<compile_context>
chip_gen: v6e
topology: v6e:2x2x1
jax: 0.10.0
libtpu: 0.0.40
codegen_flags: <defaults>
</compile_context>

<pallas_src>
import functools

import jax
import jax.numpy as jnp
from jax import lax
from jax.experimental import pallas as pl
from jax.experimental.pallas import tpu as pltpu

_VMEM_LIMIT_BYTES = 48 * 1024 * 1024   # raised scoped-VMEM cap; safe on v5e/v6e/v7x (<=64 MiB)
_UPSAMPLE_VMEM_BUDGET = 20 * 1024 * 1024  # target live bytes per upsample grid step


# ----------------------------------------------------------------------------
# Interpolation weights (align_corners=True, as in nn.UpsamplingBilinear2d)
# ----------------------------------------------------------------------------
def _linear_interp_matrix(out_size: int, in_size: int) -> jnp.ndarray:
    """Dense (out_size, in_size) 1-D linear-interp matrix, align_corners=True."""
    out_idx = jnp.arange(out_size, dtype=jnp.float32)
    denom = max(out_size - 1, 1)
    src = out_idx * (float(in_size - 1) / float(denom))
    src = jnp.clip(src, 0.0, float(in_size - 1))
    lo = jnp.floor(src).astype(jnp.int32)
    hi = jnp.minimum(lo + 1, in_size - 1)
    frac = src - lo.astype(jnp.float32)
    return (jax.nn.one_hot(lo, in_size, dtype=jnp.float32) * (1.0 - frac)[:, None]
            + jax.nn.one_hot(hi, in_size, dtype=jnp.float32) * frac[:, None])


# ----------------------------------------------------------------------------
# Kernel 1: bilinear x2 upsample, batched over TB channel-slices per grid step
# ----------------------------------------------------------------------------
def _upsample_kernel(x_ref, wh_ref, wwt_ref, o_ref):
    # x_ref:   (TB, H_in, W_in)    TB (n, c) slices per grid step
    # wh_ref:  (H_out, H_in)       row-interp weights (constant index map -> resident)
    # wwt_ref: (W_in, W_out)       column-interp weights, transposed
    # o_ref:   (TB, H_out, W_out)
    x = x_ref[...]                       # keep native dtype; MXU accumulates in f32
    wh = wh_ref[...]
    wwt = wwt_ref[...]
    tb, _, w_in = x.shape
    h_out = wh.shape[0]
    w_out = wwt.shape[1]

    # Row pass: batched small matmuls on the MXU (f32 accumulation).
    wh_b = jnp.broadcast_to(wh[None], (tb, h_out, wh.shape[1]))
    t = lax.dot_general(wh_b, x, (((2,), (1,)), ((0,), (0,))),
                        preferred_element_type=jnp.float32)       # (TB, H_out, W_in)
    t = t.astype(x.dtype)

    # Column pass: one flat matmul with M = TB*H_out for good MXU fill.
    out = jnp.dot(t.reshape(tb * h_out, w_in), wwt,
                  preferred_element_type=jnp.float32)             # (TB*H_out, W_out)
    o_ref[...] = out.reshape(tb, h_out, w_out).astype(o_ref.dtype)


def _pick_tb(b, h_in, w_in, h_out, w_out, itemsize):
    """Largest batch-of-slices tile that fits the VMEM budget (double-buffered
    in/out blocks + f32 intermediates + broadcast row weights)."""
    per_slice = ((2 * h_in * w_in + 2 * h_out * w_out + h_out * h_in) * itemsize
                 + (h_out * w_in + h_out * w_out) * 4)
    tb = max(1, _UPSAMPLE_VMEM_BUDGET // per_slice)
    tb = min(tb, b)
    if b >= 2:
        # keep >=2 grid steps so both v7x TensorCores get work (no-op on v5e/v6e)
        tb = min(tb, -(-b // 2))
    if tb >= 8:
        tb = (tb // 8) * 8               # clean sublane tiling
    return int(tb)


def _bilinear_upsample_x2(x):
    """x: (N, C, H, W) -> (N, C, 2H, 2W), bilinear, align_corners=True."""
    n, c, h_in, w_in = x.shape
    h_out, w_out = 2 * h_in, 2 * w_in
    dt = x.dtype
    isz = jnp.dtype(dt).itemsize

    wh = _linear_interp_matrix(h_out, h_in).astype(dt)           # (H_out, H_in)
    wwt = _linear_interp_matrix(w_out, w_in).T.astype(dt)        # (W_in, W_out)

    b = n * c
    x_flat = x.reshape(b, h_in, w_in)
    tb = _pick_tb(b, h_in, w_in, h_out, w_out, isz)
    grid0 = pl.cdiv(b, tb)

    out_flat = pl.pallas_call(
        _upsample_kernel,
        out_shape=jax.ShapeDtypeStruct((b, h_out, w_out), dt),
        grid_spec=pltpu.PrefetchScalarGridSpec(
            num_scalar_prefetch=0,
            grid=(grid0,),
            in_specs=[
                pl.BlockSpec((tb, h_in, w_in), lambda i: (i, 0, 0)),
                pl.BlockSpec((h_out, h_in), lambda i: (0, 0)),
                pl.BlockSpec((w_in, w_out), lambda i: (0, 0)),
            ],
            out_specs=pl.BlockSpec((tb, h_out, w_out), lambda i: (i, 0, 0)),
        ),
        compiler_params=pltpu.CompilerParams(
            dimension_semantics=("parallel",),
            vmem_limit_bytes=_VMEM_LIMIT_BYTES,
        ),
        cost_estimate=pl.CostEstimate(
            flops=2 * b * (h_out * h_in * w_in + h_out * w_in * w_out),
            transcendentals=0,
            bytes_accessed=(b * (h_in * w_in + h_out * w_out)
                            + h_out * h_in + w_in * w_out) * isz,
        ),
    )(x_flat, wh, wwt)

    return out_flat.reshape(n, c, h_out, w_out)


# ----------------------------------------------------------------------------
# Kernel 2: fused Conv2d(bias=False) + BatchNorm2d(eval) + ReLU  (NHWC)
# ----------------------------------------------------------------------------
def _conv_bn_relu_kernel(x_ref, w_ref, scale_ref, bias_ref, o_ref, *,
                         k: int, s: int, h_out: int, w_out: int):
    # x_ref:     (1, H_pad, W_pad, C_in)   one zero-padded NHWC image
    # w_ref:     (k*k, C_in, C_out)        conv weights, one (C_in, C_out) slab per tap
    # scale_ref: (1, C_out)                BN scale = gamma / sqrt(var + eps)
    # bias_ref:  (1, C_out)                BN bias  = beta - mean * scale
    # o_ref:     (1, H_out, W_out, C_out)
    c_in = x_ref.shape[-1]
    c_out = o_ref.shape[-1]
    acc = jnp.zeros((h_out * w_out, c_out), jnp.float32)
    for kh in range(k):
        for kw in range(k):
            if s == 1:
                xs = x_ref[0, pl.ds(kh, h_out), pl.ds(kw, w_out), :]
            else:
                # TODO(synk): strided taps (s>1) load the full block then slice;
                # fine for small blocks, untuned.
                xs = x_ref[0][kh:kh + s * (h_out - 1) + 1:s,
                              kw:kw + s * (w_out - 1) + 1:s, :]
            acc = acc + jnp.dot(xs.reshape(h_out * w_out, c_in),
                                w_ref[kh * k + kw],
                                preferred_element_type=jnp.float32)
    y = acc * scale_ref[...] + bias_ref[...]          # eval-mode BatchNorm (folded)
    y = jnp.maximum(y, 0.0)                           # ReLU
    o_ref[0] = y.reshape(h_out, w_out, c_out).astype(o_ref.dtype)


# ----------------------------------------------------------------------------
# Full UpSampBlock forward
# ----------------------------------------------------------------------------
@functools.partial(jax.jit, static_argnames=("k", "s", "p", "eps"))
def upsamp_block(x, conv_w, gamma, beta, running_mean, running_var,
                 *, k=3, s=1, p=1, eps=1e-5):
    """x: (N, C_in, H, W) NCHW; conv_w: (C_out, C_in, k, k); BN params: (C_out,)."""
    n, c_in, h, w = x.shape
    c_out = conv_w.shape[0]
    h2, w2 = 2 * h, 2 * w

    # 1) bilinear x2 upsample (Pallas kernel 1)
    up = _bilinear_upsample_x2(x)                                  # (N, C_in, 2H, 2W)

    # 2) layout plumbing in the wrapper: NCHW -> NHWC, spatial zero padding
    up_nhwc = jnp.transpose(up, (0, 2, 3, 1))
    up_pad = jnp.pad(up_nhwc, ((0, 0), (p, p), (p, p), (0, 0)))
    h_pad, w_pad = h2 + 2 * p, w2 + 2 * p
    h_out = (h2 + 2 * p - k) // s + 1
    w_out = (w2 + 2 * p - k) // s + 1

    # conv weight (C_out, C_in, k, k) -> per-tap (C_in, C_out) slabs; BN folded
    # to a per-channel scale/bias applied in the kernel epilogue (inference BN).
    w_r = jnp.transpose(conv_w, (2, 3, 1, 0)).reshape(k * k, c_in, c_out).astype(x.dtype)
    inv_std = 1.0 / jnp.sqrt(running_var.astype(jnp.float32) + eps)
    scale = (gamma.astype(jnp.float32) * inv_std).reshape(1, c_out)
    bias = (beta.astype(jnp.float32)
            - running_mean.astype(jnp.float32) * gamma.astype(jnp.float32) * inv_std
            ).reshape(1, c_out)

    isz = jnp.dtype(x.dtype).itemsize
    out_nhwc = pl.pallas_call(
        functools.partial(_conv_bn_relu_kernel, k=k, s=s, h_out=h_out, w_out=w_out),
        out_shape=jax.ShapeDtypeStruct((n, h_out, w_out, c_out), x.dtype),
        grid_spec=pltpu.PrefetchScalarGridSpec(
            num_scalar_prefetch=0,
            grid=(n,),
            in_specs=[
                pl.BlockSpec((1, h_pad, w_pad, c_in), lambda i: (i, 0, 0, 0)),
                pl.BlockSpec((k * k, c_in, c_out), lambda i: (0, 0, 0)),
                pl.BlockSpec((1, c_out), lambda i: (0, 0)),
                pl.BlockSpec((1, c_out), lambda i: (0, 0)),
            ],
            out_specs=pl.BlockSpec((1, h_out, w_out, c_out), lambda i: (i, 0, 0, 0)),
        ),
        compiler_params=pltpu.CompilerParams(
            dimension_semantics=("parallel",),
            vmem_limit_bytes=_VMEM_LIMIT_BYTES,
        ),
        cost_estimate=pl.CostEstimate(
            flops=2 * n * h_out * w_out * c_out * c_in * k * k,
            transcendentals=0,
            bytes_accessed=(n * h_pad * w_pad * c_in + n * h_out * w_out * c_out) * isz,
        ),
    )(up_pad, w_r, scale, bias)

    return jnp.transpose(out_nhwc, (0, 3, 1, 2))                   # back to NCHW


# ----------------------------------------------------------------------------
# Pure-JAX reference (for self-check)
# ----------------------------------------------------------------------------
def _reference(x, conv_w, gamma, beta, mean, var, *, k, s, p, eps):
    n, c, h, w = x.shape
    wh = _linear_interp_matrix(2 * h, h)
    ww = _linear_interp_matrix(2 * w, w)
    hp = lax.Precision.HIGHEST
    up = jnp.einsum('oh,nchw->ncow', wh, x, precision=hp)
    up = jnp.einsum('pw,ncow->ncop', ww, up, precision=hp)
    y = lax.conv_general_dilated(up, conv_w, window_strides=(s, s),
                                 padding=[(p, p), (p, p)],
                                 dimension_numbers=('NCHW', 'OIHW', 'NCHW'),
                                 precision=hp)
    scale = gamma / jnp.sqrt(var + eps)
    bias = beta - mean * scale
    y = y * scale[None, :, None, None] + bias[None, :, None, None]
    return jnp.maximum(y, 0.0)


if __name__ == "__main__":
    key = jax.random.PRNGKey(0)
    k1, k2, k3, k4, k5, k6 = jax.random.split(key, 6)

    n, c_in, h, w = 2, 4, 16, 16
    c_out, kk, stride, pad = 8, 3, 1, 1

    x = jax.random.normal(k1, (n, c_in, h, w), dtype=jnp.float32)
    conv_w = jax.random.normal(k2, (c_out, c_in, kk, kk), dtype=jnp.float32) * 0.1
    gamma = 1.0 + 0.1 * jax.random.normal(k3, (c_out,), dtype=jnp.float32)
    beta = 0.1 * jax.random.normal(k4, (c_out,), dtype=jnp.float32)
    running_mean = 0.1 * jax.random.normal(k5, (c_out,), dtype=jnp.float32)
    running_var = jax.nn.softplus(jax.random.normal(k6, (c_out,), dtype=jnp.float32)) + 0.5

    out = upsamp_block(x, conv_w, gamma, beta, running_mean, running_var,
                       k=kk, s=stride, p=pad)
    jax.block_until_ready(out)

    assert out.shape == (n, c_out, 2 * h, 2 * w), out.shape
    assert out.dtype == x.dtype

    ref = _reference(x, conv_w, gamma, beta, running_mean, running_var,
                     k=kk, s=stride, p=pad, eps=1e-5)
    err = float(jnp.max(jnp.abs(out - ref)))
    assert err < 5e-3, f"max abs error vs reference: {err}"

    print("KERNEL_OK")
</pallas_src>

<mosaic_0001>
module attributes {stable_mosaic.version = 11 : i64} {
  func.func @_upsample_kernel(%arg0: i32, %arg1: memref<4x16x16xf32, #tpu.memory_space<vmem>>, %arg2: memref<32x16xf32, #tpu.memory_space<vmem>>, %arg3: memref<16x32xf32, #tpu.memory_space<vmem>>, %arg4: memref<4x32x32xf32, #tpu.memory_space<vmem>>) attributes {dimension_semantics = [#tpu.dimension_semantics<parallel>], iteration_bounds = array<i64: 2>, scalar_prefetch = 0 : i64, scratch_operands = 0 : i64, tpu.core_type = #tpu.core_type<tc>, window_params = [{transform_indices = @transform_0, window_bounds = array<i64: 4, 16, 16>}, {pipeline_mode = #tpu.pipeline_mode<synchronous>, transform_indices = @transform_1, window_bounds = array<i64: 32, 16>}, {pipeline_mode = #tpu.pipeline_mode<synchronous>, transform_indices = @transform_2, window_bounds = array<i64: 16, 32>}, {transform_indices = @transform_3, window_bounds = array<i64: 4, 32, 32>}]} {
    %c0 = arith.constant 0 : index
    %c0_0 = arith.constant 0 : index
    %c0_1 = arith.constant 0 : index
    %0 = vector.load %arg1[%c0, %c0_0, %c0_1] : memref<4x16x16xf32, #tpu.memory_space<vmem>>, vector<4x16x16xf32>
    %c0_2 = arith.constant 0 : index
    %c0_3 = arith.constant 0 : index
    %1 = vector.load %arg2[%c0_2, %c0_3] : memref<32x16xf32, #tpu.memory_space<vmem>>, vector<32x16xf32>
    %c0_4 = arith.constant 0 : index
    %c0_5 = arith.constant 0 : index
    %2 = vector.load %arg3[%c0_4, %c0_5] : memref<16x32xf32, #tpu.memory_space<vmem>>, vector<16x32xf32>
    %3 = vector.shape_cast %1 : vector<32x16xf32> to vector<1x32x16xf32>
    %4 = vector.shape_cast %3 : vector<1x32x16xf32> to vector<1x32x16xf32>
    %5 = vector.broadcast %4 : vector<1x32x16xf32> to vector<4x32x16xf32>
    %cst = arith.constant dense<0.000000e+00> : vector<4x32x16xf32>
    %6 = tpu.matmul %5, %0, %cst {dimension_numbers = #tpu.dot_dimension_numbers<[2], [1], [1], [2], [0, 0, 0, 1, 1, 2], [0], [0]>} : vector<4x32x16xf32>, vector<4x16x16xf32>, vector<4x32x16xf32> -> vector<4x32x16xf32>
    %7 = vector.shape_cast %6 : vector<4x32x16xf32> to vector<128x16xf32>
    %cst_6 = arith.constant dense<0.000000e+00> : vector<128x32xf32>
    %8 = tpu.matmul %7, %2, %cst_6 {dimension_numbers = #tpu.dot_dimension_numbers<[1], [0], [0], [1], [0, 0, 1, 1], [], []>} : vector<128x16xf32>, vector<16x32xf32>, vector<128x32xf32> -> vector<128x32xf32>
    %9 = vector.shape_cast %8 : vector<128x32xf32> to vector<4x32x32xf32>
    %c0_7 = arith.constant 0 : index
    %c0_8 = arith.constant 0 : index
    %c0_9 = arith.constant 0 : index
    %10 = vector.load %arg4[%c0_7, %c0_8, %c0_9] : memref<4x32x32xf32, #tpu.memory_space<vmem>>, vector<4x32x32xf32>
    tpu.vector_store %arg4[%c0_7, %c0_8, %c0_9], %9 {strides = array<i32>} : memref<4x32x32xf32, #tpu.memory_space<vmem>>, vector<4x32x32xf32>,
    return
  }
  func.func @transform_0(%arg0: i32) -> (i32, i32, i32) {
    %c0_i32 = arith.constant 0 : i32
    %c0_i32_0 = arith.constant 0 : i32
    %c0_i32_1 = arith.constant 0 : i32
    return %arg0, %c0_i32, %c0_i32_0 : i32, i32, i32
  }
  func.func @transform_1(%arg0: i32) -> (i32, i32) {
    %c0_i32 = arith.constant 0 : i32
    %c0_i32_0 = arith.constant 0 : i32
    %c0_i32_1 = arith.constant 0 : i32
    return %c0_i32, %c0_i32_0 : i32, i32
  }
  func.func @transform_2(%arg0: i32) -> (i32, i32) {
    %c0_i32 = arith.constant 0 : i32
    %c0_i32_0 = arith.constant 0 : i32
    %c0_i32_1 = arith.constant 0 : i32
    return %c0_i32, %c0_i32_0 : i32, i32
  }
  func.func @transform_3(%arg0: i32) -> (i32, i32, i32) {
    %c0_i32 = arith.constant 0 : i32
    %c0_i32_0 = arith.constant 0 : i32
    %c0_i32_1 = arith.constant 0 : i32
    return %arg0, %c0_i32, %c0_i32_0 : i32, i32, i32
  }
}

module attributes {stable_mosaic.version = 11 : i64} {
  func.func @_conv_bn_relu_kernel(%arg0: i32, %arg1: memref<1x34x34x4xf32, #tpu.memory_space<vmem>>, %arg2: memref<9x4x8xf32, #tpu.memory_space<vmem>>, %arg3: memref<1x8xf32, #tpu.memory_space<vmem>>, %arg4: memref<1x8xf32, #tpu.memory_space<vmem>>, %arg5: memref<1x32x32x8xf32, #tpu.memory_space<vmem>>) attributes {dimension_semantics = [#tpu.dimension_semantics<parallel>], iteration_bounds = array<i64: 2>, scalar_prefetch = 0 : i64, scratch_operands = 0 : i64, tpu.core_type = #tpu.core_type<tc>, window_params = [{transform_indices = @transform_0, window_bounds = array<i64: 1, 34, 34, 4>}, {pipeline_mode = #tpu.pipeline_mode<synchronous>, transform_indices = @transform_1, window_bounds = array<i64: 9, 4, 8>}, {pipeline_mode = #tpu.pipeline_mode<synchronous>, transform_indices = @transform_2, window_bounds = array<i64: 1, 8>}, {pipeline_mode = #tpu.pipeline_mode<synchronous>, transform_indices = @transform_3, window_bounds = array<i64: 1, 8>}, {transform_indices = @transform_4, window_bounds = array<i64: 1, 32, 32, 8>}]} {
    %cst = arith.constant 0.000000e+00 : f32
    %0 = vector.broadcast %cst : f32 to vector<1024x8xf32>
    %c0 = arith.constant 0 : index
    %c0_0 = arith.constant 0 : index
    %c0_1 = arith.constant 0 : index
    %c0_2 = arith.constant 0 : index
    %1 = vector.load %arg1[%c0, %c0_0, %c0_1, %c0_2] : memref<1x34x34x4xf32, #tpu.memory_space<vmem>>, vector<1x32x32x4xf32>
    %2 = vector.shape_cast %1 : vector<1x32x32x4xf32> to vector<32x32x4xf32>
    %3 = vector.shape_cast %2 : vector<32x32x4xf32> to vector<1024x4xf32>
    %c0_3 = arith.constant 0 : index
    %c0_4 = arith.constant 0 : index
    %c0_5 = arith.constant 0 : index
    %4 = vector.load %arg2[%c0_3, %c0_4, %c0_5] : memref<9x4x8xf32, #tpu.memory_space<vmem>>, vector<1x4x8xf32>
    %5 = vector.shape_cast %4 : vector<1x4x8xf32> to vector<4x8xf32>
    %cst_6 = arith.constant dense<0.000000e+00> : vector<1024x8xf32>
    %6 = tpu.matmul %3, %5, %cst_6 {dimension_numbers = #tpu.dot_dimension_numbers<[1], [0], [0], [1], [0, 0, 1, 1], [], []>} : vector<1024x4xf32>, vector<4x8xf32>, vector<1024x8xf32> -> vector<1024x8xf32>
    %7 = arith.addf %0, %6 : vector<1024x8xf32>
    %c0_7 = arith.constant 0 : index
    %c0_8 = arith.constant 0 : index
    %c1 = arith.constant 1 : index
    %c0_9 = arith.constant 0 : index
    %8 = vector.load %arg1[%c0_7, %c0_8, %c1, %c0_9] : memref<1x34x34x4xf32, #tpu.memory_space<vmem>>, vector<1x32x32x4xf32>
    %9 = vector.shape_cast %8 : vector<1x32x32x4xf32> to vector<32x32x4xf32>
    %10 = vector.shape_cast %9 : vector<32x32x4xf32> to vector<1024x4xf32>
    %c1_10 = arith.constant 1 : index
    %c0_11 = arith.constant 0 : index
    %c0_12 = arith.constant 0 : index
    %11 = vector.load %arg2[%c1_10, %c0_11, %c0_12] : memref<9x4x8xf32, #tpu.memory_space<vmem>>, vector<1x4x8xf32>
    %12 = vector.shape_cast %11 : vector<1x4x8xf32> to vector<4x8xf32>
    %cst_13 = arith.constant dense<0.000000e+00> : vector<1024x8xf32>
    %13 = tpu.matmul %10, %12, %cst_13 {dimension_numbers = #tpu.dot_dimension_numbers<[1], [0], [0], [1], [0, 0, 1, 1], [], []>} : vector<1024x4xf32>, vector<4x8xf32>, vector<1024x8xf32> -> vector<1024x8xf32>
    %14 = arith.addf %7, %13 : vector<1024x8xf32>
    %c0_14 = arith.constant 0 : index
    %c0_15 = arith.constant 0 : index
    %c2 = arith.constant 2 : index
    %c0_16 = arith.constant 0 : index
    %15 = vector.load %arg1[%c0_14, %c0_15, %c2, %c0_16] : memref<1x34x34x4xf32, #tpu.memory_space<vmem>>, vector<1x32x32x4xf32>
    %16 = vector.shape_cast %15 : vector<1x32x32x4xf32> to vector<32x32x4xf32>
    %17 = vector.shape_cast %16 : vector<32x32x4xf32> to vector<1024x4xf32>
    %c2_17 = arith.constant 2 : index
    %c0_18 = arith.constant 0 : index
    %c0_19 = arith.constant 0 : index
    %18 = vector.load %arg2[%c2_17, %c0_18, %c0_19] : memref<9x4x8xf32, #tpu.memory_space<vmem>>, vector<1x4x8xf32>
    %19 = vector.shape_cast %18 : vector<1x4x8xf32> to vector<4x8xf32>
    %cst_20 = arith.constant dense<0.000000e+00> : vector<1024x8xf32>
    %20 = tpu.matmul %17, %19, %cst_20 {dimension_numbers = #tpu.dot_dimension_numbers<[1], [0], [0], [1], [0, 0, 1, 1], [], []>} : vector<1024x4xf32>, vector<4x8xf32>, vector<1024x8xf32> -> vector<1024x8xf32>
    %21 = arith.addf %14, %20 : vector<1024x8xf32>
    %c0_21 = arith.constant 0 : index
    %c1_22 = arith.constant 1 : index
    %c0_23 = arith.constant 0 : index
    %c0_24 = arith.constant 0 : index
    %22 = vector.load %arg1[%c0_21, %c1_22, %c0_23, %c0_24] : memref<1x34x34x4xf32, #tpu.memory_space<vmem>>, vector<1x32x32x4xf32>
    %23 = vector.shape_cast %22 : vector<1x32x32x4xf32> to vector<32x32x4xf32>
    %24 = vector.shape_cast %23 : vector<32x32x4xf32> to vector<1024x4xf32>
    %c3 = arith.constant 3 : index
    %c0_25 = arith.constant 0 : index
    %c0_26 = arith.constant 0 : index
    %25 = vector.load %arg2[%c3, %c0_25, %c0_26] : memref<9x4x8xf32, #tpu.memory_space<vmem>>, vector<1x4x8xf32>
    %26 = vector.shape_cast %25 : vector<1x4x8xf32> to vector<4x8xf32>
    %cst_27 = arith.constant dense<0.000000e+00> : vector<1024x8xf32>
    %27 = tpu.matmul %24, %26, %cst_27 {dimension_numbers = #tpu.dot_dimension_numbers<[1], [0], [0], [1], [0, 0, 1, 1], [], []>} : vector<1024x4xf32>, vector<4x8xf32>, vector<1024x8xf32> -> vector<1024x8xf32>
    %28 = arith.addf %21, %27 : vector<1024x8xf32>
    %c0_28 = arith.constant 0 : index
    %c1_29 = arith.constant 1 : index
    %c1_30 = arith.constant 1 : index
    %c0_31 = arith.constant 0 : index
    %29 = vector.load %arg1[%c0_28, %c1_29, %c1_30, %c0_31] : memref<1x34x34x4xf32, #tpu.memory_space<vmem>>, vector<1x32x32x4xf32>
    %30 = vector.shape_cast %29 : vector<1x32x32x4xf32> to vector<32x32x4xf32>
    %31 = vector.shape_cast %30 : vector<32x32x4xf32> to vector<1024x4xf32>
    %c4 = arith.constant 4 : index
    %c0_32 = arith.constant 0 : index
    %c0_33 = arith.constant 0 : index
    %32 = vector.load %arg2[%c4, %c0_32, %c0_33] : memref<9x4x8xf32, #tpu.memory_space<vmem>>, vector<1x4x8xf32>
    %33 = vector.shape_cast %32 : vector<1x4x8xf32> to vector<4x8xf32>
    %cst_34 = arith.constant dense<0.000000e+00> : vector<1024x8xf32>
    %34 = tpu.matmul %31, %33, %cst_34 {dimension_numbers = #tpu.dot_dimension_numbers<[1], [0], [0], [1], [0, 0, 1, 1], [], []>} : vector<1024x4xf32>, vector<4x8xf32>, vector<1024x8xf32> -> vector<1024x8xf32>
    %35 = arith.addf %28, %34 : vector<1024x8xf32>
    %c0_35 = arith.constant 0 : index
    %c1_36 = arith.constant 1 : index
    %c2_37 = arith.constant 2 : index
    %c0_38 = arith.constant 0 : index
    %36 = vector.load %arg1[%c0_35, %c1_36, %c2_37, %c0_38] : memref<1x34x34x4xf32, #tpu.memory_space<vmem>>, vector<1x32x32x4xf32>
    %37 = vector.shape_cast %36 : vector<1x32x32x4xf32> to vector<32x32x4xf32>
    %38 = vector.shape_cast %37 : vector<32x32x4xf32> to vector<1024x4xf32>
    %c5 = arith.constant 5 : index
    %c0_39 = arith.constant 0 : index
    %c0_40 = arith.constant 0 : index
    %39 = vector.load %arg2[%c5, %c0_39, %c0_40] : memref<9x4x8xf32, #tpu.memory_space<vmem>>, vector<1x4x8xf32>
    %40 = vector.shape_cast %39 : vector<1x4x8xf32> to vector<4x8xf32>
    %cst_41 = arith.constant dense<0.000000e+00> : vector<1024x8xf32>
    %41 = tpu.matmul %38, %40, %cst_41 {dimension_numbers = #tpu.dot_dimension_numbers<[1], [0], [0], [1], [0, 0, 1, 1], [], []>} : vector<1024x4xf32>, vector<4x8xf32>, vector<1024x8xf32> -> vector<1024x8xf32>
    %42 = arith.addf %35, %41 : vector<1024x8xf32>
    %c0_42 = arith.constant 0 : index
    %c2_43 = arith.constant 2 : index
    %c0_44 = arith.constant 0 : index
    %c0_45 = arith.constant 0 : index
    %43 = vector.load %arg1[%c0_42, %c2_43, %c0_44, %c0_45] : memref<1x34x34x4xf32, #tpu.memory_space<vmem>>, vector<1x32x32x4xf32>
    %44 = vector.shape_cast %43 : vector<1x32x32x4xf32> to vector<32x32x4xf32>
    %45 = vector.shape_cast %44 : vector<32x32x4xf32> to vector<1024x4xf32>
    %c6 = arith.constant 6 : index
    %c0_46 = arith.constant 0 : index
    %c0_47 = arith.constant 0 : index
    %46 = vector.load %arg2[%c6, %c0_46, %c0_47] : memref<9x4x8xf32, #tpu.memory_space<vmem>>, vector<1x4x8xf32>
    %47 = vector.shape_cast %46 : vector<1x4x8xf32> to vector<4x8xf32>
    %cst_48 = arith.constant dense<0.000000e+00> : vector<1024x8xf32>
    %48 = tpu.matmul %45, %47, %cst_48 {dimension_numbers = #tpu.dot_dimension_numbers<[1], [0], [0], [1], [0, 0, 1, 1], [], []>} : vector<1024x4xf32>, vector<4x8xf32>, vector<1024x8xf32> -> vector<1024x8xf32>
    %49 = arith.addf %42, %48 : vector<1024x8xf32>
    %c0_49 = arith.constant 0 : index
    %c2_50 = arith.constant 2 : index
    %c1_51 = arith.constant 1 : index
    %c0_52 = arith.constant 0 : index
    %50 = vector.load %arg1[%c0_49, %c2_50, %c1_51, %c0_52] : memref<1x34x34x4xf32, #tpu.memory_space<vmem>>, vector<1x32x32x4xf32>
    %51 = vector.shape_cast %50 : vector<1x32x32x4xf32> to vector<32x32x4xf32>
    %52 = vector.shape_cast %51 : vector<32x32x4xf32> to vector<1024x4xf32>
    %c7 = arith.constant 7 : index
    %c0_53 = arith.constant 0 : index
    %c0_54 = arith.constant 0 : index
    %53 = vector.load %arg2[%c7, %c0_53, %c0_54] : memref<9x4x8xf32, #tpu.memory_space<vmem>>, vector<1x4x8xf32>
    %54 = vector.shape_cast %53 : vector<1x4x8xf32> to vector<4x8xf32>
    %cst_55 = arith.constant dense<0.000000e+00> : vector<1024x8xf32>
    %55 = tpu.matmul %52, %54, %cst_55 {dimension_numbers = #tpu.dot_dimension_numbers<[1], [0], [0], [1], [0, 0, 1, 1], [], []>} : vector<1024x4xf32>, vector<4x8xf32>, vector<1024x8xf32> -> vector<1024x8xf32>
    %56 = arith.addf %49, %55 : vector<1024x8xf32>
    %c0_56 = arith.constant 0 : index
    %c2_57 = arith.constant 2 : index
    %c2_58 = arith.constant 2 : index
    %c0_59 = arith.constant 0 : index
    %57 = vector.load %arg1[%c0_56, %c2_57, %c2_58, %c0_59] : memref<1x34x34x4xf32, #tpu.memory_space<vmem>>, vector<1x32x32x4xf32>
    %58 = vector.shape_cast %57 : vector<1x32x32x4xf32> to vector<32x32x4xf32>
    %59 = vector.shape_cast %58 : vector<32x32x4xf32> to vector<1024x4xf32>
    %c8 = arith.constant 8 : index
    %c0_60 = arith.constant 0 : index
    %c0_61 = arith.constant 0 : index
    %60 = vector.load %arg2[%c8, %c0_60, %c0_61] : memref<9x4x8xf32, #tpu.memory_space<vmem>>, vector<1x4x8xf32>
    %61 = vector.shape_cast %60 : vector<1x4x8xf32> to vector<4x8xf32>
    %cst_62 = arith.constant dense<0.000000e+00> : vector<1024x8xf32>
    %62 = tpu.matmul %59, %61, %cst_62 {dimension_numbers = #tpu.dot_dimension_numbers<[1], [0], [0], [1], [0, 0, 1, 1], [], []>} : vector<1024x4xf32>, vector<4x8xf32>, vector<1024x8xf32> -> vector<1024x8xf32>
    %63 = arith.addf %56, %62 : vector<1024x8xf32>
    %c0_63 = arith.constant 0 : index
    %c0_64 = arith.constant 0 : index
    %64 = vector.load %arg3[%c0_63, %c0_64] : memref<1x8xf32, #tpu.memory_space<vmem>>, vector<1x8xf32>
    %65 = vector.broadcast %64 : vector<1x8xf32> to vector<1024x8xf32>
    %66 = arith.mulf %63, %65 : vector<1024x8xf32>
    %c0_65 = arith.constant 0 : index
    %c0_66 = arith.constant 0 : index
    %67 = vector.load %arg4[%c0_65, %c0_66] : memref<1x8xf32, #tpu.memory_space<vmem>>, vector<1x8xf32>
    %68 = vector.broadcast %67 : vector<1x8xf32> to vector<1024x8xf32>
    %69 = arith.addf %66, %68 : vector<1024x8xf32>
    %cst_67 = arith.constant 0.000000e+00 : f32
    %70 = vector.broadcast %cst_67 : f32 to vector<1024x8xf32>
    %71 = arith.maximumf %69, %70 : vector<1024x8xf32>
    %72 = vector.shape_cast %71 : vector<1024x8xf32> to vector<32x32x8xf32>
    %c0_68 = arith.constant 0 : index
    %c0_69 = arith.constant 0 : index
    %c0_70 = arith.constant 0 : index
    %c0_71 = arith.constant 0 : index
    %73 = vector.load %arg5[%c0_68, %c0_69, %c0_70, %c0_71] : memref<1x32x32x8xf32, #tpu.memory_space<vmem>>, vector<1x32x32x8xf32>
    %74 = vector.shape_cast %73 : vector<1x32x32x8xf32> to vector<32x32x8xf32>
    %75 = vector.shape_cast %72 : vector<32x32x8xf32> to vector<1x32x32x8xf32>
    tpu.vector_store %arg5[%c0_68, %c0_69, %c0_70, %c0_71], %75 {strides = array<i32>} : memref<1x32x32x8xf32, #tpu.memory_space<vmem>>, vector<1x32x32x8xf32>,
    return
  }
  func.func @transform_0(%arg0: i32) -> (i32, i32, i32, i32) {
    %c0_i32 = arith.constant 0 : i32
    %c0_i32_0 = arith.constant 0 : i32
    %c0_i32_1 = arith.constant 0 : i32
    %c0_i32_2 = arith.constant 0 : i32
    return %arg0, %c0_i32, %c0_i32_0, %c0_i32_1 : i32, i32, i32, i32
  }
  func.func @transform_1(%arg0: i32) -> (i32, i32, i32) {
    %c0_i32 = arith.constant 0 : i32
    %c0_i32_0 = arith.constant 0 : i32
    %c0_i32_1 = arith.constant 0 : i32
    %c0_i32_2 = arith.constant 0 : i32
    return %c0_i32, %c0_i32_0, %c0_i32_1 : i32, i32, i32
  }
  func.func @transform_2(%arg0: i32) -> (i32, i32) {
    %c0_i32 = arith.constant 0 : i32
    %c0_i32_0 = arith.constant 0 : i32
    %c0_i32_1 = arith.constant 0 : i32
    return %c0_i32, %c0_i32_0 : i32, i32
  }
  func.func @transform_3(%arg0: i32) -> (i32, i32) {
    %c0_i32 = arith.constant 0 : i32
    %c0_i32_0 = arith.constant 0 : i32
    %c0_i32_1 = arith.constant 0 : i32
    return %c0_i32, %c0_i32_0 : i32, i32
  }
  func.func @transform_4(%arg0: i32) -> (i32, i32, i32, i32) {
    %c0_i32 = arith.constant 0 : i32
    %c0_i32_0 = arith.constant 0 : i32
    %c0_i32_1 = arith.constant 0 : i32
    %c0_i32_2 = arith.constant 0 : i32
    return %arg0, %c0_i32, %c0_i32_0, %c0_i32_1 : i32, i32, i32, i32
  }
}

</mosaic_0001>

<llo_original>
// kernel: upsamp_block.2
$region0: #{upsamp_block.2}
  #allocation0 [shape = 'u32[]', space=smem, size = 0x4, offset = 0x4, fixed_abs, tag = 'smem constant byte address 0x4 - core index']
  #allocation1 [shape = 'u32[144,128]{1,0:T(1,128)}', space=vmem, size = 0x12000, scoped, tag = 'internal scratch']
  %s0 = inlined_call_operand.hbm [shape: f32[8,16,16], index: 0, kind: input, shape index: {}]
  %s1 = inlined_call_operand.vmem [shape: f32[32,16], index: 1, kind: input, shape index: {}]
  %s2 = inlined_call_operand.vmem [shape: f32[16,32], index: 2, kind: input, shape index: {}]
  %s3 = inlined_call_operand.vmem [shape: f32[8,32,32], index: 3, kind: output, shape index: {}]
  %s4 = sld [smem:[#allocation0]]
  $region49: #{upsamp_block.2} parent=0
    _
  %s6 = ssub.s32 1, %s4
  %s7 = scalar_select 0, %s6, %s4
  $region1: #{upsamp_block.2} parent=0
    #allocation2 [shape = 'u8[65536]{0}', space=vmem, size = 0x10000, scoped, tag = 'input window, operand 0']
    #allocation3 [shape = 's32[2]{0}', space=sflag, size = 0x8, scoped, tag = 'scoped memory for upsamp_block.2']
    %8 = vsyncpa [#allocation3], 0
    %s9 = scalar_lea.sflag [#allocation3], 1
    %10 = vsyncpa %s9, 0
    loop: start=0, step=1, limit=4
    $region2: #{upsamp_block.2} parent=1 // loop_pre_header
      _
    $region3: #{upsamp_block.2} parent=1 // loop_header
      %s12 = sphi 0, %s16
      %p13 = scmp.ge.s32.totalorder %s12, 4
      %s22 = sphi 0, %s24
      %s25 = sphi 0, %s22
      %s26 = sphi 0, %s25
      %s42 = sphi 0, %s26
      %s46 = sphi 0, %s46
      %s48 = sphi 0, %s46
      %s49 = sphi 0, %s48
      %s63 = sphi 0, %s49
      %s67 = sphi 0, %s67
      %s69 = sphi 0, %s67
      %s70 = sphi 0, %s69
      %s84 = sphi 0, %s70
      %s90 = sphi 0, %s92
      %s93 = sphi 0, %s90
      %s94 = sphi 0, %s93
      %s110 = sphi 0, %s94
    $region4: #{upsamp_block.2} parent=1 // loop_header_branch
      %15 = sbr.rel (%p13) target = $region8
    $region5: #{upsamp_block.2} parent=1 // loop_body
      %s17 = ssub.s32 %s12, 1
      %s18 = ssub.s32 %s12, 2
      %s19 = sadd.s32 %s12, 1
      %s20 = ssub.s32 %s12, %s19
      %p21 = scmp.eq.s32.totalorder %s20, 0
      %s23 = sadd.s32 %s22, 1
      %s24 = scalar_select %p21, %s22, %s23
      %p27 = pneg %p21
      %p28 = scmp.eq.s32.totalorder %s12, 1
      %p29 = por %p27, %p28
      %p30 = scmp.ne.s32.totalorder %s22, %s25
      %p31 = scmp.eq.s32.totalorder %s12, 0
      %p32 = por %p30, %p31
      %p33 = scmp.ne.s32.totalorder %s22, %s25
      %p34 = scmp.eq.s32.totalorder %s17, 1
      %p35 = por %p33, %p34
      %p36 = scmp.ne.s32.totalorder %s25, %s26
      %p37 = scmp.eq.s32.totalorder %s17, 0
      %p38 = por %p36, %p37
      %p39 = scmp.ne.s32.totalorder %s25, %s26
      %p40 = scmp.eq.s32.totalorder %s18, 1
      %p41 = por %p39, %p40
      %p43 = scmp.ne.s32.totalorder %s26, %s42
      %p44 = scmp.eq.s32.totalorder %s18, 0
      %p45 = por %p43, %p44
      %s47 = sadd.s32 %s46, 1
      %p50 = scmp.eq.s32.totalorder %s12, 1
      %p51 = scmp.ne.s32.totalorder %s46, %s48
      %p52 = scmp.eq.s32.totalorder %s12, 0
      %p53 = por %p51, %p52
      %p54 = scmp.ne.s32.totalorder %s46, %s48
      %p55 = scmp.eq.s32.totalorder %s17, 1
      %p56 = por %p54, %p55
      %p57 = scmp.ne.s32.totalorder %s48, %s49
      %p58 = scmp.eq.s32.totalorder %s17, 0
      %p59 = por %p57, %p58
      %p60 = scmp.ne.s32.totalorder %s48, %s49
      %p61 = scmp.eq.s32.totalorder %s18, 1
      %p62 = por %p60, %p61
      %p64 = scmp.ne.s32.totalorder %s49, %s63
      %p65 = scmp.eq.s32.totalorder %s18, 0
      %p66 = por %p64, %p65
      %s68 = sadd.s32 %s67, 1
      %p71 = scmp.eq.s32.totalorder %s12, 1
      %p72 = scmp.ne.s32.totalorder %s67, %s69
      %p73 = scmp.eq.s32.totalorder %s12, 0
      %p74 = por %p72, %p73
      %p75 = scmp.ne.s32.totalorder %s67, %s69
      %p76 = scmp.eq.s32.totalorder %s17, 1
      %p77 = por %p75, %p76
      %p78 = scmp.ne.s32.totalorder %s69, %s70
      %p79 = scmp.eq.s32.totalorder %s17, 0
      %p80 = por %p78, %p79
      %p81 = scmp.ne.s32.totalorder %s69, %s70
      %p82 = scmp.eq.s32.totalorder %s18, 1
      %p83 = por %p81, %p82
      %p85 = scmp.ne.s32.totalorder %s70, %s84
      %p86 = scmp.eq.s32.totalorder %s18, 0
      %p87 = por %p85, %p86
      %s88 = ssub.s32 %s12, %s19
      %p89 = scmp.eq.s32.totalorder %s88, 0
      %s91 = sadd.s32 %s90, 1
      %s92 = scalar_select %p89, %s90, %s91
      %p95 = pneg %p89
      %p96 = scmp.eq.s32.totalorder %s12, 1
      %p97 = por %p95, %p96
      %p98 = scmp.ne.s32.totalorder %s90, %s93
      %p99 = scmp.eq.s32.totalorder %s12, 0
      %p100 = por %p98, %p99
      %p101 = scmp.ne.s32.totalorder %s90, %s93
      %p102 = scmp.eq.s32.totalorder %s17, 1
      %p103 = por %p101, %p102
      %p104 = scmp.ne.s32.totalorder %s93, %s94
      %p105 = scmp.eq.s32.totalorder %s17, 0
      %p106 = por %p104, %p105
      %p107 = scmp.ne.s32.totalorder %s93, %s94
      %p108 = scmp.eq.s32.totalorder %s18, 1
      %p109 = por %p107, %p108
      %p111 = scmp.ne.s32.totalorder %s94, %s110
      %p112 = scmp.eq.s32.totalorder %s18, 0
      %p113 = por %p111, %p112
      %p114 = scmp.le.s32.totalorder 1, %s12
      %p115 = scmp.lt.s32.totalorder %s12, 3
      %p116 = pnand %p114, %p115
      %p117 = pneg %p116
      // Predicated region
      $region9: #{upsamp_block.2} parent=5 // pred_check
        _
      $region10: #{upsamp_block.2} parent=5 // pred_check_branch
        %119 = sbr.rel (%p116) target = $region12
      $region11: #{upsamp_block.2} parent=5 // pred_region
        %s120 = ssub.s32 %s12, 1
        // Predicated region
        $region13: #{upsamp_block.2} parent=11 // pred_check
          %p121 = pneg %p59
        $region14: #{upsamp_block.2} parent=11 // pred_check_branch
          %123 = sbr.rel (%p121) target = $region16
        $region15: #{upsamp_block.2} parent=11 // pred_region
          _
        $region16: #{upsamp_block.2} parent=11 // pred_fallthru
          _
        // Predicated region
        $region17: #{upsamp_block.2} parent=11 // pred_check
          %p124 = pneg %p80
        $region18: #{upsamp_block.2} parent=11 // pred_check_branch
          %126 = sbr.rel (%p124) target = $region20
        $region19: #{upsamp_block.2} parent=11 // pred_region
          _
        $region20: #{upsamp_block.2} parent=11 // pred_fallthru
          _
      $region12: #{upsamp_block.2} parent=5 // pred_fallthru
        _
      %p127 = scmp.lt.s32.totalorder %s12, 2
      // Predicated region
      $region21: #{upsamp_block.2} parent=5 // pred_check
        %p128 = pneg %p127
      $region22: #{upsamp_block.2} parent=5 // pred_check_branch
        %130 = sbr.rel (%p128) target = $region24
      $region23: #{upsamp_block.2} parent=5 // pred_region
        // Predicated region
        $region25: #{upsamp_block.2} parent=23 // pred_check
          %p131 = pneg %p32
        $region26: #{upsamp_block.2} parent=23 // pred_check_branch
          %133 = sbr.rel (%p131) target = $region28
        $region27: #{upsamp_block.2} parent=23 // pred_region
          %s134 = sand.u32 %s22, 1
          %s135 = scalar_lea.sflag [#allocation3], %s134
          %s136 = sand.u32 %s22, 1
          %s137 = smul.addr %s136, 64
          %s138 = scalar_lea.vmem [#allocation2], %s137
          %s139 = smul.u32 4, %s12
          %s141 = ssub.s32 1024, 1024
          %142 = vsyncadd %s135, %s141
          %s143 = smul.addr %s139, 2
          %s144 = smul.addr %s143, 128
          %s145 = scalar_lea.hbm %s0, %s144
          %s146 = sshll.u32 %s138, 4
          %s147 = int_to_ptr.vmem [resolvable:$true] %s146
          %152 = dma.hbm_to_vmem [thread:$0]  %s145, 1024, %s147, %s135, 128, 128, 8
        $region28: #{upsamp_block.2} parent=23 // pred_fallthru
          _
      $region24: #{upsamp_block.2} parent=5 // pred_fallthru
        _
      %p153 = scmp.le.s32.totalorder 1, %s12
      %p154 = scmp.lt.s32.totalorder %s12, 3
      %p155 = pnand %p153, %p154
      %p156 = pneg %p155
      // Predicated region
      $region29: #{upsamp_block.2} parent=5 // pred_check
        _
      $region30: #{upsamp_block.2} parent=5 // pred_check_branch
        %158 = sbr.rel (%p155) target = $region32
      $region31: #{upsamp_block.2} parent=5 // pred_region
        %s159 = ssub.s32 %s12, 1
        %s160 = sand.u32 %s25, 1
        %s161 = scalar_lea.sflag [#allocation3], %s160
        %s162 = sand.u32 %s25, 1
        %s163 = smul.addr %s162, 64
        %s164 = scalar_lea.vmem [#allocation2], %s163
        // Predicated region
        $region33: #{upsamp_block.2} parent=31 // pred_check
          %p165 = pneg %p38
        $region34: #{upsamp_block.2} parent=31 // pred_check_branch
          %167 = sbr.rel (%p165) target = $region36
        $region35: #{upsamp_block.2} parent=31 // pred_region
          %168 = dma.done %s161, 1024
        $region36: #{upsamp_block.2} parent=31 // pred_fallthru
          _
        %s169 = sand.u32 %s25, 1
        %s170 = scalar_lea.sflag [#allocation3], %s169
        %s171 = sand.u32 %s25, 1
        %s172 = smul.addr %s171, 64
        %s173 = scalar_lea.vmem [#allocation2], %s172
        %p174 = pneg %p38
        %p175 = pneg %p35
        %p176 = pneg %p59
        %p177 = pneg %p56
        %p178 = pneg %p80
        %p179 = pneg %p77
        %p180 = pneg %p106
        %p181 = pneg %p103
        %s182 = smul.u32 4, %s17
        %p183 = scmp.lt.s32.totalorder %s182, 7
        %s184 = scalar_select %p183, %s182, 7
        %s185 = smul.addr %s184, 4
        %s186 = smul.addr %s185, 8
        %s187 = scalar_lea.vmem %s3, %s186
        %s188 = smul.u32 4, %s17
        %s189 = smul.u32 4, %s17
        %p190 = scmp.lt.s32.totalorder %s189, 7
        %s191 = scalar_select %p190, %s189, 7
        %s192 = smul.addr %s191, 4
        %s193 = smul.addr %s192, 8
        %s194 = scalar_lea.vmem %s3, %s193
        %s195 = smul.u32 4, %s17
        %v196 = vld [vmem:[%s164] sm:$0xff]
        %v197 = vld [vmem:[%s164 + $0x8] sm:$0xff]
        %v198 = vld [vmem:[%s164 + $0x10] sm:$0xff]
        %v199 = vld [vmem:[%s164 + $0x18] sm:$0xff]
        %v200 = vld [vmem:[%s164 + $0x20] sm:$0xff]
        %v201 = vld [vmem:[%s164 + $0x28] sm:$0xff]
        %v202 = vld [vmem:[%s164 + $0x30] sm:$0xff]
        %v203 = vld [vmem:[%s164 + $0x38] sm:$0xff]
        %v204 = vld [vmem:[%s1] sm:$0xff]
        %v205 = vld [vmem:[%s1 + $0x8] sm:$0xff]
        %v206 = vld [vmem:[%s1 + $0x10] sm:$0xff]
        %v207 = vld [vmem:[%s1 + $0x18] sm:$0xff]
        %v208 = vld [vmem:[%s2] sm:$0xff]
        %v209 = vld [vmem:[%s2 + $0x8] sm:$0xff]
        %vm210 = vcmask 130048
        %v212 = vsel %vm210, %v204, 0
        %v215 = vsel %vm210, %v205, 0
        %v218 = vsel %vm210, %v206, 0
        %v221 = vsel %vm210, %v207, 0
        %223 = vmatprep.subr.mxu0 0.0
        %224 = vmatpush1.msra.mxu0 0.0
        %225 = vmatprep.subr.mxu0 0.0
        %226 = vmatpush1.msra.mxu0 0.0
        %227 = vmatprep.subr.mxu0 0.0
        %228 = vmatpush1.msra.mxu0 0.0
        %229 = vmatprep.subr.mxu0 0.0
        %230 = vmatpush1.msra.mxu0 0.0
        %231 = vmatprep.subr.mxu0 0.0
        %232 = vmatpush1.msra.mxu0 0.0
        %233 = vmatprep.subr.mxu0 0.0
        %234 = vmatpush1.msra.mxu0 0.0
        %235 = vmatprep.subr.mxu0 0.0
        %236 = vmatpush1.msra.mxu0 0.0
        %237 = vmatprep.subr.mxu0 0.0
        %238 = vmatpush1.msra.mxu0 0.0
        %239 = vmatprep.subr.mxu0 0.0
        %240 = vmatpush1.msra.mxu0 0.0
        %241 = vmatprep.subr.mxu0 0.0
        %242 = vmatpush1.msra.mxu0 0.0
        %243 = vmatprep.subr.mxu0 0.0
        %244 = vmatpush1.msra.mxu0 0.0
        %245 = vmatprep.subr.mxu0 0.0
        %246 = vmatpush1.msra.mxu0 0.0
        %247 = vmatprep.subr.mxu0 0.0
        %248 = vmatpush1.msra.mxu0 0.0
        %249 = vmatprep.subr.mxu0 0.0
        %250 = vmatpush1.msra.mxu0 0.0
        %251 = vmatprep.subr.mxu0 0.0
        %252 = vmatpush1.msra.mxu0 %v197
        %253 = vmatprep.subr.mxu0 0.0
        %254 = vmatpush1.msra.mxu0 %v196
        %255 = vmatprep.subr.mxu0 0.0
        %256 = vmatpush2.msra.mxu0 0.0
        %257 = vmatprep.subr.mxu0 0.0
        %258 = vmatpush2.msra.mxu0 0.0
        %259 = vmatprep.subr.mxu0 0.0
        %260 = vmatpush2.msra.mxu0 0.0
        %261 = vmatprep.subr.mxu0 0.0
        %262 = vmatpush2.msra.mxu0 0.0
        %263 = vmatprep.subr.mxu0 0.0
        %264 = vmatpush2.msra.mxu0 0.0
        %265 = vmatprep.subr.mxu0 0.0
        %266 = vmatpush2.msra.mxu0 0.0
        %267 = vmatprep.subr.mxu0 0.0
        %268 = vmatpush2.msra.mxu0 0.0
        %269 = vmatprep.subr.mxu0 0.0
        %270 = vmatpush2.msra.mxu0 0.0
        %271 = vmatprep.subr.mxu0 0.0
        %272 = vmatpush2.msra.mxu0 0.0
        %273 = vmatprep.subr.mxu0 0.0
        %274 = vmatpush2.msra.mxu0 0.0
        %275 = vmatprep.subr.mxu0 0.0
        %276 = vmatpush2.msra.mxu0 0.0
        %277 = vmatprep.subr.mxu0 0.0
        %278 = vmatpush2.msra.mxu0 0.0
        %279 = vmatprep.subr.mxu0 0.0
        %280 = vmatpush2.msra.mxu0 0.0
        %281 = vmatprep.subr.mxu0 0.0
        %282 = vmatpush2.msra.mxu0 0.0
        %283 = vmatprep.subr.mxu0 0.0
        %284 = vmatpush2.msra.mxu0 0.0
        %285 = vmatprep.subr.mxu0 0.0
        %286 = vmatpush2.msra.mxu0 0.0
        %287 = vmatprep.mubr.f32.mxu0 0.0
        %288 = vmatmul.mubr.f32.gmra.mxu0 %v212
        %v289 = vpop.f32.mrf.mxu0
        %v290 = vadd.f32 0.0, %v289
        %v291 = vpop.f32.mrf.mxu0
        %292 = vmatprep.mubr.f32.mxu0 0.0
        %293 = vmatmul.mubr.f32.gmra.mxu0 %v215
        %v294 = vpop.f32.mrf.mxu0
        %v295 = vadd.f32 0.0, %v294
        %v296 = vpop.f32.mrf.mxu0
        %297 = vmatprep.mubr.f32.mxu0 0.0
        %298 = vmatmul.mubr.f32.gmra.mxu0 %v218
        %v299 = vpop.f32.mrf.mxu0
        %v300 = vadd.f32 0.0, %v299
        %v301 = vpop.f32.mrf.mxu0
        %302 = vmatprep.mubr.f32.mxu0 0.0
        %303 = vmatmul.mubr.f32.gmra.mxu0 %v221
        %v304 = vpop.f32.mrf.mxu0
        %v305 = vadd.f32 0.0, %v304
        %v306 = vpop.f32.mrf.mxu0
        %307 = vdwg.mxu0
        %308 = vmatprep.subr.mxu0 0.0
        %309 = vmatpush1.msra.mxu0 0.0
        %310 = vmatprep.subr.mxu0 0.0
        %311 = vmatpush1.msra.mxu0 0.0
        %312 = vmatprep.subr.mxu0 0.0
        %313 = vmatpush1.msra.mxu0 0.0
        %314 = vmatprep.subr.mxu0 0.0
        %315 = vmatpush1.msra.mxu0 0.0
        %316 = vmatprep.subr.mxu0 0.0
        %317 = vmatpush1.msra.mxu0 0.0
        %318 = vmatprep.subr.mxu0 0.0
        %319 = vmatpush1.msra.mxu0 0.0
        %320 = vmatprep.subr.mxu0 0.0
        %321 = vmatpush1.msra.mxu0 0.0
        %322 = vmatprep.subr.mxu0 0.0
        %323 = vmatpush1.msra.mxu0 0.0
        %324 = vmatprep.subr.mxu0 0.0
        %325 = vmatpush1.msra.mxu0 0.0
        %326 = vmatprep.subr.mxu0 0.0
        %327 = vmatpush1.msra.mxu0 0.0
        %328 = vmatprep.subr.mxu0 0.0
        %329 = vmatpush1.msra.mxu0 0.0
        %330 = vmatprep.subr.mxu0 0.0
        %331 = vmatpush1.msra.mxu0 0.0
        %332 = vmatprep.subr.mxu0 0.0
        %333 = vmatpush1.msra.mxu0 0.0
        %334 = vmatprep.subr.mxu0 0.0
        %335 = vmatpush1.msra.mxu0 0.0
        %336 = vmatprep.subr.mxu0 0.0
        %337 = vmatpush1.msra.mxu0 %v199
        %338 = vmatprep.subr.mxu0 0.0
        %339 = vmatpush1.msra.mxu0 %v198
        %340 = vmatprep.subr.mxu0 0.0
        %341 = vmatpush2.msra.mxu0 0.0
        %342 = vmatprep.subr.mxu0 0.0
        %343 = vmatpush2.msra.mxu0 0.0
        %344 = vmatprep.subr.mxu0 0.0
        %345 = vmatpush2.msra.mxu0 0.0
        %346 = vmatprep.subr.mxu0 0.0
        %347 = vmatpush2.msra.mxu0 0.0
        %348 = vmatprep.subr.mxu0 0.0
        %349 = vmatpush2.msra.mxu0 0.0
        %350 = vmatprep.subr.mxu0 0.0
        %351 = vmatpush2.msra.mxu0 0.0
        %352 = vmatprep.subr.mxu0 0.0
        %353 = vmatpush2.msra.mxu0 0.0
        %354 = vmatprep.subr.mxu0 0.0
        %355 = vmatpush2.msra.mxu0 0.0
        %356 = vmatprep.subr.mxu0 0.0
        %357 = vmatpush2.msra.mxu0 0.0
        %358 = vmatprep.subr.mxu0 0.0
        %359 = vmatpush2.msra.mxu0 0.0
        %360 = vmatprep.subr.mxu0 0.0
        %361 = vmatpush2.msra.mxu0 0.0
        %362 = vmatprep.subr.mxu0 0.0
        %363 = vmatpush2.msra.mxu0 0.0
        %364 = vmatprep.subr.mxu0 0.0
        %365 = vmatpush2.msra.mxu0 0.0
        %366 = vmatprep.subr.mxu0 0.0
        %367 = vmatpush2.msra.mxu0 0.0
        %368 = vmatprep.subr.mxu0 0.0
        %369 = vmatpush2.msra.mxu0 0.0
        %370 = vmatprep.subr.mxu0 0.0
        %371 = vmatpush2.msra.mxu0 0.0
        %372 = vmatprep.mubr.f32.mxu0 0.0
        %373 = vmatmul.mubr.f32.gmra.mxu0 %v212
        %v374 = vpop.f32.mrf.mxu0
        %v375 = vadd.f32 0.0, %v374
        %v376 = vpop.f32.mrf.mxu0
        %377 = vmatprep.mubr.f32.mxu0 0.0
        %378 = vmatmul.mubr.f32.gmra.mxu0 %v215
        %v379 = vpop.f32.mrf.mxu0
        %v380 = vadd.f32 0.0, %v379
        %v381 = vpop.f32.mrf.mxu0
        %382 = vmatprep.mubr.f32.mxu0 0.0
        %383 = vmatmul.mubr.f32.gmra.mxu0 %v218
        %v384 = vpop.f32.mrf.mxu0
        %v385 = vadd.f32 0.0, %v384
        %v386 = vpop.f32.mrf.mxu0
        %387 = vmatprep.mubr.f32.mxu0 0.0
        %388 = vmatmul.mubr.f32.gmra.mxu0 %v221
        %v389 = vpop.f32.mrf.mxu0
        %v390 = vadd.f32 0.0, %v389
        %v391 = vpop.f32.mrf.mxu0
        %392 = vdwg.mxu0
        %393 = vmatprep.subr.mxu0 0.0
        %394 = vmatpush1.msra.mxu0 0.0
        %395 = vmatprep.subr.mxu0 0.0
        %396 = vmatpush1.msra.mxu0 0.0
        %397 = vmatprep.subr.mxu0 0.0
        %398 = vmatpush1.msra.mxu0 0.0
        %399 = vmatprep.subr.mxu0 0.0
        %400 = vmatpush1.msra.mxu0 0.0
        %401 = vmatprep.subr.mxu0 0.0
        %402 = vmatpush1.msra.mxu0 0.0
        %403 = vmatprep.subr.mxu0 0.0
        %404 = vmatpush1.msra.mxu0 0.0
        %405 = vmatprep.subr.mxu0 0.0
        %406 = vmatpush1.msra.mxu0 0.0
        %407 = vmatprep.subr.mxu0 0.0
        %408 = vmatpush1.msra.mxu0 0.0
        %409 = vmatprep.subr.mxu0 0.0
        %410 = vmatpush1.msra.mxu0 0.0
        %411 = vmatprep.subr.mxu0 0.0
        %412 = vmatpush1.msra.mxu0 0.0
        %413 = vmatprep.subr.mxu0 0.0
        %414 = vmatpush1.msra.mxu0 0.0
        %415 = vmatprep.subr.mxu0 0.0
        %416 = vmatpush1.msra.mxu0 0.0
        %417 = vmatprep.subr.mxu0 0.0
        %418 = vmatpush1.msra.mxu0 0.0
        %419 = vmatprep.subr.mxu0 0.0
        %420 = vmatpush1.msra.mxu0 0.0
        %421 = vmatprep.subr.mxu0 0.0
        %422 = vmatpush1.msra.mxu0 %v201
        %423 = vmatprep.subr.mxu0 0.0
        %424 = vmatpush1.msra.mxu0 %v200
        %425 = vmatprep.subr.mxu0 0.0
        %426 = vmatpush2.msra.mxu0 0.0
        %427 = vmatprep.subr.mxu0 0.0
        %428 = vmatpush2.msra.mxu0 0.0
        %429 = vmatprep.subr.mxu0 0.0
        %430 = vmatpush2.msra.mxu0 0.0
        %431 = vmatprep.subr.mxu0 0.0
        %432 = vmatpush2.msra.mxu0 0.0
        %433 = vmatprep.subr.mxu0 0.0
        %434 = vmatpush2.msra.mxu0 0.0
        %435 = vmatprep.subr.mxu0 0.0
        %436 = vmatpush2.msra.mxu0 0.0
        %437 = vmatprep.subr.mxu0 0.0
        %438 = vmatpush2.msra.mxu0 0.0
        %439 = vmatprep.subr.mxu0 0.0
        %440 = vmatpush2.msra.mxu0 0.0
        %441 = vmatprep.subr.mxu0 0.0
        %442 = vmatpush2.msra.mxu0 0.0
        %443 = vmatprep.subr.mxu0 0.0
        %444 = vmatpush2.msra.mxu0 0.0
        %445 = vmatprep.subr.mxu0 0.0
        %446 = vmatpush2.msra.mxu0 0.0
        %447 = vmatprep.subr.mxu0 0.0
        %448 = vmatpush2.msra.mxu0 0.0
        %449 = vmatprep.subr.mxu0 0.0
        %450 = vmatpush2.msra.mxu0 0.0
        %451 = vmatprep.subr.mxu0 0.0
        %452 = vmatpush2.msra.mxu0 0.0
        %453 = vmatprep.subr.mxu0 0.0
        %454 = vmatpush2.msra.mxu0 0.0
        %455 = vmatprep.subr.mxu0 0.0
        %456 = vmatpush2.msra.mxu0 0.0
        %457 = vmatprep.mubr.f32.mxu0 0.0
        %458 = vmatmul.mubr.f32.gmra.mxu0 %v212
        %v459 = vpop.f32.mrf.mxu0
        %v460 = vadd.f32 0.0, %v459
        %v461 = vpop.f32.mrf.mxu0
        %462 = vmatprep.mubr.f32.mxu0 0.0
        %463 = vmatmul.mubr.f32.gmra.mxu0 %v215
        %v464 = vpop.f32.mrf.mxu0
        %v465 = vadd.f32 0.0, %v464
        %v466 = vpop.f32.mrf.mxu0
        %467 = vmatprep.mubr.f32.mxu0 0.0
        %468 = vmatmul.mubr.f32.gmra.mxu0 %v218
        %v469 = vpop.f32.mrf.mxu0
        %v470 = vadd.f32 0.0, %v469
        %v471 = vpop.f32.mrf.mxu0
        %472 = vmatprep.mubr.f32.mxu0 0.0
        %473 = vmatmul.mubr.f32.gmra.mxu0 %v221
        %v474 = vpop.f32.mrf.mxu0
        %v475 = vadd.f32 0.0, %v474
        %v476 = vpop.f32.mrf.mxu0
        %477 = vdwg.mxu0
        %478 = vmatprep.subr.mxu0 0.0
        %479 = vmatpush1.msra.mxu0 0.0
        %480 = vmatprep.subr.mxu0 0.0
        %481 = vmatpush1.msra.mxu0 0.0
        %482 = vmatprep.subr.mxu0 0.0
        %483 = vmatpush1.msra.mxu0 0.0
        %484 = vmatprep.subr.mxu0 0.0
        %485 = vmatpush1.msra.mxu0 0.0
        %486 = vmatprep.subr.mxu0 0.0
        %487 = vmatpush1.msra.mxu0 0.0
        %488 = vmatprep.subr.mxu0 0.0
        %489 = vmatpush1.msra.mxu0 0.0
        %490 = vmatprep.subr.mxu0 0.0
        %491 = vmatpush1.msra.mxu0 0.0
        %492 = vmatprep.subr.mxu0 0.0
        %493 = vmatpush1.msra.mxu0 0.0
        %494 = vmatprep.subr.mxu0 0.0
        %495 = vmatpush1.msra.mxu0 0.0
        %496 = vmatprep.subr.mxu0 0.0
        %497 = vmatpush1.msra.mxu0 0.0
        %498 = vmatprep.subr.mxu0 0.0
        %499 = vmatpush1.msra.mxu0 0.0
        %500 = vmatprep.subr.mxu0 0.0
        %501 = vmatpush1.msra.mxu0 0.0
        %502 = vmatprep.subr.mxu0 0.0
        %503 = vmatpush1.msra.mxu0 0.0
        %504 = vmatprep.subr.mxu0 0.0
        %505 = vmatpush1.msra.mxu0 0.0
        %506 = vmatprep.subr.mxu0 0.0
        %507 = vmatpush1.msra.mxu0 %v203
        %508 = vmatprep.subr.mxu0 0.0
        %509 = vmatpush1.msra.mxu0 %v202
        %510 = vmatprep.subr.mxu0 0.0
        %511 = vmatpush2.msra.mxu0 0.0
        %512 = vmatprep.subr.mxu0 0.0
        %513 = vmatpush2.msra.mxu0 0.0
        %514 = vmatprep.subr.mxu0 0.0
        %515 = vmatpush2.msra.mxu0 0.0
        %516 = vmatprep.subr.mxu0 0.0
        %517 = vmatpush2.msra.mxu0 0.0
        %518 = vmatprep.subr.mxu0 0.0
        %519 = vmatpush2.msra.mxu0 0.0
        %520 = vmatprep.subr.mxu0 0.0
        %521 = vmatpush2.msra.mxu0 0.0
        %522 = vmatprep.subr.mxu0 0.0
        %523 = vmatpush2.msra.mxu0 0.0
        %524 = vmatprep.subr.mxu0 0.0
        %525 = vmatpush2.msra.mxu0 0.0
        %526 = vmatprep.subr.mxu0 0.0
        %527 = vmatpush2.msra.mxu0 0.0
        %528 = vmatprep.subr.mxu0 0.0
        %529 = vmatpush2.msra.mxu0 0.0
        %530 = vmatprep.subr.mxu0 0.0
        %531 = vmatpush2.msra.mxu0 0.0
        %532 = vmatprep.subr.mxu0 0.0
        %533 = vmatpush2.msra.mxu0 0.0
        %534 = vmatprep.subr.mxu0 0.0
        %535 = vmatpush2.msra.mxu0 0.0
        %536 = vmatprep.subr.mxu0 0.0
        %537 = vmatpush2.msra.mxu0 0.0
        %538 = vmatprep.subr.mxu0 0.0
        %539 = vmatpush2.msra.mxu0 0.0
        %540 = vmatprep.subr.mxu0 0.0
        %541 = vmatpush2.msra.mxu0 0.0
        %542 = vmatprep.mubr.f32.mxu0 0.0
        %543 = vmatmul.mubr.f32.gmra.mxu0 %v212
        %v544 = vpop.f32.mrf.mxu0
        %v545 = vadd.f32 0.0, %v544
        %v546 = vpop.f32.mrf.mxu0
        %547 = vmatprep.mubr.f32.mxu0 0.0
        %548 = vmatmul.mubr.f32.gmra.mxu0 %v215
        %v549 = vpop.f32.mrf.mxu0
        %v550 = vadd.f32 0.0, %v549
        %v551 = vpop.f32.mrf.mxu0
        %552 = vmatprep.mubr.f32.mxu0 0.0
        %553 = vmatmul.mubr.f32.gmra.mxu0 %v218
        %v554 = vpop.f32.mrf.mxu0
        %v555 = vadd.f32 0.0, %v554
        %v556 = vpop.f32.mrf.mxu0
        %557 = vmatprep.mubr.f32.mxu0 0.0
        %558 = vmatmul.mubr.f32.gmra.mxu0 %v221
        %v559 = vpop.f32.mrf.mxu0
        %v560 = vadd.f32 0.0, %v559
        %v561 = vpop.f32.mrf.mxu0
        %562 = vdwg.mxu0
        %v564 = vsel %vm210, %v290, 0
        %v567 = vsel %vm210, %v295, 0
        %v570 = vsel %vm210, %v300, 0
        %v573 = vsel %vm210, %v305, 0
        %v576 = vsel %vm210, %v375, 0
        %v579 = vsel %vm210, %v380, 0
        %v582 = vsel %vm210, %v385, 0
        %v585 = vsel %vm210, %v390, 0
        %v588 = vsel %vm210, %v460, 0
        %v591 = vsel %vm210, %v465, 0
        %v594 = vsel %vm210, %v470, 0
        %v597 = vsel %vm210, %v475, 0
        %v600 = vsel %vm210, %v545, 0
        %v603 = vsel %vm210, %v550, 0
        %v606 = vsel %vm210, %v555, 0
        %v609 = vsel %vm210, %v560, 0
        %611 = vmatprep.subr.mxu0 0.0
        %612 = vmatpush1.msra.mxu0 0.0
        %613 = vmatprep.subr.mxu0 0.0
        %614 = vmatpush1.msra.mxu0 0.0
        %615 = vmatprep.subr.mxu0 0.0
        %616 = vmatpush1.msra.mxu0 0.0
        %617 = vmatprep.subr.mxu0 0.0
        %618 = vmatpush1.msra.mxu0 0.0
        %619 = vmatprep.subr.mxu0 0.0
        %620 = vmatpush1.msra.mxu0 0.0
        %621 = vmatprep.subr.mxu0 0.0
        %622 = vmatpush1.msra.mxu0 0.0
        %623 = vmatprep.subr.mxu0 0.0
        %624 = vmatpush1.msra.mxu0 0.0
        %625 = vmatprep.subr.mxu0 0.0
        %626 = vmatpush1.msra.mxu0 0.0
        %627 = vmatprep.subr.mxu0 0.0
        %628 = vmatpush1.msra.mxu0 0.0
        %629 = vmatprep.subr.mxu0 0.0
        %630 = vmatpush1.msra.mxu0 0.0
        %631 = vmatprep.subr.mxu0 0.0
        %632 = vmatpush1.msra.mxu0 0.0
        %633 = vmatprep.subr.mxu0 0.0
        %634 = vmatpush1.msra.mxu0 0.0
        %635 = vmatprep.subr.mxu0 0.0
        %636 = vmatpush1.msra.mxu0 0.0
        %637 = vmatprep.subr.mxu0 0.0
        %638 = vmatpush1.msra.mxu0 0.0
        %639 = vmatprep.subr.mxu0 0.0
        %640 = vmatpush1.msra.mxu0 %v209
        %641 = vmatprep.subr.mxu0 0.0
        %642 = vmatpush1.msra.mxu0 %v208
        %643 = vmatprep.subr.mxu0 0.0
        %644 = vmatpush2.msra.mxu0 0.0
        %645 = vmatprep.subr.mxu0 0.0
        %646 = vmatpush2.msra.mxu0 0.0
        %647 = vmatprep.subr.mxu0 0.0
        %648 = vmatpush2.msra.mxu0 0.0
        %649 = vmatprep.subr.mxu0 0.0
        %650 = vmatpush2.msra.mxu0 0.0
        %651 = vmatprep.subr.mxu0 0.0
        %652 = vmatpush2.msra.mxu0 0.0
        %653 = vmatprep.subr.mxu0 0.0
        %654 = vmatpush2.msra.mxu0 0.0
        %655 = vmatprep.subr.mxu0 0.0
        %656 = vmatpush2.msra.mxu0 0.0
        %657 = vmatprep.subr.mxu0 0.0
        %658 = vmatpush2.msra.mxu0 0.0
        %659 = vmatprep.subr.mxu0 0.0
        %660 = vmatpush2.msra.mxu0 0.0
        %661 = vmatprep.subr.mxu0 0.0
        %662 = vmatpush2.msra.mxu0 0.0
        %663 = vmatprep.subr.mxu0 0.0
        %664 = vmatpush2.msra.mxu0 0.0
        %665 = vmatprep.subr.mxu0 0.0
        %666 = vmatpush2.msra.mxu0 0.0
        %667 = vmatprep.subr.mxu0 0.0
        %668 = vmatpush2.msra.mxu0 0.0
        %669 = vmatprep.subr.mxu0 0.0
        %670 = vmatpush2.msra.mxu0 0.0
        %671 = vmatprep.subr.mxu0 0.0
        %672 = vmatpush2.msra.mxu0 0.0
        %673 = vmatprep.subr.mxu0 0.0
        %674 = vmatpush2.msra.mxu0 0.0
        %675 = vmatprep.mubr.f32.mxu0 0.0
        %676 = vmatmul.mubr.f32.gmra.mxu0 %v564
        %v677 = vpop.f32.mrf.mxu0
        %v678 = vadd.f32 0.0, %v677
        %v679 = vpop.f32.mrf.mxu0
        %680 = vmatprep.mubr.f32.mxu0 0.0
        %681 = vmatmul.mubr.f32.gmra.mxu0 %v567
        %v682 = vpop.f32.mrf.mxu0
        %v683 = vadd.f32 0.0, %v682
        %v684 = vpop.f32.mrf.mxu0
        %685 = vmatprep.mubr.f32.mxu0 0.0
        %686 = vmatmul.mubr.f32.gmra.mxu0 %v570
        %v687 = vpop.f32.mrf.mxu0
        %v688 = vadd.f32 0.0, %v687
        %v689 = vpop.f32.mrf.mxu0
        %690 = vmatprep.mubr.f32.mxu0 0.0
        %691 = vmatmul.mubr.f32.gmra.mxu0 %v573
        %v692 = vpop.f32.mrf.mxu0
        %v693 = vadd.f32 0.0, %v692
        %v694 = vpop.f32.mrf.mxu0
        %695 = vmatprep.mubr.f32.mxu0 0.0
        %696 = vmatmul.mubr.f32.gmra.mxu0 %v576
        %v697 = vpop.f32.mrf.mxu0
        %v698 = vadd.f32 0.0, %v697
        %v699 = vpop.f32.mrf.mxu0
        %700 = vmatprep.mubr.f32.mxu0 0.0
        %701 = vmatmul.mubr.f32.gmra.mxu0 %v579
        %v702 = vpop.f32.mrf.mxu0
        %v703 = vadd.f32 0.0, %v702
        %v704 = vpop.f32.mrf.mxu0
        %705 = vmatprep.mubr.f32.mxu0 0.0
        %706 = vmatmul.mubr.f32.gmra.mxu0 %v582
        %v707 = vpop.f32.mrf.mxu0
        %v708 = vadd.f32 0.0, %v707
        %v709 = vpop.f32.mrf.mxu0
        %710 = vmatprep.mubr.f32.mxu0 0.0
        %711 = vmatmul.mubr.f32.gmra.mxu0 %v585
        %v712 = vpop.f32.mrf.mxu0
        %v713 = vadd.f32 0.0, %v712
        %v714 = vpop.f32.mrf.mxu0
        %715 = vmatprep.mubr.f32.mxu0 0.0
        %716 = vmatmul.mubr.f32.gmra.mxu0 %v588
        %v717 = vpop.f32.mrf.mxu0
        %v718 = vadd.f32 0.0, %v717
        %v719 = vpop.f32.mrf.mxu0
        %720 = vmatprep.mubr.f32.mxu0 0.0
        %721 = vmatmul.mubr.f32.gmra.mxu0 %v591
        %v722 = vpop.f32.mrf.mxu0
        %v723 = vadd.f32 0.0, %v722
        %v724 = vpop.f32.mrf.mxu0
        %725 = vmatprep.mubr.f32.mxu0 0.0
        %726 = vmatmul.mubr.f32.gmra.mxu0 %v594
        %v727 = vpop.f32.mrf.mxu0
        %v728 = vadd.f32 0.0, %v727
        %v729 = vpop.f32.mrf.mxu0
        %730 = vmatprep.mubr.f32.mxu0 0.0
        %731 = vmatmul.mubr.f32.gmra.mxu0 %v597
        %v732 = vpop.f32.mrf.mxu0
        %v733 = vadd.f32 0.0, %v732
        %v734 = vpop.f32.mrf.mxu0
        %735 = vmatprep.mubr.f32.mxu0 0.0
        %736 = vmatmul.mubr.f32.gmra.mxu0 %v600
        %v737 = vpop.f32.mrf.mxu0
        %v738 = vadd.f32 0.0, %v737
        %v739 = vpop.f32.mrf.mxu0
        %740 = vmatprep.mubr.f32.mxu0 0.0
        %741 = vmatmul.mubr.f32.gmra.mxu0 %v603
        %v742 = vpop.f32.mrf.mxu0
        %v743 = vadd.f32 0.0, %v742
        %v744 = vpop.f32.mrf.mxu0
        %745 = vmatprep.mubr.f32.mxu0 0.0
        %746 = vmatmul.mubr.f32.gmra.mxu0 %v606
        %v747 = vpop.f32.mrf.mxu0
        %v748 = vadd.f32 0.0, %v747
        %v749 = vpop.f32.mrf.mxu0
        %750 = vmatprep.mubr.f32.mxu0 0.0
        %751 = vmatmul.mubr.f32.gmra.mxu0 %v609
        %v752 = vpop.f32.mrf.mxu0
        %v753 = vadd.f32 0.0, %v752
        %v754 = vpop.f32.mrf.mxu0
        %755 = vdwg.mxu0
        %vm756 = vcmask 261120
        %757 = vst.msk [vmem:[%s194] sm:$0xff] %vm756, %v678
        %758 = vst.msk [vmem:[%s194 + $0x8] sm:$0xff] %vm756, %v683
        %759 = vst.msk [vmem:[%s194 + $0x10] sm:$0xff] %vm756, %v688
        %760 = vst.msk [vmem:[%s194 + $0x18] sm:$0xff] %vm756, %v693
        %761 = vst.msk [vmem:[%s194 + $0x20] sm:$0xff] %vm756, %v698
        %762 = vst.msk [vmem:[%s194 + $0x28] sm:$0xff] %vm756, %v703
        %763 = vst.msk [vmem:[%s194 + $0x30] sm:$0xff] %vm756, %v708
        %764 = vst.msk [vmem:[%s194 + $0x38] sm:$0xff] %vm756, %v713
        %765 = vst.msk [vmem:[%s194 + $0x40] sm:$0xff] %vm756, %v718
        %766 = vst.msk [vmem:[%s194 + $0x48] sm:$0xff] %vm756, %v723
        %767 = vst.msk [vmem:[%s194 + $0x50] sm:$0xff] %vm756, %v728
        %768 = vst.msk [vmem:[%s194 + $0x58] sm:$0xff] %vm756, %v733
        %769 = vst.msk [vmem:[%s194 + $0x60] sm:$0xff] %vm756, %v738
        %770 = vst.msk [vmem:[%s194 + $0x68] sm:$0xff] %vm756, %v743
        %771 = vst.msk [vmem:[%s194 + $0x70] sm:$0xff] %vm756, %v748
        %772 = vst.msk [vmem:[%s194 + $0x78] sm:$0xff] %vm756, %v753
        %s773 = smul.u32 4, %s17
        %p774 = scmp.lt.s32.totalorder %s773, 7
        %s775 = scalar_select %p774, %s773, 7
        %s776 = smul.addr %s775, 4
        %s777 = smul.addr %s776, 8
        %s778 = scalar_lea.vmem %s3, %s777
        // Predicated region
        $region37: #{upsamp_block.2} parent=31 // pred_check
          %p779 = pneg %p103
        $region38: #{upsamp_block.2} parent=31 // pred_check_branch
          %781 = sbr.rel (%p779) target = $region40
        $region39: #{upsamp_block.2} parent=31 // pred_region
          %s782 = smul.u32 4, %s17
        $region40: #{upsamp_block.2} parent=31 // pred_fallthru
          _
      $region32: #{upsamp_block.2} parent=5 // pred_fallthru
        _
      %p783 = scmp.le.s32.totalorder 2, %s12
      // Predicated region
      $region41: #{upsamp_block.2} parent=5 // pred_check
        %p784 = pneg %p783
      $region42: #{upsamp_block.2} parent=5 // pred_check_branch
        %786 = sbr.rel (%p784) target = $region44
      $region43: #{upsamp_block.2} parent=5 // pred_region
        %s787 = ssub.s32 %s12, 2
        // Predicated region
        $region45: #{upsamp_block.2} parent=43 // pred_check
          %p788 = pneg %p109
        $region46: #{upsamp_block.2} parent=43 // pred_check_branch
          %790 = sbr.rel (%p788) target = $region48
        $region47: #{upsamp_block.2} parent=43 // pred_region
          %s791 = smul.u32 4, %s18
          %p792 = scmp.lt.s32.totalorder %s791, 7
          %s793 = scalar_select %p792, %s791, 7
          %s794 = smul.addr %s793, 4
          %s795 = smul.addr %s794, 8
          %s796 = scalar_lea.vmem %s3, %s795
        $region48: #{upsamp_block.2} parent=43 // pred_fallthru
          _
      $region44: #{upsamp_block.2} parent=5 // pred_fallthru
        _
    $region6: #{upsamp_block.2} parent=1 // loop_footer
      %s16 = sadd.s32 1, %s12
    $region7: #{upsamp_block.2} parent=1 // loop_footer_branch
      %11 = sbr.rel target = $region3
    $region8: #{upsamp_block.2} parent=1 // loop_exit
      _
    %797 = vsyncpa [#allocation3], 1
    %s798 = scalar_lea.sflag [#allocation3], 1
    %799 = vsyncpa %s798, 1

// kernel: upsamp_block.3
$region0: #{upsamp_block.3}
  #allocation0 [shape = 'u32[]', space=smem, size = 0x4, offset = 0x4, fixed_abs, tag = 'smem constant byte address 0x4 - core index']
  #allocation1 [shape = 'u32[144,128]{1,0:T(1,128)}', space=vmem, size = 0x12000, scoped, tag = 'internal scratch']
  %s0 = inlined_call_operand.vmem [shape: f32[2,34,34,4], index: 0, kind: input, shape index: {}]
  %s1 = inlined_call_operand.vmem [shape: f32[9,4,8], index: 1, kind: input, shape index: {}]
  %s2 = inlined_call_operand.vmem [shape: f32[1,8], index: 2, kind: input, shape index: {}]
  %s3 = inlined_call_operand.vmem [shape: f32[1,8], index: 3, kind: input, shape index: {}]
  %s4 = inlined_call_operand.vmem [shape: f32[2,32,32,8], index: 4, kind: output, shape index: {}]
  %s5 = sld [smem:[#allocation0]]
  $region49: #{upsamp_block.3} parent=0
    _
  %s7 = ssub.s32 1, %s5
  %s8 = scalar_select 0, %s7, %s5
  loop: start=0, step=1, limit=4
  $region2: #{upsamp_block.3} parent=0 // loop_pre_header
    _
  $region3: #{upsamp_block.3} parent=0 // loop_header
    %s10 = sphi 0, %s14
    %p11 = scmp.ge.s32.totalorder %s10, 4
    %s20 = sphi 0, %s22
    %s23 = sphi 0, %s20
    %s24 = sphi 0, %s23
    %s40 = sphi 0, %s24
    %s44 = sphi 0, %s44
    %s46 = sphi 0, %s44
    %s47 = sphi 0, %s46
    %s61 = sphi 0, %s47
    %s65 = sphi 0, %s65
    %s67 = sphi 0, %s65
    %s68 = sphi 0, %s67
    %s82 = sphi 0, %s68
    %s86 = sphi 0, %s86
    %s88 = sphi 0, %s86
    %s89 = sphi 0, %s88
    %s103 = sphi 0, %s89
    %s109 = sphi 0, %s111
    %s112 = sphi 0, %s109
    %s113 = sphi 0, %s112
    %s129 = sphi 0, %s113
  $region4: #{upsamp_block.3} parent=0 // loop_header_branch
    %13 = sbr.rel (%p11) target = $region8
  $region5: #{upsamp_block.3} parent=0 // loop_body
    %s15 = ssub.s32 %s10, 1
    %s16 = ssub.s32 %s10, 2
    %s17 = sadd.s32 %s10, 1
    %s18 = ssub.s32 %s10, %s17
    %p19 = scmp.eq.s32.totalorder %s18, 0
    %s21 = sadd.s32 %s20, 1
    %s22 = scalar_select %p19, %s20, %s21
    %p25 = pneg %p19
    %p26 = scmp.eq.s32.totalorder %s10, 1
    %p27 = por %p25, %p26
    %p28 = scmp.ne.s32.totalorder %s20, %s23
    %p29 = scmp.eq.s32.totalorder %s10, 0
    %p30 = por %p28, %p29
    %p31 = scmp.ne.s32.totalorder %s20, %s23
    %p32 = scmp.eq.s32.totalorder %s15, 1
    %p33 = por %p31, %p32
    %p34 = scmp.ne.s32.totalorder %s23, %s24
    %p35 = scmp.eq.s32.totalorder %s15, 0
    %p36 = por %p34, %p35
    %p37 = scmp.ne.s32.totalorder %s23, %s24
    %p38 = scmp.eq.s32.totalorder %s16, 1
    %p39 = por %p37, %p38
    %p41 = scmp.ne.s32.totalorder %s24, %s40
    %p42 = scmp.eq.s32.totalorder %s16, 0
    %p43 = por %p41, %p42
    %s45 = sadd.s32 %s44, 1
    %p48 = scmp.eq.s32.totalorder %s10, 1
    %p49 = scmp.ne.s32.totalorder %s44, %s46
    %p50 = scmp.eq.s32.totalorder %s10, 0
    %p51 = por %p49, %p50
    %p52 = scmp.ne.s32.totalorder %s44, %s46
    %p53 = scmp.eq.s32.totalorder %s15, 1
    %p54 = por %p52, %p53
    %p55 = scmp.ne.s32.totalorder %s46, %s47
    %p56 = scmp.eq.s32.totalorder %s15, 0
    %p57 = por %p55, %p56
    %p58 = scmp.ne.s32.totalorder %s46, %s47
    %p59 = scmp.eq.s32.totalorder %s16, 1
    %p60 = por %p58, %p59
    %p62 = scmp.ne.s32.totalorder %s47, %s61
    %p63 = scmp.eq.s32.totalorder %s16, 0
    %p64 = por %p62, %p63
    %s66 = sadd.s32 %s65, 1
    %p69 = scmp.eq.s32.totalorder %s10, 1
    %p70 = scmp.ne.s32.totalorder %s65, %s67
    %p71 = scmp.eq.s32.totalorder %s10, 0
    %p72 = por %p70, %p71
    %p73 = scmp.ne.s32.totalorder %s65, %s67
    %p74 = scmp.eq.s32.totalorder %s15, 1
    %p75 = por %p73, %p74
    %p76 = scmp.ne.s32.totalorder %s67, %s68
    %p77 = scmp.eq.s32.totalorder %s15, 0
    %p78 = por %p76, %p77
    %p79 = scmp.ne.s32.totalorder %s67, %s68
    %p80 = scmp.eq.s32.totalorder %s16, 1
    %p81 = por %p79, %p80
    %p83 = scmp.ne.s32.totalorder %s68, %s82
    %p84 = scmp.eq.s32.totalorder %s16, 0
    %p85 = por %p83, %p84
    %s87 = sadd.s32 %s86, 1
    %p90 = scmp.eq.s32.totalorder %s10, 1
    %p91 = scmp.ne.s32.totalorder %s86, %s88
    %p92 = scmp.eq.s32.totalorder %s10, 0
    %p93 = por %p91, %p92
    %p94 = scmp.ne.s32.totalorder %s86, %s88
    %p95 = scmp.eq.s32.totalorder %s15, 1
    %p96 = por %p94, %p95
    %p97 = scmp.ne.s32.totalorder %s88, %s89
    %p98 = scmp.eq.s32.totalorder %s15, 0
    %p99 = por %p97, %p98
    %p100 = scmp.ne.s32.totalorder %s88, %s89
    %p101 = scmp.eq.s32.totalorder %s16, 1
    %p102 = por %p100, %p101
    %p104 = scmp.ne.s32.totalorder %s89, %s103
    %p105 = scmp.eq.s32.totalorder %s16, 0
    %p106 = por %p104, %p105
    %s107 = ssub.s32 %s10, %s17
    %p108 = scmp.eq.s32.totalorder %s107, 0
    %s110 = sadd.s32 %s109, 1
    %s111 = scalar_select %p108, %s109, %s110
    %p114 = pneg %p108
    %p115 = scmp.eq.s32.totalorder %s10, 1
    %p116 = por %p114, %p115
    %p117 = scmp.ne.s32.totalorder %s109, %s112
    %p118 = scmp.eq.s32.totalorder %s10, 0
    %p119 = por %p117, %p118
    %p120 = scmp.ne.s32.totalorder %s109, %s112
    %p121 = scmp.eq.s32.totalorder %s15, 1
    %p122 = por %p120, %p121
    %p123 = scmp.ne.s32.totalorder %s112, %s113
    %p124 = scmp.eq.s32.totalorder %s15, 0
    %p125 = por %p123, %p124
    %p126 = scmp.ne.s32.totalorder %s112, %s113
    %p127 = scmp.eq.s32.totalorder %s16, 1
    %p128 = por %p126, %p127
    %p130 = scmp.ne.s32.totalorder %s113, %s129
    %p131 = scmp.eq.s32.totalorder %s16, 0
    %p132 = por %p130, %p131
    %p133 = scmp.le.s32.totalorder 1, %s10
    %p134 = scmp.lt.s32.totalorder %s10, 3
    %p135 = pnand %p133, %p134
    %p136 = pneg %p135
    // Predicated region
    $region9: #{upsamp_block.3} parent=5 // pred_check
      _
    $region10: #{upsamp_block.3} parent=5 // pred_check_branch
      %138 = sbr.rel (%p135) target = $region12
    $region11: #{upsamp_block.3} parent=5 // pred_region
      %s139 = ssub.s32 %s10, 1
      // Predicated region
      $region13: #{upsamp_block.3} parent=11 // pred_check
        %p140 = pneg %p57
      $region14: #{upsamp_block.3} parent=11 // pred_check_branch
        %142 = sbr.rel (%p140) target = $region16
      $region15: #{upsamp_block.3} parent=11 // pred_region
        _
      $region16: #{upsamp_block.3} parent=11 // pred_fallthru
        _
      // Predicated region
      $region17: #{upsamp_block.3} parent=11 // pred_check
        %p143 = pneg %p78
      $region18: #{upsamp_block.3} parent=11 // pred_check_branch
        %145 = sbr.rel (%p143) target = $region20
      $region19: #{upsamp_block.3} parent=11 // pred_region
        _
      $region20: #{upsamp_block.3} parent=11 // pred_fallthru
        _
      // Predicated region
      $region21: #{upsamp_block.3} parent=11 // pred_check
        %p146 = pneg %p99
      $region22: #{upsamp_block.3} parent=11 // pred_check_branch
        %148 = sbr.rel (%p146) target = $region24
      $region23: #{upsamp_block.3} parent=11 // pred_region
        _
      $region24: #{upsamp_block.3} parent=11 // pred_fallthru
        _
    $region12: #{upsamp_block.3} parent=5 // pred_fallthru
      _
    %p149 = scmp.lt.s32.totalorder %s10, 2
    // Predicated region
    $region25: #{upsamp_block.3} parent=5 // pred_check
      %p150 = pneg %p149
    $region26: #{upsamp_block.3} parent=5 // pred_check_branch
      %152 = sbr.rel (%p150) target = $region28
    $region27: #{upsamp_block.3} parent=5 // pred_region
      // Predicated region
      $region29: #{upsamp_block.3} parent=27 // pred_check
        %p153 = pneg %p30
      $region30: #{upsamp_block.3} parent=27 // pred_check_branch
        %155 = sbr.rel (%p153) target = $region32
      $region31: #{upsamp_block.3} parent=27 // pred_region
        %p156 = scmp.lt.s32.totalorder %s10, 1
        %s157 = scalar_select %p156, %s10, 1
        %s158 = smul.addr %s157, 170
        %s159 = smul.addr %s158, 8
        %s160 = scalar_lea.vmem %s0, %s159
      $region32: #{upsamp_block.3} parent=27 // pred_fallthru
        _
    $region28: #{upsamp_block.3} parent=5 // pred_fallthru
      _
    %p161 = scmp.le.s32.totalorder 1, %s10
    %p162 = scmp.lt.s32.totalorder %s10, 3
    %p163 = pnand %p161, %p162
    %p164 = pneg %p163
    // Predicated region
    $region33: #{upsamp_block.3} parent=5 // pred_check
      _
    $region34: #{upsamp_block.3} parent=5 // pred_check_branch
      %166 = sbr.rel (%p163) target = $region36
    $region35: #{upsamp_block.3} parent=5 // pred_region
      %s167 = ssub.s32 %s10, 1
      %p168 = scmp.lt.s32.totalorder %s15, 1
      %s169 = scalar_select %p168, %s15, 1
      %s170 = smul.addr %s169, 170
      %s171 = smul.addr %s170, 8
      %s172 = scalar_lea.vmem %s0, %s171
      %p173 = pneg %p36
      %p174 = pneg %p33
      %p175 = pneg %p57
      %p176 = pneg %p54
      %p177 = pneg %p78
      %p178 = pneg %p75
      %p179 = pneg %p99
      %p180 = pneg %p96
      %p181 = pneg %p125
      %p182 = pneg %p122
      %p183 = scmp.lt.s32.totalorder %s15, 1
      %s184 = scalar_select %p183, %s15, 1
      %s185 = smul.addr %s184, 128
      %s186 = smul.addr %s185, 8
      %s187 = scalar_lea.vmem %s4, %s186
      %p188 = scmp.lt.s32.totalorder %s15, 1
      %s189 = scalar_select %p188, %s15, 1
      %s190 = smul.addr %s189, 170
      %s191 = smul.addr %s190, 8
      %s192 = scalar_lea.vmem %s0, %s191
      %p193 = scmp.lt.s32.totalorder %s15, 1
      %s194 = scalar_select %p193, %s15, 1
      %s195 = smul.addr %s194, 128
      %s196 = smul.addr %s195, 8
      %s197 = scalar_lea.vmem %s4, %s196
      %v198 = vld [vmem:[%s192] sm:$0xff]
      %v199 = vld [vmem:[%s192 + $0x8] sm:$0xff]
      %v200 = vld [vmem:[%s192 + $0x10] sm:$0xff]
      %v201 = vld [vmem:[%s192 + $0x18] sm:$0xff]
      %v202 = vld [vmem:[%s192 + $0x28] sm:$0xff]
      %v203 = vld [vmem:[%s192 + $0x30] sm:$0xff]
      %v204 = vld [vmem:[%s192 + $0x38] sm:$0xff]
      %v205 = vld [vmem:[%s192 + $0x40] sm:$0xff]
      %v206 = vld [vmem:[%s192 + $0x50] sm:$0xff]
      %v207 = vld [vmem:[%s192 + $0x58] sm:$0xff]
      %v208 = vld [vmem:[%s192 + $0x60] sm:$0xff]
      %v209 = vld [vmem:[%s192 + $0x68] sm:$0xff]
      %v210 = vld [vmem:[%s192 + $0x78] sm:$0xff]
      %v211 = vld [vmem:[%s192 + $0x80] sm:$0xff]
      %v212 = vld [vmem:[%s192 + $0x88] sm:$0xff]
      %v213 = vld [vmem:[%s192 + $0x90] sm:$0xff]
      %v214 = vld [vmem:[%s192 + $0xa0] sm:$0xff]
      %v215 = vld [vmem:[%s192 + $0xa8] sm:$0xff]
      %v216 = vld [vmem:[%s192 + $0xb0] sm:$0xff]
      %v217 = vld [vmem:[%s192 + $0xb8] sm:$0xff]
      %v218 = vld [vmem:[%s192 + $0xc8] sm:$0xff]
      %v219 = vld [vmem:[%s192 + $0xd0] sm:$0xff]
      %v220 = vld [vmem:[%s192 + $0xd8] sm:$0xff]
      %v221 = vld [vmem:[%s192 + $0xe0] sm:$0xff]
      %v222 = vld [vmem:[%s192 + $0xf0] sm:$0xff]
      %v223 = vld [vmem:[%s192 + $0xf8] sm:$0xff]
      %v224 = vld [vmem:[%s192 + $0x100] sm:$0xff]
      %v225 = vld [vmem:[%s192 + $0x108] sm:$0xff]
      %v226 = vld [vmem:[%s192 + $0x118] sm:$0xff]
      %v227 = vld [vmem:[%s192 + $0x120] sm:$0xff]
      %v228 = vld [vmem:[%s192 + $0x128] sm:$0xff]
      %v229 = vld [vmem:[%s192 + $0x130] sm:$0xff]
      %v230 = vld [vmem:[%s192 + $0x140] sm:$0xff]
      %v231 = vld [vmem:[%s192 + $0x148] sm:$0xff]
      %v232 = vld [vmem:[%s192 + $0x150] sm:$0xff]
      %v233 = vld [vmem:[%s192 + $0x158] sm:$0xff]
      %v234 = vld [vmem:[%s192 + $0x168] sm:$0xff]
      %v235 = vld [vmem:[%s192 + $0x170] sm:$0xff]
      %v236 = vld [vmem:[%s192 + $0x178] sm:$0xff]
      %v237 = vld [vmem:[%s192 + $0x180] sm:$0xff]
      %v238 = vld [vmem:[%s192 + $0x190] sm:$0xff]
      %v239 = vld [vmem:[%s192 + $0x198] sm:$0xff]
      %v240 = vld [vmem:[%s192 + $0x1a0] sm:$0xff]
      %v241 = vld [vmem:[%s192 + $0x1a8] sm:$0xff]
      %v242 = vld [vmem:[%s192 + $0x1b8] sm:$0xff]
      %v243 = vld [vmem:[%s192 + $0x1c0] sm:$0xff]
      %v244 = vld [vmem:[%s192 + $0x1c8] sm:$0xff]
      %v245 = vld [vmem:[%s192 + $0x1d0] sm:$0xff]
      %v246 = vld [vmem:[%s192 + $0x1e0] sm:$0xff]
      %v247 = vld [vmem:[%s192 + $0x1e8] sm:$0xff]
      %v248 = vld [vmem:[%s192 + $0x1f0] sm:$0xff]
      %v249 = vld [vmem:[%s192 + $0x1f8] sm:$0xff]
      %v250 = vld [vmem:[%s192 + $0x208] sm:$0xff]
      %v251 = vld [vmem:[%s192 + $0x210] sm:$0xff]
      %v252 = vld [vmem:[%s192 + $0x218] sm:$0xff]
      %v253 = vld [vmem:[%s192 + $0x220] sm:$0xff]
      %v254 = vld [vmem:[%s192 + $0x230] sm:$0xff]
      %v255 = vld [vmem:[%s192 + $0x238] sm:$0xff]
      %v256 = vld [vmem:[%s192 + $0x240] sm:$0xff]
      %v257 = vld [vmem:[%s192 + $0x248] sm:$0xff]
      %v258 = vld [vmem:[%s192 + $0x258] sm:$0xff]
      %v259 = vld [vmem:[%s192 + $0x260] sm:$0xff]
      %v260 = vld [vmem:[%s192 + $0x268] sm:$0xff]
      %v261 = vld [vmem:[%s192 + $0x270] sm:$0xff]
      %v262 = vld [vmem:[%s192 + $0x280] sm:$0xff]
      %v263 = vld [vmem:[%s192 + $0x288] sm:$0xff]
      %v264 = vld [vmem:[%s192 + $0x290] sm:$0xff]
      %v265 = vld [vmem:[%s192 + $0x298] sm:$0xff]
      %v266 = vld [vmem:[%s192 + $0x2a8] sm:$0xff]
      %v267 = vld [vmem:[%s192 + $0x2b0] sm:$0xff]
      %v268 = vld [vmem:[%s192 + $0x2b8] sm:$0xff]
      %v269 = vld [vmem:[%s192 + $0x2c0] sm:$0xff]
      %v270 = vld [vmem:[%s192 + $0x2d0] sm:$0xff]
      %v271 = vld [vmem:[%s192 + $0x2d8] sm:$0xff]
      %v272 = vld [vmem:[%s192 + $0x2e0] sm:$0xff]
      %v273 = vld [vmem:[%s192 + $0x2e8] sm:$0xff]
      %v274 = vld [vmem:[%s192 + $0x2f8] sm:$0xff]
      %v275 = vld [vmem:[%s192 + $0x300] sm:$0xff]
      %v276 = vld [vmem:[%s192 + $0x308] sm:$0xff]
      %v277 = vld [vmem:[%s192 + $0x310] sm:$0xff]
      %v278 = vld [vmem:[%s192 + $0x320] sm:$0xff]
      %v279 = vld [vmem:[%s192 + $0x328] sm:$0xff]
      %v280 = vld [vmem:[%s192 + $0x330] sm:$0xff]
      %v281 = vld [vmem:[%s192 + $0x338] sm:$0xff]
      %v282 = vld [vmem:[%s192 + $0x348] sm:$0xff]
      %v283 = vld [vmem:[%s192 + $0x350] sm:$0xff]
      %v284 = vld [vmem:[%s192 + $0x358] sm:$0xff]
      %v285 = vld [vmem:[%s192 + $0x360] sm:$0xff]
      %v286 = vld [vmem:[%s192 + $0x370] sm:$0xff]
      %v287 = vld [vmem:[%s192 + $0x378] sm:$0xff]
      %v288 = vld [vmem:[%s192 + $0x380] sm:$0xff]
      %v289 = vld [vmem:[%s192 + $0x388] sm:$0xff]
      %v290 = vld [vmem:[%s192 + $0x398] sm:$0xff]
      %v291 = vld [vmem:[%s192 + $0x3a0] sm:$0xff]
      %v292 = vld [vmem:[%s192 + $0x3a8] sm:$0xff]
      %v293 = vld [vmem:[%s192 + $0x3b0] sm:$0xff]
      %v294 = vld [vmem:[%s192 + $0x3c0] sm:$0xff]
      %v295 = vld [vmem:[%s192 + $0x3c8] sm:$0xff]
      %v296 = vld [vmem:[%s192 + $0x3d0] sm:$0xff]
      %v297 = vld [vmem:[%s192 + $0x3d8] sm:$0xff]
      %v298 = vld [vmem:[%s192 + $0x3e8] sm:$0xff]
      %v299 = vld [vmem:[%s192 + $0x3f0] sm:$0xff]
      %v300 = vld [vmem:[%s192 + $0x3f8] sm:$0xff]
      %v301 = vld [vmem:[%s192 + $0x400] sm:$0xff]
      %v302 = vld [vmem:[%s192 + $0x410] sm:$0xff]
      %v303 = vld [vmem:[%s192 + $0x418] sm:$0xff]
      %v304 = vld [vmem:[%s192 + $0x420] sm:$0xff]
      %v305 = vld [vmem:[%s192 + $0x428] sm:$0xff]
      %v306 = vld [vmem:[%s192 + $0x438] sm:$0xff]
      %v307 = vld [vmem:[%s192 + $0x440] sm:$0xff]
      %v308 = vld [vmem:[%s192 + $0x448] sm:$0xff]
      %v309 = vld [vmem:[%s192 + $0x450] sm:$0xff]
      %v310 = vld [vmem:[%s192 + $0x460] sm:$0xff]
      %v311 = vld [vmem:[%s192 + $0x468] sm:$0xff]
      %v312 = vld [vmem:[%s192 + $0x470] sm:$0xff]
      %v313 = vld [vmem:[%s192 + $0x478] sm:$0xff]
      %v314 = vld [vmem:[%s192 + $0x488] sm:$0xff]
      %v315 = vld [vmem:[%s192 + $0x490] sm:$0xff]
      %v316 = vld [vmem:[%s192 + $0x498] sm:$0xff]
      %v317 = vld [vmem:[%s192 + $0x4a0] sm:$0xff]
      %v318 = vld [vmem:[%s192 + $0x4b0] sm:$0xff]
      %v319 = vld [vmem:[%s192 + $0x4b8] sm:$0xff]
      %v320 = vld [vmem:[%s192 + $0x4c0] sm:$0xff]
      %v321 = vld [vmem:[%s192 + $0x4c8] sm:$0xff]
      %v322 = vld [vmem:[%s192 + $0x4d8] sm:$0xff]
      %v323 = vld [vmem:[%s192 + $0x4e0] sm:$0xff]
      %v324 = vld [vmem:[%s192 + $0x4e8] sm:$0xff]
      %v325 = vld [vmem:[%s192 + $0x4f0] sm:$0xff]
      %v326 = vld [vmem:[%s1] sm:$0xf]
      %v327 = vld [vmem:[%s192 + $0x1] sm:$0xff]
      %v328 = vld [vmem:[%s192 + $0x9] sm:$0xff]
      %v329 = vld [vmem:[%s192 + $0x11] sm:$0xff]
      %v330 = vld [vmem:[%s192 + $0x19] sm:$0xff]
      %v331 = vld [vmem:[%s192 + $0x29] sm:$0xff]
      %v332 = vld [vmem:[%s192 + $0x31] sm:$0xff]
      %v333 = vld [vmem:[%s192 + $0x39] sm:$0xff]
      %v334 = vld [vmem:[%s192 + $0x41] sm:$0xff]
      %v335 = vld [vmem:[%s192 + $0x51] sm:$0xff]
      %v336 = vld [vmem:[%s192 + $0x59] sm:$0xff]
      %v337 = vld [vmem:[%s192 + $0x61] sm:$0xff]
      %v338 = vld [vmem:[%s192 + $0x69] sm:$0xff]
      %v339 = vld [vmem:[%s192 + $0x79] sm:$0xff]
      %v340 = vld [vmem:[%s192 + $0x81] sm:$0xff]
      %v341 = vld [vmem:[%s192 + $0x89] sm:$0xff]
      %v342 = vld [vmem:[%s192 + $0x91] sm:$0xff]
      %v343 = vld [vmem:[%s192 + $0xa1] sm:$0xff]
      %v344 = vld [vmem:[%s192 + $0xa9] sm:$0xff]
      %v345 = vld [vmem:[%s192 + $0xb1] sm:$0xff]
      %v346 = vld [vmem:[%s192 + $0xb9] sm:$0xff]
      %v347 = vld [vmem:[%s192 + $0xc9] sm:$0xff]
      %v348 = vld [vmem:[%s192 + $0xd1] sm:$0xff]
      %v349 = vld [vmem:[%s192 + $0xd9] sm:$0xff]
      %v350 = vld [vmem:[%s192 + $0xe1] sm:$0xff]
      %v351 = vld [vmem:[%s192 + $0xf1] sm:$0xff]
      %v352 = vld [vmem:[%s192 + $0xf9] sm:$0xff]
      %v353 = vld [vmem:[%s192 + $0x101] sm:$0xff]
      %v354 = vld [vmem:[%s192 + $0x109] sm:$0xff]
      %v355 = vld [vmem:[%s192 + $0x119] sm:$0xff]
      %v356 = vld [vmem:[%s192 + $0x121] sm:$0xff]
      %v357 = vld [vmem:[%s192 + $0x129] sm:$0xff]
      %v358 = vld [vmem:[%s192 + $0x131] sm:$0xff]
      %v359 = vld [vmem:[%s192 + $0x141] sm:$0xff]
      %v360 = vld [vmem:[%s192 + $0x149] sm:$0xff]
      %v361 = vld [vmem:[%s192 + $0x151] sm:$0xff]
      %v362 = vld [vmem:[%s192 + $0x159] sm:$0xff]
      %v363 = vld [vmem:[%s192 + $0x169] sm:$0xff]
      %v364 = vld [vmem:[%s192 + $0x171] sm:$0xff]
      %v365 = vld [vmem:[%s192 + $0x179] sm:$0xff]
      %v366 = vld [vmem:[%s192 + $0x181] sm:$0xff]
      %v367 = vld [vmem:[%s192 + $0x191] sm:$0xff]
      %v368 = vld [vmem:[%s192 + $0x199] sm:$0xff]
      %v369 = vld [vmem:[%s192 + $0x1a1] sm:$0xff]
      %v370 = vld [vmem:[%s192 + $0x1a9] sm:$0xff]
      %v371 = vld [vmem:[%s192 + $0x1b9] sm:$0xff]
      %v372 = vld [vmem:[%s192 + $0x1c1] sm:$0xff]
      %v373 = vld [vmem:[%s192 + $0x1c9] sm:$0xff]
      %v374 = vld [vmem:[%s192 + $0x1d1] sm:$0xff]
      %v375 = vld [vmem:[%s192 + $0x1e1] sm:$0xff]
      %v376 = vld [vmem:[%s192 + $0x1e9] sm:$0xff]
      %v377 = vld [vmem:[%s192 + $0x1f1] sm:$0xff]
      %v378 = vld [vmem:[%s192 + $0x1f9] sm:$0xff]
      %v379 = vld [vmem:[%s192 + $0x209] sm:$0xff]
      %v380 = vld [vmem:[%s192 + $0x211] sm:$0xff]
      %v381 = vld [vmem:[%s192 + $0x219] sm:$0xff]
      %v382 = vld [vmem:[%s192 + $0x221] sm:$0xff]
      %v383 = vld [vmem:[%s192 + $0x231] sm:$0xff]
      %v384 = vld [vmem:[%s192 + $0x239] sm:$0xff]
      %v385 = vld [vmem:[%s192 + $0x241] sm:$0xff]
      %v386 = vld [vmem:[%s192 + $0x249] sm:$0xff]
      %v387 = vld [vmem:[%s192 + $0x259] sm:$0xff]
      %v388 = vld [vmem:[%s192 + $0x261] sm:$0xff]
      %v389 = vld [vmem:[%s192 + $0x269] sm:$0xff]
      %v390 = vld [vmem:[%s192 + $0x271] sm:$0xff]
      %v391 = vld [vmem:[%s192 + $0x281] sm:$0xff]
      %v392 = vld [vmem:[%s192 + $0x289] sm:$0xff]
      %v393 = vld [vmem:[%s192 + $0x291] sm:$0xff]
      %v394 = vld [vmem:[%s192 + $0x299] sm:$0xff]
      %v395 = vld [vmem:[%s192 + $0x2a9] sm:$0xff]
      %v396 = vld [vmem:[%s192 + $0x2b1] sm:$0xff]
      %v397 = vld [vmem:[%s192 + $0x2b9] sm:$0xff]
      %v398 = vld [vmem:[%s192 + $0x2c1] sm:$0xff]
      %v399 = vld [vmem:[%s192 + $0x2d1] sm:$0xff]
      %v400 = vld [vmem:[%s192 + $0x2d9] sm:$0xff]
      %v401 = vld [vmem:[%s192 + $0x2e1] sm:$0xff]
      %v402 = vld [vmem:[%s192 + $0x2e9] sm:$0xff]
      %v403 = vld [vmem:[%s192 + $0x2f9] sm:$0xff]
      %v404 = vld [vmem:[%s192 + $0x301] sm:$0xff]
      %v405 = vld [vmem:[%s192 + $0x309] sm:$0xff]
      %v406 = vld [vmem:[%s192 + $0x311] sm:$0xff]
      %v407 = vld [vmem:[%s192 + $0x321] sm:$0xff]
      %v408 = vld [vmem:[%s192 + $0x329] sm:$0xff]
      %v409 = vld [vmem:[%s192 + $0x331] sm:$0xff]
      %v410 = vld [vmem:[%s192 + $0x339] sm:$0xff]
      %v411 = vld [vmem:[%s192 + $0x349] sm:$0xff]
      %v412 = vld [vmem:[%s192 + $0x351] sm:$0xff]
      %v413 = vld [vmem:[%s192 + $0x359] sm:$0xff]
      %v414 = vld [vmem:[%s192 + $0x361] sm:$0xff]
      %v415 = vld [vmem:[%s192 + $0x371] sm:$0xff]
      %v416 = vld [vmem:[%s192 + $0x379] sm:$0xff]
      %v417 = vld [vmem:[%s192 + $0x381] sm:$0xff]
      %v418 = vld [vmem:[%s192 + $0x389] sm:$0xff]
      %v419 = vld [vmem:[%s192 + $0x399] sm:$0xff]
      %v420 = vld [vmem:[%s192 + $0x3a1] sm:$0xff]
      %v421 = vld [vmem:[%s192 + $0x3a9] sm:$0xff]
      %v422 = vld [vmem:[%s192 + $0x3b1] sm:$0xff]
      %v423 = vld [vmem:[%s192 + $0x3c1] sm:$0xff]
      %v424 = vld [vmem:[%s192 + $0x3c9] sm:$0xff]
      %v425 = vld [vmem:[%s192 + $0x3d1] sm:$0xff]
      %v426 = vld [vmem:[%s192 + $0x3d9] sm:$0xff]
      %v427 = vld [vmem:[%s192 + $0x3e9] sm:$0xff]
      %v428 = vld [vmem:[%s192 + $0x3f1] sm:$0xff]
      %v429 = vld [vmem:[%s192 + $0x3f9] sm:$0xff]
      %v430 = vld [vmem:[%s192 + $0x401] sm:$0xff]
      %v431 = vld [vmem:[%s192 + $0x411] sm:$0xff]
      %v432 = vld [vmem:[%s192 + $0x419] sm:$0xff]
      %v433 = vld [vmem:[%s192 + $0x421] sm:$0xff]
      %v434 = vld [vmem:[%s192 + $0x429] sm:$0xff]
      %v435 = vld [vmem:[%s192 + $0x439] sm:$0xff]
      %v436 = vld [vmem:[%s192 + $0x441] sm:$0xff]
      %v437 = vld [vmem:[%s192 + $0x449] sm:$0xff]
      %v438 = vld [vmem:[%s192 + $0x451] sm:$0xff]
      %v439 = vld [vmem:[%s192 + $0x461] sm:$0xff]
      %v440 = vld [vmem:[%s192 + $0x469] sm:$0xff]
      %v441 = vld [vmem:[%s192 + $0x471] sm:$0xff]
      %v442 = vld [vmem:[%s192 + $0x479] sm:$0xff]
      %v443 = vld [vmem:[%s192 + $0x489] sm:$0xff]
      %v444 = vld [vmem:[%s192 + $0x491] sm:$0xff]
      %v445 = vld [vmem:[%s192 + $0x499] sm:$0xff]
      %v446 = vld [vmem:[%s192 + $0x4a1] sm:$0xff]
      %v447 = vld [vmem:[%s192 + $0x4b1] sm:$0xff]
      %v448 = vld [vmem:[%s192 + $0x4b9] sm:$0xff]
      %v449 = vld [vmem:[%s192 + $0x4c1] sm:$0xff]
      %v450 = vld [vmem:[%s192 + $0x4c9] sm:$0xff]
      %v451 = vld [vmem:[%s192 + $0x4d9] sm:$0xff]
      %v452 = vld [vmem:[%s192 + $0x4e1] sm:$0xff]
      %v453 = vld [vmem:[%s192 + $0x4e9] sm:$0xff]
      %v454 = vld [vmem:[%s192 + $0x4f1] sm:$0xff]
      %s455 = scalar_lea.vmem %s1, 4
      %v456 = vld [vmem:[%s455] sm:$0xf]
      %vm457 = vcmask 31744
      %v459 = vsel %vm457, %v327, 0
      %v462 = vsel %vm457, %v328, 0
      %v465 = vsel %vm457, %v329, 0
      %v468 = vsel %vm457, %v330, 0
      %v471 = vsel %vm457, %v331, 0
      %v474 = vsel %vm457, %v332, 0
      %v477 = vsel %vm457, %v333, 0
      %v480 = vsel %vm457, %v334, 0
      %v483 = vsel %vm457, %v335, 0
      %v486 = vsel %vm457, %v336, 0
      %v489 = vsel %vm457, %v337, 0
      %v492 = vsel %vm457, %v338, 0
      %v495 = vsel %vm457, %v339, 0
      %v498 = vsel %vm457, %v340, 0
      %v501 = vsel %vm457, %v341, 0
      %v504 = vsel %vm457, %v342, 0
      %v507 = vsel %vm457, %v343, 0
      %v510 = vsel %vm457, %v344, 0
      %v513 = vsel %vm457, %v345, 0
      %v516 = vsel %vm457, %v346, 0
      %v519 = vsel %vm457, %v347, 0
      %v522 = vsel %vm457, %v348, 0
      %v525 = vsel %vm457, %v349, 0
      %v528 = vsel %vm457, %v350, 0
      %v531 = vsel %vm457, %v351, 0
      %v534 = vsel %vm457, %v352, 0
      %v537 = vsel %vm457, %v353, 0
      %v540 = vsel %vm457, %v354, 0
      %v543 = vsel %vm457, %v355, 0
      %v546 = vsel %vm457, %v356, 0
      %v549 = vsel %vm457, %v357, 0
      %v552 = vsel %vm457, %v358, 0
      %v555 = vsel %vm457, %v359, 0
      %v558 = vsel %vm457, %v360, 0
      %v561 = vsel %vm457, %v361, 0
      %v564 = vsel %vm457, %v362, 0
      %v567 = vsel %vm457, %v363, 0
      %v570 = vsel %vm457, %v364, 0
      %v573 = vsel %vm457, %v365, 0
      %v576 = vsel %vm457, %v366, 0
      %v579 = vsel %vm457, %v367, 0
      %v582 = vsel %vm457, %v368, 0
      %v585 = vsel %vm457, %v369, 0
      %v588 = vsel %vm457, %v370, 0
      %v591 = vsel %vm457, %v371, 0
      %v594 = vsel %vm457, %v372, 0
      %v597 = vsel %vm457, %v373, 0
      %v600 = vsel %vm457, %v374, 0
      %v603 = vsel %vm457, %v375, 0
      %v606 = vsel %vm457, %v376, 0
      %v609 = vsel %vm457, %v377, 0
      %v612 = vsel %vm457, %v378, 0
      %v615 = vsel %vm457, %v379, 0
      %v618 = vsel %vm457, %v380, 0
      %v621 = vsel %vm457, %v381, 0
      %v624 = vsel %vm457, %v382, 0
      %v627 = vsel %vm457, %v383, 0
      %v630 = vsel %vm457, %v384, 0
      %v633 = vsel %vm457, %v385, 0
      %v636 = vsel %vm457, %v386, 0
      %v639 = vsel %vm457, %v387, 0
      %v642 = vsel %vm457, %v388, 0
      %v645 = vsel %vm457, %v389, 0
      %v648 = vsel %vm457, %v390, 0
      %v651 = vsel %vm457, %v391, 0
      %v654 = vsel %vm457, %v392, 0
      %v657 = vsel %vm457, %v393, 0
      %v660 = vsel %vm457, %v394, 0
      %v663 = vsel %vm457, %v395, 0
      %v666 = vsel %vm457, %v396, 0
      %v669 = vsel %vm457, %v397, 0
      %v672 = vsel %vm457, %v398, 0
      %v675 = vsel %vm457, %v399, 0
      %v678 = vsel %vm457, %v400, 0
      %v681 = vsel %vm457, %v401, 0
      %v684 = vsel %vm457, %v402, 0
      %v687 = vsel %vm457, %v403, 0
      %v690 = vsel %vm457, %v404, 0
      %v693 = vsel %vm457, %v405, 0
      %v696 = vsel %vm457, %v406, 0
      %v699 = vsel %vm457, %v407, 0
      %v702 = vsel %vm457, %v408, 0
      %v705 = vsel %vm457, %v409, 0
      %v708 = vsel %vm457, %v410, 0
      %v711 = vsel %vm457, %v411, 0
      %v714 = vsel %vm457, %v412, 0
      %v717 = vsel %vm457, %v413, 0
      %v720 = vsel %vm457, %v414, 0
      %v723 = vsel %vm457, %v415, 0
      %v726 = vsel %vm457, %v416, 0
      %v729 = vsel %vm457, %v417, 0
      %v732 = vsel %vm457, %v418, 0
      %v735 = vsel %vm457, %v419, 0
      %v738 = vsel %vm457, %v420, 0
      %v741 = vsel %vm457, %v421, 0
      %v744 = vsel %vm457, %v422, 0
      %v747 = vsel %vm457, %v423, 0
      %v750 = vsel %vm457, %v424, 0
      %v753 = vsel %vm457, %v425, 0
      %v756 = vsel %vm457, %v426, 0
      %v759 = vsel %vm457, %v427, 0
      %v762 = vsel %vm457, %v428, 0
      %v765 = vsel %vm457, %v429, 0
      %v768 = vsel %vm457, %v430, 0
      %v771 = vsel %vm457, %v431, 0
      %v774 = vsel %vm457, %v432, 0
      %v777 = vsel %vm457, %v433, 0
      %v780 = vsel %vm457, %v434, 0
      %v783 = vsel %vm457, %v435, 0
      %v786 = vsel %vm457, %v436, 0
      %v789 = vsel %vm457, %v437, 0
      %v792 = vsel %vm457, %v438, 0
      %v795 = vsel %vm457, %v439, 0
      %v798 = vsel %vm457, %v440, 0
      %v801 = vsel %vm457, %v441, 0
      %v804 = vsel %vm457, %v442, 0
      %v807 = vsel %vm457, %v443, 0
      %v810 = vsel %vm457, %v444, 0
      %v813 = vsel %vm457, %v445, 0
      %v816 = vsel %vm457, %v446, 0
      %v819 = vsel %vm457, %v447, 0
      %v822 = vsel %vm457, %v448, 0
      %v825 = vsel %vm457, %v449, 0
      %v828 = vsel %vm457, %v450, 0
      %v831 = vsel %vm457, %v451, 0
      %v834 = vsel %vm457, %v452, 0
      %v837 = vsel %vm457, %v453, 0
      %v840 = vsel %vm457, %v454, 0
      %vm842 = vcmask 1043456
      %v844 = vsel %vm842, %v456, 0
      %846 = vmatprep.subr.mxu0 0.0
      %847 = vmatpush1.msra.mxu0 0.0
      %848 = vmatprep.subr.mxu0 0.0
      %849 = vmatpush1.msra.mxu0 0.0
      %850 = vmatprep.subr.mxu0 0.0
      %851 = vmatpush1.msra.mxu0 0.0
      %852 = vmatprep.subr.mxu0 0.0
      %853 = vmatpush1.msra.mxu0 0.0
      %854 = vmatprep.subr.mxu0 0.0
      %855 = vmatpush1.msra.mxu0 0.0
      %856 = vmatprep.subr.mxu0 0.0
      %857 = vmatpush1.msra.mxu0 0.0
      %858 = vmatprep.subr.mxu0 0.0
      %859 = vmatpush1.msra.mxu0 0.0
      %860 = vmatprep.subr.mxu0 0.0
      %861 = vmatpush1.msra.mxu0 0.0
      %862 = vmatprep.subr.mxu0 0.0
      %863 = vmatpush1.msra.mxu0 0.0
      %864 = vmatprep.subr.mxu0 0.0
      %865 = vmatpush1.msra.mxu0 0.0
      %866 = vmatprep.subr.mxu0 0.0
      %867 = vmatpush1.msra.mxu0 0.0
      %868 = vmatprep.subr.mxu0 0.0
      %869 = vmatpush1.msra.mxu0 0.0
      %870 = vmatprep.subr.mxu0 0.0
      %871 = vmatpush1.msra.mxu0 0.0
      %872 = vmatprep.subr.mxu0 0.0
      %873 = vmatpush1.msra.mxu0 0.0
      %874 = vmatprep.subr.mxu0 0.0
      %875 = vmatpush1.msra.mxu0 0.0
      %876 = vmatprep.subr.mxu0 0.0
      %877 = vmatpush1.msra.mxu0 %v844
      %878 = vmatprep.subr.mxu0 0.0
      %879 = vmatpush2.msra.mxu0 0.0
      %880 = vmatprep.subr.mxu0 0.0
      %881 = vmatpush2.msra.mxu0 0.0
      %882 = vmatprep.subr.mxu0 0.0
      %883 = vmatpush2.msra.mxu0 0.0
      %884 = vmatprep.subr.mxu0 0.0
      %885 = vmatpush2.msra.mxu0 0.0
      %886 = vmatprep.subr.mxu0 0.0
      %887 = vmatpush2.msra.mxu0 0.0
      %888 = vmatprep.subr.mxu0 0.0
      %889 = vmatpush2.msra.mxu0 0.0
      %890 = vmatprep.subr.mxu0 0.0
      %891 = vmatpush2.msra.mxu0 0.0
      %892 = vmatprep.subr.mxu0 0.0
      %893 = vmatpush2.msra.mxu0 0.0
      %894 = vmatprep.subr.mxu0 0.0
      %895 = vmatpush2.msra.mxu0 0.0
      %896 = vmatprep.subr.mxu0 0.0
      %897 = vmatpush2.msra.mxu0 0.0
      %898 = vmatprep.subr.mxu0 0.0
      %899 = vmatpush2.msra.mxu0 0.0
      %900 = vmatprep.subr.mxu0 0.0
      %901 = vmatpush2.msra.mxu0 0.0
      %902 = vmatprep.subr.mxu0 0.0
      %903 = vmatpush2.msra.mxu0 0.0
      %904 = vmatprep.subr.mxu0 0.0
      %905 = vmatpush2.msra.mxu0 0.0
      %906 = vmatprep.subr.mxu0 0.0
      %907 = vmatpush2.msra.mxu0 0.0
      %908 = vmatprep.subr.mxu0 0.0
      %909 = vmatpush2.msra.mxu0 0.0
      %910 = vmatprep.mubr.f32.mxu0 0.0
      %911 = vmatmul.mubr.f32.gmra.mxu0 %v459
      %v912 = vpop.f32.mrf.mxu0
      %v913 = vadd.f32 0.0, %v912
      %v914 = vpop.f32.mrf.mxu0
      %915 = vmatprep.mubr.f32.mxu0 0.0
      %916 = vmatmul.mubr.f32.gmra.mxu0 %v462
      %v917 = vpop.f32.mrf.mxu0
      %v918 = vadd.f32 0.0, %v917
      %v919 = vpop.f32.mrf.mxu0
      %920 = vmatprep.mubr.f32.mxu0 0.0
      %921 = vmatmul.mubr.f32.gmra.mxu0 %v465
      %v922 = vpop.f32.mrf.mxu0
      %v923 = vadd.f32 0.0, %v922
      %v924 = vpop.f32.mrf.mxu0
      %925 = vmatprep.mubr.f32.mxu0 0.0
      %926 = vmatmul.mubr.f32.gmra.mxu0 %v468
      %v927 = vpop.f32.mrf.mxu0
      %v928 = vadd.f32 0.0, %v927
      %v929 = vpop.f32.mrf.mxu0
      %930 = vmatprep.mubr.f32.mxu0 0.0
      %931 = vmatmul.mubr.f32.gmra.mxu0 %v471
      %v932 = vpop.f32.mrf.mxu0
      %v933 = vadd.f32 0.0, %v932
      %v934 = vpop.f32.mrf.mxu0
      %935 = vmatprep.mubr.f32.mxu0 0.0
      %936 = vmatmul.mubr.f32.gmra.mxu0 %v474
      %v937 = vpop.f32.mrf.mxu0
      %v938 = vadd.f32 0.0, %v937
      %v939 = vpop.f32.mrf.mxu0
      %940 = vmatprep.mubr.f32.mxu0 0.0
      %941 = vmatmul.mubr.f32.gmra.mxu0 %v477
      %v942 = vpop.f32.mrf.mxu0
      %v943 = vadd.f32 0.0, %v942
      %v944 = vpop.f32.mrf.mxu0
      %945 = vmatprep.mubr.f32.mxu0 0.0
      %946 = vmatmul.mubr.f32.gmra.mxu0 %v480
      %v947 = vpop.f32.mrf.mxu0
      %v948 = vadd.f32 0.0, %v947
      %v949 = vpop.f32.mrf.mxu0
      %950 = vmatprep.mubr.f32.mxu0 0.0
      %951 = vmatmul.mubr.f32.gmra.mxu0 %v483
      %v952 = vpop.f32.mrf.mxu0
      %v953 = vadd.f32 0.0, %v952
      %v954 = vpop.f32.mrf.mxu0
      %955 = vmatprep.mubr.f32.mxu0 0.0
      %956 = vmatmul.mubr.f32.gmra.mxu0 %v486
      %v957 = vpop.f32.mrf.mxu0
      %v958 = vadd.f32 0.0, %v957
      %v959 = vpop.f32.mrf.mxu0
      %960 = vmatprep.mubr.f32.mxu0 0.0
      %961 = vmatmul.mubr.f32.gmra.mxu0 %v489
      %v962 = vpop.f32.mrf.mxu0
      %v963 = vadd.f32 0.0, %v962
      %v964 = vpop.f32.mrf.mxu0
      %965 = vmatprep.mubr.f32.mxu0 0.0
      %966 = vmatmul.mubr.f32.gmra.mxu0 %v492
      %v967 = vpop.f32.mrf.mxu0
      %v968 = vadd.f32 0.0, %v967
      %v969 = vpop.f32.mrf.mxu0
      %970 = vmatprep.mubr.f32.mxu0 0.0
      %971 = vmatmul.mubr.f32.gmra.mxu0 %v495
      %v972 = vpop.f32.mrf.mxu0
      %v973 = vadd.f32 0.0, %v972
      %v974 = vpop.f32.mrf.mxu0
      %975 = vmatprep.mubr.f32.mxu0 0.0
      %976 = vmatmul.mubr.f32.gmra.mxu0 %v498
      %v977 = vpop.f32.mrf.mxu0
      %v978 = vadd.f32 0.0, %v977
      %v979 = vpop.f32.mrf.mxu0
      %980 = vmatprep.mubr.f32.mxu0 0.0
      %981 = vmatmul.mubr.f32.gmra.mxu0 %v501
      %v982 = vpop.f32.mrf.mxu0
      %v983 = vadd.f32 0.0, %v982
      %v984 = vpop.f32.mrf.mxu0
      %985 = vmatprep.mubr.f32.mxu0 0.0
      %986 = vmatmul.mubr.f32.gmra.mxu0 %v504
      %v987 = vpop.f32.mrf.mxu0
      %v988 = vadd.f32 0.0, %v987
      %v989 = vpop.f32.mrf.mxu0
      %990 = vmatprep.mubr.f32.mxu0 0.0
      %991 = vmatmul.mubr.f32.gmra.mxu0 %v507
      %v992 = vpop.f32.mrf.mxu0
      %v993 = vadd.f32 0.0, %v992
      %v994 = vpop.f32.mrf.mxu0
      %995 = vmatprep.mubr.f32.mxu0 0.0
      %996 = vmatmul.mubr.f32.gmra.mxu0 %v510
      %v997 = vpop.f32.mrf.mxu0
      %v998 = vadd.f32 0.0, %v997
      %v999 = vpop.f32.mrf.mxu0
      %1000 = vmatprep.mubr.f32.mxu0 0.0
      %1001 = vmatmul.mubr.f32.gmra.mxu0 %v513
      %v1002 = vpop.f32.mrf.mxu0
      %v1003 = vadd.f32 0.0, %v1002
      %v1004 = vpop.f32.mrf.mxu0
      %1005 = vmatprep.mubr.f32.mxu0 0.0
      %1006 = vmatmul.mubr.f32.gmra.mxu0 %v516
      %v1007 = vpop.f32.mrf.mxu0
      %v1008 = vadd.f32 0.0, %v1007
      %v1009 = vpop.f32.mrf.mxu0
      %1010 = vmatprep.mubr.f32.mxu0 0.0
      %1011 = vmatmul.mubr.f32.gmra.mxu0 %v519
      %v1012 = vpop.f32.mrf.mxu0
      %v1013 = vadd.f32 0.0, %v1012
      %v1014 = vpop.f32.mrf.mxu0
      %1015 = vmatprep.mubr.f32.mxu0 0.0
      %1016 = vmatmul.mubr.f32.gmra.mxu0 %v522
      %v1017 = vpop.f32.mrf.mxu0
      %v1018 = vadd.f32 0.0, %v1017
      %v1019 = vpop.f32.mrf.mxu0
      %1020 = vmatprep.mubr.f32.mxu0 0.0
      %1021 = vmatmul.mubr.f32.gmra.mxu0 %v525
      %v1022 = vpop.f32.mrf.mxu0
      %v1023 = vadd.f32 0.0, %v1022
      %v1024 = vpop.f32.mrf.mxu0
      %1025 = vmatprep.mubr.f32.mxu0 0.0
      %1026 = vmatmul.mubr.f32.gmra.mxu0 %v528
      %v1027 = vpop.f32.mrf.mxu0
      %v1028 = vadd.f32 0.0, %v1027
      %v1029 = vpop.f32.mrf.mxu0
      %1030 = vmatprep.mubr.f32.mxu0 0.0
      %1031 = vmatmul.mubr.f32.gmra.mxu0 %v531
      %v1032 = vpop.f32.mrf.mxu0
      %v1033 = vadd.f32 0.0, %v1032
      %v1034 = vpop.f32.mrf.mxu0
      %1035 = vmatprep.mubr.f32.mxu0 0.0
      %1036 = vmatmul.mubr.f32.gmra.mxu0 %v534
      %v1037 = vpop.f32.mrf.mxu0
      %v1038 = vadd.f32 0.0, %v1037
      %v1039 = vpop.f32.mrf.mxu0
      %1040 = vmatprep.mubr.f32.mxu0 0.0
      %1041 = vmatmul.mubr.f32.gmra.mxu0 %v537
      %v1042 = vpop.f32.mrf.mxu0
      %v1043 = vadd.f32 0.0, %v1042
      %v1044 = vpop.f32.mrf.mxu0
      %1045 = vmatprep.mubr.f32.mxu0 0.0
      %1046 = vmatmul.mubr.f32.gmra.mxu0 %v540
      %v1047 = vpop.f32.mrf.mxu0
      %v1048 = vadd.f32 0.0, %v1047
      %v1049 = vpop.f32.mrf.mxu0
      %1050 = vmatprep.mubr.f32.mxu0 0.0
      %1051 = vmatmul.mubr.f32.gmra.mxu0 %v543
      %v1052 = vpop.f32.mrf.mxu0
      %v1053 = vadd.f32 0.0, %v1052
      %v1054 = vpop.f32.mrf.mxu0
      %1055 = vmatprep.mubr.f32.mxu0 0.0
      %1056 = vmatmul.mubr.f32.gmra.mxu0 %v546
      %v1057 = vpop.f32.mrf.mxu0
      %v1058 = vadd.f32 0.0, %v1057
      %v1059 = vpop.f32.mrf.mxu0
      %1060 = vmatprep.mubr.f32.mxu0 0.0
      %1061 = vmatmul.mubr.f32.gmra.mxu0 %v549
      %v1062 = vpop.f32.mrf.mxu0
      %v1063 = vadd.f32 0.0, %v1062
      %v1064 = vpop.f32.mrf.mxu0
      %1065 = vmatprep.mubr.f32.mxu0 0.0
      %1066 = vmatmul.mubr.f32.gmra.mxu0 %v552
      %v1067 = vpop.f32.mrf.mxu0
      %v1068 = vadd.f32 0.0, %v1067
      %v1069 = vpop.f32.mrf.mxu0
      %1070 = vmatprep.mubr.f32.mxu0 0.0
      %1071 = vmatmul.mubr.f32.gmra.mxu0 %v555
      %v1072 = vpop.f32.mrf.mxu0
      %v1073 = vadd.f32 0.0, %v1072
      %v1074 = vpop.f32.mrf.mxu0
      %1075 = vmatprep.mubr.f32.mxu0 0.0
      %1076 = vmatmul.mubr.f32.gmra.mxu0 %v558
      %v1077 = vpop.f32.mrf.mxu0
      %v1078 = vadd.f32 0.0, %v1077
      %v1079 = vpop.f32.mrf.mxu0
      %1080 = vmatprep.mubr.f32.mxu0 0.0
      %1081 = vmatmul.mubr.f32.gmra.mxu0 %v561
      %v1082 = vpop.f32.mrf.mxu0
      %v1083 = vadd.f32 0.0, %v1082
      %v1084 = vpop.f32.mrf.mxu0
      %1085 = vmatprep.mubr.f32.mxu0 0.0
      %1086 = vmatmul.mubr.f32.gmra.mxu0 %v564
      %v1087 = vpop.f32.mrf.mxu0
      %v1088 = vadd.f32 0.0, %v1087
      %v1089 = vpop.f32.mrf.mxu0
      %1090 = vmatprep.mubr.f32.mxu0 0.0
      %1091 = vmatmul.mubr.f32.gmra.mxu0 %v567
      %v1092 = vpop.f32.mrf.mxu0
      %v1093 = vadd.f32 0.0, %v1092
      %v1094 = vpop.f32.mrf.mxu0
      %1095 = vmatprep.mubr.f32.mxu0 0.0
      %1096 = vmatmul.mubr.f32.gmra.mxu0 %v570
      %v1097 = vpop.f32.mrf.mxu0
      %v1098 = vadd.f32 0.0, %v1097
      %v1099 = vpop.f32.mrf.mxu0
      %1100 = vmatprep.mubr.f32.mxu0 0.0
      %1101 = vmatmul.mubr.f32.gmra.mxu0 %v573
      %v1102 = vpop.f32.mrf.mxu0
      %v1103 = vadd.f32 0.0, %v1102
      %v1104 = vpop.f32.mrf.mxu0
      %1105 = vmatprep.mubr.f32.mxu0 0.0
      %1106 = vmatmul.mubr.f32.gmra.mxu0 %v576
      %v1107 = vpop.f32.mrf.mxu0
      %v1108 = vadd.f32 0.0, %v1107
      %v1109 = vpop.f32.mrf.mxu0
      %1110 = vmatprep.mubr.f32.mxu0 0.0
      %1111 = vmatmul.mubr.f32.gmra.mxu0 %v579
      %v1112 = vpop.f32.mrf.mxu0
      %v1113 = vadd.f32 0.0, %v1112
      %v1114 = vpop.f32.mrf.mxu0
      %1115 = vmatprep.mubr.f32.mxu0 0.0
      %1116 = vmatmul.mubr.f32.gmra.mxu0 %v582
      %v1117 = vpop.f32.mrf.mxu0
      %v1118 = vadd.f32 0.0, %v1117
      %v1119 = vpop.f32.mrf.mxu0
      %1120 = vmatprep.mubr.f32.mxu0 0.0
      %1121 = vmatmul.mubr.f32.gmra.mxu0 %v585
      %v1122 = vpop.f32.mrf.mxu0
      %v1123 = vadd.f32 0.0, %v1122
      %v1124 = vpop.f32.mrf.mxu0
      %1125 = vmatprep.mubr.f32.mxu0 0.0
      %1126 = vmatmul.mubr.f32.gmra.mxu0 %v588
      %v1127 = vpop.f32.mrf.mxu0
      %v1128 = vadd.f32 0.0, %v1127
      %v1129 = vpop.f32.mrf.mxu0
      %1130 = vmatprep.mubr.f32.mxu0 0.0
      %1131 = vmatmul.mubr.f32.gmra.mxu0 %v591
      %v1132 = vpop.f32.mrf.mxu0
      %v1133 = vadd.f32 0.0, %v1132
      %v1134 = vpop.f32.mrf.mxu0
      %1135 = vmatprep.mubr.f32.mxu0 0.0
      %1136 = vmatmul.mubr.f32.gmra.mxu0 %v594
      %v1137 = vpop.f32.mrf.mxu0
      %v1138 = vadd.f32 0.0, %v1137
      %v1139 = vpop.f32.mrf.mxu0
      %1140 = vmatprep.mubr.f32.mxu0 0.0
      %1141 = vmatmul.mubr.f32.gmra.mxu0 %v597
      %v1142 = vpop.f32.mrf.mxu0
      %v1143 = vadd.f32 0.0, %v1142
      %v1144 = vpop.f32.mrf.mxu0
      %1145 = vmatprep.mubr.f32.mxu0 0.0
      %1146 = vmatmul.mubr.f32.gmra.mxu0 %v600
      %v1147 = vpop.f32.mrf.mxu0
      %v1148 = vadd.f32 0.0, %v1147
      %v1149 = vpop.f32.mrf.mxu0
      %1150 = vmatprep.mubr.f32.mxu0 0.0
      %1151 = vmatmul.mubr.f32.gmra.mxu0 %v603
      %v1152 = vpop.f32.mrf.mxu0
      %v1153 = vadd.f32 0.0, %v1152
      %v1154 = vpop.f32.mrf.mxu0
      %1155 = vmatprep.mubr.f32.mxu0 0.0
      %1156 = vmatmul.mubr.f32.gmra.mxu0 %v606
      %v1157 = vpop.f32.mrf.mxu0
      %v1158 = vadd.f32 0.0, %v1157
      %v1159 = vpop.f32.mrf.mxu0
      %1160 = vmatprep.mubr.f32.mxu0 0.0
      %1161 = vmatmul.mubr.f32.gmra.mxu0 %v609
      %v1162 = vpop.f32.mrf.mxu0
      %v1163 = vadd.f32 0.0, %v1162
      %v1164 = vpop.f32.mrf.mxu0
      %1165 = vmatprep.mubr.f32.mxu0 0.0
      %1166 = vmatmul.mubr.f32.gmra.mxu0 %v612
      %v1167 = vpop.f32.mrf.mxu0
      %v1168 = vadd.f32 0.0, %v1167
      %v1169 = vpop.f32.mrf.mxu0
      %1170 = vmatprep.mubr.f32.mxu0 0.0
      %1171 = vmatmul.mubr.f32.gmra.mxu0 %v615
      %v1172 = vpop.f32.mrf.mxu0
      %v1173 = vadd.f32 0.0, %v1172
      %v1174 = vpop.f32.mrf.mxu0
      %1175 = vmatprep.mubr.f32.mxu0 0.0
      %1176 = vmatmul.mubr.f32.gmra.mxu0 %v618
      %v1177 = vpop.f32.mrf.mxu0
      %v1178 = vadd.f32 0.0, %v1177
      %v1179 = vpop.f32.mrf.mxu0
      %1180 = vmatprep.mubr.f32.mxu0 0.0
      %1181 = vmatmul.mubr.f32.gmra.mxu0 %v621
      %v1182 = vpop.f32.mrf.mxu0
      %v1183 = vadd.f32 0.0, %v1182
      %v1184 = vpop.f32.mrf.mxu0
      %1185 = vmatprep.mubr.f32.mxu0 0.0
      %1186 = vmatmul.mubr.f32.gmra.mxu0 %v624
      %v1187 = vpop.f32.mrf.mxu0
      %v1188 = vadd.f32 0.0, %v1187
      %v1189 = vpop.f32.mrf.mxu0
      %1190 = vmatprep.mubr.f32.mxu0 0.0
      %1191 = vmatmul.mubr.f32.gmra.mxu0 %v627
      %v1192 = vpop.f32.mrf.mxu0
      %v1193 = vadd.f32 0.0, %v1192
      %v1194 = vpop.f32.mrf.mxu0
      %1195 = vmatprep.mubr.f32.mxu0 0.0
      %1196 = vmatmul.mubr.f32.gmra.mxu0 %v630
      %v1197 = vpop.f32.mrf.mxu0
      %v1198 = vadd.f32 0.0, %v1197
      %v1199 = vpop.f32.mrf.mxu0
      %1200 = vmatprep.mubr.f32.mxu0 0.0
      %1201 = vmatmul.mubr.f32.gmra.mxu0 %v633
      %v1202 = vpop.f32.mrf.mxu0
      %v1203 = vadd.f32 0.0, %v1202
      %v1204 = vpop.f32.mrf.mxu0
      %1205 = vmatprep.mubr.f32.mxu0 0.0
      %1206 = vmatmul.mubr.f32.gmra.mxu0 %v636
      %v1207 = vpop.f32.mrf.mxu0
      %v1208 = vadd.f32 0.0, %v1207
      %v1209 = vpop.f32.mrf.mxu0
      %1210 = vmatprep.mubr.f32.mxu0 0.0
      %1211 = vmatmul.mubr.f32.gmra.mxu0 %v639
      %v1212 = vpop.f32.mrf.mxu0
      %v1213 = vadd.f32 0.0, %v1212
      %v1214 = vpop.f32.mrf.mxu0
      %1215 = vmatprep.mubr.f32.mxu0 0.0
      %1216 = vmatmul.mubr.f32.gmra.mxu0 %v642
      %v1217 = vpop.f32.mrf.mxu0
      %v1218 = vadd.f32 0.0, %v1217
      %v1219 = vpop.f32.mrf.mxu0
      %1220 = vmatprep.mubr.f32.mxu0 0.0
      %1221 = vmatmul.mubr.f32.gmra.mxu0 %v645
      %v1222 = vpop.f32.mrf.mxu0
      %v1223 = vadd.f32 0.0, %v1222
      %v1224 = vpop.f32.mrf.mxu0
      %1225 = vmatprep.mubr.f32.mxu0 0.0
      %1226 = vmatmul.mubr.f32.gmra.mxu0 %v648
      %v1227 = vpop.f32.mrf.mxu0
      %v1228 = vadd.f32 0.0, %v1227
      %v1229 = vpop.f32.mrf.mxu0
      %1230 = vmatprep.mubr.f32.mxu0 0.0
      %1231 = vmatmul.mubr.f32.gmra.mxu0 %v651
      %v1232 = vpop.f32.mrf.mxu0
      %v1233 = vadd.f32 0.0, %v1232
      %v1234 = vpop.f32.mrf.mxu0
      %1235 = vmatprep.mubr.f32.mxu0 0.0
      %1236 = vmatmul.mubr.f32.gmra.mxu0 %v654
      %v1237 = vpop.f32.mrf.mxu0
      %v1238 = vadd.f32 0.0, %v1237
      %v1239 = vpop.f32.mrf.mxu0
      %1240 = vmatprep.mubr.f32.mxu0 0.0
      %1241 = vmatmul.mubr.f32.gmra.mxu0 %v657
      %v1242 = vpop.f32.mrf.mxu0
      %v1243 = vadd.f32 0.0, %v1242
      %v1244 = vpop.f32.mrf.mxu0
      %1245 = vmatprep.mubr.f32.mxu0 0.0
      %1246 = vmatmul.mubr.f32.gmra.mxu0 %v660
      %v1247 = vpop.f32.mrf.mxu0
      %v1248 = vadd.f32 0.0, %v1247
      %v1249 = vpop.f32.mrf.mxu0
      %1250 = vmatprep.mubr.f32.mxu0 0.0
      %1251 = vmatmul.mubr.f32.gmra.mxu0 %v663
      %v1252 = vpop.f32.mrf.mxu0
      %v1253 = vadd.f32 0.0, %v1252
      %v1254 = vpop.f32.mrf.mxu0
      %1255 = vmatprep.mubr.f32.mxu0 0.0
      %1256 = vmatmul.mubr.f32.gmra.mxu0 %v666
      %v1257 = vpop.f32.mrf.mxu0
      %v1258 = vadd.f32 0.0, %v1257
      %v1259 = vpop.f32.mrf.mxu0
      %1260 = vmatprep.mubr.f32.mxu0 0.0
      %1261 = vmatmul.mubr.f32.gmra.mxu0 %v669
      %v1262 = vpop.f32.mrf.mxu0
      %v1263 = vadd.f32 0.0, %v1262
      %v1264 = vpop.f32.mrf.mxu0
      %1265 = vmatprep.mubr.f32.mxu0 0.0
      %1266 = vmatmul.mubr.f32.gmra.mxu0 %v672
      %v1267 = vpop.f32.mrf.mxu0
      %v1268 = vadd.f32 0.0, %v1267
      %v1269 = vpop.f32.mrf.mxu0
      %1270 = vmatprep.mubr.f32.mxu0 0.0
      %1271 = vmatmul.mubr.f32.gmra.mxu0 %v675
      %v1272 = vpop.f32.mrf.mxu0
      %v1273 = vadd.f32 0.0, %v1272
      %v1274 = vpop.f32.mrf.mxu0
      %1275 = vmatprep.mubr.f32.mxu0 0.0
      %1276 = vmatmul.mubr.f32.gmra.mxu0 %v678
      %v1277 = vpop.f32.mrf.mxu0
      %v1278 = vadd.f32 0.0, %v1277
      %v1279 = vpop.f32.mrf.mxu0
      %1280 = vmatprep.mubr.f32.mxu0 0.0
      %1281 = vmatmul.mubr.f32.gmra.mxu0 %v681
      %v1282 = vpop.f32.mrf.mxu0
      %v1283 = vadd.f32 0.0, %v1282
      %v1284 = vpop.f32.mrf.mxu0
      %1285 = vmatprep.mubr.f32.mxu0 0.0
      %1286 = vmatmul.mubr.f32.gmra.mxu0 %v684
      %v1287 = vpop.f32.mrf.mxu0
      %v1288 = vadd.f32 0.0, %v1287
      %v1289 = vpop.f32.mrf.mxu0
      %1290 = vmatprep.mubr.f32.mxu0 0.0
      %1291 = vmatmul.mubr.f32.gmra.mxu0 %v687
      %v1292 = vpop.f32.mrf.mxu0
      %v1293 = vadd.f32 0.0, %v1292
      %v1294 = vpop.f32.mrf.mxu0
      %1295 = vmatprep.mubr.f32.mxu0 0.0
      %1296 = vmatmul.mubr.f32.gmra.mxu0 %v690
      %v1297 = vpop.f32.mrf.mxu0
      %v1298 = vadd.f32 0.0, %v1297
      %v1299 = vpop.f32.mrf.mxu0
      %1300 = vmatprep.mubr.f32.mxu0 0.0
      %1301 = vmatmul.mubr.f32.gmra.mxu0 %v693
      %v1302 = vpop.f32.mrf.mxu0
      %v1303 = vadd.f32 0.0, %v1302
      %v1304 = vpop.f32.mrf.mxu0
      %1305 = vmatprep.mubr.f32.mxu0 0.0
      %1306 = vmatmul.mubr.f32.gmra.mxu0 %v696
      %v1307 = vpop.f32.mrf.mxu0
      %v1308 = vadd.f32 0.0, %v1307
      %v1309 = vpop.f32.mrf.mxu0
      %1310 = vmatprep.mubr.f32.mxu0 0.0
      %1311 = vmatmul.mubr.f32.gmra.mxu0 %v699
      %v1312 = vpop.f32.mrf.mxu0
      %v1313 = vadd.f32 0.0, %v1312
      %v1314 = vpop.f32.mrf.mxu0
      %1315 = vmatprep.mubr.f32.mxu0 0.0
      %1316 = vmatmul.mubr.f32.gmra.mxu0 %v702
      %v1317 = vpop.f32.mrf.mxu0
      %v1318 = vadd.f32 0.0, %v1317
      %v1319 = vpop.f32.mrf.mxu0
      %1320 = vmatprep.mubr.f32.mxu0 0.0
      %1321 = vmatmul.mubr.f32.gmra.mxu0 %v705
      %v1322 = vpop.f32.mrf.mxu0
      %v1323 = vadd.f32 0.0, %v1322
      %v1324 = vpop.f32.mrf.mxu0
      %1325 = vmatprep.mubr.f32.mxu0 0.0
      %1326 = vmatmul.mubr.f32.gmra.mxu0 %v708
      %v1327 = vpop.f32.mrf.mxu0
      %v1328 = vadd.f32 0.0, %v1327
      %v1329 = vpop.f32.mrf.mxu0
      %1330 = vmatprep.mubr.f32.mxu0 0.0
      %1331 = vmatmul.mubr.f32.gmra.mxu0 %v711
      %v1332 = vpop.f32.mrf.mxu0
      %v1333 = vadd.f32 0.0, %v1332
      %v1334 = vpop.f32.mrf.mxu0
      %1335 = vmatprep.mubr.f32.mxu0 0.0
      %1336 = vmatmul.mubr.f32.gmra.mxu0 %v714
      %v1337 = vpop.f32.mrf.mxu0
      %v1338 = vadd.f32 0.0, %v1337
      %v1339 = vpop.f32.mrf.mxu0
      %1340 = vmatprep.mubr.f32.mxu0 0.0
      %1341 = vmatmul.mubr.f32.gmra.mxu0 %v717
      %v1342 = vpop.f32.mrf.mxu0
      %v1343 = vadd.f32 0.0, %v1342
      %v1344 = vpop.f32.mrf.mxu0
      %1345 = vmatprep.mubr.f32.mxu0 0.0
      %1346 = vmatmul.mubr.f32.gmra.mxu0 %v720
      %v1347 = vpop.f32.mrf.mxu0
      %v1348 = vadd.f32 0.0, %v1347
      %v1349 = vpop.f32.mrf.mxu0
      %1350 = vmatprep.mubr.f32.mxu0 0.0
      %1351 = vmatmul.mubr.f32.gmra.mxu0 %v723
      %v1352 = vpop.f32.mrf.mxu0
      %v1353 = vadd.f32 0.0, %v1352
      %v1354 = vpop.f32.mrf.mxu0
      %1355 = vmatprep.mubr.f32.mxu0 0.0
      %1356 = vmatmul.mubr.f32.gmra.mxu0 %v726
      %v1357 = vpop.f32.mrf.mxu0
      %v1358 = vadd.f32 0.0, %v1357
      %v1359 = vpop.f32.mrf.mxu0
      %1360 = vmatprep.mubr.f32.mxu0 0.0
      %1361 = vmatmul.mubr.f32.gmra.mxu0 %v729
      %v1362 = vpop.f32.mrf.mxu0
      %v1363 = vadd.f32 0.0, %v1362
      %v1364 = vpop.f32.mrf.mxu0
      %1365 = vmatprep.mubr.f32.mxu0 0.0
      %1366 = vmatmul.mubr.f32.gmra.mxu0 %v732
      %v1367 = vpop.f32.mrf.mxu0
      %v1368 = vadd.f32 0.0, %v1367
      %v1369 = vpop.f32.mrf.mxu0
      %1370 = vmatprep.mubr.f32.mxu0 0.0
      %1371 = vmatmul.mubr.f32.gmra.mxu0 %v735
      %v1372 = vpop.f32.mrf.mxu0
      %v1373 = vadd.f32 0.0, %v1372
      %v1374 = vpop.f32.mrf.mxu0
      %1375 = vmatprep.mubr.f32.mxu0 0.0
      %1376 = vmatmul.mubr.f32.gmra.mxu0 %v738
      %v1377 = vpop.f32.mrf.mxu0
      %v1378 = vadd.f32 0.0, %v1377
      %v1379 = vpop.f32.mrf.mxu0
      %1380 = vmatprep.mubr.f32.mxu0 0.0
      %1381 = vmatmul.mubr.f32.gmra.mxu0 %v741
      %v1382 = vpop.f32.mrf.mxu0
      %v1383 = vadd.f32 0.0, %v1382
      %v1384 = vpop.f32.mrf.mxu0
      %1385 = vmatprep.mubr.f32.mxu0 0.0
      %1386 = vmatmul.mubr.f32.gmra.mxu0 %v744
      %v1387 = vpop.f32.mrf.mxu0
      %v1388 = vadd.f32 0.0, %v1387
      %v1389 = vpop.f32.mrf.mxu0
      %1390 = vmatprep.mubr.f32.mxu0 0.0
      %1391 = vmatmul.mubr.f32.gmra.mxu0 %v747
      %v1392 = vpop.f32.mrf.mxu0
      %v1393 = vadd.f32 0.0, %v1392
      %v1394 = vpop.f32.mrf.mxu0
      %1395 = vmatprep.mubr.f32.mxu0 0.0
      %1396 = vmatmul.mubr.f32.gmra.mxu0 %v750
      %v1397 = vpop.f32.mrf.mxu0
      %v1398 = vadd.f32 0.0, %v1397
      %v1399 = vpop.f32.mrf.mxu0
      %1400 = vmatprep.mubr.f32.mxu0 0.0
      %1401 = vmatmul.mubr.f32.gmra.mxu0 %v753
      %v1402 = vpop.f32.mrf.mxu0
      %v1403 = vadd.f32 0.0, %v1402
      %v1404 = vpop.f32.mrf.mxu0
      %1405 = vmatprep.mubr.f32.mxu0 0.0
      %1406 = vmatmul.mubr.f32.gmra.mxu0 %v756
      %v1407 = vpop.f32.mrf.mxu0
      %v1408 = vadd.f32 0.0, %v1407
      %v1409 = vpop.f32.mrf.mxu0
      %1410 = vmatprep.mubr.f32.mxu0 0.0
      %1411 = vmatmul.mubr.f32.gmra.mxu0 %v759
      %v1412 = vpop.f32.mrf.mxu0
      %v1413 = vadd.f32 0.0, %v1412
      %v1414 = vpop.f32.mrf.mxu0
      %1415 = vmatprep.mubr.f32.mxu0 0.0
      %1416 = vmatmul.mubr.f32.gmra.mxu0 %v762
      %v1417 = vpop.f32.mrf.mxu0
      %v1418 = vadd.f32 0.0, %v1417
      %v1419 = vpop.f32.mrf.mxu0
      %1420 = vmatprep.mubr.f32.mxu0 0.0
      %1421 = vmatmul.mubr.f32.gmra.mxu0 %v765
      %v1422 = vpop.f32.mrf.mxu0
      %v1423 = vadd.f32 0.0, %v1422
      %v1424 = vpop.f32.mrf.mxu0
      %1425 = vmatprep.mubr.f32.mxu0 0.0
      %1426 = vmatmul.mubr.f32.gmra.mxu0 %v768
      %v1427 = vpop.f32.mrf.mxu0
      %v1428 = vadd.f32 0.0, %v1427
      %v1429 = vpop.f32.mrf.mxu0
      %1430 = vmatprep.mubr.f32.mxu0 0.0
      %1431 = vmatmul.mubr.f32.gmra.mxu0 %v771
      %v1432 = vpop.f32.mrf.mxu0
      %v1433 = vadd.f32 0.0, %v1432
      %v1434 = vpop.f32.mrf.mxu0
      %1435 = vmatprep.mubr.f32.mxu0 0.0
      %1436 = vmatmul.mubr.f32.gmra.mxu0 %v774
      %v1437 = vpop.f32.mrf.mxu0
      %v1438 = vadd.f32 0.0, %v1437
      %v1439 = vpop.f32.mrf.mxu0
      %1440 = vmatprep.mubr.f32.mxu0 0.0
      %1441 = vmatmul.mubr.f32.gmra.mxu0 %v777
      %v1442 = vpop.f32.mrf.mxu0
      %v1443 = vadd.f32 0.0, %v1442
      %v1444 = vpop.f32.mrf.mxu0
      %1445 = vmatprep.mubr.f32.mxu0 0.0
      %1446 = vmatmul.mubr.f32.gmra.mxu0 %v780
      %v1447 = vpop.f32.mrf.mxu0
      %v1448 = vadd.f32 0.0, %v1447
      %v1449 = vpop.f32.mrf.mxu0
      %1450 = vmatprep.mubr.f32.mxu0 0.0
      %1451 = vmatmul.mubr.f32.gmra.mxu0 %v783
      %v1452 = vpop.f32.mrf.mxu0
      %v1453 = vadd.f32 0.0, %v1452
      %v1454 = vpop.f32.mrf.mxu0
      %1455 = vmatprep.mubr.f32.mxu0 0.0
      %1456 = vmatmul.mubr.f32.gmra.mxu0 %v786
      %v1457 = vpop.f32.mrf.mxu0
      %v1458 = vadd.f32 0.0, %v1457
      %v1459 = vpop.f32.mrf.mxu0
      %1460 = vmatprep.mubr.f32.mxu0 0.0
      %1461 = vmatmul.mubr.f32.gmra.mxu0 %v789
      %v1462 = vpop.f32.mrf.mxu0
      %v1463 = vadd.f32 0.0, %v1462
      %v1464 = vpop.f32.mrf.mxu0
      %1465 = vmatprep.mubr.f32.mxu0 0.0
      %1466 = vmatmul.mubr.f32.gmra.mxu0 %v792
      %v1467 = vpop.f32.mrf.mxu0
      %v1468 = vadd.f32 0.0, %v1467
      %v1469 = vpop.f32.mrf.mxu0
      %1470 = vmatprep.mubr.f32.mxu0 0.0
      %1471 = vmatmul.mubr.f32.gmra.mxu0 %v795
      %v1472 = vpop.f32.mrf.mxu0
      %v1473 = vadd.f32 0.0, %v1472
      %v1474 = vpop.f32.mrf.mxu0
      %1475 = vmatprep.mubr.f32.mxu0 0.0
      %1476 = vmatmul.mubr.f32.gmra.mxu0 %v798
      %v1477 = vpop.f32.mrf.mxu0
      %v1478 = vadd.f32 0.0, %v1477
      %v1479 = vpop.f32.mrf.mxu0
      %1480 = vmatprep.mubr.f32.mxu0 0.0
      %1481 = vmatmul.mubr.f32.gmra.mxu0 %v801
      %v1482 = vpop.f32.mrf.mxu0
      %v1483 = vadd.f32 0.0, %v1482
      %v1484 = vpop.f32.mrf.mxu0
      %1485 = vmatprep.mubr.f32.mxu0 0.0
      %1486 = vmatmul.mubr.f32.gmra.mxu0 %v804
      %v1487 = vpop.f32.mrf.mxu0
      %v1488 = vadd.f32 0.0, %v1487
      %v1489 = vpop.f32.mrf.mxu0
      %1490 = vmatprep.mubr.f32.mxu0 0.0
      %1491 = vmatmul.mubr.f32.gmra.mxu0 %v807
      %v1492 = vpop.f32.mrf.mxu0
      %v1493 = vadd.f32 0.0, %v1492
      %v1494 = vpop.f32.mrf.mxu0
      %1495 = vmatprep.mubr.f32.mxu0 0.0
      %1496 = vmatmul.mubr.f32.gmra.mxu0 %v810
      %v1497 = vpop.f32.mrf.mxu0
      %v1498 = vadd.f32 0.0, %v1497
      %v1499 = vpop.f32.mrf.mxu0
      %1500 = vmatprep.mubr.f32.mxu0 0.0
      %1501 = vmatmul.mubr.f32.gmra.mxu0 %v813
      %v1502 = vpop.f32.mrf.mxu0
      %v1503 = vadd.f32 0.0, %v1502
      %v1504 = vpop.f32.mrf.mxu0
      %1505 = vmatprep.mubr.f32.mxu0 0.0
      %1506 = vmatmul.mubr.f32.gmra.mxu0 %v816
      %v1507 = vpop.f32.mrf.mxu0
      %v1508 = vadd.f32 0.0, %v1507
      %v1509 = vpop.f32.mrf.mxu0
      %1510 = vmatprep.mubr.f32.mxu0 0.0
      %1511 = vmatmul.mubr.f32.gmra.mxu0 %v819
      %v1512 = vpop.f32.mrf.mxu0
      %v1513 = vadd.f32 0.0, %v1512
      %v1514 = vpop.f32.mrf.mxu0
      %1515 = vmatprep.mubr.f32.mxu0 0.0
      %1516 = vmatmul.mubr.f32.gmra.mxu0 %v822
      %v1517 = vpop.f32.mrf.mxu0
      %v1518 = vadd.f32 0.0, %v1517
      %v1519 = vpop.f32.mrf.mxu0
      %1520 = vmatprep.mubr.f32.mxu0 0.0
      %1521 = vmatmul.mubr.f32.gmra.mxu0 %v825
      %v1522 = vpop.f32.mrf.mxu0
      %v1523 = vadd.f32 0.0, %v1522
      %v1524 = vpop.f32.mrf.mxu0
      %1525 = vmatprep.mubr.f32.mxu0 0.0
      %1526 = vmatmul.mubr.f32.gmra.mxu0 %v828
      %v1527 = vpop.f32.mrf.mxu0
      %v1528 = vadd.f32 0.0, %v1527
      %v1529 = vpop.f32.mrf.mxu0
      %1530 = vmatprep.mubr.f32.mxu0 0.0
      %1531 = vmatmul.mubr.f32.gmra.mxu0 %v831
      %v1532 = vpop.f32.mrf.mxu0
      %v1533 = vadd.f32 0.0, %v1532
      %v1534 = vpop.f32.mrf.mxu0
      %1535 = vmatprep.mubr.f32.mxu0 0.0
      %1536 = vmatmul.mubr.f32.gmra.mxu0 %v834
      %v1537 = vpop.f32.mrf.mxu0
      %v1538 = vadd.f32 0.0, %v1537
      %v1539 = vpop.f32.mrf.mxu0
      %1540 = vmatprep.mubr.f32.mxu0 0.0
      %1541 = vmatmul.mubr.f32.gmra.mxu0 %v837
      %v1542 = vpop.f32.mrf.mxu0
      %v1543 = vadd.f32 0.0, %v1542
      %v1544 = vpop.f32.mrf.mxu0
      %1545 = vmatprep.mubr.f32.mxu0 0.0
      %1546 = vmatmul.mubr.f32.gmra.mxu0 %v840
      %v1547 = vpop.f32.mrf.mxu0
      %v1548 = vadd.f32 0.0, %v1547
      %v1549 = vpop.f32.mrf.mxu0
      %1550 = vdwg.mxu0
      %v1552 = vsel %vm457, %v198, 0
      %v1555 = vsel %vm457, %v199, 0
      %v1558 = vsel %vm457, %v200, 0
      %v1561 = vsel %vm457, %v201, 0
      %v1564 = vsel %vm457, %v202, 0
      %v1567 = vsel %vm457, %v203, 0
      %v1570 = vsel %vm457, %v204, 0
      %v1573 = vsel %vm457, %v205, 0
      %v1576 = vsel %vm457, %v206, 0
      %v1579 = vsel %vm457, %v207, 0
      %v1582 = vsel %vm457, %v208, 0
      %v1585 = vsel %vm457, %v209, 0
      %v1588 = vsel %vm457, %v210, 0
      %v1591 = vsel %vm457, %v211, 0
      %v1594 = vsel %vm457, %v212, 0
      %v1597 = vsel %vm457, %v213, 0
      %v1600 = vsel %vm457, %v214, 0
      %v1603 = vsel %vm457, %v215, 0
      %v1606 = vsel %vm457, %v216, 0
      %v1609 = vsel %vm457, %v217, 0
      %v1612 = vsel %vm457, %v218, 0
      %v1615 = vsel %vm457, %v219, 0
      %v1618 = vsel %vm457, %v220, 0
      %v1621 = vsel %vm457, %v221, 0
      %v1624 = vsel %vm457, %v222, 0
      %v1627 = vsel %vm457, %v223, 0
      %v1630 = vsel %vm457, %v224, 0
      %v1633 = vsel %vm457, %v225, 0
      %v1636 = vsel %vm457, %v226, 0
      %v1639 = vsel %vm457, %v227, 0
      %v1642 = vsel %vm457, %v228, 0
      %v1645 = vsel %vm457, %v229, 0
      %v1648 = vsel %vm457, %v230, 0
      %v1651 = vsel %vm457, %v231, 0
      %v1654 = vsel %vm457, %v232, 0
      %v1657 = vsel %vm457, %v233, 0
      %v1660 = vsel %vm457, %v234, 0
      %v1663 = vsel %vm457, %v235, 0
      %v1666 = vsel %vm457, %v236, 0
      %v1669 = vsel %vm457, %v237, 0
      %v1672 = vsel %vm457, %v238, 0
      %v1675 = vsel %vm457, %v239, 0
      %v1678 = vsel %vm457, %v240, 0
      %v1681 = vsel %vm457, %v241, 0
      %v1684 = vsel %vm457, %v242, 0
      %v1687 = vsel %vm457, %v243, 0
      %v1690 = vsel %vm457, %v244, 0
      %v1693 = vsel %vm457, %v245, 0
      %v1696 = vsel %vm457, %v246, 0
      %v1699 = vsel %vm457, %v247, 0
      %v1702 = vsel %vm457, %v248, 0
      %v1705 = vsel %vm457, %v249, 0
      %v1708 = vsel %vm457, %v250, 0
      %v1711 = vsel %vm457, %v251, 0
      %v1714 = vsel %vm457, %v252, 0
      %v1717 = vsel %vm457, %v253, 0
      %v1720 = vsel %vm457, %v254, 0
      %v1723 = vsel %vm457, %v255, 0
      %v1726 = vsel %vm457, %v256, 0
      %v1729 = vsel %vm457, %v257, 0
      %v1732 = vsel %vm457, %v258, 0
      %v1735 = vsel %vm457, %v259, 0
      %v1738 = vsel %vm457, %v260, 0
      %v1741 = vsel %vm457, %v261, 0
      %v1744 = vsel %vm457, %v262, 0
      %v1747 = vsel %vm457, %v263, 0
      %v1750 = vsel %vm457, %v264, 0
      %v1753 = vsel %vm457, %v265, 0
      %v1756 = vsel %vm457, %v266, 0
      %v1759 = vsel %vm457, %v267, 0
      %v1762 = vsel %vm457, %v268, 0
      %v1765 = vsel %vm457, %v269, 0
      %v1768 = vsel %vm457, %v270, 0
      %v1771 = vsel %vm457, %v271, 0
      %v1774 = vsel %vm457, %v272, 0
      %v1777 = vsel %vm457, %v273, 0
      %v1780 = vsel %vm457, %v274, 0
      %v1783 = vsel %vm457, %v275, 0
      %v1786 = vsel %vm457, %v276, 0
      %v1789 = vsel %vm457, %v277, 0
      %v1792 = vsel %vm457, %v278, 0
      %v1795 = vsel %vm457, %v279, 0
      %v1798 = vsel %vm457, %v280, 0
      %v1801 = vsel %vm457, %v281, 0
      %v1804 = vsel %vm457, %v282, 0
      %v1807 = vsel %vm457, %v283, 0
      %v1810 = vsel %vm457, %v284, 0
      %v1813 = vsel %vm457, %v285, 0
      %v1816 = vsel %vm457, %v286, 0
      %v1819 = vsel %vm457, %v287, 0
      %v1822 = vsel %vm457, %v288, 0
      %v1825 = vsel %vm457, %v289, 0
      %v1828 = vsel %vm457, %v290, 0
      %v1831 = vsel %vm457, %v291, 0
      %v1834 = vsel %vm457, %v292, 0
      %v1837 = vsel %vm457, %v293, 0
      %v1840 = vsel %vm457, %v294, 0
      %v1843 = vsel %vm457, %v295, 0
      %v1846 = vsel %vm457, %v296, 0
      %v1849 = vsel %vm457, %v297, 0
      %v1852 = vsel %vm457, %v298, 0
      %v1855 = vsel %vm457, %v299, 0
      %v1858 = vsel %vm457, %v300, 0
      %v1861 = vsel %vm457, %v301, 0
      %v1864 = vsel %vm457, %v302, 0
      %v1867 = vsel %vm457, %v303, 0
      %v1870 = vsel %vm457, %v304, 0
      %v1873 = vsel %vm457, %v305, 0
      %v1876 = vsel %vm457, %v306, 0
      %v1879 = vsel %vm457, %v307, 0
      %v1882 = vsel %vm457, %v308, 0
      %v1885 = vsel %vm457, %v309, 0
      %v1888 = vsel %vm457, %v310, 0
      %v1891 = vsel %vm457, %v311, 0
      %v1894 = vsel %vm457, %v312, 0
      %v1897 = vsel %vm457, %v313, 0
      %v1900 = vsel %vm457, %v314, 0
      %v1903 = vsel %vm457, %v315, 0
      %v1906 = vsel %vm457, %v316, 0
      %v1909 = vsel %vm457, %v317, 0
      %v1912 = vsel %vm457, %v318, 0
      %v1915 = vsel %vm457, %v319, 0
      %v1918 = vsel %vm457, %v320, 0
      %v1921 = vsel %vm457, %v321, 0
      %v1924 = vsel %vm457, %v322, 0
      %v1927 = vsel %vm457, %v323, 0
      %v1930 = vsel %vm457, %v324, 0
      %v1933 = vsel %vm457, %v325, 0
      %v1936 = vsel %vm842, %v326, 0
      %1938 = vmatprep.subr.mxu0 0.0
      %1939 = vmatpush1.msra.mxu0 0.0
      %1940 = vmatprep.subr.mxu0 0.0
      %1941 = vmatpush1.msra.mxu0 0.0
      %1942 = vmatprep.subr.mxu0 0.0
      %1943 = vmatpush1.msra.mxu0 0.0
      %1944 = vmatprep.subr.mxu0 0.0
      %1945 = vmatpush1.msra.mxu0 0.0
      %1946 = vmatprep.subr.mxu0 0.0
      %1947 = vmatpush1.msra.mxu0 0.0
      %1948 = vmatprep.subr.mxu0 0.0
      %1949 = vmatpush1.msra.mxu0 0.0
      %1950 = vmatprep.subr.mxu0 0.0
      %1951 = vmatpush1.msra.mxu0 0.0
      %1952 = vmatprep.subr.mxu0 0.0
      %1953 = vmatpush1.msra.mxu0 0.0
      %1954 = vmatprep.subr.mxu0 0.0
      %1955 = vmatpush1.msra.mxu0 0.0
      %1956 = vmatprep.subr.mxu0 0.0
      %1957 = vmatpush1.msra.mxu0 0.0
      %1958 = vmatprep.subr.mxu0 0.0
      %1959 = vmatpush1.msra.mxu0 0.0
      %1960 = vmatprep.subr.mxu0 0.0
      %1961 = vmatpush1.msra.mxu0 0.0
      %1962 = vmatprep.subr.mxu0 0.0
      %1963 = vmatpush1.msra.mxu0 0.0
      %1964 = vmatprep.subr.mxu0 0.0
      %1965 = vmatpush1.msra.mxu0 0.0
      %1966 = vmatprep.subr.mxu0 0.0
      %1967 = vmatpush1.msra.mxu0 0.0
      %1968 = vmatprep.subr.mxu0 0.0
      %1969 = vmatpush1.msra.mxu0 %v1936
      %1970 = vmatprep.subr.mxu0 0.0
      %1971 = vmatpush2.msra.mxu0 0.0
      %1972 = vmatprep.subr.mxu0 0.0
      %1973 = vmatpush2.msra.mxu0 0.0
      %1974 = vmatprep.subr.mxu0 0.0
      %1975 = vmatpush2.msra.mxu0 0.0
      %1976 = vmatprep.subr.mxu0 0.0
      %1977 = vmatpush2.msra.mxu0 0.0
      %1978 = vmatprep.subr.mxu0 0.0
      %1979 = vmatpush2.msra.mxu0 0.0
      %1980 = vmatprep.subr.mxu0 0.0
      %1981 = vmatpush2.msra.mxu0 0.0
      %1982 = vmatprep.subr.mxu0 0.0
      %1983 = vmatpush2.msra.mxu0 0.0
      %1984 = vmatprep.subr.mxu0 0.0
      %1985 = vmatpush2.msra.mxu0 0.0
      %1986 = vmatprep.subr.mxu0 0.0
      %1987 = vmatpush2.msra.mxu0 0.0
      %1988 = vmatprep.subr.mxu0 0.0
      %1989 = vmatpush2.msra.mxu0 0.0
      %1990 = vmatprep.subr.mxu0 0.0
      %1991 = vmatpush2.msra.mxu0 0.0
      %1992 = vmatprep.subr.mxu0 0.0
      %1993 = vmatpush2.msra.mxu0 0.0
      %1994 = vmatprep.subr.mxu0 0.0
      %1995 = vmatpush2.msra.mxu0 0.0
      %1996 = vmatprep.subr.mxu0 0.0
      %1997 = vmatpush2.msra.mxu0 0.0
      %1998 = vmatprep.subr.mxu0 0.0
      %1999 = vmatpush2.msra.mxu0 0.0
      %2000 = vmatprep.subr.mxu0 0.0
      %2001 = vmatpush2.msra.mxu0 0.0
      %2002 = vmatprep.mubr.f32.mxu0 0.0
      %2003 = vmatmul.mubr.f32.gmra.mxu0 %v1552
      %v2004 = vpop.f32.mrf.mxu0
      %v2005 = vadd.f32 %v913, %v2004
      %v2006 = vpop.f32.mrf.mxu0
      %2007 = vmatprep.mubr.f32.mxu0 0.0
      %2008 = vmatmul.mubr.f32.gmra.mxu0 %v1555
      %v2009 = vpop.f32.mrf.mxu0
      %v2010 = vadd.f32 %v918, %v2009
      %v2011 = vpop.f32.mrf.mxu0
      %2012 = vmatprep.mubr.f32.mxu0 0.0
      %2013 = vmatmul.mubr.f32.gmra.mxu0 %v1558
      %v2014 = vpop.f32.mrf.mxu0
      %v2015 = vadd.f32 %v923, %v2014
      %v2016 = vpop.f32.mrf.mxu0
      %2017 = vmatprep.mubr.f32.mxu0 0.0
      %2018 = vmatmul.mubr.f32.gmra.mxu0 %v1561
      %v2019 = vpop.f32.mrf.mxu0
      %v2020 = vadd.f32 %v928, %v2019
      %v2021 = vpop.f32.mrf.mxu0
      %2022 = vmatprep.mubr.f32.mxu0 0.0
      %2023 = vmatmul.mubr.f32.gmra.mxu0 %v1564
      %v2024 = vpop.f32.mrf.mxu0
      %v2025 = vadd.f32 %v933, %v2024
      %v2026 = vpop.f32.mrf.mxu0
      %2027 = vmatprep.mubr.f32.mxu0 0.0
      %2028 = vmatmul.mubr.f32.gmra.mxu0 %v1567
      %v2029 = vpop.f32.mrf.mxu0
      %v2030 = vadd.f32 %v938, %v2029
      %v2031 = vpop.f32.mrf.mxu0
      %2032 = vmatprep.mubr.f32.mxu0 0.0
      %2033 = vmatmul.mubr.f32.gmra.mxu0 %v1570
      %v2034 = vpop.f32.mrf.mxu0
      %v2035 = vadd.f32 %v943, %v2034
      %v2036 = vpop.f32.mrf.mxu0
      %2037 = vmatprep.mubr.f32.mxu0 0.0
      %2038 = vmatmul.mubr.f32.gmra.mxu0 %v1573
      %v2039 = vpop.f32.mrf.mxu0
      %v2040 = vadd.f32 %v948, %v2039
      %v2041 = vpop.f32.mrf.mxu0
      %2042 = vmatprep.mubr.f32.mxu0 0.0
      %2043 = vmatmul.mubr.f32.gmra.mxu0 %v1576
      %v2044 = vpop.f32.mrf.mxu0
      %v2045 = vadd.f32 %v953, %v2044
      %v2046 = vpop.f32.mrf.mxu0
      %2047 = vmatprep.mubr.f32.mxu0 0.0
      %2048 = vmatmul.mubr.f32.gmra.mxu0 %v1579
      %v2049 = vpop.f32.mrf.mxu0
      %v2050 = vadd.f32 %v958, %v2049
      %v2051 = vpop.f32.mrf.mxu0
      %2052 = vmatprep.mubr.f32.mxu0 0.0
      %2053 = vmatmul.mubr.f32.gmra.mxu0 %v1582
      %v2054 = vpop.f32.mrf.mxu0
      %v2055 = vadd.f32 %v963, %v2054
      %v2056 = vpop.f32.mrf.mxu0
      %2057 = vmatprep.mubr.f32.mxu0 0.0
      %2058 = vmatmul.mubr.f32.gmra.mxu0 %v1585
      %v2059 = vpop.f32.mrf.mxu0
      %v2060 = vadd.f32 %v968, %v2059
      %v2061 = vpop.f32.mrf.mxu0
      %2062 = vmatprep.mubr.f32.mxu0 0.0
      %2063 = vmatmul.mubr.f32.gmra.mxu0 %v1588
      %v2064 = vpop.f32.mrf.mxu0
      %v2065 = vadd.f32 %v973, %v2064
      %v2066 = vpop.f32.mrf.mxu0
      %2067 = vmatprep.mubr.f32.mxu0 0.0
      %2068 = vmatmul.mubr.f32.gmra.mxu0 %v1591
      %v2069 = vpop.f32.mrf.mxu0
      %v2070 = vadd.f32 %v978, %v2069
      %v2071 = vpop.f32.mrf.mxu0
      %2072 = vmatprep.mubr.f32.mxu0 0.0
      %2073 = vmatmul.mubr.f32.gmra.mxu0 %v1594
      %v2074 = vpop.f32.mrf.mxu0
      %v2075 = vadd.f32 %v983, %v2074
      %v2076 = vpop.f32.mrf.mxu0
      %2077 = vmatprep.mubr.f32.mxu0 0.0
      %2078 = vmatmul.mubr.f32.gmra.mxu0 %v1597
      %v2079 = vpop.f32.mrf.mxu0
      %v2080 = vadd.f32 %v988, %v2079
      %v2081 = vpop.f32.mrf.mxu0
      %2082 = vmatprep.mubr.f32.mxu0 0.0
      %2083 = vmatmul.mubr.f32.gmra.mxu0 %v1600
      %v2084 = vpop.f32.mrf.mxu0
      %v2085 = vadd.f32 %v993, %v2084
      %v2086 = vpop.f32.mrf.mxu0
      %2087 = vmatprep.mubr.f32.mxu0 0.0
      %2088 = vmatmul.mubr.f32.gmra.mxu0 %v1603
      %v2089 = vpop.f32.mrf.mxu0
      %v2090 = vadd.f32 %v998, %v2089
      %v2091 = vpop.f32.mrf.mxu0
      %2092 = vmatprep.mubr.f32.mxu0 0.0
      %2093 = vmatmul.mubr.f32.gmra.mxu0 %v1606
      %v2094 = vpop.f32.mrf.mxu0
      %v2095 = vadd.f32 %v1003, %v2094
      %v2096 = vpop.f32.mrf.mxu0
      %2097 = vmatprep.mubr.f32.mxu0 0.0
      %2098 = vmatmul.mubr.f32.gmra.mxu0 %v1609
      %v2099 = vpop.f32.mrf.mxu0
      %v2100 = vadd.f32 %v1008, %v2099
      %v2101 = vpop.f32.mrf.mxu0
      %2102 = vmatprep.mubr.f32.mxu0 0.0
      %2103 = vmatmul.mubr.f32.gmra.mxu0 %v1612
      %v2104 = vpop.f32.mrf.mxu0
      %v2105 = vadd.f32 %v1013, %v2104
      %v2106 = vpop.f32.mrf.mxu0
      %2107 = vmatprep.mubr.f32.mxu0 0.0
      %2108 = vmatmul.mubr.f32.gmra.mxu0 %v1615
      %v2109 = vpop.f32.mrf.mxu0
      %v2110 = vadd.f32 %v1018, %v2109
      %v2111 = vpop.f32.mrf.mxu0
      %2112 = vmatprep.mubr.f32.mxu0 0.0
      %2113 = vmatmul.mubr.f32.gmra.mxu0 %v1618
      %v2114 = vpop.f32.mrf.mxu0
      %v2115 = vadd.f32 %v1023, %v2114
      %v2116 = vpop.f32.mrf.mxu0
      %2117 = vmatprep.mubr.f32.mxu0 0.0
      %2118 = vmatmul.mubr.f32.gmra.mxu0 %v1621
      %v2119 = vpop.f32.mrf.mxu0
      %v2120 = vadd.f32 %v1028, %v2119
      %v2121 = vpop.f32.mrf.mxu0
      %2122 = vmatprep.mubr.f32.mxu0 0.0
      %2123 = vmatmul.mubr.f32.gmra.mxu0 %v1624
      %v2124 = vpop.f32.mrf.mxu0
      %v2125 = vadd.f32 %v1033, %v2124
      %v2126 = vpop.f32.mrf.mxu0
      %2127 = vmatprep.mubr.f32.mxu0 0.0
      %2128 = vmatmul.mubr.f32.gmra.mxu0 %v1627
      %v2129 = vpop.f32.mrf.mxu0
      %v2130 = vadd.f32 %v1038, %v2129
      %v2131 = vpop.f32.mrf.mxu0
      %2132 = vmatprep.mubr.f32.mxu0 0.0
      %2133 = vmatmul.mubr.f32.gmra.mxu0 %v1630
      %v2134 = vpop.f32.mrf.mxu0
      %v2135 = vadd.f32 %v1043, %v2134
      %v2136 = vpop.f32.mrf.mxu0
      %2137 = vmatprep.mubr.f32.mxu0 0.0
      %2138 = vmatmul.mubr.f32.gmra.mxu0 %v1633
      %v2139 = vpop.f32.mrf.mxu0
      %v2140 = vadd.f32 %v1048, %v2139
      %v2141 = vpop.f32.mrf.mxu0
      %2142 = vmatprep.mubr.f32.mxu0 0.0
      %2143 = vmatmul.mubr.f32.gmra.mxu0 %v1636
      %v2144 = vpop.f32.mrf.mxu0
      %v2145 = vadd.f32 %v1053, %v2144
      %v2146 = vpop.f32.mrf.mxu0
      %2147 = vmatprep.mubr.f32.mxu0 0.0
      %2148 = vmatmul.mubr.f32.gmra.mxu0 %v1639
      %v2149 = vpop.f32.mrf.mxu0
      %v2150 = vadd.f32 %v1058, %v2149
      %v2151 = vpop.f32.mrf.mxu0
      %2152 = vmatprep.mubr.f32.mxu0 0.0
      %2153 = vmatmul.mubr.f32.gmra.mxu0 %v1642
      %v2154 = vpop.f32.mrf.mxu0
      %v2155 = vadd.f32 %v1063, %v2154
      %v2156 = vpop.f32.mrf.mxu0
      %2157 = vmatprep.mubr.f32.mxu0 0.0
      %2158 = vmatmul.mubr.f32.gmra.mxu0 %v1645
      %v2159 = vpop.f32.mrf.mxu0
      %v2160 = vadd.f32 %v1068, %v2159
      %v2161 = vpop.f32.mrf.mxu0
      %2162 = vmatprep.mubr.f32.mxu0 0.0
      %2163 = vmatmul.mubr.f32.gmra.mxu0 %v1648
      %v2164 = vpop.f32.mrf.mxu0
      %v2165 = vadd.f32 %v1073, %v2164
      %v2166 = vpop.f32.mrf.mxu0
      %2167 = vmatprep.mubr.f32.mxu0 0.0
      %2168 = vmatmul.mubr.f32.gmra.mxu0 %v1651
      %v2169 = vpop.f32.mrf.mxu0
      %v2170 = vadd.f32 %v1078, %v2169
      %v2171 = vpop.f32.mrf.mxu0
      %2172 = vmatprep.mubr.f32.mxu0 0.0
      %2173 = vmatmul.mubr.f32.gmra.mxu0 %v1654
      %v2174 = vpop.f32.mrf.mxu0
      %v2175 = vadd.f32 %v1083, %v2174
      %v2176 = vpop.f32.mrf.mxu0
      %2177 = vmatprep.mubr.f32.mxu0 0.0
      %2178 = vmatmul.mubr.f32.gmra.mxu0 %v1657
      %v2179 = vpop.f32.mrf.mxu0
      %v2180 = vadd.f32 %v1088, %v2179
      %v2181 = vpop.f32.mrf.mxu0
      %2182 = vmatprep.mubr.f32.mxu0 0.0
      %2183 = vmatmul.mubr.f32.gmra.mxu0 %v1660
      %v2184 = vpop.f32.mrf.mxu0
      %v2185 = vadd.f32 %v1093, %v2184
      %v2186 = vpop.f32.mrf.mxu0
      %2187 = vmatprep.mubr.f32.mxu0 0.0
      %2188 = vmatmul.mubr.f32.gmra.mxu0 %v1663
      %v2189 = vpop.f32.mrf.mxu0
      %v2190 = vadd.f32 %v1098, %v2189
      %v2191 = vpop.f32.mrf.mxu0
      %2192 = vmatprep.mubr.f32.mxu0 0.0
      %2193 = vmatmul.mubr.f32.gmra.mxu0 %v1666
      %v2194 = vpop.f32.mrf.mxu0
      %v2195 = vadd.f32 %v1103, %v2194
      %v2196 = vpop.f32.mrf.mxu0
      %2197 = vmatprep.mubr.f32.mxu0 0.0
      %2198 = vmatmul.mubr.f32.gmra.mxu0 %v1669
      %v2199 = vpop.f32.mrf.mxu0
      %v2200 = vadd.f32 %v1108, %v2199
      %v2201 = vpop.f32.mrf.mxu0
      %2202 = vmatprep.mubr.f32.mxu0 0.0
      %2203 = vmatmul.mubr.f32.gmra.mxu0 %v1672
      %v2204 = vpop.f32.mrf.mxu0
      %v2205 = vadd.f32 %v1113, %v2204
      %v2206 = vpop.f32.mrf.mxu0
      %2207 = vmatprep.mubr.f32.mxu0 0.0
      %2208 = vmatmul.mubr.f32.gmra.mxu0 %v1675
      %v2209 = vpop.f32.mrf.mxu0
      %v2210 = vadd.f32 %v1118, %v2209
      %v2211 = vpop.f32.mrf.mxu0
      %2212 = vmatprep.mubr.f32.mxu0 0.0
      %2213 = vmatmul.mubr.f32.gmra.mxu0 %v1678
      %v2214 = vpop.f32.mrf.mxu0
      %v2215 = vadd.f32 %v1123, %v2214
      %v2216 = vpop.f32.mrf.mxu0
      %2217 = vmatprep.mubr.f32.mxu0 0.0
      %2218 = vmatmul.mubr.f32.gmra.mxu0 %v1681
      %v2219 = vpop.f32.mrf.mxu0
      %v2220 = vadd.f32 %v1128, %v2219
      %v2221 = vpop.f32.mrf.mxu0
      %2222 = vmatprep.mubr.f32.mxu0 0.0
      %2223 = vmatmul.mubr.f32.gmra.mxu0 %v1684
      %v2224 = vpop.f32.mrf.mxu0
      %v2225 = vadd.f32 %v1133, %v2224
      %v2226 = vpop.f32.mrf.mxu0
      %2227 = vmatprep.mubr.f32.mxu0 0.0
      %2228 = vmatmul.mubr.f32.gmra.mxu0 %v1687
      %v2229 = vpop.f32.mrf.mxu0
      %v2230 = vadd.f32 %v1138, %v2229
      %v2231 = vpop.f32.mrf.mxu0
      %2232 = vmatprep.mubr.f32.mxu0 0.0
      %2233 = vmatmul.mubr.f32.gmra.mxu0 %v1690
      %v2234 = vpop.f32.mrf.mxu0
      %v2235 = vadd.f32 %v1143, %v2234
      %v2236 = vpop.f32.mrf.mxu0
      %2237 = vmatprep.mubr.f32.mxu0 0.0
      %2238 = vmatmul.mubr.f32.gmra.mxu0 %v1693
      %v2239 = vpop.f32.mrf.mxu0
      %v2240 = vadd.f32 %v1148, %v2239
      %v2241 = vpop.f32.mrf.mxu0
      %2242 = vmatprep.mubr.f32.mxu0 0.0
      %2243 = vmatmul.mubr.f32.gmra.mxu0 %v1696
      %v2244 = vpop.f32.mrf.mxu0
      %v2245 = vadd.f32 %v1153, %v2244
      %v2246 = vpop.f32.mrf.mxu0
      %2247 = vmatprep.mubr.f32.mxu0 0.0
      %2248 = vmatmul.mubr.f32.gmra.mxu0 %v1699
      %v2249 = vpop.f32.mrf.mxu0
      %v2250 = vadd.f32 %v1158, %v2249
      %v2251 = vpop.f32.mrf.mxu0
      %2252 = vmatprep.mubr.f32.mxu0 0.0
      %2253 = vmatmul.mubr.f32.gmra.mxu0 %v1702
      %v2254 = vpop.f32.mrf.mxu0
      %v2255 = vadd.f32 %v1163, %v2254
      %v2256 = vpop.f32.mrf.mxu0
      %2257 = vmatprep.mubr.f32.mxu0 0.0
      %2258 = vmatmul.mubr.f32.gmra.mxu0 %v1705
      %v2259 = vpop.f32.mrf.mxu0
      %v2260 = vadd.f32 %v1168, %v2259
      %v2261 = vpop.f32.mrf.mxu0
      %2262 = vmatprep.mubr.f32.mxu0 0.0
      %2263 = vmatmul.mubr.f32.gmra.mxu0 %v1708
      %v2264 = vpop.f32.mrf.mxu0
      %v2265 = vadd.f32 %v1173, %v2264
      %v2266 = vpop.f32.mrf.mxu0
      %2267 = vmatprep.mubr.f32.mxu0 0.0
      %2268 = vmatmul.mubr.f32.gmra.mxu0 %v1711
      %v2269 = vpop.f32.mrf.mxu0
      %v2270 = vadd.f32 %v1178, %v2269
      %v2271 = vpop.f32.mrf.mxu0
      %2272 = vmatprep.mubr.f32.mxu0 0.0
      %2273 = vmatmul.mubr.f32.gmra.mxu0 %v1714
      %v2274 = vpop.f32.mrf.mxu0
      %v2275 = vadd.f32 %v1183, %v2274
      %v2276 = vpop.f32.mrf.mxu0
      %2277 = vmatprep.mubr.f32.mxu0 0.0
      %2278 = vmatmul.mubr.f32.gmra.mxu0 %v1717
      %v2279 = vpop.f32.mrf.mxu0
      %v2280 = vadd.f32 %v1188, %v2279
      %v2281 = vpop.f32.mrf.mxu0
      %2282 = vmatprep.mubr.f32.mxu0 0.0
      %2283 = vmatmul.mubr.f32.gmra.mxu0 %v1720
      %v2284 = vpop.f32.mrf.mxu0
      %v2285 = vadd.f32 %v1193, %v2284
      %v2286 = vpop.f32.mrf.mxu0
      %2287 = vmatprep.mubr.f32.mxu0 0.0
      %2288 = vmatmul.mubr.f32.gmra.mxu0 %v1723
      %v2289 = vpop.f32.mrf.mxu0
      %v2290 = vadd.f32 %v1198, %v2289
      %v2291 = vpop.f32.mrf.mxu0
      %2292 = vmatprep.mubr.f32.mxu0 0.0
      %2293 = vmatmul.mubr.f32.gmra.mxu0 %v1726
      %v2294 = vpop.f32.mrf.mxu0
      %v2295 = vadd.f32 %v1203, %v2294
      %v2296 = vpop.f32.mrf.mxu0
      %2297 = vmatprep.mubr.f32.mxu0 0.0
      %2298 = vmatmul.mubr.f32.gmra.mxu0 %v1729
      %v2299 = vpop.f32.mrf.mxu0
      %v2300 = vadd.f32 %v1208, %v2299
      %v2301 = vpop.f32.mrf.mxu0
      %2302 = vmatprep.mubr.f32.mxu0 0.0
      %2303 = vmatmul.mubr.f32.gmra.mxu0 %v1732
      %v2304 = vpop.f32.mrf.mxu0
      %v2305 = vadd.f32 %v1213, %v2304
      %v2306 = vpop.f32.mrf.mxu0
      %2307 = vmatprep.mubr.f32.mxu0 0.0
      %2308 = vmatmul.mubr.f32.gmra.mxu0 %v1735
      %v2309 = vpop.f32.mrf.mxu0
      %v2310 = vadd.f32 %v1218, %v2309
      %v2311 = vpop.f32.mrf.mxu0
      %2312 = vmatprep.mubr.f32.mxu0 0.0
      %2313 = vmatmul.mubr.f32.gmra.mxu0 %v1738
      %v2314 = vpop.f32.mrf.mxu0
      %v2315 = vadd.f32 %v1223, %v2314
      %v2316 = vpop.f32.mrf.mxu0
      %2317 = vmatprep.mubr.f32.mxu0 0.0
      %2318 = vmatmul.mubr.f32.gmra.mxu0 %v1741
      %v2319 = vpop.f32.mrf.mxu0
      %v2320 = vadd.f32 %v1228, %v2319
      %v2321 = vpop.f32.mrf.mxu0
      %2322 = vmatprep.mubr.f32.mxu0 0.0
      %2323 = vmatmul.mubr.f32.gmra.mxu0 %v1744
      %v2324 = vpop.f32.mrf.mxu0
      %v2325 = vadd.f32 %v1233, %v2324
      %v2326 = vpop.f32.mrf.mxu0
      %2327 = vmatprep.mubr.f32.mxu0 0.0
      %2328 = vmatmul.mubr.f32.gmra.mxu0 %v1747
      %v2329 = vpop.f32.mrf.mxu0
      %v2330 = vadd.f32 %v1238, %v2329
      %v2331 = vpop.f32.mrf.mxu0
      %2332 = vmatprep.mubr.f32.mxu0 0.0
      %2333 = vmatmul.mubr.f32.gmra.mxu0 %v1750
      %v2334 = vpop.f32.mrf.mxu0
      %v2335 = vadd.f32 %v1243, %v2334
      %v2336 = vpop.f32.mrf.mxu0
      %2337 = vmatprep.mubr.f32.mxu0 0.0
      %2338 = vmatmul.mubr.f32.gmra.mxu0 %v1753
      %v2339 = vpop.f32.mrf.mxu0
      %v2340 = vadd.f32 %v1248, %v2339
      %v2341 = vpop.f32.mrf.mxu0
      %2342 = vmatprep.mubr.f32.mxu0 0.0
      %2343 = vmatmul.mubr.f32.gmra.mxu0 %v1756
      %v2344 = vpop.f32.mrf.mxu0
      %v2345 = vadd.f32 %v1253, %v2344
      %v2346 = vpop.f32.mrf.mxu0
      %2347 = vmatprep.mubr.f32.mxu0 0.0
      %2348 = vmatmul.mubr.f32.gmra.mxu0 %v1759
      %v2349 = vpop.f32.mrf.mxu0
      %v2350 = vadd.f32 %v1258, %v2349
      %v2351 = vpop.f32.mrf.mxu0
      %2352 = vmatprep.mubr.f32.mxu0 0.0
      %2353 = vmatmul.mubr.f32.gmra.mxu0 %v1762
      %v2354 = vpop.f32.mrf.mxu0
      %v2355 = vadd.f32 %v1263, %v2354
      %v2356 = vpop.f32.mrf.mxu0
      %2357 = vmatprep.mubr.f32.mxu0 0.0
      %2358 = vmatmul.mubr.f32.gmra.mxu0 %v1765
      %v2359 = vpop.f32.mrf.mxu0
      %v2360 = vadd.f32 %v1268, %v2359
      %v2361 = vpop.f32.mrf.mxu0
      %2362 = vmatprep.mubr.f32.mxu0 0.0
      %2363 = vmatmul.mubr.f32.gmra.mxu0 %v1768
      %v2364 = vpop.f32.mrf.mxu0
      %v2365 = vadd.f32 %v1273, %v2364
      %v2366 = vpop.f32.mrf.mxu0
      %2367 = vmatprep.mubr.f32.mxu0 0.0
      %2368 = vmatmul.mubr.f32.gmra.mxu0 %v1771
      %v2369 = vpop.f32.mrf.mxu0
      %v2370 = vadd.f32 %v1278, %v2369
      %v2371 = vpop.f32.mrf.mxu0
      %2372 = vmatprep.mubr.f32.mxu0 0.0
      %2373 = vmatmul.mubr.f32.gmra.mxu0 %v1774
      %v2374 = vpop.f32.mrf.mxu0
      %v2375 = vadd.f32 %v1283, %v2374
      %v2376 = vpop.f32.mrf.mxu0
      %2377 = vmatprep.mubr.f32.mxu0 0.0
      %2378 = vmatmul.mubr.f32.gmra.mxu0 %v1777
      %v2379 = vpop.f32.mrf.mxu0
      %v2380 = vadd.f32 %v1288, %v2379
      %v2381 = vpop.f32.mrf.mxu0
      %2382 = vmatprep.mubr.f32.mxu0 0.0
      %2383 = vmatmul.mubr.f32.gmra.mxu0 %v1780
      %v2384 = vpop.f32.mrf.mxu0
      %v2385 = vadd.f32 %v1293, %v2384
      %v2386 = vpop.f32.mrf.mxu0
      %2387 = vmatprep.mubr.f32.mxu0 0.0
      %2388 = vmatmul.mubr.f32.gmra.mxu0 %v1783
      %v2389 = vpop.f32.mrf.mxu0
      %v2390 = vadd.f32 %v1298, %v2389
      %v2391 = vpop.f32.mrf.mxu0
      %2392 = vmatprep.mubr.f32.mxu0 0.0
      %2393 = vmatmul.mubr.f32.gmra.mxu0 %v1786
      %v2394 = vpop.f32.mrf.mxu0
      %v2395 = vadd.f32 %v1303, %v2394
      %v2396 = vpop.f32.mrf.mxu0
      %2397 = vmatprep.mubr.f32.mxu0 0.0
      %2398 = vmatmul.mubr.f32.gmra.mxu0 %v1789
      %v2399 = vpop.f32.mrf.mxu0
      %v2400 = vadd.f32 %v1308, %v2399
      %v2401 = vpop.f32.mrf.mxu0
      %2402 = vmatprep.mubr.f32.mxu0 0.0
      %2403 = vmatmul.mubr.f32.gmra.mxu0 %v1792
      %v2404 = vpop.f32.mrf.mxu0
      %v2405 = vadd.f32 %v1313, %v2404
      %v2406 = vpop.f32.mrf.mxu0
      %2407 = vmatprep.mubr.f32.mxu0 0.0
      %2408 = vmatmul.mubr.f32.gmra.mxu0 %v1795
      %v2409 = vpop.f32.mrf.mxu0
      %v2410 = vadd.f32 %v1318, %v2409
      %v2411 = vpop.f32.mrf.mxu0
      %2412 = vmatprep.mubr.f32.mxu0 0.0
      %2413 = vmatmul.mubr.f32.gmra.mxu0 %v1798
      %v2414 = vpop.f32.mrf.mxu0
      %v2415 = vadd.f32 %v1323, %v2414
      %v2416 = vpop.f32.mrf.mxu0
      %2417 = vmatprep.mubr.f32.mxu0 0.0
      %2418 = vmatmul.mubr.f32.gmra.mxu0 %v1801
      %v2419 = vpop.f32.mrf.mxu0
      %v2420 = vadd.f32 %v1328, %v2419
      %v2421 = vpop.f32.mrf.mxu0
      %2422 = vmatprep.mubr.f32.mxu0 0.0
      %2423 = vmatmul.mubr.f32.gmra.mxu0 %v1804
      %v2424 = vpop.f32.mrf.mxu0
      %v2425 = vadd.f32 %v1333, %v2424
      %v2426 = vpop.f32.mrf.mxu0
      %2427 = vmatprep.mubr.f32.mxu0 0.0
      %2428 = vmatmul.mubr.f32.gmra.mxu0 %v1807
      %v2429 = vpop.f32.mrf.mxu0
      %v2430 = vadd.f32 %v1338, %v2429
      %v2431 = vpop.f32.mrf.mxu0
      %2432 = vmatprep.mubr.f32.mxu0 0.0
      %2433 = vmatmul.mubr.f32.gmra.mxu0 %v1810
      %v2434 = vpop.f32.mrf.mxu0
      %v2435 = vadd.f32 %v1343, %v2434
      %v2436 = vpop.f32.mrf.mxu0
      %2437 = vmatprep.mubr.f32.mxu0 0.0
      %2438 = vmatmul.mubr.f32.gmra.mxu0 %v1813
      %v2439 = vpop.f32.mrf.mxu0
      %v2440 = vadd.f32 %v1348, %v2439
      %v2441 = vpop.f32.mrf.mxu0
      %2442 = vmatprep.mubr.f32.mxu0 0.0
      %2443 = vmatmul.mubr.f32.gmra.mxu0 %v1816
      %v2444 = vpop.f32.mrf.mxu0
      %v2445 = vadd.f32 %v1353, %v2444
      %v2446 = vpop.f32.mrf.mxu0
      %2447 = vmatprep.mubr.f32.mxu0 0.0
      %2448 = vmatmul.mubr.f32.gmra.mxu0 %v1819
      %v2449 = vpop.f32.mrf.mxu0
      %v2450 = vadd.f32 %v1358, %v2449
      %v2451 = vpop.f32.mrf.mxu0
      %2452 = vmatprep.mubr.f32.mxu0 0.0
      %2453 = vmatmul.mubr.f32.gmra.mxu0 %v1822
      %v2454 = vpop.f32.mrf.mxu0
      %v2455 = vadd.f32 %v1363, %v2454
      %v2456 = vpop.f32.mrf.mxu0
      %2457 = vmatprep.mubr.f32.mxu0 0.0
      %2458 = vmatmul.mubr.f32.gmra.mxu0 %v1825
      %v2459 = vpop.f32.mrf.mxu0
      %v2460 = vadd.f32 %v1368, %v2459
      %v2461 = vpop.f32.mrf.mxu0
      %2462 = vmatprep.mubr.f32.mxu0 0.0
      %2463 = vmatmul.mubr.f32.gmra.mxu0 %v1828
      %v2464 = vpop.f32.mrf.mxu0
      %v2465 = vadd.f32 %v1373, %v2464
      %v2466 = vpop.f32.mrf.mxu0
      %2467 = vmatprep.mubr.f32.mxu0 0.0
      %2468 = vmatmul.mubr.f32.gmra.mxu0 %v1831
      %v2469 = vpop.f32.mrf.mxu0
      %v2470 = vadd.f32 %v1378, %v2469
      %v2471 = vpop.f32.mrf.mxu0
      %2472 = vmatprep.mubr.f32.mxu0 0.0
      %2473 = vmatmul.mubr.f32.gmra.mxu0 %v1834
      %v2474 = vpop.f32.mrf.mxu0
      %v2475 = vadd.f32 %v1383, %v2474
      %v2476 = vpop.f32.mrf.mxu0
      %2477 = vmatprep.mubr.f32.mxu0 0.0
      %2478 = vmatmul.mubr.f32.gmra.mxu0 %v1837
      %v2479 = vpop.f32.mrf.mxu0
      %v2480 = vadd.f32 %v1388, %v2479
      %v2481 = vpop.f32.mrf.mxu0
      %2482 = vmatprep.mubr.f32.mxu0 0.0
      %2483 = vmatmul.mubr.f32.gmra.mxu0 %v1840
      %v2484 = vpop.f32.mrf.mxu0
      %v2485 = vadd.f32 %v1393, %v2484
      %v2486 = vpop.f32.mrf.mxu0
      %2487 = vmatprep.mubr.f32.mxu0 0.0
      %2488 = vmatmul.mubr.f32.gmra.mxu0 %v1843
      %v2489 = vpop.f32.mrf.mxu0
      %v2490 = vadd.f32 %v1398, %v2489
      %v2491 = vpop.f32.mrf.mxu0
      %2492 = vmatprep.mubr.f32.mxu0 0.0
      %2493 = vmatmul.mubr.f32.gmra.mxu0 %v1846
      %v2494 = vpop.f32.mrf.mxu0
      %v2495 = vadd.f32 %v1403, %v2494
      %v2496 = vpop.f32.mrf.mxu0
      %2497 = vmatprep.mubr.f32.mxu0 0.0
      %2498 = vmatmul.mubr.f32.gmra.mxu0 %v1849
      %v2499 = vpop.f32.mrf.mxu0
      %v2500 = vadd.f32 %v1408, %v2499
      %v2501 = vpop.f32.mrf.mxu0
      %2502 = vmatprep.mubr.f32.mxu0 0.0
      %2503 = vmatmul.mubr.f32.gmra.mxu0 %v1852
      %v2504 = vpop.f32.mrf.mxu0
      %v2505 = vadd.f32 %v1413, %v2504
      %v2506 = vpop.f32.mrf.mxu0
      %2507 = vmatprep.mubr.f32.mxu0 0.0
      %2508 = vmatmul.mubr.f32.gmra.mxu0 %v1855
      %v2509 = vpop.f32.mrf.mxu0
      %v2510 = vadd.f32 %v1418, %v2509
      %v2511 = vpop.f32.mrf.mxu0
      %2512 = vmatprep.mubr.f32.mxu0 0.0
      %2513 = vmatmul.mubr.f32.gmra.mxu0 %v1858
      %v2514 = vpop.f32.mrf.mxu0
      %v2515 = vadd.f32 %v1423, %v2514
      %v2516 = vpop.f32.mrf.mxu0
      %2517 = vmatprep.mubr.f32.mxu0 0.0
      %2518 = vmatmul.mubr.f32.gmra.mxu0 %v1861
      %v2519 = vpop.f32.mrf.mxu0
      %v2520 = vadd.f32 %v1428, %v2519
      %v2521 = vpop.f32.mrf.mxu0
      %2522 = vmatprep.mubr.f32.mxu0 0.0
      %2523 = vmatmul.mubr.f32.gmra.mxu0 %v1864
      %v2524 = vpop.f32.mrf.mxu0
      %v2525 = vadd.f32 %v1433, %v2524
      %v2526 = vpop.f32.mrf.mxu0
      %2527 = vmatprep.mubr.f32.mxu0 0.0
      %2528 = vmatmul.mubr.f32.gmra.mxu0 %v1867
      %v2529 = vpop.f32.mrf.mxu0
      %v2530 = vadd.f32 %v1438, %v2529
      %v2531 = vpop.f32.mrf.mxu0
      %2532 = vmatprep.mubr.f32.mxu0 0.0
      %2533 = vmatmul.mubr.f32.gmra.mxu0 %v1870
      %v2534 = vpop.f32.mrf.mxu0
      %v2535 = vadd.f32 %v1443, %v2534
      %v2536 = vpop.f32.mrf.mxu0
      %2537 = vmatprep.mubr.f32.mxu0 0.0
      %2538 = vmatmul.mubr.f32.gmra.mxu0 %v1873
      %v2539 = vpop.f32.mrf.mxu0
      %v2540 = vadd.f32 %v1448, %v2539
      %v2541 = vpop.f32.mrf.mxu0
      %2542 = vmatprep.mubr.f32.mxu0 0.0
      %2543 = vmatmul.mubr.f32.gmra.mxu0 %v1876
      %v2544 = vpop.f32.mrf.mxu0
      %v2545 = vadd.f32 %v1453, %v2544
      %v2546 = vpop.f32.mrf.mxu0
      %2547 = vmatprep.mubr.f32.mxu0 0.0
      %2548 = vmatmul.mubr.f32.gmra.mxu0 %v1879
      %v2549 = vpop.f32.mrf.mxu0
      %v2550 = vadd.f32 %v1458, %v2549
      %v2551 = vpop.f32.mrf.mxu0
      %2552 = vmatprep.mubr.f32.mxu0 0.0
      %2553 = vmatmul.mubr.f32.gmra.mxu0 %v1882
      %v2554 = vpop.f32.mrf.mxu0
      %v2555 = vadd.f32 %v1463, %v2554
      %v2556 = vpop.f32.mrf.mxu0
      %2557 = vmatprep.mubr.f32.mxu0 0.0
      %2558 = vmatmul.mubr.f32.gmra.mxu0 %v1885
      %v2559 = vpop.f32.mrf.mxu0
      %v2560 = vadd.f32 %v1468, %v2559
      %v2561 = vpop.f32.mrf.mxu0
      %2562 = vmatprep.mubr.f32.mxu0 0.0
      %2563 = vmatmul.mubr.f32.gmra.mxu0 %v1888
      %v2564 = vpop.f32.mrf.mxu0
      %v2565 = vadd.f32 %v1473, %v2564
      %v2566 = vpop.f32.mrf.mxu0
      %2567 = vmatprep.mubr.f32.mxu0 0.0
      %2568 = vmatmul.mubr.f32.gmra.mxu0 %v1891
      %v2569 = vpop.f32.mrf.mxu0
      %v2570 = vadd.f32 %v1478, %v2569
      %v2571 = vpop.f32.mrf.mxu0
      %2572 = vmatprep.mubr.f32.mxu0 0.0
      %2573 = vmatmul.mubr.f32.gmra.mxu0 %v1894
      %v2574 = vpop.f32.mrf.mxu0
      %v2575 = vadd.f32 %v1483, %v2574
      %v2576 = vpop.f32.mrf.mxu0
      %2577 = vmatprep.mubr.f32.mxu0 0.0
      %2578 = vmatmul.mubr.f32.gmra.mxu0 %v1897
      %v2579 = vpop.f32.mrf.mxu0
      %v2580 = vadd.f32 %v1488, %v2579
      %v2581 = vpop.f32.mrf.mxu0
      %2582 = vmatprep.mubr.f32.mxu0 0.0
      %2583 = vmatmul.mubr.f32.gmra.mxu0 %v1900
      %v2584 = vpop.f32.mrf.mxu0
      %v2585 = vadd.f32 %v1493, %v2584
      %v2586 = vpop.f32.mrf.mxu0
      %2587 = vmatprep.mubr.f32.mxu0 0.0
      %2588 = vmatmul.mubr.f32.gmra.mxu0 %v1903
      %v2589 = vpop.f32.mrf.mxu0
      %v2590 = vadd.f32 %v1498, %v2589
      %v2591 = vpop.f32.mrf.mxu0
      %2592 = vmatprep.mubr.f32.mxu0 0.0
      %2593 = vmatmul.mubr.f32.gmra.mxu0 %v1906
      %v2594 = vpop.f32.mrf.mxu0
      %v2595 = vadd.f32 %v1503, %v2594
      %v2596 = vpop.f32.mrf.mxu0
      %2597 = vmatprep.mubr.f32.mxu0 0.0
      %2598 = vmatmul.mubr.f32.gmra.mxu0 %v1909
      %v2599 = vpop.f32.mrf.mxu0
      %v2600 = vadd.f32 %v1508, %v2599
      %v2601 = vpop.f32.mrf.mxu0
      %2602 = vmatprep.mubr.f32.mxu0 0.0
      %2603 = vmatmul.mubr.f32.gmra.mxu0 %v1912
      %v2604 = vpop.f32.mrf.mxu0
      %v2605 = vadd.f32 %v1513, %v2604
      %v2606 = vpop.f32.mrf.mxu0
      %2607 = vmatprep.mubr.f32.mxu0 0.0
      %2608 = vmatmul.mubr.f32.gmra.mxu0 %v1915
      %v2609 = vpop.f32.mrf.mxu0
      %v2610 = vadd.f32 %v1518, %v2609
      %v2611 = vpop.f32.mrf.mxu0
      %2612 = vmatprep.mubr.f32.mxu0 0.0
      %2613 = vmatmul.mubr.f32.gmra.mxu0 %v1918
      %v2614 = vpop.f32.mrf.mxu0
      %v2615 = vadd.f32 %v1523, %v2614
      %v2616 = vpop.f32.mrf.mxu0
      %2617 = vmatprep.mubr.f32.mxu0 0.0
      %2618 = vmatmul.mubr.f32.gmra.mxu0 %v1921
      %v2619 = vpop.f32.mrf.mxu0
      %v2620 = vadd.f32 %v1528, %v2619
      %v2621 = vpop.f32.mrf.mxu0
      %2622 = vmatprep.mubr.f32.mxu0 0.0
      %2623 = vmatmul.mubr.f32.gmra.mxu0 %v1924
      %v2624 = vpop.f32.mrf.mxu0
      %v2625 = vadd.f32 %v1533, %v2624
      %v2626 = vpop.f32.mrf.mxu0
      %2627 = vmatprep.mubr.f32.mxu0 0.0
      %2628 = vmatmul.mubr.f32.gmra.mxu0 %v1927
      %v2629 = vpop.f32.mrf.mxu0
      %v2630 = vadd.f32 %v1538, %v2629
      %v2631 = vpop.f32.mrf.mxu0
      %2632 = vmatprep.mubr.f32.mxu0 0.0
      %2633 = vmatmul.mubr.f32.gmra.mxu0 %v1930
      %v2634 = vpop.f32.mrf.mxu0
      %v2635 = vadd.f32 %v1543, %v2634
      %v2636 = vpop.f32.mrf.mxu0
      %2637 = vmatprep.mubr.f32.mxu0 0.0
      %2638 = vmatmul.mubr.f32.gmra.mxu0 %v1933
      %v2639 = vpop.f32.mrf.mxu0
      %v2640 = vadd.f32 %v1548, %v2639
      %v2641 = vpop.f32.mrf.mxu0
      %2642 = vdwg.mxu0
      %v2643 = vld [vmem:[%s192 + $0x2] sm:$0xff]
      %v2644 = vld [vmem:[%s192 + $0xa] sm:$0xff]
      %v2645 = vld [vmem:[%s192 + $0x12] sm:$0xff]
      %v2646 = vld [vmem:[%s192 + $0x1a] sm:$0xff]
      %v2647 = vld [vmem:[%s192 + $0x2a] sm:$0xff]
      %v2648 = vld [vmem:[%s192 + $0x32] sm:$0xff]
      %v2649 = vld [vmem:[%s192 + $0x3a] sm:$0xff]
      %v2650 = vld [vmem:[%s192 + $0x42] sm:$0xff]
      %v2651 = vld [vmem:[%s192 + $0x52] sm:$0xff]
      %v2652 = vld [vmem:[%s192 + $0x5a] sm:$0xff]
      %v2653 = vld [vmem:[%s192 + $0x62] sm:$0xff]
      %v2654 = vld [vmem:[%s192 + $0x6a] sm:$0xff]
      %v2655 = vld [vmem:[%s192 + $0x7a] sm:$0xff]
      %v2656 = vld [vmem:[%s192 + $0x82] sm:$0xff]
      %v2657 = vld [vmem:[%s192 + $0x8a] sm:$0xff]
      %v2658 = vld [vmem:[%s192 + $0x92] sm:$0xff]
      %v2659 = vld [vmem:[%s192 + $0xa2] sm:$0xff]
      %v2660 = vld [vmem:[%s192 + $0xaa] sm:$0xff]
      %v2661 = vld [vmem:[%s192 + $0xb2] sm:$0xff]
      %v2662 = vld [vmem:[%s192 + $0xba] sm:$0xff]
      %v2663 = vld [vmem:[%s192 + $0xca] sm:$0xff]
      %v2664 = vld [vmem:[%s192 + $0xd2] sm:$0xff]
      %v2665 = vld [vmem:[%s192 + $0xda] sm:$0xff]
      %v2666 = vld [vmem:[%s192 + $0xe2] sm:$0xff]
      %v2667 = vld [vmem:[%s192 + $0xf2] sm:$0xff]
      %v2668 = vld [vmem:[%s192 + $0xfa] sm:$0xff]
      %v2669 = vld [vmem:[%s192 + $0x102] sm:$0xff]
      %v2670 = vld [vmem:[%s192 + $0x10a] sm:$0xff]
      %v2671 = vld [vmem:[%s192 + $0x11a] sm:$0xff]
      %v2672 = vld [vmem:[%s192 + $0x122] sm:$0xff]
      %v2673 = vld [vmem:[%s192 + $0x12a] sm:$0xff]
      %v2674 = vld [vmem:[%s192 + $0x132] sm:$0xff]
      %v2675 = vld [vmem:[%s192 + $0x142] sm:$0xff]
      %v2676 = vld [vmem:[%s192 + $0x14a] sm:$0xff]
      %v2677 = vld [vmem:[%s192 + $0x152] sm:$0xff]
      %v2678 = vld [vmem:[%s192 + $0x15a] sm:$0xff]
      %v2679 = vld [vmem:[%s192 + $0x16a] sm:$0xff]
      %v2680 = vld [vmem:[%s192 + $0x172] sm:$0xff]
      %v2681 = vld [vmem:[%s192 + $0x17a] sm:$0xff]
      %v2682 = vld [vmem:[%s192 + $0x182] sm:$0xff]
      %v2683 = vld [vmem:[%s192 + $0x192] sm:$0xff]
      %v2684 = vld [vmem:[%s192 + $0x19a] sm:$0xff]
      %v2685 = vld [vmem:[%s192 + $0x1a2] sm:$0xff]
      %v2686 = vld [vmem:[%s192 + $0x1aa] sm:$0xff]
      %v2687 = vld [vmem:[%s192 + $0x1ba] sm:$0xff]
      %v2688 = vld [vmem:[%s192 + $0x1c2] sm:$0xff]
      %v2689 = vld [vmem:[%s192 + $0x1ca] sm:$0xff]
      %v2690 = vld [vmem:[%s192 + $0x1d2] sm:$0xff]
      %v2691 = vld [vmem:[%s192 + $0x1e2] sm:$0xff]
      %v2692 = vld [vmem:[%s192 + $0x1ea] sm:$0xff]
      %v2693 = vld [vmem:[%s192 + $0x1f2] sm:$0xff]
      %v2694 = vld [vmem:[%s192 + $0x1fa] sm:$0xff]
      %v2695 = vld [vmem:[%s192 + $0x20a] sm:$0xff]
      %v2696 = vld [vmem:[%s192 + $0x212] sm:$0xff]
      %v2697 = vld [vmem:[%s192 + $0x21a] sm:$0xff]
      %v2698 = vld [vmem:[%s192 + $0x222] sm:$0xff]
      %v2699 = vld [vmem:[%s192 + $0x232] sm:$0xff]
      %v2700 = vld [vmem:[%s192 + $0x23a] sm:$0xff]
      %v2701 = vld [vmem:[%s192 + $0x242] sm:$0xff]
      %v2702 = vld [vmem:[%s192 + $0x24a] sm:$0xff]
      %v2703 = vld [vmem:[%s192 + $0x25a] sm:$0xff]
      %v2704 = vld [vmem:[%s192 + $0x262] sm:$0xff]
      %v2705 = vld [vmem:[%s192 + $0x26a] sm:$0xff]
      %v2706 = vld [vmem:[%s192 + $0x272] sm:$0xff]
      %v2707 = vld [vmem:[%s192 + $0x282] sm:$0xff]
      %v2708 = vld [vmem:[%s192 + $0x28a] sm:$0xff]
      %v2709 = vld [vmem:[%s192 + $0x292] sm:$0xff]
      %v2710 = vld [vmem:[%s192 + $0x29a] sm:$0xff]
      %v2711 = vld [vmem:[%s192 + $0x2aa] sm:$0xff]
      %v2712 = vld [vmem:[%s192 + $0x2b2] sm:$0xff]
      %v2713 = vld [vmem:[%s192 + $0x2ba] sm:$0xff]
      %v2714 = vld [vmem:[%s192 + $0x2c2] sm:$0xff]
      %v2715 = vld [vmem:[%s192 + $0x2d2] sm:$0xff]
      %v2716 = vld [vmem:[%s192 + $0x2da] sm:$0xff]
      %v2717 = vld [vmem:[%s192 + $0x2e2] sm:$0xff]
      %v2718 = vld [vmem:[%s192 + $0x2ea] sm:$0xff]
      %v2719 = vld [vmem:[%s192 + $0x2fa] sm:$0xff]
      %v2720 = vld [vmem:[%s192 + $0x302] sm:$0xff]
      %v2721 = vld [vmem:[%s192 + $0x30a] sm:$0xff]
      %v2722 = vld [vmem:[%s192 + $0x312] sm:$0xff]
      %v2723 = vld [vmem:[%s192 + $0x322] sm:$0xff]
      %v2724 = vld [vmem:[%s192 + $0x32a] sm:$0xff]
      %v2725 = vld [vmem:[%s192 + $0x332] sm:$0xff]
      %v2726 = vld [vmem:[%s192 + $0x33a] sm:$0xff]
      %v2727 = vld [vmem:[%s192 + $0x34a] sm:$0xff]
      %v2728 = vld [vmem:[%s192 + $0x352] sm:$0xff]
      %v2729 = vld [vmem:[%s192 + $0x35a] sm:$0xff]
      %v2730 = vld [vmem:[%s192 + $0x362] sm:$0xff]
      %v2731 = vld [vmem:[%s192 + $0x372] sm:$0xff]
      %v2732 = vld [vmem:[%s192 + $0x37a] sm:$0xff]
      %v2733 = vld [vmem:[%s192 + $0x382] sm:$0xff]
      %v2734 = vld [vmem:[%s192 + $0x38a] sm:$0xff]
      %v2735 = vld [vmem:[%s192 + $0x39a] sm:$0xff]
      %v2736 = vld [vmem:[%s192 + $0x3a2] sm:$0xff]
      %v2737 = vld [vmem:[%s192 + $0x3aa] sm:$0xff]
      %v2738 = vld [vmem:[%s192 + $0x3b2] sm:$0xff]
      %v2739 = vld [vmem:[%s192 + $0x3c2] sm:$0xff]
      %v2740 = vld [vmem:[%s192 + $0x3ca] sm:$0xff]
      %v2741 = vld [vmem:[%s192 + $0x3d2] sm:$0xff]
      %v2742 = vld [vmem:[%s192 + $0x3da] sm:$0xff]
      %v2743 = vld [vmem:[%s192 + $0x3ea] sm:$0xff]
      %v2744 = vld [vmem:[%s192 + $0x3f2] sm:$0xff]
      %v2745 = vld [vmem:[%s192 + $0x3fa] sm:$0xff]
      %v2746 = vld [vmem:[%s192 + $0x402] sm:$0xff]
      %v2747 = vld [vmem:[%s192 + $0x412] sm:$0xff]
      %v2748 = vld [vmem:[%s192 + $0x41a] sm:$0xff]
      %v2749 = vld [vmem:[%s192 + $0x422] sm:$0xff]
      %v2750 = vld [vmem:[%s192 + $0x42a] sm:$0xff]
      %v2751 = vld [vmem:[%s192 + $0x43a] sm:$0xff]
      %v2752 = vld [vmem:[%s192 + $0x442] sm:$0xff]
      %v2753 = vld [vmem:[%s192 + $0x44a] sm:$0xff]
      %v2754 = vld [vmem:[%s192 + $0x452] sm:$0xff]
      %v2755 = vld [vmem:[%s192 + $0x462] sm:$0xff]
      %v2756 = vld [vmem:[%s192 + $0x46a] sm:$0xff]
      %v2757 = vld [vmem:[%s192 + $0x472] sm:$0xff]
      %v2758 = vld [vmem:[%s192 + $0x47a] sm:$0xff]
      %v2759 = vld [vmem:[%s192 + $0x48a] sm:$0xff]
      %v2760 = vld [vmem:[%s192 + $0x492] sm:$0xff]
      %v2761 = vld [vmem:[%s192 + $0x49a] sm:$0xff]
      %v2762 = vld [vmem:[%s192 + $0x4a2] sm:$0xff]
      %v2763 = vld [vmem:[%s192 + $0x4b2] sm:$0xff]
      %v2764 = vld [vmem:[%s192 + $0x4ba] sm:$0xff]
      %v2765 = vld [vmem:[%s192 + $0x4c2] sm:$0xff]
      %v2766 = vld [vmem:[%s192 + $0x4ca] sm:$0xff]
      %v2767 = vld [vmem:[%s192 + $0x4da] sm:$0xff]
      %v2768 = vld [vmem:[%s192 + $0x4e2] sm:$0xff]
      %v2769 = vld [vmem:[%s192 + $0x4ea] sm:$0xff]
      %v2770 = vld [vmem:[%s192 + $0x4f2] sm:$0xff]
      %s2771 = scalar_lea.vmem %s1, 8
      %v2772 = vld [vmem:[%s2771] sm:$0xf]
      %v2774 = vsel %vm457, %v2643, 0
      %v2777 = vsel %vm457, %v2644, 0
      %v2780 = vsel %vm457, %v2645, 0
      %v2783 = vsel %vm457, %v2646, 0
      %v2786 = vsel %vm457, %v2647, 0
      %v2789 = vsel %vm457, %v2648, 0
      %v2792 = vsel %vm457, %v2649, 0
      %v2795 = vsel %vm457, %v2650, 0
      %v2798 = vsel %vm457, %v2651, 0
      %v2801 = vsel %vm457, %v2652, 0
      %v2804 = vsel %vm457, %v2653, 0
      %v2807 = vsel %vm457, %v2654, 0
      %v2810 = vsel %vm457, %v2655, 0
      %v2813 = vsel %vm457, %v2656, 0
      %v2816 = vsel %vm457, %v2657, 0
      %v2819 = vsel %vm457, %v2658, 0
      %v2822 = vsel %vm457, %v2659, 0
      %v2825 = vsel %vm457, %v2660, 0
      %v2828 = vsel %vm457, %v2661, 0
      %v2831 = vsel %vm457, %v2662, 0
      %v2834 = vsel %vm457, %v2663, 0
      %v2837 = vsel %vm457, %v2664, 0
      %v2840 = vsel %vm457, %v2665, 0
      %v2843 = vsel %vm457, %v2666, 0
      %v2846 = vsel %vm457, %v2667, 0
      %v2849 = vsel %vm457, %v2668, 0
      %v2852 = vsel %vm457, %v2669, 0
      %v2855 = vsel %vm457, %v2670, 0
      %v2858 = vsel %vm457, %v2671, 0
      %v2861 = vsel %vm457, %v2672, 0
      %v2864 = vsel %vm457, %v2673, 0
      %v2867 = vsel %vm457, %v2674, 0
      %v2870 = vsel %vm457, %v2675, 0
      %v2873 = vsel %vm457, %v2676, 0
      %v2876 = vsel %vm457, %v2677, 0
      %v2879 = vsel %vm457, %v2678, 0
      %v2882 = vsel %vm457, %v2679, 0
      %v2885 = vsel %vm457, %v2680, 0
      %v2888 = vsel %vm457, %v2681, 0
      %v2891 = vsel %vm457, %v2682, 0
      %v2894 = vsel %vm457, %v2683, 0
      %v2897 = vsel %vm457, %v2684, 0
      %v2900 = vsel %vm457, %v2685, 0
      %v2903 = vsel %vm457, %v2686, 0
      %v2906 = vsel %vm457, %v2687, 0
      %v2909 = vsel %vm457, %v2688, 0
      %v2912 = vsel %vm457, %v2689, 0
      %v2915 = vsel %vm457, %v2690, 0
      %v2918 = vsel %vm457, %v2691, 0
      %v2921 = vsel %vm457, %v2692, 0
      %v2924 = vsel %vm457, %v2693, 0
      %v2927 = vsel %vm457, %v2694, 0
      %v2930 = vsel %vm457, %v2695, 0
      %v2933 = vsel %vm457, %v2696, 0
      %v2936 = vsel %vm457, %v2697, 0
      %v2939 = vsel %vm457, %v2698, 0
      %v2942 = vsel %vm457, %v2699, 0
      %v2945 = vsel %vm457, %v2700, 0
      %v2948 = vsel %vm457, %v2701, 0
      %v2951 = vsel %vm457, %v2702, 0
      %v2954 = vsel %vm457, %v2703, 0
      %v2957 = vsel %vm457, %v2704, 0
      %v2960 = vsel %vm457, %v2705, 0
      %v2963 = vsel %vm457, %v2706, 0
      %v2966 = vsel %vm457, %v2707, 0
      %v2969 = vsel %vm457, %v2708, 0
      %v2972 = vsel %vm457, %v2709, 0
      %v2975 = vsel %vm457, %v2710, 0
      %v2978 = vsel %vm457, %v2711, 0
      %v2981 = vsel %vm457, %v2712, 0
      %v2984 = vsel %vm457, %v2713, 0
      %v2987 = vsel %vm457, %v2714, 0
      %v2990 = vsel %vm457, %v2715, 0
      %v2993 = vsel %vm457, %v2716, 0
      %v2996 = vsel %vm457, %v2717, 0
      %v2999 = vsel %vm457, %v2718, 0
      %v3002 = vsel %vm457, %v2719, 0
      %v3005 = vsel %vm457, %v2720, 0
      %v3008 = vsel %vm457, %v2721, 0
      %v3011 = vsel %vm457, %v2722, 0
      %v3014 = vsel %vm457, %v2723, 0
      %v3017 = vsel %vm457, %v2724, 0
      %v3020 = vsel %vm457, %v2725, 0
      %v3023 = vsel %vm457, %v2726, 0
      %v3026 = vsel %vm457, %v2727, 0
      %v3029 = vsel %vm457, %v2728, 0
      %v3032 = vsel %vm457, %v2729, 0
      %v3035 = vsel %vm457, %v2730, 0
      %v3038 = vsel %vm457, %v2731, 0
      %v3041 = vsel %vm457, %v2732, 0
      %v3044 = vsel %vm457, %v2733, 0
      %v3047 = vsel %vm457, %v2734, 0
      %v3050 = vsel %vm457, %v2735, 0
      %v3053 = vsel %vm457, %v2736, 0
      %v3056 = vsel %vm457, %v2737, 0
      %v3059 = vsel %vm457, %v2738, 0
      %v3062 = vsel %vm457, %v2739, 0
      %v3065 = vsel %vm457, %v2740, 0
      %v3068 = vsel %vm457, %v2741, 0
      %v3071 = vsel %vm457, %v2742, 0
      %v3074 = vsel %vm457, %v2743, 0
      %v3077 = vsel %vm457, %v2744, 0
      %v3080 = vsel %vm457, %v2745, 0
      %v3083 = vsel %vm457, %v2746, 0
      %v3086 = vsel %vm457, %v2747, 0
      %v3089 = vsel %vm457, %v2748, 0
      %v3092 = vsel %vm457, %v2749, 0
      %v3095 = vsel %vm457, %v2750, 0
      %v3098 = vsel %vm457, %v2751, 0
      %v3101 = vsel %vm457, %v2752, 0
      %v3104 = vsel %vm457, %v2753, 0
      %v3107 = vsel %vm457, %v2754, 0
      %v3110 = vsel %vm457, %v2755, 0
      %v3113 = vsel %vm457, %v2756, 0
      %v3116 = vsel %vm457, %v2757, 0
      %v3119 = vsel %vm457, %v2758, 0
      %v3122 = vsel %vm457, %v2759, 0
      %v3125 = vsel %vm457, %v2760, 0
      %v3128 = vsel %vm457, %v2761, 0
      %v3131 = vsel %vm457, %v2762, 0
      %v3134 = vsel %vm457, %v2763, 0
      %v3137 = vsel %vm457, %v2764, 0
      %v3140 = vsel %vm457, %v2765, 0
      %v3143 = vsel %vm457, %v2766, 0
      %v3146 = vsel %vm457, %v2767, 0
      %v3149 = vsel %vm457, %v2768, 0
      %v3152 = vsel %vm457, %v2769, 0
      %v3155 = vsel %vm457, %v2770, 0
      %v3158 = vsel %vm842, %v2772, 0
      %3160 = vmatprep.subr.mxu0 0.0
      %3161 = vmatpush1.msra.mxu0 0.0
      %3162 = vmatprep.subr.mxu0 0.0
      %3163 = vmatpush1.msra.mxu0 0.0
      %3164 = vmatprep.subr.mxu0 0.0
      %3165 = vmatpush1.msra.mxu0 0.0
      %3166 = vmatprep.subr.mxu0 0.0
      %3167 = vmatpush1.msra.mxu0 0.0
      %3168 = vmatprep.subr.mxu0 0.0
      %3169 = vmatpush1.msra.mxu0 0.0
      %3170 = vmatprep.subr.mxu0 0.0
      %3171 = vmatpush1.msra.mxu0 0.0
      %3172 = vmatprep.subr.mxu0 0.0
      %3173 = vmatpush1.msra.mxu0 0.0
      %3174 = vmatprep.subr.mxu0 0.0
      %3175 = vmatpush1.msra.mxu0 0.0
      %3176 = vmatprep.subr.mxu0 0.0
      %3177 = vmatpush1.msra.mxu0 0.0
      %3178 = vmatprep.subr.mxu0 0.0
      %3179 = vmatpush1.msra.mxu0 0.0
      %3180 = vmatprep.subr.mxu0 0.0
      %3181 = vmatpush1.msra.mxu0 0.0
      %3182 = vmatprep.subr.mxu0 0.0
      %3183 = vmatpush1.msra.mxu0 0.0
      %3184 = vmatprep.subr.mxu0 0.0
      %3185 = vmatpush1.msra.mxu0 0.0
      %3186 = vmatprep.subr.mxu0 0.0
      %3187 = vmatpush1.msra.mxu0 0.0
      %3188 = vmatprep.subr.mxu0 0.0
      %3189 = vmatpush1.msra.mxu0 0.0
      %3190 = vmatprep.subr.mxu0 0.0
      %3191 = vmatpush1.msra.mxu0 %v3158
      %3192 = vmatprep.subr.mxu0 0.0
      %3193 = vmatpush2.msra.mxu0 0.0
      %3194 = vmatprep.subr.mxu0 0.0
      %3195 = vmatpush2.msra.mxu0 0.0
      %3196 = vmatprep.subr.mxu0 0.0
      %3197 = vmatpush2.msra.mxu0 0.0
      %3198 = vmatprep.subr.mxu0 0.0
      %3199 = vmatpush2.msra.mxu0 0.0
      %3200 = vmatprep.subr.mxu0 0.0
      %3201 = vmatpush2.msra.mxu0 0.0
      %3202 = vmatprep.subr.mxu0 0.0
      %3203 = vmatpush2.msra.mxu0 0.0
      %3204 = vmatprep.subr.mxu0 0.0
      %3205 = vmatpush2.msra.mxu0 0.0
      %3206 = vmatprep.subr.mxu0 0.0
      %3207 = vmatpush2.msra.mxu0 0.0
      %3208 = vmatprep.subr.mxu0 0.0
      %3209 = vmatpush2.msra.mxu0 0.0
      %3210 = vmatprep.subr.mxu0 0.0
      %3211 = vmatpush2.msra.mxu0 0.0
      %3212 = vmatprep.subr.mxu0 0.0
      %3213 = vmatpush2.msra.mxu0 0.0
      %3214 = vmatprep.subr.mxu0 0.0
      %3215 = vmatpush2.msra.mxu0 0.0
      %3216 = vmatprep.subr.mxu0 0.0
      %3217 = vmatpush2.msra.mxu0 0.0
      %3218 = vmatprep.subr.mxu0 0.0
      %3219 = vmatpush2.msra.mxu0 0.0
      %3220 = vmatprep.subr.mxu0 0.0
      %3221 = vmatpush2.msra.mxu0 0.0
      %3222 = vmatprep.subr.mxu0 0.0
      %3223 = vmatpush2.msra.mxu0 0.0
      %3224 = vmatprep.mubr.f32.mxu0 0.0
      %3225 = vmatmul.mubr.f32.gmra.mxu0 %v2774
      %v3226 = vpop.f32.mrf.mxu0
      %v3227 = vadd.f32 0.0, %v3226
      %v3228 = vpop.f32.mrf.mxu0
      %3229 = vmatprep.mubr.f32.mxu0 0.0
      %3230 = vmatmul.mubr.f32.gmra.mxu0 %v2777
      %v3231 = vpop.f32.mrf.mxu0
      %v3232 = vadd.f32 0.0, %v3231
      %v3233 = vpop.f32.mrf.mxu0
      %3234 = vmatprep.mubr.f32.mxu0 0.0
      %3235 = vmatmul.mubr.f32.gmra.mxu0 %v2780
      %v3236 = vpop.f32.mrf.mxu0
      %v3237 = vadd.f32 0.0, %v3236
      %v3238 = vpop.f32.mrf.mxu0
      %3239 = vmatprep.mubr.f32.mxu0 0.0
      %3240 = vmatmul.mubr.f32.gmra.mxu0 %v2783
      %v3241 = vpop.f32.mrf.mxu0
      %v3242 = vadd.f32 0.0, %v3241
      %v3243 = vpop.f32.mrf.mxu0
      %3244 = vmatprep.mubr.f32.mxu0 0.0
      %3245 = vmatmul.mubr.f32.gmra.mxu0 %v2786
      %v3246 = vpop.f32.mrf.mxu0
      %v3247 = vadd.f32 0.0, %v3246
      %v3248 = vpop.f32.mrf.mxu0
      %3249 = vmatprep.mubr.f32.mxu0 0.0
      %3250 = vmatmul.mubr.f32.gmra.mxu0 %v2789
      %v3251 = vpop.f32.mrf.mxu0
      %v3252 = vadd.f32 0.0, %v3251
      %v3253 = vpop.f32.mrf.mxu0
      %3254 = vmatprep.mubr.f32.mxu0 0.0
      %3255 = vmatmul.mubr.f32.gmra.mxu0 %v2792
      %v3256 = vpop.f32.mrf.mxu0
      %v3257 = vadd.f32 0.0, %v3256
      %v3258 = vpop.f32.mrf.mxu0
      %3259 = vmatprep.mubr.f32.mxu0 0.0
      %3260 = vmatmul.mubr.f32.gmra.mxu0 %v2795
      %v3261 = vpop.f32.mrf.mxu0
      %v3262 = vadd.f32 0.0, %v3261
      %v3263 = vpop.f32.mrf.mxu0
      %3264 = vmatprep.mubr.f32.mxu0 0.0
      %3265 = vmatmul.mubr.f32.gmra.mxu0 %v2798
      %v3266 = vpop.f32.mrf.mxu0
      %v3267 = vadd.f32 0.0, %v3266
      %v3268 = vpop.f32.mrf.mxu0
      %3269 = vmatprep.mubr.f32.mxu0 0.0
      %3270 = vmatmul.mubr.f32.gmra.mxu0 %v2801
      %v3271 = vpop.f32.mrf.mxu0
      %v3272 = vadd.f32 0.0, %v3271
      %v3273 = vpop.f32.mrf.mxu0
      %3274 = vmatprep.mubr.f32.mxu0 0.0
      %3275 = vmatmul.mubr.f32.gmra.mxu0 %v2804
      %v3276 = vpop.f32.mrf.mxu0
      %v3277 = vadd.f32 0.0, %v3276
      %v3278 = vpop.f32.mrf.mxu0
      %3279 = vmatprep.mubr.f32.mxu0 0.0
      %3280 = vmatmul.mubr.f32.gmra.mxu0 %v2807
      %v3281 = vpop.f32.mrf.mxu0
      %v3282 = vadd.f32 0.0, %v3281
      %v3283 = vpop.f32.mrf.mxu0
      %3284 = vmatprep.mubr.f32.mxu0 0.0
      %3285 = vmatmul.mubr.f32.gmra.mxu0 %v2810
      %v3286 = vpop.f32.mrf.mxu0
      %v3287 = vadd.f32 0.0, %v3286
      %v3288 = vpop.f32.mrf.mxu0
      %3289 = vmatprep.mubr.f32.mxu0 0.0
      %3290 = vmatmul.mubr.f32.gmra.mxu0 %v2813
      %v3291 = vpop.f32.mrf.mxu0
      %v3292 = vadd.f32 0.0, %v3291
      %v3293 = vpop.f32.mrf.mxu0
      %3294 = vmatprep.mubr.f32.mxu0 0.0
      %3295 = vmatmul.mubr.f32.gmra.mxu0 %v2816
      %v3296 = vpop.f32.mrf.mxu0
      %v3297 = vadd.f32 0.0, %v3296
      %v3298 = vpop.f32.mrf.mxu0
      %3299 = vmatprep.mubr.f32.mxu0 0.0
      %3300 = vmatmul.mubr.f32.gmra.mxu0 %v2819
      %v3301 = vpop.f32.mrf.mxu0
      %v3302 = vadd.f32 0.0, %v3301
      %v3303 = vpop.f32.mrf.mxu0
      %3304 = vmatprep.mubr.f32.mxu0 0.0
      %3305 = vmatmul.mubr.f32.gmra.mxu0 %v2822
      %v3306 = vpop.f32.mrf.mxu0
      %v3307 = vadd.f32 0.0, %v3306
      %v3308 = vpop.f32.mrf.mxu0
      %3309 = vmatprep.mubr.f32.mxu0 0.0
      %3310 = vmatmul.mubr.f32.gmra.mxu0 %v2825
      %v3311 = vpop.f32.mrf.mxu0
      %v3312 = vadd.f32 0.0, %v3311
      %v3313 = vpop.f32.mrf.mxu0
      %3314 = vmatprep.mubr.f32.mxu0 0.0
      %3315 = vmatmul.mubr.f32.gmra.mxu0 %v2828
      %v3316 = vpop.f32.mrf.mxu0
      %v3317 = vadd.f32 0.0, %v3316
      %v3318 = vpop.f32.mrf.mxu0
      %3319 = vmatprep.mubr.f32.mxu0 0.0
      %3320 = vmatmul.mubr.f32.gmra.mxu0 %v2831
      %v3321 = vpop.f32.mrf.mxu0
      %v3322 = vadd.f32 0.0, %v3321
      %v3323 = vpop.f32.mrf.mxu0
      %3324 = vmatprep.mubr.f32.mxu0 0.0
      %3325 = vmatmul.mubr.f32.gmra.mxu0 %v2834
      %v3326 = vpop.f32.mrf.mxu0
      %v3327 = vadd.f32 0.0, %v3326
      %v3328 = vpop.f32.mrf.mxu0
      %3329 = vmatprep.mubr.f32.mxu0 0.0
      %3330 = vmatmul.mubr.f32.gmra.mxu0 %v2837
      %v3331 = vpop.f32.mrf.mxu0
      %v3332 = vadd.f32 0.0, %v3331
      %v3333 = vpop.f32.mrf.mxu0
      %3334 = vmatprep.mubr.f32.mxu0 0.0
      %3335 = vmatmul.mubr.f32.gmra.mxu0 %v2840
      %v3336 = vpop.f32.mrf.mxu0
      %v3337 = vadd.f32 0.0, %v3336
      %v3338 = vpop.f32.mrf.mxu0
      %3339 = vmatprep.mubr.f32.mxu0 0.0
      %3340 = vmatmul.mubr.f32.gmra.mxu0 %v2843
      %v3341 = vpop.f32.mrf.mxu0
      %v3342 = vadd.f32 0.0, %v3341
      %v3343 = vpop.f32.mrf.mxu0
      %3344 = vmatprep.mubr.f32.mxu0 0.0
      %3345 = vmatmul.mubr.f32.gmra.mxu0 %v2846
      %v3346 = vpop.f32.mrf.mxu0
      %v3347 = vadd.f32 0.0, %v3346
      %v3348 = vpop.f32.mrf.mxu0
      %3349 = vmatprep.mubr.f32.mxu0 0.0
      %3350 = vmatmul.mubr.f32.gmra.mxu0 %v2849
      %v3351 = vpop.f32.mrf.mxu0
      %v3352 = vadd.f32 0.0, %v3351
      %v3353 = vpop.f32.mrf.mxu0
      %3354 = vmatprep.mubr.f32.mxu0 0.0
      %3355 = vmatmul.mubr.f32.gmra.mxu0 %v2852
      %v3356 = vpop.f32.mrf.mxu0
      %v3357 = vadd.f32 0.0, %v3356
      %v3358 = vpop.f32.mrf.mxu0
      %3359 = vmatprep.mubr.f32.mxu0 0.0
      %3360 = vmatmul.mubr.f32.gmra.mxu0 %v2855
      %v3361 = vpop.f32.mrf.mxu0
      %v3362 = vadd.f32 0.0, %v3361
      %v3363 = vpop.f32.mrf.mxu0
      %3364 = vmatprep.mubr.f32.mxu0 0.0
      %3365 = vmatmul.mubr.f32.gmra.mxu0 %v2858
      %v3366 = vpop.f32.mrf.mxu0
      %v3367 = vadd.f32 0.0, %v3366
      %v3368 = vpop.f32.mrf.mxu0
      %3369 = vmatprep.mubr.f32.mxu0 0.0
      %3370 = vmatmul.mubr.f32.gmra.mxu0 %v2861
      %v3371 = vpop.f32.mrf.mxu0
      %v3372 = vadd.f32 0.0, %v3371
      %v3373 = vpop.f32.mrf.mxu0
      %3374 = vmatprep.mubr.f32.mxu0 0.0
      %3375 = vmatmul.mubr.f32.gmra.mxu0 %v2864
      %v3376 = vpop.f32.mrf.mxu0
      %v3377 = vadd.f32 0.0, %v3376
      %v3378 = vpop.f32.mrf.mxu0
      %3379 = vmatprep.mubr.f32.mxu0 0.0
      %3380 = vmatmul.mubr.f32.gmra.mxu0 %v2867
      %v3381 = vpop.f32.mrf.mxu0
      %v3382 = vadd.f32 0.0, %v3381
      %v3383 = vpop.f32.mrf.mxu0
      %3384 = vmatprep.mubr.f32.mxu0 0.0
      %3385 = vmatmul.mubr.f32.gmra.mxu0 %v2870
      %v3386 = vpop.f32.mrf.mxu0
      %v3387 = vadd.f32 0.0, %v3386
      %v3388 = vpop.f32.mrf.mxu0
      %3389 = vmatprep.mubr.f32.mxu0 0.0
      %3390 = vmatmul.mubr.f32.gmra.mxu0 %v2873
      %v3391 = vpop.f32.mrf.mxu0
      %v3392 = vadd.f32 0.0, %v3391
      %v3393 = vpop.f32.mrf.mxu0
      %3394 = vmatprep.mubr.f32.mxu0 0.0
      %3395 = vmatmul.mubr.f32.gmra.mxu0 %v2876
      %v3396 = vpop.f32.mrf.mxu0
      %v3397 = vadd.f32 0.0, %v3396
      %v3398 = vpop.f32.mrf.mxu0
      %3399 = vmatprep.mubr.f32.mxu0 0.0
      %3400 = vmatmul.mubr.f32.gmra.mxu0 %v2879
      %v3401 = vpop.f32.mrf.mxu0
      %v3402 = vadd.f32 0.0, %v3401
      %v3403 = vpop.f32.mrf.mxu0
      %3404 = vmatprep.mubr.f32.mxu0 0.0
      %3405 = vmatmul.mubr.f32.gmra.mxu0 %v2882
      %v3406 = vpop.f32.mrf.mxu0
      %v3407 = vadd.f32 0.0, %v3406
      %v3408 = vpop.f32.mrf.mxu0
      %3409 = vmatprep.mubr.f32.mxu0 0.0
      %3410 = vmatmul.mubr.f32.gmra.mxu0 %v2885
      %v3411 = vpop.f32.mrf.mxu0
      %v3412 = vadd.f32 0.0, %v3411
      %v3413 = vpop.f32.mrf.mxu0
      %3414 = vmatprep.mubr.f32.mxu0 0.0
      %3415 = vmatmul.mubr.f32.gmra.mxu0 %v2888
      %v3416 = vpop.f32.mrf.mxu0
      %v3417 = vadd.f32 0.0, %v3416
      %v3418 = vpop.f32.mrf.mxu0
      %3419 = vmatprep.mubr.f32.mxu0 0.0
      %3420 = vmatmul.mubr.f32.gmra.mxu0 %v2891
      %v3421 = vpop.f32.mrf.mxu0
      %v3422 = vadd.f32 0.0, %v3421
      %v3423 = vpop.f32.mrf.mxu0
      %3424 = vmatprep.mubr.f32.mxu0 0.0
      %3425 = vmatmul.mubr.f32.gmra.mxu0 %v2894
      %v3426 = vpop.f32.mrf.mxu0
      %v3427 = vadd.f32 0.0, %v3426
      %v3428 = vpop.f32.mrf.mxu0
      %3429 = vmatprep.mubr.f32.mxu0 0.0
      %3430 = vmatmul.mubr.f32.gmra.mxu0 %v2897
      %v3431 = vpop.f32.mrf.mxu0
      %v3432 = vadd.f32 0.0, %v3431
      %v3433 = vpop.f32.mrf.mxu0
      %3434 = vmatprep.mubr.f32.mxu0 0.0
      %3435 = vmatmul.mubr.f32.gmra.mxu0 %v2900
      %v3436 = vpop.f32.mrf.mxu0
      %v3437 = vadd.f32 0.0, %v3436
      %v3438 = vpop.f32.mrf.mxu0
      %3439 = vmatprep.mubr.f32.mxu0 0.0
      %3440 = vmatmul.mubr.f32.gmra.mxu0 %v2903
      %v3441 = vpop.f32.mrf.mxu0
      %v3442 = vadd.f32 0.0, %v3441
      %v3443 = vpop.f32.mrf.mxu0
      %3444 = vmatprep.mubr.f32.mxu0 0.0
      %3445 = vmatmul.mubr.f32.gmra.mxu0 %v2906
      %v3446 = vpop.f32.mrf.mxu0
      %v3447 = vadd.f32 0.0, %v3446
      %v3448 = vpop.f32.mrf.mxu0
      %3449 = vmatprep.mubr.f32.mxu0 0.0
      %3450 = vmatmul.mubr.f32.gmra.mxu0 %v2909
      %v3451 = vpop.f32.mrf.mxu0
      %v3452 = vadd.f32 0.0, %v3451
      %v3453 = vpop.f32.mrf.mxu0
      %3454 = vmatprep.mubr.f32.mxu0 0.0
      %3455 = vmatmul.mubr.f32.gmra.mxu0 %v2912
      %v3456 = vpop.f32.mrf.mxu0
      %v3457 = vadd.f32 0.0, %v3456
      %v3458 = vpop.f32.mrf.mxu0
      %3459 = vmatprep.mubr.f32.mxu0 0.0
      %3460 = vmatmul.mubr.f32.gmra.mxu0 %v2915
      %v3461 = vpop.f32.mrf.mxu0
      %v3462 = vadd.f32 0.0, %v3461
      %v3463 = vpop.f32.mrf.mxu0
      %3464 = vmatprep.mubr.f32.mxu0 0.0
      %3465 = vmatmul.mubr.f32.gmra.mxu0 %v2918
      %v3466 = vpop.f32.mrf.mxu0
      %v3467 = vadd.f32 0.0, %v3466
      %v3468 = vpop.f32.mrf.mxu0
      %3469 = vmatprep.mubr.f32.mxu0 0.0
      %3470 = vmatmul.mubr.f32.gmra.mxu0 %v2921
      %v3471 = vpop.f32.mrf.mxu0
      %v3472 = vadd.f32 0.0, %v3471
      %v3473 = vpop.f32.mrf.mxu0
      %3474 = vmatprep.mubr.f32.mxu0 0.0
      %3475 = vmatmul.mubr.f32.gmra.mxu0 %v2924
      %v3476 = vpop.f32.mrf.mxu0
      %v3477 = vadd.f32 0.0, %v3476
      %v3478 = vpop.f32.mrf.mxu0
      %3479 = vmatprep.mubr.f32.mxu0 0.0
      %3480 = vmatmul.mubr.f32.gmra.mxu0 %v2927
      %v3481 = vpop.f32.mrf.mxu0
      %v3482 = vadd.f32 0.0, %v3481
      %v3483 = vpop.f32.mrf.mxu0
      %3484 = vmatprep.mubr.f32.mxu0 0.0
      %3485 = vmatmul.mubr.f32.gmra.mxu0 %v2930
      %v3486 = vpop.f32.mrf.mxu0
      %v3487 = vadd.f32 0.0, %v3486
      %v3488 = vpop.f32.mrf.mxu0
      %3489 = vmatprep.mubr.f32.mxu0 0.0
      %3490 = vmatmul.mubr.f32.gmra.mxu0 %v2933
      %v3491 = vpop.f32.mrf.mxu0
      %v3492 = vadd.f32 0.0, %v3491
      %v3493 = vpop.f32.mrf.mxu0
      %3494 = vmatprep.mubr.f32.mxu0 0.0
      %3495 = vmatmul.mubr.f32.gmra.mxu0 %v2936
      %v3496 = vpop.f32.mrf.mxu0
      %v3497 = vadd.f32 0.0, %v3496
      %v3498 = vpop.f32.mrf.mxu0
      %3499 = vmatprep.mubr.f32.mxu0 0.0
      %3500 = vmatmul.mubr.f32.gmra.mxu0 %v2939
      %v3501 = vpop.f32.mrf.mxu0
      %v3502 = vadd.f32 0.0, %v3501
      %v3503 = vpop.f32.mrf.mxu0
      %3504 = vmatprep.mubr.f32.mxu0 0.0
      %3505 = vmatmul.mubr.f32.gmra.mxu0 %v2942
      %v3506 = vpop.f32.mrf.mxu0
      %v3507 = vadd.f32 0.0, %v3506
      %v3508 = vpop.f32.mrf.mxu0
      %3509 = vmatprep.mubr.f32.mxu0 0.0
      %3510 = vmatmul.mubr.f32.gmra.mxu0 %v2945
      %v3511 = vpop.f32.mrf.mxu0
      %v3512 = vadd.f32 0.0, %v3511
      %v3513 = vpop.f32.mrf.mxu0
      %3514 = vmatprep.mubr.f32.mxu0 0.0
      %3515 = vmatmul.mubr.f32.gmra.mxu0 %v2948
      %v3516 = vpop.f32.mrf.mxu0
      %v3517 = vadd.f32 0.0, %v3516
      %v3518 = vpop.f32.mrf.mxu0
      %3519 = vmatprep.mubr.f32.mxu0 0.0
      %3520 = vmatmul.mubr.f32.gmra.mxu0 %v2951
      %v3521 = vpop.f32.mrf.mxu0
      %v3522 = vadd.f32 0.0, %v3521
      %v3523 = vpop.f32.mrf.mxu0
      %3524 = vmatprep.mubr.f32.mxu0 0.0
      %3525 = vmatmul.mubr.f32.gmra.mxu0 %v2954
      %v3526 = vpop.f32.mrf.mxu0
      %v3527 = vadd.f32 0.0, %v3526
      %v3528 = vpop.f32.mrf.mxu0
      %3529 = vmatprep.mubr.f32.mxu0 0.0
      %3530 = vmatmul.mubr.f32.gmra.mxu0 %v2957
      %v3531 = vpop.f32.mrf.mxu0
      %v3532 = vadd.f32 0.0, %v3531
      %v3533 = vpop.f32.mrf.mxu0
      %3534 = vmatprep.mubr.f32.mxu0 0.0
      %3535 = vmatmul.mubr.f32.gmra.mxu0 %v2960
      %v3536 = vpop.f32.mrf.mxu0
      %v3537 = vadd.f32 0.0, %v3536
      %v3538 = vpop.f32.mrf.mxu0
      %3539 = vmatprep.mubr.f32.mxu0 0.0
      %3540 = vmatmul.mubr.f32.gmra.mxu0 %v2963
      %v3541 = vpop.f32.mrf.mxu0
      %v3542 = vadd.f32 0.0, %v3541
      %v3543 = vpop.f32.mrf.mxu0
      %3544 = vmatprep.mubr.f32.mxu0 0.0
      %3545 = vmatmul.mubr.f32.gmra.mxu0 %v2966
      %v3546 = vpop.f32.mrf.mxu0
      %v3547 = vadd.f32 0.0, %v3546
      %v3548 = vpop.f32.mrf.mxu0
      %3549 = vmatprep.mubr.f32.mxu0 0.0
      %3550 = vmatmul.mubr.f32.gmra.mxu0 %v2969
      %v3551 = vpop.f32.mrf.mxu0
      %v3552 = vadd.f32 0.0, %v3551
      %v3553 = vpop.f32.mrf.mxu0
      %3554 = vmatprep.mubr.f32.mxu0 0.0
      %3555 = vmatmul.mubr.f32.gmra.mxu0 %v2972
      %v3556 = vpop.f32.mrf.mxu0
      %v3557 = vadd.f32 0.0, %v3556
      %v3558 = vpop.f32.mrf.mxu0
      %3559 = vmatprep.mubr.f32.mxu0 0.0
      %3560 = vmatmul.mubr.f32.gmra.mxu0 %v2975
      %v3561 = vpop.f32.mrf.mxu0
      %v3562 = vadd.f32 0.0, %v3561
      %v3563 = vpop.f32.mrf.mxu0
      %3564 = vmatprep.mubr.f32.mxu0 0.0
      %3565 = vmatmul.mubr.f32.gmra.mxu0 %v2978
      %v3566 = vpop.f32.mrf.mxu0
      %v3567 = vadd.f32 0.0, %v3566
      %v3568 = vpop.f32.mrf.mxu0
      %3569 = vmatprep.mubr.f32.mxu0 0.0
      %3570 = vmatmul.mubr.f32.gmra.mxu0 %v2981
      %v3571 = vpop.f32.mrf.mxu0
      %v3572 = vadd.f32 0.0, %v3571
      %v3573 = vpop.f32.mrf.mxu0
      %3574 = vmatprep.mubr.f32.mxu0 0.0
      %3575 = vmatmul.mubr.f32.gmra.mxu0 %v2984
      %v3576 = vpop.f32.mrf.mxu0
      %v3577 = vadd.f32 0.0, %v3576
      %v3578 = vpop.f32.mrf.mxu0
      %3579 = vmatprep.mubr.f32.mxu0 0.0
      %3580 = vmatmul.mubr.f32.gmra.mxu0 %v2987
      %v3581 = vpop.f32.mrf.mxu0
      %v3582 = vadd.f32 0.0, %v3581
      %v3583 = vpop.f32.mrf.mxu0
      %3584 = vmatprep.mubr.f32.mxu0 0.0
      %3585 = vmatmul.mubr.f32.gmra.mxu0 %v2990
      %v3586 = vpop.f32.mrf.mxu0
      %v3587 = vadd.f32 0.0, %v3586
      %v3588 = vpop.f32.mrf.mxu0
      %3589 = vmatprep.mubr.f32.mxu0 0.0
      %3590 = vmatmul.mubr.f32.gmra.mxu0 %v2993
      %v3591 = vpop.f32.mrf.mxu0
      %v3592 = vadd.f32 0.0, %v3591
      %v3593 = vpop.f32.mrf.mxu0
      %3594 = vmatprep.mubr.f32.mxu0 0.0
      %3595 = vmatmul.mubr.f32.gmra.mxu0 %v2996
      %v3596 = vpop.f32.mrf.mxu0
      %v3597 = vadd.f32 0.0, %v3596
      %v3598 = vpop.f32.mrf.mxu0
      %3599 = vmatprep.mubr.f32.mxu0 0.0
      %3600 = vmatmul.mubr.f32.gmra.mxu0 %v2999
      %v3601 = vpop.f32.mrf.mxu0
      %v3602 = vadd.f32 0.0, %v3601
      %v3603 = vpop.f32.mrf.mxu0
      %3604 = vmatprep.mubr.f32.mxu0 0.0
      %3605 = vmatmul.mubr.f32.gmra.mxu0 %v3002
      %v3606 = vpop.f32.mrf.mxu0
      %v3607 = vadd.f32 0.0, %v3606
      %v3608 = vpop.f32.mrf.mxu0
      %3609 = vmatprep.mubr.f32.mxu0 0.0
      %3610 = vmatmul.mubr.f32.gmra.mxu0 %v3005
      %v3611 = vpop.f32.mrf.mxu0
      %v3612 = vadd.f32 0.0, %v3611
      %v3613 = vpop.f32.mrf.mxu0
      %3614 = vmatprep.mubr.f32.mxu0 0.0
      %3615 = vmatmul.mubr.f32.gmra.mxu0 %v3008
      %v3616 = vpop.f32.mrf.mxu0
      %v3617 = vadd.f32 0.0, %v3616
      %v3618 = vpop.f32.mrf.mxu0
      %3619 = vmatprep.mubr.f32.mxu0 0.0
      %3620 = vmatmul.mubr.f32.gmra.mxu0 %v3011
      %v3621 = vpop.f32.mrf.mxu0
      %v3622 = vadd.f32 0.0, %v3621
      %v3623 = vpop.f32.mrf.mxu0
      %3624 = vmatprep.mubr.f32.mxu0 0.0
      %3625 = vmatmul.mubr.f32.gmra.mxu0 %v3014
      %v3626 = vpop.f32.mrf.mxu0
      %v3627 = vadd.f32 0.0, %v3626
      %v3628 = vpop.f32.mrf.mxu0
      %3629 = vmatprep.mubr.f32.mxu0 0.0
      %3630 = vmatmul.mubr.f32.gmra.mxu0 %v3017
      %v3631 = vpop.f32.mrf.mxu0
      %v3632 = vadd.f32 0.0, %v3631
      %v3633 = vpop.f32.mrf.mxu0
      %3634 = vmatprep.mubr.f32.mxu0 0.0
      %3635 = vmatmul.mubr.f32.gmra.mxu0 %v3020
      %v3636 = vpop.f32.mrf.mxu0
      %v3637 = vadd.f32 0.0, %v3636
      %v3638 = vpop.f32.mrf.mxu0
      %3639 = vmatprep.mubr.f32.mxu0 0.0
      %3640 = vmatmul.mubr.f32.gmra.mxu0 %v3023
      %v3641 = vpop.f32.mrf.mxu0
      %v3642 = vadd.f32 0.0, %v3641
      %v3643 = vpop.f32.mrf.mxu0
      %3644 = vmatprep.mubr.f32.mxu0 0.0
      %3645 = vmatmul.mubr.f32.gmra.mxu0 %v3026
      %v3646 = vpop.f32.mrf.mxu0
      %v3647 = vadd.f32 0.0, %v3646
      %v3648 = vpop.f32.mrf.mxu0
      %3649 = vmatprep.mubr.f32.mxu0 0.0
      %3650 = vmatmul.mubr.f32.gmra.mxu0 %v3029
      %v3651 = vpop.f32.mrf.mxu0
      %v3652 = vadd.f32 0.0, %v3651
      %v3653 = vpop.f32.mrf.mxu0
      %3654 = vmatprep.mubr.f32.mxu0 0.0
      %3655 = vmatmul.mubr.f32.gmra.mxu0 %v3032
      %v3656 = vpop.f32.mrf.mxu0
      %v3657 = vadd.f32 0.0, %v3656
      %v3658 = vpop.f32.mrf.mxu0
      %3659 = vmatprep.mubr.f32.mxu0 0.0
      %3660 = vmatmul.mubr.f32.gmra.mxu0 %v3035
      %v3661 = vpop.f32.mrf.mxu0
      %v3662 = vadd.f32 0.0, %v3661
      %v3663 = vpop.f32.mrf.mxu0
      %3664 = vmatprep.mubr.f32.mxu0 0.0
      %3665 = vmatmul.mubr.f32.gmra.mxu0 %v3038
      %v3666 = vpop.f32.mrf.mxu0
      %v3667 = vadd.f32 0.0, %v3666
      %v3668 = vpop.f32.mrf.mxu0
      %3669 = vmatprep.mubr.f32.mxu0 0.0
      %3670 = vmatmul.mubr.f32.gmra.mxu0 %v3041
      %v3671 = vpop.f32.mrf.mxu0
      %v3672 = vadd.f32 0.0, %v3671
      %v3673 = vpop.f32.mrf.mxu0
      %3674 = vmatprep.mubr.f32.mxu0 0.0
      %3675 = vmatmul.mubr.f32.gmra.mxu0 %v3044
      %v3676 = vpop.f32.mrf.mxu0
      %v3677 = vadd.f32 0.0, %v3676
      %v3678 = vpop.f32.mrf.mxu0
      %3679 = vmatprep.mubr.f32.mxu0 0.0
      %3680 = vmatmul.mubr.f32.gmra.mxu0 %v3047
      %v3681 = vpop.f32.mrf.mxu0
      %v3682 = vadd.f32 0.0, %v3681
      %v3683 = vpop.f32.mrf.mxu0
      %3684 = vmatprep.mubr.f32.mxu0 0.0
      %3685 = vmatmul.mubr.f32.gmra.mxu0 %v3050
      %v3686 = vpop.f32.mrf.mxu0
      %v3687 = vadd.f32 0.0, %v3686
      %v3688 = vpop.f32.mrf.mxu0
      %3689 = vmatprep.mubr.f32.mxu0 0.0
      %3690 = vmatmul.mubr.f32.gmra.mxu0 %v3053
      %v3691 = vpop.f32.mrf.mxu0
      %v3692 = vadd.f32 0.0, %v3691
      %v3693 = vpop.f32.mrf.mxu0
      %3694 = vmatprep.mubr.f32.mxu0 0.0
      %3695 = vmatmul.mubr.f32.gmra.mxu0 %v3056
      %v3696 = vpop.f32.mrf.mxu0
      %v3697 = vadd.f32 0.0, %v3696
      %v3698 = vpop.f32.mrf.mxu0
      %3699 = vmatprep.mubr.f32.mxu0 0.0
      %3700 = vmatmul.mubr.f32.gmra.mxu0 %v3059
      %v3701 = vpop.f32.mrf.mxu0
      %v3702 = vadd.f32 0.0, %v3701
      %v3703 = vpop.f32.mrf.mxu0
      %3704 = vmatprep.mubr.f32.mxu0 0.0
      %3705 = vmatmul.mubr.f32.gmra.mxu0 %v3062
      %v3706 = vpop.f32.mrf.mxu0
      %v3707 = vadd.f32 0.0, %v3706
      %v3708 = vpop.f32.mrf.mxu0
      %3709 = vmatprep.mubr.f32.mxu0 0.0
      %3710 = vmatmul.mubr.f32.gmra.mxu0 %v3065
      %v3711 = vpop.f32.mrf.mxu0
      %v3712 = vadd.f32 0.0, %v3711
      %v3713 = vpop.f32.mrf.mxu0
      %3714 = vmatprep.mubr.f32.mxu0 0.0
      %3715 = vmatmul.mubr.f32.gmra.mxu0 %v3068
      %v3716 = vpop.f32.mrf.mxu0
      %v3717 = vadd.f32 0.0, %v3716
      %v3718 = vpop.f32.mrf.mxu0
      %3719 = vmatprep.mubr.f32.mxu0 0.0
      %3720 = vmatmul.mubr.f32.gmra.mxu0 %v3071
      %v3721 = vpop.f32.mrf.mxu0
      %v3722 = vadd.f32 0.0, %v3721
      %v3723 = vpop.f32.mrf.mxu0
      %3724 = vmatprep.mubr.f32.mxu0 0.0
      %3725 = vmatmul.mubr.f32.gmra.mxu0 %v3074
      %v3726 = vpop.f32.mrf.mxu0
      %v3727 = vadd.f32 0.0, %v3726
      %v3728 = vpop.f32.mrf.mxu0
      %3729 = vmatprep.mubr.f32.mxu0 0.0
      %3730 = vmatmul.mubr.f32.gmra.mxu0 %v3077
      %v3731 = vpop.f32.mrf.mxu0
      %v3732 = vadd.f32 0.0, %v3731
      %v3733 = vpop.f32.mrf.mxu0
      %3734 = vmatprep.mubr.f32.mxu0 0.0
      %3735 = vmatmul.mubr.f32.gmra.mxu0 %v3080
      %v3736 = vpop.f32.mrf.mxu0
      %v3737 = vadd.f32 0.0, %v3736
      %v3738 = vpop.f32.mrf.mxu0
      %3739 = vmatprep.mubr.f32.mxu0 0.0
      %3740 = vmatmul.mubr.f32.gmra.mxu0 %v3083
      %v3741 = vpop.f32.mrf.mxu0
      %v3742 = vadd.f32 0.0, %v3741
      %v3743 = vpop.f32.mrf.mxu0
      %3744 = vmatprep.mubr.f32.mxu0 0.0
      %3745 = vmatmul.mubr.f32.gmra.mxu0 %v3086
      %v3746 = vpop.f32.mrf.mxu0
      %v3747 = vadd.f32 0.0, %v3746
      %v3748 = vpop.f32.mrf.mxu0
      %3749 = vmatprep.mubr.f32.mxu0 0.0
      %3750 = vmatmul.mubr.f32.gmra.mxu0 %v3089
      %v3751 = vpop.f32.mrf.mxu0
      %v3752 = vadd.f32 0.0, %v3751
      %v3753 = vpop.f32.mrf.mxu0
      %3754 = vmatprep.mubr.f32.mxu0 0.0
      %3755 = vmatmul.mubr.f32.gmra.mxu0 %v3092
      %v3756 = vpop.f32.mrf.mxu0
      %v3757 = vadd.f32 0.0, %v3756
      %v3758 = vpop.f32.mrf.mxu0
      %3759 = vmatprep.mubr.f32.mxu0 0.0
      %3760 = vmatmul.mubr.f32.gmra.mxu0 %v3095
      %v3761 = vpop.f32.mrf.mxu0
      %v3762 = vadd.f32 0.0, %v3761
      %v3763 = vpop.f32.mrf.mxu0
      %3764 = vmatprep.mubr.f32.mxu0 0.0
      %3765 = vmatmul.mubr.f32.gmra.mxu0 %v3098
      %v3766 = vpop.f32.mrf.mxu0
      %v3767 = vadd.f32 0.0, %v3766
      %v3768 = vpop.f32.mrf.mxu0
      %3769 = vmatprep.mubr.f32.mxu0 0.0
      %3770 = vmatmul.mubr.f32.gmra.mxu0 %v3101
      %v3771 = vpop.f32.mrf.mxu0
      %v3772 = vadd.f32 0.0, %v3771
      %v3773 = vpop.f32.mrf.mxu0
      %3774 = vmatprep.mubr.f32.mxu0 0.0
      %3775 = vmatmul.mubr.f32.gmra.mxu0 %v3104
      %v3776 = vpop.f32.mrf.mxu0
      %v3777 = vadd.f32 0.0, %v3776
      %v3778 = vpop.f32.mrf.mxu0
      %3779 = vmatprep.mubr.f32.mxu0 0.0
      %3780 = vmatmul.mubr.f32.gmra.mxu0 %v3107
      %v3781 = vpop.f32.mrf.mxu0
      %v3782 = vadd.f32 0.0, %v3781
      %v3783 = vpop.f32.mrf.mxu0
      %3784 = vmatprep.mubr.f32.mxu0 0.0
      %3785 = vmatmul.mubr.f32.gmra.mxu0 %v3110
      %v3786 = vpop.f32.mrf.mxu0
      %v3787 = vadd.f32 0.0, %v3786
      %v3788 = vpop.f32.mrf.mxu0
      %3789 = vmatprep.mubr.f32.mxu0 0.0
      %3790 = vmatmul.mubr.f32.gmra.mxu0 %v3113
      %v3791 = vpop.f32.mrf.mxu0
      %v3792 = vadd.f32 0.0, %v3791
      %v3793 = vpop.f32.mrf.mxu0
      %3794 = vmatprep.mubr.f32.mxu0 0.0
      %3795 = vmatmul.mubr.f32.gmra.mxu0 %v3116
      %v3796 = vpop.f32.mrf.mxu0
      %v3797 = vadd.f32 0.0, %v3796
      %v3798 = vpop.f32.mrf.mxu0
      %3799 = vmatprep.mubr.f32.mxu0 0.0
      %3800 = vmatmul.mubr.f32.gmra.mxu0 %v3119
      %v3801 = vpop.f32.mrf.mxu0
      %v3802 = vadd.f32 0.0, %v3801
      %v3803 = vpop.f32.mrf.mxu0
      %3804 = vmatprep.mubr.f32.mxu0 0.0
      %3805 = vmatmul.mubr.f32.gmra.mxu0 %v3122
      %v3806 = vpop.f32.mrf.mxu0
      %v3807 = vadd.f32 0.0, %v3806
      %v3808 = vpop.f32.mrf.mxu0
      %3809 = vmatprep.mubr.f32.mxu0 0.0
      %3810 = vmatmul.mubr.f32.gmra.mxu0 %v3125
      %v3811 = vpop.f32.mrf.mxu0
      %v3812 = vadd.f32 0.0, %v3811
      %v3813 = vpop.f32.mrf.mxu0
      %3814 = vmatprep.mubr.f32.mxu0 0.0
      %3815 = vmatmul.mubr.f32.gmra.mxu0 %v3128
      %v3816 = vpop.f32.mrf.mxu0
      %v3817 = vadd.f32 0.0, %v3816
      %v3818 = vpop.f32.mrf.mxu0
      %3819 = vmatprep.mubr.f32.mxu0 0.0
      %3820 = vmatmul.mubr.f32.gmra.mxu0 %v3131
      %v3821 = vpop.f32.mrf.mxu0
      %v3822 = vadd.f32 0.0, %v3821
      %v3823 = vpop.f32.mrf.mxu0
      %3824 = vmatprep.mubr.f32.mxu0 0.0
      %3825 = vmatmul.mubr.f32.gmra.mxu0 %v3134
      %v3826 = vpop.f32.mrf.mxu0
      %v3827 = vadd.f32 0.0, %v3826
      %v3828 = vpop.f32.mrf.mxu0
      %3829 = vmatprep.mubr.f32.mxu0 0.0
      %3830 = vmatmul.mubr.f32.gmra.mxu0 %v3137
      %v3831 = vpop.f32.mrf.mxu0
      %v3832 = vadd.f32 0.0, %v3831
      %v3833 = vpop.f32.mrf.mxu0
      %3834 = vmatprep.mubr.f32.mxu0 0.0
      %3835 = vmatmul.mubr.f32.gmra.mxu0 %v3140
      %v3836 = vpop.f32.mrf.mxu0
      %v3837 = vadd.f32 0.0, %v3836
      %v3838 = vpop.f32.mrf.mxu0
      %3839 = vmatprep.mubr.f32.mxu0 0.0
      %3840 = vmatmul.mubr.f32.gmra.mxu0 %v3143
      %v3841 = vpop.f32.mrf.mxu0
      %v3842 = vadd.f32 0.0, %v3841
      %v3843 = vpop.f32.mrf.mxu0
      %3844 = vmatprep.mubr.f32.mxu0 0.0
      %3845 = vmatmul.mubr.f32.gmra.mxu0 %v3146
      %v3846 = vpop.f32.mrf.mxu0
      %v3847 = vadd.f32 0.0, %v3846
      %v3848 = vpop.f32.mrf.mxu0
      %3849 = vmatprep.mubr.f32.mxu0 0.0
      %3850 = vmatmul.mubr.f32.gmra.mxu0 %v3149
      %v3851 = vpop.f32.mrf.mxu0
      %v3852 = vadd.f32 0.0, %v3851
      %v3853 = vpop.f32.mrf.mxu0
      %3854 = vmatprep.mubr.f32.mxu0 0.0
      %3855 = vmatmul.mubr.f32.gmra.mxu0 %v3152
      %v3856 = vpop.f32.mrf.mxu0
      %v3857 = vadd.f32 0.0, %v3856
      %v3858 = vpop.f32.mrf.mxu0
      %3859 = vmatprep.mubr.f32.mxu0 0.0
      %3860 = vmatmul.mubr.f32.gmra.mxu0 %v3155
      %v3861 = vpop.f32.mrf.mxu0
      %v3862 = vadd.f32 0.0, %v3861
      %v3863 = vpop.f32.mrf.mxu0
      %3864 = vdwg.mxu0
      %v3865 = vadd.f32 %v2005, %v3227
      %v3866 = vadd.f32 %v2010, %v3232
      %v3867 = vadd.f32 %v2015, %v3237
      %v3868 = vadd.f32 %v2020, %v3242
      %v3869 = vadd.f32 %v2025, %v3247
      %v3870 = vadd.f32 %v2030, %v3252
      %v3871 = vadd.f32 %v2035, %v3257
      %v3872 = vadd.f32 %v2040, %v3262
      %v3873 = vadd.f32 %v2045, %v3267
      %v3874 = vadd.f32 %v2050, %v3272
      %v3875 = vadd.f32 %v2055, %v3277
      %v3876 = vadd.f32 %v2060, %v3282
      %v3877 = vadd.f32 %v2065, %v3287
      %v3878 = vadd.f32 %v2070, %v3292
      %v3879 = vadd.f32 %v2075, %v3297
      %v3880 = vadd.f32 %v2080, %v3302
      %v3881 = vadd.f32 %v2085, %v3307
      %v3882 = vadd.f32 %v2090, %v3312
      %v3883 = vadd.f32 %v2095, %v3317
      %v3884 = vadd.f32 %v2100, %v3322
      %v3885 = vadd.f32 %v2105, %v3327
      %v3886 = vadd.f32 %v2110, %v3332
      %v3887 = vadd.f32 %v2115, %v3337
      %v3888 = vadd.f32 %v2120, %v3342
      %v3889 = vadd.f32 %v2125, %v3347
      %v3890 = vadd.f32 %v2130, %v3352
      %v3891 = vadd.f32 %v2135, %v3357
      %v3892 = vadd.f32 %v2140, %v3362
      %v3893 = vadd.f32 %v2145, %v3367
      %v3894 = vadd.f32 %v2150, %v3372
      %v3895 = vadd.f32 %v2155, %v3377
      %v3896 = vadd.f32 %v2160, %v3382
      %v3897 = vadd.f32 %v2165, %v3387
      %v3898 = vadd.f32 %v2170, %v3392
      %v3899 = vadd.f32 %v2175, %v3397
      %v3900 = vadd.f32 %v2180, %v3402
      %v3901 = vadd.f32 %v2185, %v3407
      %v3902 = vadd.f32 %v2190, %v3412
      %v3903 = vadd.f32 %v2195, %v3417
      %v3904 = vadd.f32 %v2200, %v3422
      %v3905 = vadd.f32 %v2205, %v3427
      %v3906 = vadd.f32 %v2210, %v3432
      %v3907 = vadd.f32 %v2215, %v3437
      %v3908 = vadd.f32 %v2220, %v3442
      %v3909 = vadd.f32 %v2225, %v3447
      %v3910 = vadd.f32 %v2230, %v3452
      %v3911 = vadd.f32 %v2235, %v3457
      %v3912 = vadd.f32 %v2240, %v3462
      %v3913 = vadd.f32 %v2245, %v3467
      %v3914 = vadd.f32 %v2250, %v3472
      %v3915 = vadd.f32 %v2255, %v3477
      %v3916 = vadd.f32 %v2260, %v3482
      %v3917 = vadd.f32 %v2265, %v3487
      %v3918 = vadd.f32 %v2270, %v3492
      %v3919 = vadd.f32 %v2275, %v3497
      %v3920 = vadd.f32 %v2280, %v3502
      %v3921 = vadd.f32 %v2285, %v3507
      %v3922 = vadd.f32 %v2290, %v3512
      %v3923 = vadd.f32 %v2295, %v3517
      %v3924 = vadd.f32 %v2300, %v3522
      %v3925 = vadd.f32 %v2305, %v3527
      %v3926 = vadd.f32 %v2310, %v3532
      %v3927 = vadd.f32 %v2315, %v3537
      %v3928 = vadd.f32 %v2320, %v3542
      %v3929 = vadd.f32 %v2325, %v3547
      %v3930 = vadd.f32 %v2330, %v3552
      %v3931 = vadd.f32 %v2335, %v3557
      %v3932 = vadd.f32 %v2340, %v3562
      %v3933 = vadd.f32 %v2345, %v3567
      %v3934 = vadd.f32 %v2350, %v3572
      %v3935 = vadd.f32 %v2355, %v3577
      %v3936 = vadd.f32 %v2360, %v3582
      %v3937 = vadd.f32 %v2365, %v3587
      %v3938 = vadd.f32 %v2370, %v3592
      %v3939 = vadd.f32 %v2375, %v3597
      %v3940 = vadd.f32 %v2380, %v3602
      %v3941 = vadd.f32 %v2385, %v3607
      %v3942 = vadd.f32 %v2390, %v3612
      %v3943 = vadd.f32 %v2395, %v3617
      %v3944 = vadd.f32 %v2400, %v3622
      %v3945 = vadd.f32 %v2405, %v3627
      %v3946 = vadd.f32 %v2410, %v3632
      %v3947 = vadd.f32 %v2415, %v3637
      %v3948 = vadd.f32 %v2420, %v3642
      %v3949 = vadd.f32 %v2425, %v3647
      %v3950 = vadd.f32 %v2430, %v3652
      %v3951 = vadd.f32 %v2435, %v3657
      %v3952 = vadd.f32 %v2440, %v3662
      %v3953 = vadd.f32 %v2445, %v3667
      %v3954 = vadd.f32 %v2450, %v3672
      %v3955 = vadd.f32 %v2455, %v3677
      %v3956 = vadd.f32 %v2460, %v3682
      %v3957 = vadd.f32 %v2465, %v3687
      %v3958 = vadd.f32 %v2470, %v3692
      %v3959 = vadd.f32 %v2475, %v3697
      %v3960 = vadd.f32 %v2480, %v3702
      %v3961 = vadd.f32 %v2485, %v3707
      %v3962 = vadd.f32 %v2490, %v3712
      %v3963 = vadd.f32 %v2495, %v3717
      %v3964 = vadd.f32 %v2500, %v3722
      %v3965 = vadd.f32 %v2505, %v3727
      %v3966 = vadd.f32 %v2510, %v3732
      %v3967 = vadd.f32 %v2515, %v3737
      %v3968 = vadd.f32 %v2520, %v3742
      %v3969 = vadd.f32 %v2525, %v3747
      %v3970 = vadd.f32 %v2530, %v3752
      %v3971 = vadd.f32 %v2535, %v3757
      %v3972 = vadd.f32 %v2540, %v3762
      %v3973 = vadd.f32 %v2545, %v3767
      %v3974 = vadd.f32 %v2550, %v3772
      %v3975 = vadd.f32 %v2555, %v3777
      %v3976 = vadd.f32 %v2560, %v3782
      %v3977 = vadd.f32 %v2565, %v3787
      %v3978 = vadd.f32 %v2570, %v3792
      %v3979 = vadd.f32 %v2575, %v3797
      %v3980 = vadd.f32 %v2580, %v3802
      %v3981 = vadd.f32 %v2585, %v3807
      %v3982 = vadd.f32 %v2590, %v3812
      %v3983 = vadd.f32 %v2595, %v3817
      %v3984 = vadd.f32 %v2600, %v3822
      %v3985 = vadd.f32 %v2605, %v3827
      %v3986 = vadd.f32 %v2610, %v3832
      %v3987 = vadd.f32 %v2615, %v3837
      %v3988 = vadd.f32 %v2620, %v3842
      %v3989 = vadd.f32 %v2625, %v3847
      %v3990 = vadd.f32 %v2630, %v3852
      %v3991 = vadd.f32 %v2635, %v3857
      %v3992 = vadd.f32 %v2640, %v3862
      %s3993 = scalar_lea.vmem %s192, 40
      %v3994 = vld [vmem:[%s3993] sm:$0xff]
      %v3995 = vld [vmem:[%s3993 + $0x8] sm:$0xff]
      %v3996 = vld [vmem:[%s3993 + $0x10] sm:$0xff]
      %v3997 = vld [vmem:[%s3993 + $0x18] sm:$0xff]
      %v3998 = vld [vmem:[%s3993 + $0x28] sm:$0xff]
      %v3999 = vld [vmem:[%s3993 + $0x30] sm:$0xff]
      %v4000 = vld [vmem:[%s3993 + $0x38] sm:$0xff]
      %v4001 = vld [vmem:[%s3993 + $0x40] sm:$0xff]
      %v4002 = vld [vmem:[%s3993 + $0x50] sm:$0xff]
      %v4003 = vld [vmem:[%s3993 + $0x58] sm:$0xff]
      %v4004 = vld [vmem:[%s3993 + $0x60] sm:$0xff]
      %v4005 = vld [vmem:[%s3993 + $0x68] sm:$0xff]
      %v4006 = vld [vmem:[%s3993 + $0x78] sm:$0xff]
      %v4007 = vld [vmem:[%s3993 + $0x80] sm:$0xff]
      %v4008 = vld [vmem:[%s3993 + $0x88] sm:$0xff]
      %v4009 = vld [vmem:[%s3993 + $0x90] sm:$0xff]
      %v4010 = vld [vmem:[%s3993 + $0xa0] sm:$0xff]
      %v4011 = vld [vmem:[%s3993 + $0xa8] sm:$0xff]
      %v4012 = vld [vmem:[%s3993 + $0xb0] sm:$0xff]
      %v4013 = vld [vmem:[%s3993 + $0xb8] sm:$0xff]
      %v4014 = vld [vmem:[%s3993 + $0xc8] sm:$0xff]
      %v4015 = vld [vmem:[%s3993 + $0xd0] sm:$0xff]
      %v4016 = vld [vmem:[%s3993 + $0xd8] sm:$0xff]
      %v4017 = vld [vmem:[%s3993 + $0xe0] sm:$0xff]
      %v4018 = vld [vmem:[%s3993 + $0xf0] sm:$0xff]
      %v4019 = vld [vmem:[%s3993 + $0xf8] sm:$0xff]
      %v4020 = vld [vmem:[%s3993 + $0x100] sm:$0xff]
      %v4021 = vld [vmem:[%s3993 + $0x108] sm:$0xff]
      %v4022 = vld [vmem:[%s3993 + $0x118] sm:$0xff]
      %v4023 = vld [vmem:[%s3993 + $0x120] sm:$0xff]
      %v4024 = vld [vmem:[%s3993 + $0x128] sm:$0xff]
      %v4025 = vld [vmem:[%s3993 + $0x130] sm:$0xff]
      %v4026 = vld [vmem:[%s3993 + $0x140] sm:$0xff]
      %v4027 = vld [vmem:[%s3993 + $0x148] sm:$0xff]
      %v4028 = vld [vmem:[%s3993 + $0x150] sm:$0xff]
      %v4029 = vld [vmem:[%s3993 + $0x158] sm:$0xff]
      %v4030 = vld [vmem:[%s3993 + $0x168] sm:$0xff]
      %v4031 = vld [vmem:[%s3993 + $0x170] sm:$0xff]
      %v4032 = vld [vmem:[%s3993 + $0x178] sm:$0xff]
      %v4033 = vld [vmem:[%s3993 + $0x180] sm:$0xff]
      %v4034 = vld [vmem:[%s3993 + $0x190] sm:$0xff]
      %v4035 = vld [vmem:[%s3993 + $0x198] sm:$0xff]
      %v4036 = vld [vmem:[%s3993 + $0x1a0] sm:$0xff]
      %v4037 = vld [vmem:[%s3993 + $0x1a8] sm:$0xff]
      %v4038 = vld [vmem:[%s3993 + $0x1b8] sm:$0xff]
      %v4039 = vld [vmem:[%s3993 + $0x1c0] sm:$0xff]
      %v4040 = vld [vmem:[%s3993 + $0x1c8] sm:$0xff]
      %v4041 = vld [vmem:[%s3993 + $0x1d0] sm:$0xff]
      %v4042 = vld [vmem:[%s3993 + $0x1e0] sm:$0xff]
      %v4043 = vld [vmem:[%s3993 + $0x1e8] sm:$0xff]
      %v4044 = vld [vmem:[%s3993 + $0x1f0] sm:$0xff]
      %v4045 = vld [vmem:[%s3993 + $0x1f8] sm:$0xff]
      %v4046 = vld [vmem:[%s3993 + $0x208] sm:$0xff]
      %v4047 = vld [vmem:[%s3993 + $0x210] sm:$0xff]
      %v4048 = vld [vmem:[%s3993 + $0x218] sm:$0xff]
      %v4049 = vld [vmem:[%s3993 + $0x220] sm:$0xff]
      %v4050 = vld [vmem:[%s3993 + $0x230] sm:$0xff]
      %v4051 = vld [vmem:[%s3993 + $0x238] sm:$0xff]
      %v4052 = vld [vmem:[%s3993 + $0x240] sm:$0xff]
      %v4053 = vld [vmem:[%s3993 + $0x248] sm:$0xff]
      %v4054 = vld [vmem:[%s3993 + $0x258] sm:$0xff]
      %v4055 = vld [vmem:[%s3993 + $0x260] sm:$0xff]
      %v4056 = vld [vmem:[%s3993 + $0x268] sm:$0xff]
      %v4057 = vld [vmem:[%s3993 + $0x270] sm:$0xff]
      %v4058 = vld [vmem:[%s3993 + $0x280] sm:$0xff]
      %v4059 = vld [vmem:[%s3993 + $0x288] sm:$0xff]
      %v4060 = vld [vmem:[%s3993 + $0x290] sm:$0xff]
      %v4061 = vld [vmem:[%s3993 + $0x298] sm:$0xff]
      %v4062 = vld [vmem:[%s3993 + $0x2a8] sm:$0xff]
      %v4063 = vld [vmem:[%s3993 + $0x2b0] sm:$0xff]
      %v4064 = vld [vmem:[%s3993 + $0x2b8] sm:$0xff]
      %v4065 = vld [vmem:[%s3993 + $0x2c0] sm:$0xff]
      %v4066 = vld [vmem:[%s3993 + $0x2d0] sm:$0xff]
      %v4067 = vld [vmem:[%s3993 + $0x2d8] sm:$0xff]
      %v4068 = vld [vmem:[%s3993 + $0x2e0] sm:$0xff]
      %v4069 = vld [vmem:[%s3993 + $0x2e8] sm:$0xff]
      %v4070 = vld [vmem:[%s3993 + $0x2f8] sm:$0xff]
      %v4071 = vld [vmem:[%s3993 + $0x300] sm:$0xff]
      %v4072 = vld [vmem:[%s3993 + $0x308] sm:$0xff]
      %v4073 = vld [vmem:[%s3993 + $0x310] sm:$0xff]
      %v4074 = vld [vmem:[%s3993 + $0x320] sm:$0xff]
      %v4075 = vld [vmem:[%s3993 + $0x328] sm:$0xff]
      %v4076 = vld [vmem:[%s3993 + $0x330] sm:$0xff]
      %v4077 = vld [vmem:[%s3993 + $0x338] sm:$0xff]
      %v4078 = vld [vmem:[%s3993 + $0x348] sm:$0xff]
      %v4079 = vld [vmem:[%s3993 + $0x350] sm:$0xff]
      %v4080 = vld [vmem:[%s3993 + $0x358] sm:$0xff]
      %v4081 = vld [vmem:[%s3993 + $0x360] sm:$0xff]
      %v4082 = vld [vmem:[%s3993 + $0x370] sm:$0xff]
      %v4083 = vld [vmem:[%s3993 + $0x378] sm:$0xff]
      %v4084 = vld [vmem:[%s3993 + $0x380] sm:$0xff]
      %v4085 = vld [vmem:[%s3993 + $0x388] sm:$0xff]
      %v4086 = vld [vmem:[%s3993 + $0x398] sm:$0xff]
      %v4087 = vld [vmem:[%s3993 + $0x3a0] sm:$0xff]
      %v4088 = vld [vmem:[%s3993 + $0x3a8] sm:$0xff]
      %v4089 = vld [vmem:[%s3993 + $0x3b0] sm:$0xff]
      %v4090 = vld [vmem:[%s3993 + $0x3c0] sm:$0xff]
      %v4091 = vld [vmem:[%s3993 + $0x3c8] sm:$0xff]
      %v4092 = vld [vmem:[%s3993 + $0x3d0] sm:$0xff]
      %v4093 = vld [vmem:[%s3993 + $0x3d8] sm:$0xff]
      %v4094 = vld [vmem:[%s3993 + $0x3e8] sm:$0xff]
      %v4095 = vld [vmem:[%s3993 + $0x3f0] sm:$0xff]
      %v4096 = vld [vmem:[%s3993 + $0x3f8] sm:$0xff]
      %v4097 = vld [vmem:[%s3993 + $0x400] sm:$0xff]
      %v4098 = vld [vmem:[%s3993 + $0x410] sm:$0xff]
      %v4099 = vld [vmem:[%s3993 + $0x418] sm:$0xff]
      %v4100 = vld [vmem:[%s3993 + $0x420] sm:$0xff]
      %v4101 = vld [vmem:[%s3993 + $0x428] sm:$0xff]
      %v4102 = vld [vmem:[%s3993 + $0x438] sm:$0xff]
      %v4103 = vld [vmem:[%s3993 + $0x440] sm:$0xff]
      %v4104 = vld [vmem:[%s3993 + $0x448] sm:$0xff]
      %v4105 = vld [vmem:[%s3993 + $0x450] sm:$0xff]
      %v4106 = vld [vmem:[%s3993 + $0x460] sm:$0xff]
      %v4107 = vld [vmem:[%s3993 + $0x468] sm:$0xff]
      %v4108 = vld [vmem:[%s3993 + $0x470] sm:$0xff]
      %v4109 = vld [vmem:[%s3993 + $0x478] sm:$0xff]
      %v4110 = vld [vmem:[%s3993 + $0x488] sm:$0xff]
      %v4111 = vld [vmem:[%s3993 + $0x490] sm:$0xff]
      %v4112 = vld [vmem:[%s3993 + $0x498] sm:$0xff]
      %v4113 = vld [vmem:[%s3993 + $0x4a0] sm:$0xff]
      %v4114 = vld [vmem:[%s3993 + $0x4b0] sm:$0xff]
      %v4115 = vld [vmem:[%s3993 + $0x4b8] sm:$0xff]
      %v4116 = vld [vmem:[%s3993 + $0x4c0] sm:$0xff]
      %v4117 = vld [vmem:[%s3993 + $0x4c8] sm:$0xff]
      %v4118 = vld [vmem:[%s3993 + $0x4d8] sm:$0xff]
      %v4119 = vld [vmem:[%s3993 + $0x4e0] sm:$0xff]
      %v4120 = vld [vmem:[%s3993 + $0x4e8] sm:$0xff]
      %v4121 = vld [vmem:[%s3993 + $0x4f0] sm:$0xff]
      %s4122 = scalar_lea.vmem %s1, 12
      %v4123 = vld [vmem:[%s4122] sm:$0xf]
      %v4125 = vsel %vm457, %v3994, 0
      %v4128 = vsel %vm457, %v3995, 0
      %v4131 = vsel %vm457, %v3996, 0
      %v4134 = vsel %vm457, %v3997, 0
      %v4137 = vsel %vm457, %v3998, 0
      %v4140 = vsel %vm457, %v3999, 0
      %v4143 = vsel %vm457, %v4000, 0
      %v4146 = vsel %vm457, %v4001, 0
      %v4149 = vsel %vm457, %v4002, 0
      %v4152 = vsel %vm457, %v4003, 0
      %v4155 = vsel %vm457, %v4004, 0
      %v4158 = vsel %vm457, %v4005, 0
      %v4161 = vsel %vm457, %v4006, 0
      %v4164 = vsel %vm457, %v4007, 0
      %v4167 = vsel %vm457, %v4008, 0
      %v4170 = vsel %vm457, %v4009, 0
      %v4173 = vsel %vm457, %v4010, 0
      %v4176 = vsel %vm457, %v4011, 0
      %v4179 = vsel %vm457, %v4012, 0
      %v4182 = vsel %vm457, %v4013, 0
      %v4185 = vsel %vm457, %v4014, 0
      %v4188 = vsel %vm457, %v4015, 0
      %v4191 = vsel %vm457, %v4016, 0
      %v4194 = vsel %vm457, %v4017, 0
      %v4197 = vsel %vm457, %v4018, 0
      %v4200 = vsel %vm457, %v4019, 0
      %v4203 = vsel %vm457, %v4020, 0
      %v4206 = vsel %vm457, %v4021, 0
      %v4209 = vsel %vm457, %v4022, 0
      %v4212 = vsel %vm457, %v4023, 0
      %v4215 = vsel %vm457, %v4024, 0
      %v4218 = vsel %vm457, %v4025, 0
      %v4221 = vsel %vm457, %v4026, 0
      %v4224 = vsel %vm457, %v4027, 0
      %v4227 = vsel %vm457, %v4028, 0
      %v4230 = vsel %vm457, %v4029, 0
      %v4233 = vsel %vm457, %v4030, 0
      %v4236 = vsel %vm457, %v4031, 0
      %v4239 = vsel %vm457, %v4032, 0
      %v4242 = vsel %vm457, %v4033, 0
      %v4245 = vsel %vm457, %v4034, 0
      %v4248 = vsel %vm457, %v4035, 0
      %v4251 = vsel %vm457, %v4036, 0
      %v4254 = vsel %vm457, %v4037, 0
      %v4257 = vsel %vm457, %v4038, 0
      %v4260 = vsel %vm457, %v4039, 0
      %v4263 = vsel %vm457, %v4040, 0
      %v4266 = vsel %vm457, %v4041, 0
      %v4269 = vsel %vm457, %v4042, 0
      %v4272 = vsel %vm457, %v4043, 0
      %v4275 = vsel %vm457, %v4044, 0
      %v4278 = vsel %vm457, %v4045, 0
      %v4281 = vsel %vm457, %v4046, 0
      %v4284 = vsel %vm457, %v4047, 0
      %v4287 = vsel %vm457, %v4048, 0
      %v4290 = vsel %vm457, %v4049, 0
      %v4293 = vsel %vm457, %v4050, 0
      %v4296 = vsel %vm457, %v4051, 0
      %v4299 = vsel %vm457, %v4052, 0
      %v4302 = vsel %vm457, %v4053, 0
      %v4305 = vsel %vm457, %v4054, 0
      %v4308 = vsel %vm457, %v4055, 0
      %v4311 = vsel %vm457, %v4056, 0
      %v4314 = vsel %vm457, %v4057, 0
      %v4317 = vsel %vm457, %v4058, 0
      %v4320 = vsel %vm457, %v4059, 0
      %v4323 = vsel %vm457, %v4060, 0
      %v4326 = vsel %vm457, %v4061, 0
      %v4329 = vsel %vm457, %v4062, 0
      %v4332 = vsel %vm457, %v4063, 0
      %v4335 = vsel %vm457, %v4064, 0
      %v4338 = vsel %vm457, %v4065, 0
      %v4341 = vsel %vm457, %v4066, 0
      %v4344 = vsel %vm457, %v4067, 0
      %v4347 = vsel %vm457, %v4068, 0
      %v4350 = vsel %vm457, %v4069, 0
      %v4353 = vsel %vm457, %v4070, 0
      %v4356 = vsel %vm457, %v4071, 0
      %v4359 = vsel %vm457, %v4072, 0
      %v4362 = vsel %vm457, %v4073, 0
      %v4365 = vsel %vm457, %v4074, 0
      %v4368 = vsel %vm457, %v4075, 0
      %v4371 = vsel %vm457, %v4076, 0
      %v4374 = vsel %vm457, %v4077, 0
      %v4377 = vsel %vm457, %v4078, 0
      %v4380 = vsel %vm457, %v4079, 0
      %v4383 = vsel %vm457, %v4080, 0
      %v4386 = vsel %vm457, %v4081, 0
      %v4389 = vsel %vm457, %v4082, 0
      %v4392 = vsel %vm457, %v4083, 0
      %v4395 = vsel %vm457, %v4084, 0
      %v4398 = vsel %vm457, %v4085, 0
      %v4401 = vsel %vm457, %v4086, 0
      %v4404 = vsel %vm457, %v4087, 0
      %v4407 = vsel %vm457, %v4088, 0
      %v4410 = vsel %vm457, %v4089, 0
      %v4413 = vsel %vm457, %v4090, 0
      %v4416 = vsel %vm457, %v4091, 0
      %v4419 = vsel %vm457, %v4092, 0
      %v4422 = vsel %vm457, %v4093, 0
      %v4425 = vsel %vm457, %v4094, 0
      %v4428 = vsel %vm457, %v4095, 0
      %v4431 = vsel %vm457, %v4096, 0
      %v4434 = vsel %vm457, %v4097, 0
      %v4437 = vsel %vm457, %v4098, 0
      %v4440 = vsel %vm457, %v4099, 0
      %v4443 = vsel %vm457, %v4100, 0
      %v4446 = vsel %vm457, %v4101, 0
      %v4449 = vsel %vm457, %v4102, 0
      %v4452 = vsel %vm457, %v4103, 0
      %v4455 = vsel %vm457, %v4104, 0
      %v4458 = vsel %vm457, %v4105, 0
      %v4461 = vsel %vm457, %v4106, 0
      %v4464 = vsel %vm457, %v4107, 0
      %v4467 = vsel %vm457, %v4108, 0
      %v4470 = vsel %vm457, %v4109, 0
      %v4473 = vsel %vm457, %v4110, 0
      %v4476 = vsel %vm457, %v4111, 0
      %v4479 = vsel %vm457, %v4112, 0
      %v4482 = vsel %vm457, %v4113, 0
      %v4485 = vsel %vm457, %v4114, 0
      %v4488 = vsel %vm457, %v4115, 0
      %v4491 = vsel %vm457, %v4116, 0
      %v4494 = vsel %vm457, %v4117, 0
      %v4497 = vsel %vm457, %v4118, 0
      %v4500 = vsel %vm457, %v4119, 0
      %v4503 = vsel %vm457, %v4120, 0
      %v4506 = vsel %vm457, %v4121, 0
      %v4509 = vsel %vm842, %v4123, 0
      %4511 = vmatprep.subr.mxu0 0.0
      %4512 = vmatpush1.msra.mxu0 0.0
      %4513 = vmatprep.subr.mxu0 0.0
      %4514 = vmatpush1.msra.mxu0 0.0
      %4515 = vmatprep.subr.mxu0 0.0
      %4516 = vmatpush1.msra.mxu0 0.0
      %4517 = vmatprep.subr.mxu0 0.0
      %4518 = vmatpush1.msra.mxu0 0.0
      %4519 = vmatprep.subr.mxu0 0.0
      %4520 = vmatpush1.msra.mxu0 0.0
      %4521 = vmatprep.subr.mxu0 0.0
      %4522 = vmatpush1.msra.mxu0 0.0
      %4523 = vmatprep.subr.mxu0 0.0
      %4524 = vmatpush1.msra.mxu0 0.0
      %4525 = vmatprep.subr.mxu0 0.0
      %4526 = vmatpush1.msra.mxu0 0.0
      %4527 = vmatprep.subr.mxu0 0.0
      %4528 = vmatpush1.msra.mxu0 0.0
      %4529 = vmatprep.subr.mxu0 0.0
      %4530 = vmatpush1.msra.mxu0 0.0
      %4531 = vmatprep.subr.mxu0 0.0
      %4532 = vmatpush1.msra.mxu0 0.0
      %4533 = vmatprep.subr.mxu0 0.0
      %4534 = vmatpush1.msra.mxu0 0.0
      %4535 = vmatprep.subr.mxu0 0.0
      %4536 = vmatpush1.msra.mxu0 0.0
      %4537 = vmatprep.subr.mxu0 0.0
      %4538 = vmatpush1.msra.mxu0 0.0
      %4539 = vmatprep.subr.mxu0 0.0
      %4540 = vmatpush1.msra.mxu0 0.0
      %4541 = vmatprep.subr.mxu0 0.0
      %4542 = vmatpush1.msra.mxu0 %v4509
      %4543 = vmatprep.subr.mxu0 0.0
      %4544 = vmatpush2.msra.mxu0 0.0
      %4545 = vmatprep.subr.mxu0 0.0
      %4546 = vmatpush2.msra.mxu0 0.0
      %4547 = vmatprep.subr.mxu0 0.0
      %4548 = vmatpush2.msra.mxu0 0.0
      %4549 = vmatprep.subr.mxu0 0.0
      %4550 = vmatpush2.msra.mxu0 0.0
      %4551 = vmatprep.subr.mxu0 0.0
      %4552 = vmatpush2.msra.mxu0 0.0
      %4553 = vmatprep.subr.mxu0 0.0
      %4554 = vmatpush2.msra.mxu0 0.0
      %4555 = vmatprep.subr.mxu0 0.0
      %4556 = vmatpush2.msra.mxu0 0.0
      %4557 = vmatprep.subr.mxu0 0.0
      %4558 = vmatpush2.msra.mxu0 0.0
      %4559 = vmatprep.subr.mxu0 0.0
      %4560 = vmatpush2.msra.mxu0 0.0
      %4561 = vmatprep.subr.mxu0 0.0
      %4562 = vmatpush2.msra.mxu0 0.0
      %4563 = vmatprep.subr.mxu0 0.0
      %4564 = vmatpush2.msra.mxu0 0.0
      %4565 = vmatprep.subr.mxu0 0.0
      %4566 = vmatpush2.msra.mxu0 0.0
      %4567 = vmatprep.subr.mxu0 0.0
      %4568 = vmatpush2.msra.mxu0 0.0
      %4569 = vmatprep.subr.mxu0 0.0
      %4570 = vmatpush2.msra.mxu0 0.0
      %4571 = vmatprep.subr.mxu0 0.0
      %4572 = vmatpush2.msra.mxu0 0.0
      %4573 = vmatprep.subr.mxu0 0.0
      %4574 = vmatpush2.msra.mxu0 0.0
      %4575 = vmatprep.mubr.f32.mxu0 0.0
      %4576 = vmatmul.mubr.f32.gmra.mxu0 %v4125
      %v4577 = vpop.f32.mrf.mxu0
      %v4578 = vadd.f32 0.0, %v4577
      %v4579 = vpop.f32.mrf.mxu0
      %4580 = vmatprep.mubr.f32.mxu0 0.0
      %4581 = vmatmul.mubr.f32.gmra.mxu0 %v4128
      %v4582 = vpop.f32.mrf.mxu0
      %v4583 = vadd.f32 0.0, %v4582
      %v4584 = vpop.f32.mrf.mxu0
      %4585 = vmatprep.mubr.f32.mxu0 0.0
      %4586 = vmatmul.mubr.f32.gmra.mxu0 %v4131
      %v4587 = vpop.f32.mrf.mxu0
      %v4588 = vadd.f32 0.0, %v4587
      %v4589 = vpop.f32.mrf.mxu0
      %4590 = vmatprep.mubr.f32.mxu0 0.0
      %4591 = vmatmul.mubr.f32.gmra.mxu0 %v4134
      %v4592 = vpop.f32.mrf.mxu0
      %v4593 = vadd.f32 0.0, %v4592
      %v4594 = vpop.f32.mrf.mxu0
      %4595 = vmatprep.mubr.f32.mxu0 0.0
      %4596 = vmatmul.mubr.f32.gmra.mxu0 %v4137
      %v4597 = vpop.f32.mrf.mxu0
      %v4598 = vadd.f32 0.0, %v4597
      %v4599 = vpop.f32.mrf.mxu0
      %4600 = vmatprep.mubr.f32.mxu0 0.0
      %4601 = vmatmul.mubr.f32.gmra.mxu0 %v4140
      %v4602 = vpop.f32.mrf.mxu0
      %v4603 = vadd.f32 0.0, %v4602
      %v4604 = vpop.f32.mrf.mxu0
      %4605 = vmatprep.mubr.f32.mxu0 0.0
      %4606 = vmatmul.mubr.f32.gmra.mxu0 %v4143
      %v4607 = vpop.f32.mrf.mxu0
      %v4608 = vadd.f32 0.0, %v4607
      %v4609 = vpop.f32.mrf.mxu0
      %4610 = vmatprep.mubr.f32.mxu0 0.0
      %4611 = vmatmul.mubr.f32.gmra.mxu0 %v4146
      %v4612 = vpop.f32.mrf.mxu0
      %v4613 = vadd.f32 0.0, %v4612
      %v4614 = vpop.f32.mrf.mxu0
      %4615 = vmatprep.mubr.f32.mxu0 0.0
      %4616 = vmatmul.mubr.f32.gmra.mxu0 %v4149
      %v4617 = vpop.f32.mrf.mxu0
      %v4618 = vadd.f32 0.0, %v4617
      %v4619 = vpop.f32.mrf.mxu0
      %4620 = vmatprep.mubr.f32.mxu0 0.0
      %4621 = vmatmul.mubr.f32.gmra.mxu0 %v4152
      %v4622 = vpop.f32.mrf.mxu0
      %v4623 = vadd.f32 0.0, %v4622
      %v4624 = vpop.f32.mrf.mxu0
      %4625 = vmatprep.mubr.f32.mxu0 0.0
      %4626 = vmatmul.mubr.f32.gmra.mxu0 %v4155
      %v4627 = vpop.f32.mrf.mxu0
      %v4628 = vadd.f32 0.0, %v4627
      %v4629 = vpop.f32.mrf.mxu0
      %4630 = vmatprep.mubr.f32.mxu0 0.0
      %4631 = vmatmul.mubr.f32.gmra.mxu0 %v4158
      %v4632 = vpop.f32.mrf.mxu0
      %v4633 = vadd.f32 0.0, %v4632
      %v4634 = vpop.f32.mrf.mxu0
      %4635 = vmatprep.mubr.f32.mxu0 0.0
      %4636 = vmatmul.mubr.f32.gmra.mxu0 %v4161
      %v4637 = vpop.f32.mrf.mxu0
      %v4638 = vadd.f32 0.0, %v4637
      %v4639 = vpop.f32.mrf.mxu0
      %4640 = vmatprep.mubr.f32.mxu0 0.0
      %4641 = vmatmul.mubr.f32.gmra.mxu0 %v4164
      %v4642 = vpop.f32.mrf.mxu0
      %v4643 = vadd.f32 0.0, %v4642
      %v4644 = vpop.f32.mrf.mxu0
      %4645 = vmatprep.mubr.f32.mxu0 0.0
      %4646 = vmatmul.mubr.f32.gmra.mxu0 %v4167
      %v4647 = vpop.f32.mrf.mxu0
      %v4648 = vadd.f32 0.0, %v4647
      %v4649 = vpop.f32.mrf.mxu0
      %4650 = vmatprep.mubr.f32.mxu0 0.0
      %4651 = vmatmul.mubr.f32.gmra.mxu0 %v4170
      %v4652 = vpop.f32.mrf.mxu0
      %v4653 = vadd.f32 0.0, %v4652
      %v4654 = vpop.f32.mrf.mxu0
      %4655 = vmatprep.mubr.f32.mxu0 0.0
      %4656 = vmatmul.mubr.f32.gmra.mxu0 %v4173
      %v4657 = vpop.f32.mrf.mxu0
      %v4658 = vadd.f32 0.0, %v4657
      %v4659 = vpop.f32.mrf.mxu0
      %4660 = vmatprep.mubr.f32.mxu0 0.0
      %4661 = vmatmul.mubr.f32.gmra.mxu0 %v4176
      %v4662 = vpop.f32.mrf.mxu0
      %v4663 = vadd.f32 0.0, %v4662
      %v4664 = vpop.f32.mrf.mxu0
      %4665 = vmatprep.mubr.f32.mxu0 0.0
      %4666 = vmatmul.mubr.f32.gmra.mxu0 %v4179
      %v4667 = vpop.f32.mrf.mxu0
      %v4668 = vadd.f32 0.0, %v4667
      %v4669 = vpop.f32.mrf.mxu0
      %4670 = vmatprep.mubr.f32.mxu0 0.0
      %4671 = vmatmul.mubr.f32.gmra.mxu0 %v4182
      %v4672 = vpop.f32.mrf.mxu0
      %v4673 = vadd.f32 0.0, %v4672
      %v4674 = vpop.f32.mrf.mxu0
      %4675 = vmatprep.mubr.f32.mxu0 0.0
      %4676 = vmatmul.mubr.f32.gmra.mxu0 %v4185
      %v4677 = vpop.f32.mrf.mxu0
      %v4678 = vadd.f32 0.0, %v4677
      %v4679 = vpop.f32.mrf.mxu0
      %4680 = vmatprep.mubr.f32.mxu0 0.0
      %4681 = vmatmul.mubr.f32.gmra.mxu0 %v4188
      %v4682 = vpop.f32.mrf.mxu0
      %v4683 = vadd.f32 0.0, %v4682
      %v4684 = vpop.f32.mrf.mxu0
      %4685 = vmatprep.mubr.f32.mxu0 0.0
      %4686 = vmatmul.mubr.f32.gmra.mxu0 %v4191
      %v4687 = vpop.f32.mrf.mxu0
      %v4688 = vadd.f32 0.0, %v4687
      %v4689 = vpop.f32.mrf.mxu0
      %4690 = vmatprep.mubr.f32.mxu0 0.0
      %4691 = vmatmul.mubr.f32.gmra.mxu0 %v4194
      %v4692 = vpop.f32.mrf.mxu0
      %v4693 = vadd.f32 0.0, %v4692
      %v4694 = vpop.f32.mrf.mxu0
      %4695 = vmatprep.mubr.f32.mxu0 0.0
      %4696 = vmatmul.mubr.f32.gmra.mxu0 %v4197
      %v4697 = vpop.f32.mrf.mxu0
      %v4698 = vadd.f32 0.0, %v4697
      %v4699 = vpop.f32.mrf.mxu0
      %4700 = vmatprep.mubr.f32.mxu0 0.0
      %4701 = vmatmul.mubr.f32.gmra.mxu0 %v4200
      %v4702 = vpop.f32.mrf.mxu0
      %v4703 = vadd.f32 0.0, %v4702
      %v4704 = vpop.f32.mrf.mxu0
      %4705 = vmatprep.mubr.f32.mxu0 0.0
      %4706 = vmatmul.mubr.f32.gmra.mxu0 %v4203
      %v4707 = vpop.f32.mrf.mxu0
      %v4708 = vadd.f32 0.0, %v4707
      %v4709 = vpop.f32.mrf.mxu0
      %4710 = vmatprep.mubr.f32.mxu0 0.0
      %4711 = vmatmul.mubr.f32.gmra.mxu0 %v4206
      %v4712 = vpop.f32.mrf.mxu0
      %v4713 = vadd.f32 0.0, %v4712
      %v4714 = vpop.f32.mrf.mxu0
      %4715 = vmatprep.mubr.f32.mxu0 0.0
      %4716 = vmatmul.mubr.f32.gmra.mxu0 %v4209
      %v4717 = vpop.f32.mrf.mxu0
      %v4718 = vadd.f32 0.0, %v4717
      %v4719 = vpop.f32.mrf.mxu0
      %4720 = vmatprep.mubr.f32.mxu0 0.0
      %4721 = vmatmul.mubr.f32.gmra.mxu0 %v4212
      %v4722 = vpop.f32.mrf.mxu0
      %v4723 = vadd.f32 0.0, %v4722
      %v4724 = vpop.f32.mrf.mxu0
      %4725 = vmatprep.mubr.f32.mxu0 0.0
      %4726 = vmatmul.mubr.f32.gmra.mxu0 %v4215
      %v4727 = vpop.f32.mrf.mxu0
      %v4728 = vadd.f32 0.0, %v4727
      %v4729 = vpop.f32.mrf.mxu0
      %4730 = vmatprep.mubr.f32.mxu0 0.0
      %4731 = vmatmul.mubr.f32.gmra.mxu0 %v4218
      %v4732 = vpop.f32.mrf.mxu0
      %v4733 = vadd.f32 0.0, %v4732
      %v4734 = vpop.f32.mrf.mxu0
      %4735 = vmatprep.mubr.f32.mxu0 0.0
      %4736 = vmatmul.mubr.f32.gmra.mxu0 %v4221
      %v4737 = vpop.f32.mrf.mxu0
      %v4738 = vadd.f32 0.0, %v4737
      %v4739 = vpop.f32.mrf.mxu0
      %4740 = vmatprep.mubr.f32.mxu0 0.0
      %4741 = vmatmul.mubr.f32.gmra.mxu0 %v4224
      %v4742 = vpop.f32.mrf.mxu0
      %v4743 = vadd.f32 0.0, %v4742
      %v4744 = vpop.f32.mrf.mxu0
      %4745 = vmatprep.mubr.f32.mxu0 0.0
      %4746 = vmatmul.mubr.f32.gmra.mxu0 %v4227
      %v4747 = vpop.f32.mrf.mxu0
      %v4748 = vadd.f32 0.0, %v4747
      %v4749 = vpop.f32.mrf.mxu0
      %4750 = vmatprep.mubr.f32.mxu0 0.0
      %4751 = vmatmul.mubr.f32.gmra.mxu0 %v4230
      %v4752 = vpop.f32.mrf.mxu0
      %v4753 = vadd.f32 0.0, %v4752
      %v4754 = vpop.f32.mrf.mxu0
      %4755 = vmatprep.mubr.f32.mxu0 0.0
      %4756 = vmatmul.mubr.f32.gmra.mxu0 %v4233
      %v4757 = vpop.f32.mrf.mxu0
      %v4758 = vadd.f32 0.0, %v4757
      %v4759 = vpop.f32.mrf.mxu0
      %4760 = vmatprep.mubr.f32.mxu0 0.0
      %4761 = vmatmul.mubr.f32.gmra.mxu0 %v4236
      %v4762 = vpop.f32.mrf.mxu0
      %v4763 = vadd.f32 0.0, %v4762
      %v4764 = vpop.f32.mrf.mxu0
      %4765 = vmatprep.mubr.f32.mxu0 0.0
      %4766 = vmatmul.mubr.f32.gmra.mxu0 %v4239
      %v4767 = vpop.f32.mrf.mxu0
      %v4768 = vadd.f32 0.0, %v4767
      %v4769 = vpop.f32.mrf.mxu0
      %4770 = vmatprep.mubr.f32.mxu0 0.0
      %4771 = vmatmul.mubr.f32.gmra.mxu0 %v4242
      %v4772 = vpop.f32.mrf.mxu0
      %v4773 = vadd.f32 0.0, %v4772
      %v4774 = vpop.f32.mrf.mxu0
      %4775 = vmatprep.mubr.f32.mxu0 0.0
      %4776 = vmatmul.mubr.f32.gmra.mxu0 %v4245
      %v4777 = vpop.f32.mrf.mxu0
      %v4778 = vadd.f32 0.0, %v4777
      %v4779 = vpop.f32.mrf.mxu0
      %4780 = vmatprep.mubr.f32.mxu0 0.0
      %4781 = vmatmul.mubr.f32.gmra.mxu0 %v4248
      %v4782 = vpop.f32.mrf.mxu0
      %v4783 = vadd.f32 0.0, %v4782
      %v4784 = vpop.f32.mrf.mxu0
      %4785 = vmatprep.mubr.f32.mxu0 0.0
      %4786 = vmatmul.mubr.f32.gmra.mxu0 %v4251
      %v4787 = vpop.f32.mrf.mxu0
      %v4788 = vadd.f32 0.0, %v4787
      %v4789 = vpop.f32.mrf.mxu0
      %4790 = vmatprep.mubr.f32.mxu0 0.0
      %4791 = vmatmul.mubr.f32.gmra.mxu0 %v4254
      %v4792 = vpop.f32.mrf.mxu0
      %v4793 = vadd.f32 0.0, %v4792
      %v4794 = vpop.f32.mrf.mxu0
      %4795 = vmatprep.mubr.f32.mxu0 0.0
      %4796 = vmatmul.mubr.f32.gmra.mxu0 %v4257
      %v4797 = vpop.f32.mrf.mxu0
      %v4798 = vadd.f32 0.0, %v4797
      %v4799 = vpop.f32.mrf.mxu0
      %4800 = vmatprep.mubr.f32.mxu0 0.0
      %4801 = vmatmul.mubr.f32.gmra.mxu0 %v4260
      %v4802 = vpop.f32.mrf.mxu0
      %v4803 = vadd.f32 0.0, %v4802
      %v4804 = vpop.f32.mrf.mxu0
      %4805 = vmatprep.mubr.f32.mxu0 0.0
      %4806 = vmatmul.mubr.f32.gmra.mxu0 %v4263
      %v4807 = vpop.f32.mrf.mxu0
      %v4808 = vadd.f32 0.0, %v4807
      %v4809 = vpop.f32.mrf.mxu0
      %4810 = vmatprep.mubr.f32.mxu0 0.0
      %4811 = vmatmul.mubr.f32.gmra.mxu0 %v4266
      %v4812 = vpop.f32.mrf.mxu0
      %v4813 = vadd.f32 0.0, %v4812
      %v4814 = vpop.f32.mrf.mxu0
      %4815 = vmatprep.mubr.f32.mxu0 0.0
      %4816 = vmatmul.mubr.f32.gmra.mxu0 %v4269
      %v4817 = vpop.f32.mrf.mxu0
      %v4818 = vadd.f32 0.0, %v4817
      %v4819 = vpop.f32.mrf.mxu0
      %4820 = vmatprep.mubr.f32.mxu0 0.0
      %4821 = vmatmul.mubr.f32.gmra.mxu0 %v4272
      %v4822 = vpop.f32.mrf.mxu0
      %v4823 = vadd.f32 0.0, %v4822
      %v4824 = vpop.f32.mrf.mxu0
      %4825 = vmatprep.mubr.f32.mxu0 0.0
      %4826 = vmatmul.mubr.f32.gmra.mxu0 %v4275
      %v4827 = vpop.f32.mrf.mxu0
      %v4828 = vadd.f32 0.0, %v4827
      %v4829 = vpop.f32.mrf.mxu0
      %4830 = vmatprep.mubr.f32.mxu0 0.0
      %4831 = vmatmul.mubr.f32.gmra.mxu0 %v4278
      %v4832 = vpop.f32.mrf.mxu0
      %v4833 = vadd.f32 0.0, %v4832
      %v4834 = vpop.f32.mrf.mxu0
      %4835 = vmatprep.mubr.f32.mxu0 0.0
      %4836 = vmatmul.mubr.f32.gmra.mxu0 %v4281
      %v4837 = vpop.f32.mrf.mxu0
      %v4838 = vadd.f32 0.0, %v4837
      %v4839 = vpop.f32.mrf.mxu0
      %4840 = vmatprep.mubr.f32.mxu0 0.0
      %4841 = vmatmul.mubr.f32.gmra.mxu0 %v4284
      %v4842 = vpop.f32.mrf.mxu0
      %v4843 = vadd.f32 0.0, %v4842
      %v4844 = vpop.f32.mrf.mxu0
      %4845 = vmatprep.mubr.f32.mxu0 0.0
      %4846 = vmatmul.mubr.f32.gmra.mxu0 %v4287
      %v4847 = vpop.f32.mrf.mxu0
      %v4848 = vadd.f32 0.0, %v4847
      %v4849 = vpop.f32.mrf.mxu0
      %4850 = vmatprep.mubr.f32.mxu0 0.0
      %4851 = vmatmul.mubr.f32.gmra.mxu0 %v4290
      %v4852 = vpop.f32.mrf.mxu0
      %v4853 = vadd.f32 0.0, %v4852
      %v4854 = vpop.f32.mrf.mxu0
      %4855 = vmatprep.mubr.f32.mxu0 0.0
      %4856 = vmatmul.mubr.f32.gmra.mxu0 %v4293
      %v4857 = vpop.f32.mrf.mxu0
      %v4858 = vadd.f32 0.0, %v4857
      %v4859 = vpop.f32.mrf.mxu0
      %4860 = vmatprep.mubr.f32.mxu0 0.0
      %4861 = vmatmul.mubr.f32.gmra.mxu0 %v4296
      %v4862 = vpop.f32.mrf.mxu0
      %v4863 = vadd.f32 0.0, %v4862
      %v4864 = vpop.f32.mrf.mxu0
      %4865 = vmatprep.mubr.f32.mxu0 0.0
      %4866 = vmatmul.mubr.f32.gmra.mxu0 %v4299
      %v4867 = vpop.f32.mrf.mxu0
      %v4868 = vadd.f32 0.0, %v4867
      %v4869 = vpop.f32.mrf.mxu0
      %4870 = vmatprep.mubr.f32.mxu0 0.0
      %4871 = vmatmul.mubr.f32.gmra.mxu0 %v4302
      %v4872 = vpop.f32.mrf.mxu0
      %v4873 = vadd.f32 0.0, %v4872
      %v4874 = vpop.f32.mrf.mxu0
      %4875 = vmatprep.mubr.f32.mxu0 0.0
      %4876 = vmatmul.mubr.f32.gmra.mxu0 %v4305
      %v4877 = vpop.f32.mrf.mxu0
      %v4878 = vadd.f32 0.0, %v4877
      %v4879 = vpop.f32.mrf.mxu0
      %4880 = vmatprep.mubr.f32.mxu0 0.0
      %4881 = vmatmul.mubr.f32.gmra.mxu0 %v4308
      %v4882 = vpop.f32.mrf.mxu0
      %v4883 = vadd.f32 0.0, %v4882
      %v4884 = vpop.f32.mrf.mxu0
      %4885 = vmatprep.mubr.f32.mxu0 0.0
      %4886 = vmatmul.mubr.f32.gmra.mxu0 %v4311
      %v4887 = vpop.f32.mrf.mxu0
      %v4888 = vadd.f32 0.0, %v4887
      %v4889 = vpop.f32.mrf.mxu0
      %4890 = vmatprep.mubr.f32.mxu0 0.0
      %4891 = vmatmul.mubr.f32.gmra.mxu0 %v4314
      %v4892 = vpop.f32.mrf.mxu0
      %v4893 = vadd.f32 0.0, %v4892
      %v4894 = vpop.f32.mrf.mxu0
      %4895 = vmatprep.mubr.f32.mxu0 0.0
      %4896 = vmatmul.mubr.f32.gmra.mxu0 %v4317
      %v4897 = vpop.f32.mrf.mxu0
      %v4898 = vadd.f32 0.0, %v4897
      %v4899 = vpop.f32.mrf.mxu0
      %4900 = vmatprep.mubr.f32.mxu0 0.0
      %4901 = vmatmul.mubr.f32.gmra.mxu0 %v4320
      %v4902 = vpop.f32.mrf.mxu0
      %v4903 = vadd.f32 0.0, %v4902
      %v4904 = vpop.f32.mrf.mxu0
      %4905 = vmatprep.mubr.f32.mxu0 0.0
      %4906 = vmatmul.mubr.f32.gmra.mxu0 %v4323
      %v4907 = vpop.f32.mrf.mxu0
      %v4908 = vadd.f32 0.0, %v4907
      %v4909 = vpop.f32.mrf.mxu0
      %4910 = vmatprep.mubr.f32.mxu0 0.0
      %4911 = vmatmul.mubr.f32.gmra.mxu0 %v4326
      %v4912 = vpop.f32.mrf.mxu0
      %v4913 = vadd.f32 0.0, %v4912
      %v4914 = vpop.f32.mrf.mxu0
      %4915 = vmatprep.mubr.f32.mxu0 0.0
      %4916 = vmatmul.mubr.f32.gmra.mxu0 %v4329
      %v4917 = vpop.f32.mrf.mxu0
      %v4918 = vadd.f32 0.0, %v4917
      %v4919 = vpop.f32.mrf.mxu0
      %4920 = vmatprep.mubr.f32.mxu0 0.0
      %4921 = vmatmul.mubr.f32.gmra.mxu0 %v4332
      %v4922 = vpop.f32.mrf.mxu0
      %v4923 = vadd.f32 0.0, %v4922
      %v4924 = vpop.f32.mrf.mxu0
      %4925 = vmatprep.mubr.f32.mxu0 0.0
      %4926 = vmatmul.mubr.f32.gmra.mxu0 %v4335
      %v4927 = vpop.f32.mrf.mxu0
      %v4928 = vadd.f32 0.0, %v4927
      %v4929 = vpop.f32.mrf.mxu0
      %4930 = vmatprep.mubr.f32.mxu0 0.0
      %4931 = vmatmul.mubr.f32.gmra.mxu0 %v4338
      %v4932 = vpop.f32.mrf.mxu0
      %v4933 = vadd.f32 0.0, %v4932
      %v4934 = vpop.f32.mrf.mxu0
      %4935 = vmatprep.mubr.f32.mxu0 0.0
      %4936 = vmatmul.mubr.f32.gmra.mxu0 %v4341
      %v4937 = vpop.f32.mrf.mxu0
      %v4938 = vadd.f32 0.0, %v4937
      %v4939 = vpop.f32.mrf.mxu0
      %4940 = vmatprep.mubr.f32.mxu0 0.0
      %4941 = vmatmul.mubr.f32.gmra.mxu0 %v4344
      %v4942 = vpop.f32.mrf.mxu0
      %v4943 = vadd.f32 0.0, %v4942
      %v4944 = vpop.f32.mrf.mxu0
      %4945 = vmatprep.mubr.f32.mxu0 0.0
      %4946 = vmatmul.mubr.f32.gmra.mxu0 %v4347
      %v4947 = vpop.f32.mrf.mxu0
      %v4948 = vadd.f32 0.0, %v4947
      %v4949 = vpop.f32.mrf.mxu0
      %4950 = vmatprep.mubr.f32.mxu0 0.0
      %4951 = vmatmul.mubr.f32.gmra.mxu0 %v4350
      %v4952 = vpop.f32.mrf.mxu0
      %v4953 = vadd.f32 0.0, %v4952
      %v4954 = vpop.f32.mrf.mxu0
      %4955 = vmatprep.mubr.f32.mxu0 0.0
      %4956 = vmatmul.mubr.f32.gmra.mxu0 %v4353
      %v4957 = vpop.f32.mrf.mxu0
      %v4958 = vadd.f32 0.0, %v4957
      %v4959 = vpop.f32.mrf.mxu0
      %4960 = vmatprep.mubr.f32.mxu0 0.0
      %4961 = vmatmul.mubr.f32.gmra.mxu0 %v4356
      %v4962 = vpop.f32.mrf.mxu0
      %v4963 = vadd.f32 0.0, %v4962
      %v4964 = vpop.f32.mrf.mxu0
      %4965 = vmatprep.mubr.f32.mxu0 0.0
      %4966 = vmatmul.mubr.f32.gmra.mxu0 %v4359
      %v4967 = vpop.f32.mrf.mxu0
      %v4968 = vadd.f32 0.0, %v4967
      %v4969 = vpop.f32.mrf.mxu0
      %4970 = vmatprep.mubr.f32.mxu0 0.0
      %4971 = vmatmul.mubr.f32.gmra.mxu0 %v4362
      %v4972 = vpop.f32.mrf.mxu0
      %v4973 = vadd.f32 0.0, %v4972
      %v4974 = vpop.f32.mrf.mxu0
      %4975 = vmatprep.mubr.f32.mxu0 0.0
      %4976 = vmatmul.mubr.f32.gmra.mxu0 %v4365
      %v4977 = vpop.f32.mrf.mxu0
      %v4978 = vadd.f32 0.0, %v4977
      %v4979 = vpop.f32.mrf.mxu0
      %4980 = vmatprep.mubr.f32.mxu0 0.0
      %4981 = vmatmul.mubr.f32.gmra.mxu0 %v4368
      %v4982 = vpop.f32.mrf.mxu0
      %v4983 = vadd.f32 0.0, %v4982
      %v4984 = vpop.f32.mrf.mxu0
      %4985 = vmatprep.mubr.f32.mxu0 0.0
      %4986 = vmatmul.mubr.f32.gmra.mxu0 %v4371
      %v4987 = vpop.f32.mrf.mxu0
      %v4988 = vadd.f32 0.0, %v4987
      %v4989 = vpop.f32.mrf.mxu0
      %4990 = vmatprep.mubr.f32.mxu0 0.0
      %4991 = vmatmul.mubr.f32.gmra.mxu0 %v4374
      %v4992 = vpop.f32.mrf.mxu0
      %v4993 = vadd.f32 0.0, %v4992
      %v4994 = vpop.f32.mrf.mxu0
      %4995 = vmatprep.mubr.f32.mxu0 0.0
      %4996 = vmatmul.mubr.f32.gmra.mxu0 %v4377
      %v4997 = vpop.f32.mrf.mxu0
      %v4998 = vadd.f32 0.0, %v4997
      %v4999 = vpop.f32.mrf.mxu0
      %5000 = vmatprep.mubr.f32.mxu0 0.0
      %5001 = vmatmul.mubr.f32.gmra.mxu0 %v4380
      %v5002 = vpop.f32.mrf.mxu0
      %v5003 = vadd.f32 0.0, %v5002
      %v5004 = vpop.f32.mrf.mxu0
      %5005 = vmatprep.mubr.f32.mxu0 0.0
      %5006 = vmatmul.mubr.f32.gmra.mxu0 %v4383
      %v5007 = vpop.f32.mrf.mxu0
      %v5008 = vadd.f32 0.0, %v5007
      %v5009 = vpop.f32.mrf.mxu0
      %5010 = vmatprep.mubr.f32.mxu0 0.0
      %5011 = vmatmul.mubr.f32.gmra.mxu0 %v4386
      %v5012 = vpop.f32.mrf.mxu0
      %v5013 = vadd.f32 0.0, %v5012
      %v5014 = vpop.f32.mrf.mxu0
      %5015 = vmatprep.mubr.f32.mxu0 0.0
      %5016 = vmatmul.mubr.f32.gmra.mxu0 %v4389
      %v5017 = vpop.f32.mrf.mxu0
      %v5018 = vadd.f32 0.0, %v5017
      %v5019 = vpop.f32.mrf.mxu0
      %5020 = vmatprep.mubr.f32.mxu0 0.0
      %5021 = vmatmul.mubr.f32.gmra.mxu0 %v4392
      %v5022 = vpop.f32.mrf.mxu0
      %v5023 = vadd.f32 0.0, %v5022
      %v5024 = vpop.f32.mrf.mxu0
      %5025 = vmatprep.mubr.f32.mxu0 0.0
      %5026 = vmatmul.mubr.f32.gmra.mxu0 %v4395
      %v5027 = vpop.f32.mrf.mxu0
      %v5028 = vadd.f32 0.0, %v5027
      %v5029 = vpop.f32.mrf.mxu0
      %5030 = vmatprep.mubr.f32.mxu0 0.0
      %5031 = vmatmul.mubr.f32.gmra.mxu0 %v4398
      %v5032 = vpop.f32.mrf.mxu0
      %v5033 = vadd.f32 0.0, %v5032
      %v5034 = vpop.f32.mrf.mxu0
      %5035 = vmatprep.mubr.f32.mxu0 0.0
      %5036 = vmatmul.mubr.f32.gmra.mxu0 %v4401
      %v5037 = vpop.f32.mrf.mxu0
      %v5038 = vadd.f32 0.0, %v5037
      %v5039 = vpop.f32.mrf.mxu0
      %5040 = vmatprep.mubr.f32.mxu0 0.0
      %5041 = vmatmul.mubr.f32.gmra.mxu0 %v4404
      %v5042 = vpop.f32.mrf.mxu0
      %v5043 = vadd.f32 0.0, %v5042
      %v5044 = vpop.f32.mrf.mxu0
      %5045 = vmatprep.mubr.f32.mxu0 0.0
      %5046 = vmatmul.mubr.f32.gmra.mxu0 %v4407
      %v5047 = vpop.f32.mrf.mxu0
      %v5048 = vadd.f32 0.0, %v5047
      %v5049 = vpop.f32.mrf.mxu0
      %5050 = vmatprep.mubr.f32.mxu0 0.0
      %5051 = vmatmul.mubr.f32.gmra.mxu0 %v4410
      %v5052 = vpop.f32.mrf.mxu0
      %v5053 = vadd.f32 0.0, %v5052
      %v5054 = vpop.f32.mrf.mxu0
      %5055 = vmatprep.mubr.f32.mxu0 0.0
      %5056 = vmatmul.mubr.f32.gmra.mxu0 %v4413
      %v5057 = vpop.f32.mrf.mxu0
      %v5058 = vadd.f32 0.0, %v5057
      %v5059 = vpop.f32.mrf.mxu0
      %5060 = vmatprep.mubr.f32.mxu0 0.0
      %5061 = vmatmul.mubr.f32.gmra.mxu0 %v4416
      %v5062 = vpop.f32.mrf.mxu0
      %v5063 = vadd.f32 0.0, %v5062
      %v5064 = vpop.f32.mrf.mxu0
      %5065 = vmatprep.mubr.f32.mxu0 0.0
      %5066 = vmatmul.mubr.f32.gmra.mxu0 %v4419
      %v5067 = vpop.f32.mrf.mxu0
      %v5068 = vadd.f32 0.0, %v5067
      %v5069 = vpop.f32.mrf.mxu0
      %5070 = vmatprep.mubr.f32.mxu0 0.0
      %5071 = vmatmul.mubr.f32.gmra.mxu0 %v4422
      %v5072 = vpop.f32.mrf.mxu0
      %v5073 = vadd.f32 0.0, %v5072
      %v5074 = vpop.f32.mrf.mxu0
      %5075 = vmatprep.mubr.f32.mxu0 0.0
      %5076 = vmatmul.mubr.f32.gmra.mxu0 %v4425
      %v5077 = vpop.f32.mrf.mxu0
      %v5078 = vadd.f32 0.0, %v5077
      %v5079 = vpop.f32.mrf.mxu0
      %5080 = vmatprep.mubr.f32.mxu0 0.0
      %5081 = vmatmul.mubr.f32.gmra.mxu0 %v4428
      %v5082 = vpop.f32.mrf.mxu0
      %v5083 = vadd.f32 0.0, %v5082
      %v5084 = vpop.f32.mrf.mxu0
      %5085 = vmatprep.mubr.f32.mxu0 0.0
      %5086 = vmatmul.mubr.f32.gmra.mxu0 %v4431
      %v5087 = vpop.f32.mrf.mxu0
      %v5088 = vadd.f32 0.0, %v5087
      %v5089 = vpop.f32.mrf.mxu0
      %5090 = vmatprep.mubr.f32.mxu0 0.0
      %5091 = vmatmul.mubr.f32.gmra.mxu0 %v4434
      %v5092 = vpop.f32.mrf.mxu0
      %v5093 = vadd.f32 0.0, %v5092
      %v5094 = vpop.f32.mrf.mxu0
      %5095 = vmatprep.mubr.f32.mxu0 0.0
      %5096 = vmatmul.mubr.f32.gmra.mxu0 %v4437
      %v5097 = vpop.f32.mrf.mxu0
      %v5098 = vadd.f32 0.0, %v5097
      %v5099 = vpop.f32.mrf.mxu0
      %5100 = vmatprep.mubr.f32.mxu0 0.0
      %5101 = vmatmul.mubr.f32.gmra.mxu0 %v4440
      %v5102 = vpop.f32.mrf.mxu0
      %v5103 = vadd.f32 0.0, %v5102
      %v5104 = vpop.f32.mrf.mxu0
      %5105 = vmatprep.mubr.f32.mxu0 0.0
      %5106 = vmatmul.mubr.f32.gmra.mxu0 %v4443
      %v5107 = vpop.f32.mrf.mxu0
      %v5108 = vadd.f32 0.0, %v5107
      %v5109 = vpop.f32.mrf.mxu0
      %5110 = vmatprep.mubr.f32.mxu0 0.0
      %5111 = vmatmul.mubr.f32.gmra.mxu0 %v4446
      %v5112 = vpop.f32.mrf.mxu0
      %v5113 = vadd.f32 0.0, %v5112
      %v5114 = vpop.f32.mrf.mxu0
      %5115 = vmatprep.mubr.f32.mxu0 0.0
      %5116 = vmatmul.mubr.f32.gmra.mxu0 %v4449
      %v5117 = vpop.f32.mrf.mxu0
      %v5118 = vadd.f32 0.0, %v5117
      %v5119 = vpop.f32.mrf.mxu0
      %5120 = vmatprep.mubr.f32.mxu0 0.0
      %5121 = vmatmul.mubr.f32.gmra.mxu0 %v4452
      %v5122 = vpop.f32.mrf.mxu0
      %v5123 = vadd.f32 0.0, %v5122
      %v5124 = vpop.f32.mrf.mxu0
      %5125 = vmatprep.mubr.f32.mxu0 0.0
      %5126 = vmatmul.mubr.f32.gmra.mxu0 %v4455
      %v5127 = vpop.f32.mrf.mxu0
      %v5128 = vadd.f32 0.0, %v5127
      %v5129 = vpop.f32.mrf.mxu0
      %5130 = vmatprep.mubr.f32.mxu0 0.0
      %5131 = vmatmul.mubr.f32.gmra.mxu0 %v4458
      %v5132 = vpop.f32.mrf.mxu0
      %v5133 = vadd.f32 0.0, %v5132
      %v5134 = vpop.f32.mrf.mxu0
      %5135 = vmatprep.mubr.f32.mxu0 0.0
      %5136 = vmatmul.mubr.f32.gmra.mxu0 %v4461
      %v5137 = vpop.f32.mrf.mxu0
      %v5138 = vadd.f32 0.0, %v5137
      %v5139 = vpop.f32.mrf.mxu0
      %5140 = vmatprep.mubr.f32.mxu0 0.0
      %5141 = vmatmul.mubr.f32.gmra.mxu0 %v4464
      %v5142 = vpop.f32.mrf.mxu0
      %v5143 = vadd.f32 0.0, %v5142
      %v5144 = vpop.f32.mrf.mxu0
      %5145 = vmatprep.mubr.f32.mxu0 0.0
      %5146 = vmatmul.mubr.f32.gmra.mxu0 %v4467
      %v5147 = vpop.f32.mrf.mxu0
      %v5148 = vadd.f32 0.0, %v5147
      %v5149 = vpop.f32.mrf.mxu0
      %5150 = vmatprep.mubr.f32.mxu0 0.0
      %5151 = vmatmul.mubr.f32.gmra.mxu0 %v4470
      %v5152 = vpop.f32.mrf.mxu0
      %v5153 = vadd.f32 0.0, %v5152
      %v5154 = vpop.f32.mrf.mxu0
      %5155 = vmatprep.mubr.f32.mxu0 0.0
      %5156 = vmatmul.mubr.f32.gmra.mxu0 %v4473
      %v5157 = vpop.f32.mrf.mxu0
      %v5158 = vadd.f32 0.0, %v5157
      %v5159 = vpop.f32.mrf.mxu0
      %5160 = vmatprep.mubr.f32.mxu0 0.0
      %5161 = vmatmul.mubr.f32.gmra.mxu0 %v4476
      %v5162 = vpop.f32.mrf.mxu0
      %v5163 = vadd.f32 0.0, %v5162
      %v5164 = vpop.f32.mrf.mxu0
      %5165 = vmatprep.mubr.f32.mxu0 0.0
      %5166 = vmatmul.mubr.f32.gmra.mxu0 %v4479
      %v5167 = vpop.f32.mrf.mxu0
      %v5168 = vadd.f32 0.0, %v5167
      %v5169 = vpop.f32.mrf.mxu0
      %5170 = vmatprep.mubr.f32.mxu0 0.0
      %5171 = vmatmul.mubr.f32.gmra.mxu0 %v4482
      %v5172 = vpop.f32.mrf.mxu0
      %v5173 = vadd.f32 0.0, %v5172
      %v5174 = vpop.f32.mrf.mxu0
      %5175 = vmatprep.mubr.f32.mxu0 0.0
      %5176 = vmatmul.mubr.f32.gmra.mxu0 %v4485
      %v5177 = vpop.f32.mrf.mxu0
      %v5178 = vadd.f32 0.0, %v5177
      %v5179 = vpop.f32.mrf.mxu0
      %5180 = vmatprep.mubr.f32.mxu0 0.0
      %5181 = vmatmul.mubr.f32.gmra.mxu0 %v4488
      %v5182 = vpop.f32.mrf.mxu0
      %v5183 = vadd.f32 0.0, %v5182
      %v5184 = vpop.f32.mrf.mxu0
      %5185 = vmatprep.mubr.f32.mxu0 0.0
      %5186 = vmatmul.mubr.f32.gmra.mxu0 %v4491
      %v5187 = vpop.f32.mrf.mxu0
      %v5188 = vadd.f32 0.0, %v5187
      %v5189 = vpop.f32.mrf.mxu0
      %5190 = vmatprep.mubr.f32.mxu0 0.0
      %5191 = vmatmul.mubr.f32.gmra.mxu0 %v4494
      %v5192 = vpop.f32.mrf.mxu0
      %v5193 = vadd.f32 0.0, %v5192
      %v5194 = vpop.f32.mrf.mxu0
      %5195 = vmatprep.mubr.f32.mxu0 0.0
      %5196 = vmatmul.mubr.f32.gmra.mxu0 %v4497
      %v5197 = vpop.f32.mrf.mxu0
      %v5198 = vadd.f32 0.0, %v5197
      %v5199 = vpop.f32.mrf.mxu0
      %5200 = vmatprep.mubr.f32.mxu0 0.0
      %5201 = vmatmul.mubr.f32.gmra.mxu0 %v4500
      %v5202 = vpop.f32.mrf.mxu0
      %v5203 = vadd.f32 0.0, %v5202
      %v5204 = vpop.f32.mrf.mxu0
      %5205 = vmatprep.mubr.f32.mxu0 0.0
      %5206 = vmatmul.mubr.f32.gmra.mxu0 %v4503
      %v5207 = vpop.f32.mrf.mxu0
      %v5208 = vadd.f32 0.0, %v5207
      %v5209 = vpop.f32.mrf.mxu0
      %5210 = vmatprep.mubr.f32.mxu0 0.0
      %5211 = vmatmul.mubr.f32.gmra.mxu0 %v4506
      %v5212 = vpop.f32.mrf.mxu0
      %v5213 = vadd.f32 0.0, %v5212
      %v5214 = vpop.f32.mrf.mxu0
      %5215 = vdwg.mxu0
      %v5216 = vadd.f32 %v3865, %v4578
      %v5217 = vadd.f32 %v3866, %v4583
      %v5218 = vadd.f32 %v3867, %v4588
      %v5219 = vadd.f32 %v3868, %v4593
      %v5220 = vadd.f32 %v3869, %v4598
      %v5221 = vadd.f32 %v3870, %v4603
      %v5222 = vadd.f32 %v3871, %v4608
      %v5223 = vadd.f32 %v3872, %v4613
      %v5224 = vadd.f32 %v3873, %v4618
      %v5225 = vadd.f32 %v3874, %v4623
      %v5226 = vadd.f32 %v3875, %v4628
      %v5227 = vadd.f32 %v3876, %v4633
      %v5228 = vadd.f32 %v3877, %v4638
      %v5229 = vadd.f32 %v3878, %v4643
      %v5230 = vadd.f32 %v3879, %v4648
      %v5231 = vadd.f32 %v3880, %v4653
      %v5232 = vadd.f32 %v3881, %v4658
      %v5233 = vadd.f32 %v3882, %v4663
      %v5234 = vadd.f32 %v3883, %v4668
      %v5235 = vadd.f32 %v3884, %v4673
      %v5236 = vadd.f32 %v3885, %v4678
      %v5237 = vadd.f32 %v3886, %v4683
      %v5238 = vadd.f32 %v3887, %v4688
      %v5239 = vadd.f32 %v3888, %v4693
      %v5240 = vadd.f32 %v3889, %v4698
      %v5241 = vadd.f32 %v3890, %v4703
      %v5242 = vadd.f32 %v3891, %v4708
      %v5243 = vadd.f32 %v3892, %v4713
      %v5244 = vadd.f32 %v3893, %v4718
      %v5245 = vadd.f32 %v3894, %v4723
      %v5246 = vadd.f32 %v3895, %v4728
      %v5247 = vadd.f32 %v3896, %v4733
      %v5248 = vadd.f32 %v3897, %v4738
      %v5249 = vadd.f32 %v3898, %v4743
      %v5250 = vadd.f32 %v3899, %v4748
      %v5251 = vadd.f32 %v3900, %v4753
      %v5252 = vadd.f32 %v3901, %v4758
      %v5253 = vadd.f32 %v3902, %v4763
      %v5254 = vadd.f32 %v3903, %v4768
      %v5255 = vadd.f32 %v3904, %v4773
      %v5256 = vadd.f32 %v3905, %v4778
      %v5257 = vadd.f32 %v3906, %v4783
      %v5258 = vadd.f32 %v3907, %v4788
      %v5259 = vadd.f32 %v3908, %v4793
      %v5260 = vadd.f32 %v3909, %v4798
      %v5261 = vadd.f32 %v3910, %v4803
      %v5262 = vadd.f32 %v3911, %v4808
      %v5263 = vadd.f32 %v3912, %v4813
      %v5264 = vadd.f32 %v3913, %v4818
      %v5265 = vadd.f32 %v3914, %v4823
      %v5266 = vadd.f32 %v3915, %v4828
      %v5267 = vadd.f32 %v3916, %v4833
      %v5268 = vadd.f32 %v3917, %v4838
      %v5269 = vadd.f32 %v3918, %v4843
      %v5270 = vadd.f32 %v3919, %v4848
      %v5271 = vadd.f32 %v3920, %v4853
      %v5272 = vadd.f32 %v3921, %v4858
      %v5273 = vadd.f32 %v3922, %v4863
      %v5274 = vadd.f32 %v3923, %v4868
      %v5275 = vadd.f32 %v3924, %v4873
      %v5276 = vadd.f32 %v3925, %v4878
      %v5277 = vadd.f32 %v3926, %v4883
      %v5278 = vadd.f32 %v3927, %v4888
      %v5279 = vadd.f32 %v3928, %v4893
      %v5280 = vadd.f32 %v3929, %v4898
      %v5281 = vadd.f32 %v3930, %v4903
      %v5282 = vadd.f32 %v3931, %v4908
      %v5283 = vadd.f32 %v3932, %v4913
      %v5284 = vadd.f32 %v3933, %v4918
      %v5285 = vadd.f32 %v3934, %v4923
      %v5286 = vadd.f32 %v3935, %v4928
      %v5287 = vadd.f32 %v3936, %v4933
      %v5288 = vadd.f32 %v3937, %v4938
      %v5289 = vadd.f32 %v3938, %v4943
      %v5290 = vadd.f32 %v3939, %v4948
      %v5291 = vadd.f32 %v3940, %v4953
      %v5292 = vadd.f32 %v3941, %v4958
      %v5293 = vadd.f32 %v3942, %v4963
      %v5294 = vadd.f32 %v3943, %v4968
      %v5295 = vadd.f32 %v3944, %v4973
      %v5296 = vadd.f32 %v3945, %v4978
      %v5297 = vadd.f32 %v3946, %v4983
      %v5298 = vadd.f32 %v3947, %v4988
      %v5299 = vadd.f32 %v3948, %v4993
      %v5300 = vadd.f32 %v3949, %v4998
      %v5301 = vadd.f32 %v3950, %v5003
      %v5302 = vadd.f32 %v3951, %v5008
      %v5303 = vadd.f32 %v3952, %v5013
      %v5304 = vadd.f32 %v3953, %v5018
      %v5305 = vadd.f32 %v3954, %v5023
      %v5306 = vadd.f32 %v3955, %v5028
      %v5307 = vadd.f32 %v3956, %v5033
      %v5308 = vadd.f32 %v3957, %v5038
      %v5309 = vadd.f32 %v3958, %v5043
      %v5310 = vadd.f32 %v3959, %v5048
      %v5311 = vadd.f32 %v3960, %v5053
      %v5312 = vadd.f32 %v3961, %v5058
      %v5313 = vadd.f32 %v3962, %v5063
      %v5314 = vadd.f32 %v3963, %v5068
      %v5315 = vadd.f32 %v3964, %v5073
      %v5316 = vadd.f32 %v3965, %v5078
      %v5317 = vadd.f32 %v3966, %v5083
      %v5318 = vadd.f32 %v3967, %v5088
      %v5319 = vadd.f32 %v3968, %v5093
      %v5320 = vadd.f32 %v3969, %v5098
      %v5321 = vadd.f32 %v3970, %v5103
      %v5322 = vadd.f32 %v3971, %v5108
      %v5323 = vadd.f32 %v3972, %v5113
      %v5324 = vadd.f32 %v3973, %v5118
      %v5325 = vadd.f32 %v3974, %v5123
      %v5326 = vadd.f32 %v3975, %v5128
      %v5327 = vadd.f32 %v3976, %v5133
      %v5328 = vadd.f32 %v3977, %v5138
      %v5329 = vadd.f32 %v3978, %v5143
      %v5330 = vadd.f32 %v3979, %v5148
      %v5331 = vadd.f32 %v3980, %v5153
      %v5332 = vadd.f32 %v3981, %v5158
      %v5333 = vadd.f32 %v3982, %v5163
      %v5334 = vadd.f32 %v3983, %v5168
      %v5335 = vadd.f32 %v3984, %v5173
      %v5336 = vadd.f32 %v3985, %v5178
      %v5337 = vadd.f32 %v3986, %v5183
      %v5338 = vadd.f32 %v3987, %v5188
      %v5339 = vadd.f32 %v3988, %v5193
      %v5340 = vadd.f32 %v3989, %v5198
      %v5341 = vadd.f32 %v3990, %v5203
      %v5342 = vadd.f32 %v3991, %v5208
      %v5343 = vadd.f32 %v3992, %v5213
      %v5344 = vld [vmem:[%s3993 + $0x1] sm:$0xff]
      %v5345 = vld [vmem:[%s3993 + $0x9] sm:$0xff]
      %v5346 = vld [vmem:[%s3993 + $0x11] sm:$0xff]
      %v5347 = vld [vmem:[%s3993 + $0x19] sm:$0xff]
      %v5348 = vld [vmem:[%s3993 + $0x29] sm:$0xff]
      %v5349 = vld [vmem:[%s3993 + $0x31] sm:$0xff]
      %v5350 = vld [vmem:[%s3993 + $0x39] sm:$0xff]
      %v5351 = vld [vmem:[%s3993 + $0x41] sm:$0xff]
      %v5352 = vld [vmem:[%s3993 + $0x51] sm:$0xff]
      %v5353 = vld [vmem:[%s3993 + $0x59] sm:$0xff]
      %v5354 = vld [vmem:[%s3993 + $0x61] sm:$0xff]
      %v5355 = vld [vmem:[%s3993 + $0x69] sm:$0xff]
      %v5356 = vld [vmem:[%s3993 + $0x79] sm:$0xff]
      %v5357 = vld [vmem:[%s3993 + $0x81] sm:$0xff]
      %v5358 = vld [vmem:[%s3993 + $0x89] sm:$0xff]
      %v5359 = vld [vmem:[%s3993 + $0x91] sm:$0xff]
      %v5360 = vld [vmem:[%s3993 + $0xa1] sm:$0xff]
      %v5361 = vld [vmem:[%s3993 + $0xa9] sm:$0xff]
      %v5362 = vld [vmem:[%s3993 + $0xb1] sm:$0xff]
      %v5363 = vld [vmem:[%s3993 + $0xb9] sm:$0xff]
      %v5364 = vld [vmem:[%s3993 + $0xc9] sm:$0xff]
      %v5365 = vld [vmem:[%s3993 + $0xd1] sm:$0xff]
      %v5366 = vld [vmem:[%s3993 + $0xd9] sm:$0xff]
      %v5367 = vld [vmem:[%s3993 + $0xe1] sm:$0xff]
      %v5368 = vld [vmem:[%s3993 + $0xf1] sm:$0xff]
      %v5369 = vld [vmem:[%s3993 + $0xf9] sm:$0xff]
      %v5370 = vld [vmem:[%s3993 + $0x101] sm:$0xff]
      %v5371 = vld [vmem:[%s3993 + $0x109] sm:$0xff]
      %v5372 = vld [vmem:[%s3993 + $0x119] sm:$0xff]
      %v5373 = vld [vmem:[%s3993 + $0x121] sm:$0xff]
      %v5374 = vld [vmem:[%s3993 + $0x129] sm:$0xff]
      %v5375 = vld [vmem:[%s3993 + $0x131] sm:$0xff]
      %v5376 = vld [vmem:[%s3993 + $0x141] sm:$0xff]
      %v5377 = vld [vmem:[%s3993 + $0x149] sm:$0xff]
      %v5378 = vld [vmem:[%s3993 + $0x151] sm:$0xff]
      %v5379 = vld [vmem:[%s3993 + $0x159] sm:$0xff]
      %v5380 = vld [vmem:[%s3993 + $0x169] sm:$0xff]
      %v5381 = vld [vmem:[%s3993 + $0x171] sm:$0xff]
      %v5382 = vld [vmem:[%s3993 + $0x179] sm:$0xff]
      %v5383 = vld [vmem:[%s3993 + $0x181] sm:$0xff]
      %v5384 = vld [vmem:[%s3993 + $0x191] sm:$0xff]
      %v5385 = vld [vmem:[%s3993 + $0x199] sm:$0xff]
      %v5386 = vld [vmem:[%s3993 + $0x1a1] sm:$0xff]
      %v5387 = vld [vmem:[%s3993 + $0x1a9] sm:$0xff]
      %v5388 = vld [vmem:[%s3993 + $0x1b9] sm:$0xff]
      %v5389 = vld [vmem:[%s3993 + $0x1c1] sm:$0xff]
      %v5390 = vld [vmem:[%s3993 + $0x1c9] sm:$0xff]
      %v5391 = vld [vmem:[%s3993 + $0x1d1] sm:$0xff]
      %v5392 = vld [vmem:[%s3993 + $0x1e1] sm:$0xff]
      %v5393 = vld [vmem:[%s3993 + $0x1e9] sm:$0xff]
      %v5394 = vld [vmem:[%s3993 + $0x1f1] sm:$0xff]
      %v5395 = vld [vmem:[%s3993 + $0x1f9] sm:$0xff]
      %v5396 = vld [vmem:[%s3993 + $0x209] sm:$0xff]
      %v5397 = vld [vmem:[%s3993 + $0x211] sm:$0xff]
      %v5398 = vld [vmem:[%s3993 + $0x219] sm:$0xff]
      %v5399 = vld [vmem:[%s3993 + $0x221] sm:$0xff]
      %v5400 = vld [vmem:[%s3993 + $0x231] sm:$0xff]
      %v5401 = vld [vmem:[%s3993 + $0x239] sm:$0xff]
      %v5402 = vld [vmem:[%s3993 + $0x241] sm:$0xff]
      %v5403 = vld [vmem:[%s3993 + $0x249] sm:$0xff]
      %v5404 = vld [vmem:[%s3993 + $0x259] sm:$0xff]
      %v5405 = vld [vmem:[%s3993 + $0x261] sm:$0xff]
      %v5406 = vld [vmem:[%s3993 + $0x269] sm:$0xff]
      %v5407 = vld [vmem:[%s3993 + $0x271] sm:$0xff]
      %v5408 = vld [vmem:[%s3993 + $0x281] sm:$0xff]
      %v5409 = vld [vmem:[%s3993 + $0x289] sm:$0xff]
      %v5410 = vld [vmem:[%s3993 + $0x291] sm:$0xff]
      %v5411 = vld [vmem:[%s3993 + $0x299] sm:$0xff]
      %v5412 = vld [vmem:[%s3993 + $0x2a9] sm:$0xff]
      %v5413 = vld [vmem:[%s3993 + $0x2b1] sm:$0xff]
      %v5414 = vld [vmem:[%s3993 + $0x2b9] sm:$0xff]
      %v5415 = vld [vmem:[%s3993 + $0x2c1] sm:$0xff]
      %v5416 = vld [vmem:[%s3993 + $0x2d1] sm:$0xff]
      %v5417 = vld [vmem:[%s3993 + $0x2d9] sm:$0xff]
      %v5418 = vld [vmem:[%s3993 + $0x2e1] sm:$0xff]
      %v5419 = vld [vmem:[%s3993 + $0x2e9] sm:$0xff]
      %v5420 = vld [vmem:[%s3993 + $0x2f9] sm:$0xff]
      %v5421 = vld [vmem:[%s3993 + $0x301] sm:$0xff]
      %v5422 = vld [vmem:[%s3993 + $0x309] sm:$0xff]
      %v5423 = vld [vmem:[%s3993 + $0x311] sm:$0xff]
      %v5424 = vld [vmem:[%s3993 + $0x321] sm:$0xff]
      %v5425 = vld [vmem:[%s3993 + $0x329] sm:$0xff]
      %v5426 = vld [vmem:[%s3993 + $0x331] sm:$0xff]
      %v5427 = vld [vmem:[%s3993 + $0x339] sm:$0xff]
      %v5428 = vld [vmem:[%s3993 + $0x349] sm:$0xff]
      %v5429 = vld [vmem:[%s3993 + $0x351] sm:$0xff]
      %v5430 = vld [vmem:[%s3993 + $0x359] sm:$0xff]
      %v5431 = vld [vmem:[%s3993 + $0x361] sm:$0xff]
      %v5432 = vld [vmem:[%s3993 + $0x371] sm:$0xff]
      %v5433 = vld [vmem:[%s3993 + $0x379] sm:$0xff]
      %v5434 = vld [vmem:[%s3993 + $0x381] sm:$0xff]
      %v5435 = vld [vmem:[%s3993 + $0x389] sm:$0xff]
      %v5436 = vld [vmem:[%s3993 + $0x399] sm:$0xff]
      %v5437 = vld [vmem:[%s3993 + $0x3a1] sm:$0xff]
      %v5438 = vld [vmem:[%s3993 + $0x3a9] sm:$0xff]
      %v5439 = vld [vmem:[%s3993 + $0x3b1] sm:$0xff]
      %v5440 = vld [vmem:[%s3993 + $0x3c1] sm:$0xff]
      %v5441 = vld [vmem:[%s3993 + $0x3c9] sm:$0xff]
      %v5442 = vld [vmem:[%s3993 + $0x3d1] sm:$0xff]
      %v5443 = vld [vmem:[%s3993 + $0x3d9] sm:$0xff]
      %v5444 = vld [vmem:[%s3993 + $0x3e9] sm:$0xff]
      %v5445 = vld [vmem:[%s3993 + $0x3f1] sm:$0xff]
      %v5446 = vld [vmem:[%s3993 + $0x3f9] sm:$0xff]
      %v5447 = vld [vmem:[%s3993 + $0x401] sm:$0xff]
      %v5448 = vld [vmem:[%s3993 + $0x411] sm:$0xff]
      %v5449 = vld [vmem:[%s3993 + $0x419] sm:$0xff]
      %v5450 = vld [vmem:[%s3993 + $0x421] sm:$0xff]
      %v5451 = vld [vmem:[%s3993 + $0x429] sm:$0xff]
      %v5452 = vld [vmem:[%s3993 + $0x439] sm:$0xff]
      %v5453 = vld [vmem:[%s3993 + $0x441] sm:$0xff]
      %v5454 = vld [vmem:[%s3993 + $0x449] sm:$0xff]
      %v5455 = vld [vmem:[%s3993 + $0x451] sm:$0xff]
      %v5456 = vld [vmem:[%s3993 + $0x461] sm:$0xff]
      %v5457 = vld [vmem:[%s3993 + $0x469] sm:$0xff]
      %v5458 = vld [vmem:[%s3993 + $0x471] sm:$0xff]
      %v5459 = vld [vmem:[%s3993 + $0x479] sm:$0xff]
      %v5460 = vld [vmem:[%s3993 + $0x489] sm:$0xff]
      %v5461 = vld [vmem:[%s3993 + $0x491] sm:$0xff]
      %v5462 = vld [vmem:[%s3993 + $0x499] sm:$0xff]
      %v5463 = vld [vmem:[%s3993 + $0x4a1] sm:$0xff]
      %v5464 = vld [vmem:[%s3993 + $0x4b1] sm:$0xff]
      %v5465 = vld [vmem:[%s3993 + $0x4b9] sm:$0xff]
      %v5466 = vld [vmem:[%s3993 + $0x4c1] sm:$0xff]
      %v5467 = vld [vmem:[%s3993 + $0x4c9] sm:$0xff]
      %v5468 = vld [vmem:[%s3993 + $0x4d9] sm:$0xff]
      %v5469 = vld [vmem:[%s3993 + $0x4e1] sm:$0xff]
      %v5470 = vld [vmem:[%s3993 + $0x4e9] sm:$0xff]
      %v5471 = vld [vmem:[%s3993 + $0x4f1] sm:$0xff]
      %s5472 = scalar_lea.vmem %s1, 16
      %v5473 = vld [vmem:[%s5472] sm:$0xf]
      %v5475 = vsel %vm457, %v5344, 0
      %v5478 = vsel %vm457, %v5345, 0
      %v5481 = vsel %vm457, %v5346, 0
      %v5484 = vsel %vm457, %v5347, 0
      %v5487 = vsel %vm457, %v5348, 0
      %v5490 = vsel %vm457, %v5349, 0
      %v5493 = vsel %vm457, %v5350, 0
      %v5496 = vsel %vm457, %v5351, 0
      %v5499 = vsel %vm457, %v5352, 0
      %v5502 = vsel %vm457, %v5353, 0
      %v5505 = vsel %vm457, %v5354, 0
      %v5508 = vsel %vm457, %v5355, 0
      %v5511 = vsel %vm457, %v5356, 0
      %v5514 = vsel %vm457, %v5357, 0
      %v5517 = vsel %vm457, %v5358, 0
      %v5520 = vsel %vm457, %v5359, 0
      %v5523 = vsel %vm457, %v5360, 0
      %v5526 = vsel %vm457, %v5361, 0
      %v5529 = vsel %vm457, %v5362, 0
      %v5532 = vsel %vm457, %v5363, 0
      %v5535 = vsel %vm457, %v5364, 0
      %v5538 = vsel %vm457, %v5365, 0
      %v5541 = vsel %vm457, %v5366, 0
      %v5544 = vsel %vm457, %v5367, 0
      %v5547 = vsel %vm457, %v5368, 0
      %v5550 = vsel %vm457, %v5369, 0
      %v5553 = vsel %vm457, %v5370, 0
      %v5556 = vsel %vm457, %v5371, 0
      %v5559 = vsel %vm457, %v5372, 0
      %v5562 = vsel %vm457, %v5373, 0
      %v5565 = vsel %vm457, %v5374, 0
      %v5568 = vsel %vm457, %v5375, 0
      %v5571 = vsel %vm457, %v5376, 0
      %v5574 = vsel %vm457, %v5377, 0
      %v5577 = vsel %vm457, %v5378, 0
      %v5580 = vsel %vm457, %v5379, 0
      %v5583 = vsel %vm457, %v5380, 0
      %v5586 = vsel %vm457, %v5381, 0
      %v5589 = vsel %vm457, %v5382, 0
      %v5592 = vsel %vm457, %v5383, 0
      %v5595 = vsel %vm457, %v5384, 0
      %v5598 = vsel %vm457, %v5385, 0
      %v5601 = vsel %vm457, %v5386, 0
      %v5604 = vsel %vm457, %v5387, 0
      %v5607 = vsel %vm457, %v5388, 0
      %v5610 = vsel %vm457, %v5389, 0
      %v5613 = vsel %vm457, %v5390, 0
      %v5616 = vsel %vm457, %v5391, 0
      %v5619 = vsel %vm457, %v5392, 0
      %v5622 = vsel %vm457, %v5393, 0
      %v5625 = vsel %vm457, %v5394, 0
      %v5628 = vsel %vm457, %v5395, 0
      %v5631 = vsel %vm457, %v5396, 0
      %v5634 = vsel %vm457, %v5397, 0
      %v5637 = vsel %vm457, %v5398, 0
      %v5640 = vsel %vm457, %v5399, 0
      %v5643 = vsel %vm457, %v5400, 0
      %v5646 = vsel %vm457, %v5401, 0
      %v5649 = vsel %vm457, %v5402, 0
      %v5652 = vsel %vm457, %v5403, 0
      %v5655 = vsel %vm457, %v5404, 0
      %v5658 = vsel %vm457, %v5405, 0
      %v5661 = vsel %vm457, %v5406, 0
      %v5664 = vsel %vm457, %v5407, 0
      %v5667 = vsel %vm457, %v5408, 0
      %v5670 = vsel %vm457, %v5409, 0
      %v5673 = vsel %vm457, %v5410, 0
      %v5676 = vsel %vm457, %v5411, 0
      %v5679 = vsel %vm457, %v5412, 0
      %v5682 = vsel %vm457, %v5413, 0
      %v5685 = vsel %vm457, %v5414, 0
      %v5688 = vsel %vm457, %v5415, 0
      %v5691 = vsel %vm457, %v5416, 0
      %v5694 = vsel %vm457, %v5417, 0
      %v5697 = vsel %vm457, %v5418, 0
      %v5700 = vsel %vm457, %v5419, 0
      %v5703 = vsel %vm457, %v5420, 0
      %v5706 = vsel %vm457, %v5421, 0
      %v5709 = vsel %vm457, %v5422, 0
      %v5712 = vsel %vm457, %v5423, 0
      %v5715 = vsel %vm457, %v5424, 0
      %v5718 = vsel %vm457, %v5425, 0
      %v5721 = vsel %vm457, %v5426, 0
      %v5724 = vsel %vm457, %v5427, 0
      %v5727 = vsel %vm457, %v5428, 0
      %v5730 = vsel %vm457, %v5429, 0
      %v5733 = vsel %vm457, %v5430, 0
      %v5736 = vsel %vm457, %v5431, 0
      %v5739 = vsel %vm457, %v5432, 0
      %v5742 = vsel %vm457, %v5433, 0
      %v5745 = vsel %vm457, %v5434, 0
      %v5748 = vsel %vm457, %v5435, 0
      %v5751 = vsel %vm457, %v5436, 0
      %v5754 = vsel %vm457, %v5437, 0
      %v5757 = vsel %vm457, %v5438, 0
      %v5760 = vsel %vm457, %v5439, 0
      %v5763 = vsel %vm457, %v5440, 0
      %v5766 = vsel %vm457, %v5441, 0
      %v5769 = vsel %vm457, %v5442, 0
      %v5772 = vsel %vm457, %v5443, 0
      %v5775 = vsel %vm457, %v5444, 0
      %v5778 = vsel %vm457, %v5445, 0
      %v5781 = vsel %vm457, %v5446, 0
      %v5784 = vsel %vm457, %v5447, 0
      %v5787 = vsel %vm457, %v5448, 0
      %v5790 = vsel %vm457, %v5449, 0
      %v5793 = vsel %vm457, %v5450, 0
      %v5796 = vsel %vm457, %v5451, 0
      %v5799 = vsel %vm457, %v5452, 0
      %v5802 = vsel %vm457, %v5453, 0
      %v5805 = vsel %vm457, %v5454, 0
      %v5808 = vsel %vm457, %v5455, 0
      %v5811 = vsel %vm457, %v5456, 0
      %v5814 = vsel %vm457, %v5457, 0
      %v5817 = vsel %vm457, %v5458, 0
      %v5820 = vsel %vm457, %v5459, 0
      %v5823 = vsel %vm457, %v5460, 0
      %v5826 = vsel %vm457, %v5461, 0
      %v5829 = vsel %vm457, %v5462, 0
      %v5832 = vsel %vm457, %v5463, 0
      %v5835 = vsel %vm457, %v5464, 0
      %v5838 = vsel %vm457, %v5465, 0
      %v5841 = vsel %vm457, %v5466, 0
      %v5844 = vsel %vm457, %v5467, 0
      %v5847 = vsel %vm457, %v5468, 0
      %v5850 = vsel %vm457, %v5469, 0
      %v5853 = vsel %vm457, %v5470, 0
      %v5856 = vsel %vm457, %v5471, 0
      %v5859 = vsel %vm842, %v5473, 0
      %5861 = vmatprep.subr.mxu0 0.0
      %5862 = vmatpush1.msra.mxu0 0.0
      %5863 = vmatprep.subr.mxu0 0.0
      %5864 = vmatpush1.msra.mxu0 0.0
      %5865 = vmatprep.subr.mxu0 0.0
      %5866 = vmatpush1.msra.mxu0 0.0
      %5867 = vmatprep.subr.mxu0 0.0
      %5868 = vmatpush1.msra.mxu0 0.0
      %5869 = vmatprep.subr.mxu0 0.0
      %5870 = vmatpush1.msra.mxu0 0.0
      %5871 = vmatprep.subr.mxu0 0.0
      %5872 = vmatpush1.msra.mxu0 0.0
      %5873 = vmatprep.subr.mxu0 0.0
      %5874 = vmatpush1.msra.mxu0 0.0
      %5875 = vmatprep.subr.mxu0 0.0
      %5876 = vmatpush1.msra.mxu0 0.0
      %5877 = vmatprep.subr.mxu0 0.0
      %5878 = vmatpush1.msra.mxu0 0.0
      %5879 = vmatprep.subr.mxu0 0.0
      %5880 = vmatpush1.msra.mxu0 0.0
      %5881 = vmatprep.subr.mxu0 0.0
      %5882 = vmatpush1.msra.mxu0 0.0
      %5883 = vmatprep.subr.mxu0 0.0
      %5884 = vmatpush1.msra.mxu0 0.0
      %5885 = vmatprep.subr.mxu0 0.0
      %5886 = vmatpush1.msra.mxu0 0.0
      %5887 = vmatprep.subr.mxu0 0.0
      %5888 = vmatpush1.msra.mxu0 0.0
      %5889 = vmatprep.subr.mxu0 0.0
      %5890 = vmatpush1.msra.mxu0 0.0
      %5891 = vmatprep.subr.mxu0 0.0
      %5892 = vmatpush1.msra.mxu0 %v5859
      %5893 = vmatprep.subr.mxu0 0.0
      %5894 = vmatpush2.msra.mxu0 0.0
      %5895 = vmatprep.subr.mxu0 0.0
      %5896 = vmatpush2.msra.mxu0 0.0
      %5897 = vmatprep.subr.mxu0 0.0
      %5898 = vmatpush2.msra.mxu0 0.0
      %5899 = vmatprep.subr.mxu0 0.0
      %5900 = vmatpush2.msra.mxu0 0.0
      %5901 = vmatprep.subr.mxu0 0.0
      %5902 = vmatpush2.msra.mxu0 0.0
      %5903 = vmatprep.subr.mxu0 0.0
      %5904 = vmatpush2.msra.mxu0 0.0
      %5905 = vmatprep.subr.mxu0 0.0
      %5906 = vmatpush2.msra.mxu0 0.0
      %5907 = vmatprep.subr.mxu0 0.0
      %5908 = vmatpush2.msra.mxu0 0.0
      %5909 = vmatprep.subr.mxu0 0.0
      %5910 = vmatpush2.msra.mxu0 0.0
      %5911 = vmatprep.subr.mxu0 0.0
      %5912 = vmatpush2.msra.mxu0 0.0
      %5913 = vmatprep.subr.mxu0 0.0
      %5914 = vmatpush2.msra.mxu0 0.0
      %5915 = vmatprep.subr.mxu0 0.0
      %5916 = vmatpush2.msra.mxu0 0.0
      %5917 = vmatprep.subr.mxu0 0.0
      %5918 = vmatpush2.msra.mxu0 0.0
      %5919 = vmatprep.subr.mxu0 0.0
      %5920 = vmatpush2.msra.mxu0 0.0
      %5921 = vmatprep.subr.mxu0 0.0
      %5922 = vmatpush2.msra.mxu0 0.0
      %5923 = vmatprep.subr.mxu0 0.0
      %5924 = vmatpush2.msra.mxu0 0.0
      %5925 = vmatprep.mubr.f32.mxu0 0.0
      %5926 = vmatmul.mubr.f32.gmra.mxu0 %v5475
      %v5927 = vpop.f32.mrf.mxu0
      %v5928 = vadd.f32 0.0, %v5927
      %v5929 = vpop.f32.mrf.mxu0
      %5930 = vmatprep.mubr.f32.mxu0 0.0
      %5931 = vmatmul.mubr.f32.gmra.mxu0 %v5478
      %v5932 = vpop.f32.mrf.mxu0
      %v5933 = vadd.f32 0.0, %v5932
      %v5934 = vpop.f32.mrf.mxu0
      %5935 = vmatprep.mubr.f32.mxu0 0.0
      %5936 = vmatmul.mubr.f32.gmra.mxu0 %v5481
      %v5937 = vpop.f32.mrf.mxu0
      %v5938 = vadd.f32 0.0, %v5937
      %v5939 = vpop.f32.mrf.mxu0
      %5940 = vmatprep.mubr.f32.mxu0 0.0
      %5941 = vmatmul.mubr.f32.gmra.mxu0 %v5484
      %v5942 = vpop.f32.mrf.mxu0
      %v5943 = vadd.f32 0.0, %v5942
      %v5944 = vpop.f32.mrf.mxu0
      %5945 = vmatprep.mubr.f32.mxu0 0.0
      %5946 = vmatmul.mubr.f32.gmra.mxu0 %v5487
      %v5947 = vpop.f32.mrf.mxu0
      %v5948 = vadd.f32 0.0, %v5947
      %v5949 = vpop.f32.mrf.mxu0
      %5950 = vmatprep.mubr.f32.mxu0 0.0
      %5951 = vmatmul.mubr.f32.gmra.mxu0 %v5490
      %v5952 = vpop.f32.mrf.mxu0
      %v5953 = vadd.f32 0.0, %v5952
      %v5954 = vpop.f32.mrf.mxu0
      %5955 = vmatprep.mubr.f32.mxu0 0.0
      %5956 = vmatmul.mubr.f32.gmra.mxu0 %v5493
      %v5957 = vpop.f32.mrf.mxu0
      %v5958 = vadd.f32 0.0, %v5957
      %v5959 = vpop.f32.mrf.mxu0
      %5960 = vmatprep.mubr.f32.mxu0 0.0
      %5961 = vmatmul.mubr.f32.gmra.mxu0 %v5496
      %v5962 = vpop.f32.mrf.mxu0
      %v5963 = vadd.f32 0.0, %v5962
      %v5964 = vpop.f32.mrf.mxu0
      %5965 = vmatprep.mubr.f32.mxu0 0.0
      %5966 = vmatmul.mubr.f32.gmra.mxu0 %v5499
      %v5967 = vpop.f32.mrf.mxu0
      %v5968 = vadd.f32 0.0, %v5967
      %v5969 = vpop.f32.mrf.mxu0
      %5970 = vmatprep.mubr.f32.mxu0 0.0
      %5971 = vmatmul.mubr.f32.gmra.mxu0 %v5502
      %v5972 = vpop.f32.mrf.mxu0
      %v5973 = vadd.f32 0.0, %v5972
      %v5974 = vpop.f32.mrf.mxu0
      %5975 = vmatprep.mubr.f32.mxu0 0.0
      %5976 = vmatmul.mubr.f32.gmra.mxu0 %v5505
      %v5977 = vpop.f32.mrf.mxu0
      %v5978 = vadd.f32 0.0, %v5977
      %v5979 = vpop.f32.mrf.mxu0
      %5980 = vmatprep.mubr.f32.mxu0 0.0
      %5981 = vmatmul.mubr.f32.gmra.mxu0 %v5508
      %v5982 = vpop.f32.mrf.mxu0
      %v5983 = vadd.f32 0.0, %v5982
      %v5984 = vpop.f32.mrf.mxu0
      %5985 = vmatprep.mubr.f32.mxu0 0.0
      %5986 = vmatmul.mubr.f32.gmra.mxu0 %v5511
      %v5987 = vpop.f32.mrf.mxu0
      %v5988 = vadd.f32 0.0, %v5987
      %v5989 = vpop.f32.mrf.mxu0
      %5990 = vmatprep.mubr.f32.mxu0 0.0
      %5991 = vmatmul.mubr.f32.gmra.mxu0 %v5514
      %v5992 = vpop.f32.mrf.mxu0
      %v5993 = vadd.f32 0.0, %v5992
      %v5994 = vpop.f32.mrf.mxu0
      %5995 = vmatprep.mubr.f32.mxu0 0.0
      %5996 = vmatmul.mubr.f32.gmra.mxu0 %v5517
      %v5997 = vpop.f32.mrf.mxu0
      %v5998 = vadd.f32 0.0, %v5997
      %v5999 = vpop.f32.mrf.mxu0
      %6000 = vmatprep.mubr.f32.mxu0 0.0
      %6001 = vmatmul.mubr.f32.gmra.mxu0 %v5520
      %v6002 = vpop.f32.mrf.mxu0
      %v6003 = vadd.f32 0.0, %v6002
      %v6004 = vpop.f32.mrf.mxu0
      %6005 = vmatprep.mubr.f32.mxu0 0.0
      %6006 = vmatmul.mubr.f32.gmra.mxu0 %v5523
      %v6007 = vpop.f32.mrf.mxu0
      %v6008 = vadd.f32 0.0, %v6007
      %v6009 = vpop.f32.mrf.mxu0
      %6010 = vmatprep.mubr.f32.mxu0 0.0
      %6011 = vmatmul.mubr.f32.gmra.mxu0 %v5526
      %v6012 = vpop.f32.mrf.mxu0
      %v6013 = vadd.f32 0.0, %v6012
      %v6014 = vpop.f32.mrf.mxu0
      %6015 = vmatprep.mubr.f32.mxu0 0.0
      %6016 = vmatmul.mubr.f32.gmra.mxu0 %v5529
      %v6017 = vpop.f32.mrf.mxu0
      %v6018 = vadd.f32 0.0, %v6017
      %v6019 = vpop.f32.mrf.mxu0
      %6020 = vmatprep.mubr.f32.mxu0 0.0
      %6021 = vmatmul.mubr.f32.gmra.mxu0 %v5532
      %v6022 = vpop.f32.mrf.mxu0
      %v6023 = vadd.f32 0.0, %v6022
      %v6024 = vpop.f32.mrf.mxu0
      %6025 = vmatprep.mubr.f32.mxu0 0.0
      %6026 = vmatmul.mubr.f32.gmra.mxu0 %v5535
      %v6027 = vpop.f32.mrf.mxu0
      %v6028 = vadd.f32 0.0, %v6027
      %v6029 = vpop.f32.mrf.mxu0
      %6030 = vmatprep.mubr.f32.mxu0 0.0
      %6031 = vmatmul.mubr.f32.gmra.mxu0 %v5538
      %v6032 = vpop.f32.mrf.mxu0
      %v6033 = vadd.f32 0.0, %v6032
      %v6034 = vpop.f32.mrf.mxu0
      %6035 = vmatprep.mubr.f32.mxu0 0.0
      %6036 = vmatmul.mubr.f32.gmra.mxu0 %v5541
      %v6037 = vpop.f32.mrf.mxu0
      %v6038 = vadd.f32 0.0, %v6037
      %v6039 = vpop.f32.mrf.mxu0
      %6040 = vmatprep.mubr.f32.mxu0 0.0
      %6041 = vmatmul.mubr.f32.gmra.mxu0 %v5544
      %v6042 = vpop.f32.mrf.mxu0
      %v6043 = vadd.f32 0.0, %v6042
      %v6044 = vpop.f32.mrf.mxu0
      %6045 = vmatprep.mubr.f32.mxu0 0.0
      %6046 = vmatmul.mubr.f32.gmra.mxu0 %v5547
      %v6047 = vpop.f32.mrf.mxu0
      %v6048 = vadd.f32 0.0, %v6047
      %v6049 = vpop.f32.mrf.mxu0
      %6050 = vmatprep.mubr.f32.mxu0 0.0
      %6051 = vmatmul.mubr.f32.gmra.mxu0 %v5550
      %v6052 = vpop.f32.mrf.mxu0
      %v6053 = vadd.f32 0.0, %v6052
      %v6054 = vpop.f32.mrf.mxu0
      %6055 = vmatprep.mubr.f32.mxu0 0.0
      %6056 = vmatmul.mubr.f32.gmra.mxu0 %v5553
      %v6057 = vpop.f32.mrf.mxu0
      %v6058 = vadd.f32 0.0, %v6057
      %v6059 = vpop.f32.mrf.mxu0
      %6060 = vmatprep.mubr.f32.mxu0 0.0
      %6061 = vmatmul.mubr.f32.gmra.mxu0 %v5556
      %v6062 = vpop.f32.mrf.mxu0
      %v6063 = vadd.f32 0.0, %v6062
      %v6064 = vpop.f32.mrf.mxu0
      %6065 = vmatprep.mubr.f32.mxu0 0.0
      %6066 = vmatmul.mubr.f32.gmra.mxu0 %v5559
      %v6067 = vpop.f32.mrf.mxu0
      %v6068 = vadd.f32 0.0, %v6067
      %v6069 = vpop.f32.mrf.mxu0
      %6070 = vmatprep.mubr.f32.mxu0 0.0
      %6071 = vmatmul.mubr.f32.gmra.mxu0 %v5562
      %v6072 = vpop.f32.mrf.mxu0
      %v6073 = vadd.f32 0.0, %v6072
      %v6074 = vpop.f32.mrf.mxu0
      %6075 = vmatprep.mubr.f32.mxu0 0.0
      %6076 = vmatmul.mubr.f32.gmra.mxu0 %v5565
      %v6077 = vpop.f32.mrf.mxu0
      %v6078 = vadd.f32 0.0, %v6077
      %v6079 = vpop.f32.mrf.mxu0
      %6080 = vmatprep.mubr.f32.mxu0 0.0
      %6081 = vmatmul.mubr.f32.gmra.mxu0 %v5568
      %v6082 = vpop.f32.mrf.mxu0
      %v6083 = vadd.f32 0.0, %v6082
      %v6084 = vpop.f32.mrf.mxu0
      %6085 = vmatprep.mubr.f32.mxu0 0.0
      %6086 = vmatmul.mubr.f32.gmra.mxu0 %v5571
      %v6087 = vpop.f32.mrf.mxu0
      %v6088 = vadd.f32 0.0, %v6087
      %v6089 = vpop.f32.mrf.mxu0
      %6090 = vmatprep.mubr.f32.mxu0 0.0
      %6091 = vmatmul.mubr.f32.gmra.mxu0 %v5574
      %v6092 = vpop.f32.mrf.mxu0
      %v6093 = vadd.f32 0.0, %v6092
      %v6094 = vpop.f32.mrf.mxu0
      %6095 = vmatprep.mubr.f32.mxu0 0.0
      %6096 = vmatmul.mubr.f32.gmra.mxu0 %v5577
      %v6097 = vpop.f32.mrf.mxu0
      %v6098 = vadd.f32 0.0, %v6097
      %v6099 = vpop.f32.mrf.mxu0
      %6100 = vmatprep.mubr.f32.mxu0 0.0
      %6101 = vmatmul.mubr.f32.gmra.mxu0 %v5580
      %v6102 = vpop.f32.mrf.mxu0
      %v6103 = vadd.f32 0.0, %v6102
      %v6104 = vpop.f32.mrf.mxu0
      %6105 = vmatprep.mubr.f32.mxu0 0.0
      %6106 = vmatmul.mubr.f32.gmra.mxu0 %v5583
      %v6107 = vpop.f32.mrf.mxu0
      %v6108 = vadd.f32 0.0, %v6107
      %v6109 = vpop.f32.mrf.mxu0
      %6110 = vmatprep.mubr.f32.mxu0 0.0
      %6111 = vmatmul.mubr.f32.gmra.mxu0 %v5586
      %v6112 = vpop.f32.mrf.mxu0
      %v6113 = vadd.f32 0.0, %v6112
      %v6114 = vpop.f32.mrf.mxu0
      %6115 = vmatprep.mubr.f32.mxu0 0.0
      %6116 = vmatmul.mubr.f32.gmra.mxu0 %v5589
      %v6117 = vpop.f32.mrf.mxu0
      %v6118 = vadd.f32 0.0, %v6117
      %v6119 = vpop.f32.mrf.mxu0
      %6120 = vmatprep.mubr.f32.mxu0 0.0
      %6121 = vmatmul.mubr.f32.gmra.mxu0 %v5592
      %v6122 = vpop.f32.mrf.mxu0
      %v6123 = vadd.f32 0.0, %v6122
      %v6124 = vpop.f32.mrf.mxu0
      %6125 = vmatprep.mubr.f32.mxu0 0.0
      %6126 = vmatmul.mubr.f32.gmra.mxu0 %v5595
      %v6127 = vpop.f32.mrf.mxu0
      %v6128 = vadd.f32 0.0, %v6127
      %v6129 = vpop.f32.mrf.mxu0
      %6130 = vmatprep.mubr.f32.mxu0 0.0
      %6131 = vmatmul.mubr.f32.gmra.mxu0 %v5598
      %v6132 = vpop.f32.mrf.mxu0
      %v6133 = vadd.f32 0.0, %v6132
      %v6134 = vpop.f32.mrf.mxu0
      %6135 = vmatprep.mubr.f32.mxu0 0.0
      %6136 = vmatmul.mubr.f32.gmra.mxu0 %v5601
      %v6137 = vpop.f32.mrf.mxu0
      %v6138 = vadd.f32 0.0, %v6137
      %v6139 = vpop.f32.mrf.mxu0
      %6140 = vmatprep.mubr.f32.mxu0 0.0
      %6141 = vmatmul.mubr.f32.gmra.mxu0 %v5604
      %v6142 = vpop.f32.mrf.mxu0
      %v6143 = vadd.f32 0.0, %v6142
      %v6144 = vpop.f32.mrf.mxu0
      %6145 = vmatprep.mubr.f32.mxu0 0.0
      %6146 = vmatmul.mubr.f32.gmra.mxu0 %v5607
      %v6147 = vpop.f32.mrf.mxu0
      %v6148 = vadd.f32 0.0, %v6147
      %v6149 = vpop.f32.mrf.mxu0
      %6150 = vmatprep.mubr.f32.mxu0 0.0
      %6151 = vmatmul.mubr.f32.gmra.mxu0 %v5610
      %v6152 = vpop.f32.mrf.mxu0
      %v6153 = vadd.f32 0.0, %v6152
      %v6154 = vpop.f32.mrf.mxu0
      %6155 = vmatprep.mubr.f32.mxu0 0.0
      %6156 = vmatmul.mubr.f32.gmra.mxu0 %v5613
      %v6157 = vpop.f32.mrf.mxu0
      %v6158 = vadd.f32 0.0, %v6157
      %v6159 = vpop.f32.mrf.mxu0
      %6160 = vmatprep.mubr.f32.mxu0 0.0
      %6161 = vmatmul.mubr.f32.gmra.mxu0 %v5616
      %v6162 = vpop.f32.mrf.mxu0
      %v6163 = vadd.f32 0.0, %v6162
      %v6164 = vpop.f32.mrf.mxu0
      %6165 = vmatprep.mubr.f32.mxu0 0.0
      %6166 = vmatmul.mubr.f32.gmra.mxu0 %v5619
      %v6167 = vpop.f32.mrf.mxu0
      %v6168 = vadd.f32 0.0, %v6167
      %v6169 = vpop.f32.mrf.mxu0
      %6170 = vmatprep.mubr.f32.mxu0 0.0
      %6171 = vmatmul.mubr.f32.gmra.mxu0 %v5622
      %v6172 = vpop.f32.mrf.mxu0
      %v6173 = vadd.f32 0.0, %v6172
      %v6174 = vpop.f32.mrf.mxu0
      %6175 = vmatprep.mubr.f32.mxu0 0.0
      %6176 = vmatmul.mubr.f32.gmra.mxu0 %v5625
      %v6177 = vpop.f32.mrf.mxu0
      %v6178 = vadd.f32 0.0, %v6177
      %v6179 = vpop.f32.mrf.mxu0
      %6180 = vmatprep.mubr.f32.mxu0 0.0
      %6181 = vmatmul.mubr.f32.gmra.mxu0 %v5628
      %v6182 = vpop.f32.mrf.mxu0
      %v6183 = vadd.f32 0.0, %v6182
      %v6184 = vpop.f32.mrf.mxu0
      %6185 = vmatprep.mubr.f32.mxu0 0.0
      %6186 = vmatmul.mubr.f32.gmra.mxu0 %v5631
      %v6187 = vpop.f32.mrf.mxu0
      %v6188 = vadd.f32 0.0, %v6187
      %v6189 = vpop.f32.mrf.mxu0
      %6190 = vmatprep.mubr.f32.mxu0 0.0
      %6191 = vmatmul.mubr.f32.gmra.mxu0 %v5634
      %v6192 = vpop.f32.mrf.mxu0
      %v6193 = vadd.f32 0.0, %v6192
      %v6194 = vpop.f32.mrf.mxu0
      %6195 = vmatprep.mubr.f32.mxu0 0.0
      %6196 = vmatmul.mubr.f32.gmra.mxu0 %v5637
      %v6197 = vpop.f32.mrf.mxu0
      %v6198 = vadd.f32 0.0, %v6197
      %v6199 = vpop.f32.mrf.mxu0
      %6200 = vmatprep.mubr.f32.mxu0 0.0
      %6201 = vmatmul.mubr.f32.gmra.mxu0 %v5640
      %v6202 = vpop.f32.mrf.mxu0
      %v6203 = vadd.f32 0.0, %v6202
      %v6204 = vpop.f32.mrf.mxu0
      %6205 = vmatprep.mubr.f32.mxu0 0.0
      %6206 = vmatmul.mubr.f32.gmra.mxu0 %v5643
      %v6207 = vpop.f32.mrf.mxu0
      %v6208 = vadd.f32 0.0, %v6207
      %v6209 = vpop.f32.mrf.mxu0
      %6210 = vmatprep.mubr.f32.mxu0 0.0
      %6211 = vmatmul.mubr.f32.gmra.mxu0 %v5646
      %v6212 = vpop.f32.mrf.mxu0
      %v6213 = vadd.f32 0.0, %v6212
      %v6214 = vpop.f32.mrf.mxu0
      %6215 = vmatprep.mubr.f32.mxu0 0.0
      %6216 = vmatmul.mubr.f32.gmra.mxu0 %v5649
      %v6217 = vpop.f32.mrf.mxu0
      %v6218 = vadd.f32 0.0, %v6217
      %v6219 = vpop.f32.mrf.mxu0
      %6220 = vmatprep.mubr.f32.mxu0 0.0
      %6221 = vmatmul.mubr.f32.gmra.mxu0 %v5652
      %v6222 = vpop.f32.mrf.mxu0
      %v6223 = vadd.f32 0.0, %v6222
      %v6224 = vpop.f32.mrf.mxu0
      %6225 = vmatprep.mubr.f32.mxu0 0.0
      %6226 = vmatmul.mubr.f32.gmra.mxu0 %v5655
      %v6227 = vpop.f32.mrf.mxu0
      %v6228 = vadd.f32 0.0, %v6227
      %v6229 = vpop.f32.mrf.mxu0
      %6230 = vmatprep.mubr.f32.mxu0 0.0
      %6231 = vmatmul.mubr.f32.gmra.mxu0 %v5658
      %v6232 = vpop.f32.mrf.mxu0
      %v6233 = vadd.f32 0.0, %v6232
      %v6234 = vpop.f32.mrf.mxu0
      %6235 = vmatprep.mubr.f32.mxu0 0.0
      %6236 = vmatmul.mubr.f32.gmra.mxu0 %v5661
      %v6237 = vpop.f32.mrf.mxu0
      %v6238 = vadd.f32 0.0, %v6237
      %v6239 = vpop.f32.mrf.mxu0
      %6240 = vmatprep.mubr.f32.mxu0 0.0
      %6241 = vmatmul.mubr.f32.gmra.mxu0 %v5664
      %v6242 = vpop.f32.mrf.mxu0
      %v6243 = vadd.f32 0.0, %v6242
      %v6244 = vpop.f32.mrf.mxu0
      %6245 = vmatprep.mubr.f32.mxu0 0.0
      %6246 = vmatmul.mubr.f32.gmra.mxu0 %v5667
      %v6247 = vpop.f32.mrf.mxu0
      %v6248 = vadd.f32 0.0, %v6247
      %v6249 = vpop.f32.mrf.mxu0
      %6250 = vmatprep.mubr.f32.mxu0 0.0
      %6251 = vmatmul.mubr.f32.gmra.mxu0 %v5670
      %v6252 = vpop.f32.mrf.mxu0
      %v6253 = vadd.f32 0.0, %v6252
      %v6254 = vpop.f32.mrf.mxu0
      %6255 = vmatprep.mubr.f32.mxu0 0.0
      %6256 = vmatmul.mubr.f32.gmra.mxu0 %v5673
      %v6257 = vpop.f32.mrf.mxu0
      %v6258 = vadd.f32 0.0, %v6257
      %v6259 = vpop.f32.mrf.mxu0
      %6260 = vmatprep.mubr.f32.mxu0 0.0
      %6261 = vmatmul.mubr.f32.gmra.mxu0 %v5676
      %v6262 = vpop.f32.mrf.mxu0
      %v6263 = vadd.f32 0.0, %v6262
      %v6264 = vpop.f32.mrf.mxu0
      %6265 = vmatprep.mubr.f32.mxu0 0.0
      %6266 = vmatmul.mubr.f32.gmra.mxu0 %v5679
      %v6267 = vpop.f32.mrf.mxu0
      %v6268 = vadd.f32 0.0, %v6267
      %v6269 = vpop.f32.mrf.mxu0
      %6270 = vmatprep.mubr.f32.mxu0 0.0
      %6271 = vmatmul.mubr.f32.gmra.mxu0 %v5682
      %v6272 = vpop.f32.mrf.mxu0
      %v6273 = vadd.f32 0.0, %v6272
      %v6274 = vpop.f32.mrf.mxu0
      %6275 = vmatprep.mubr.f32.mxu0 0.0
      %6276 = vmatmul.mubr.f32.gmra.mxu0 %v5685
      %v6277 = vpop.f32.mrf.mxu0
      %v6278 = vadd.f32 0.0, %v6277
      %v6279 = vpop.f32.mrf.mxu0
      %6280 = vmatprep.mubr.f32.mxu0 0.0
      %6281 = vmatmul.mubr.f32.gmra.mxu0 %v5688
      %v6282 = vpop.f32.mrf.mxu0
      %v6283 = vadd.f32 0.0, %v6282
      %v6284 = vpop.f32.mrf.mxu0
      %6285 = vmatprep.mubr.f32.mxu0 0.0
      %6286 = vmatmul.mubr.f32.gmra.mxu0 %v5691
      %v6287 = vpop.f32.mrf.mxu0
      %v6288 = vadd.f32 0.0, %v6287
      %v6289 = vpop.f32.mrf.mxu0
      %6290 = vmatprep.mubr.f32.mxu0 0.0
      %6291 = vmatmul.mubr.f32.gmra.mxu0 %v5694
      %v6292 = vpop.f32.mrf.mxu0
      %v6293 = vadd.f32 0.0, %v6292
      %v6294 = vpop.f32.mrf.mxu0
      %6295 = vmatprep.mubr.f32.mxu0 0.0
      %6296 = vmatmul.mubr.f32.gmra.mxu0 %v5697
      %v6297 = vpop.f32.mrf.mxu0
      %v6298 = vadd.f32 0.0, %v6297
      %v6299 = vpop.f32.mrf.mxu0
      %6300 = vmatprep.mubr.f32.mxu0 0.0
      %6301 = vmatmul.mubr.f32.gmra.mxu0 %v5700
      %v6302 = vpop.f32.mrf.mxu0
      %v6303 = vadd.f32 0.0, %v6302
      %v6304 = vpop.f32.mrf.mxu0
      %6305 = vmatprep.mubr.f32.mxu0 0.0
      %6306 = vmatmul.mubr.f32.gmra.mxu0 %v5703
      %v6307 = vpop.f32.mrf.mxu0
      %v6308 = vadd.f32 0.0, %v6307
      %v6309 = vpop.f32.mrf.mxu0
      %6310 = vmatprep.mubr.f32.mxu0 0.0
      %6311 = vmatmul.mubr.f32.gmra.mxu0 %v5706
      %v6312 = vpop.f32.mrf.mxu0
      %v6313 = vadd.f32 0.0, %v6312
      %v6314 = vpop.f32.mrf.mxu0
      %6315 = vmatprep.mubr.f32.mxu0 0.0
      %6316 = vmatmul.mubr.f32.gmra.mxu0 %v5709
      %v6317 = vpop.f32.mrf.mxu0
      %v6318 = vadd.f32 0.0, %v6317
      %v6319 = vpop.f32.mrf.mxu0
      %6320 = vmatprep.mubr.f32.mxu0 0.0
      %6321 = vmatmul.mubr.f32.gmra.mxu0 %v5712
      %v6322 = vpop.f32.mrf.mxu0
      %v6323 = vadd.f32 0.0, %v6322
      %v6324 = vpop.f32.mrf.mxu0
      %6325 = vmatprep.mubr.f32.mxu0 0.0
      %6326 = vmatmul.mubr.f32.gmra.mxu0 %v5715
      %v6327 = vpop.f32.mrf.mxu0
      %v6328 = vadd.f32 0.0, %v6327
      %v6329 = vpop.f32.mrf.mxu0
      %6330 = vmatprep.mubr.f32.mxu0 0.0
      %6331 = vmatmul.mubr.f32.gmra.mxu0 %v5718
      %v6332 = vpop.f32.mrf.mxu0
      %v6333 = vadd.f32 0.0, %v6332
      %v6334 = vpop.f32.mrf.mxu0
      %6335 = vmatprep.mubr.f32.mxu0 0.0
      %6336 = vmatmul.mubr.f32.gmra.mxu0 %v5721
      %v6337 = vpop.f32.mrf.mxu0
      %v6338 = vadd.f32 0.0, %v6337
      %v6339 = vpop.f32.mrf.mxu0
      %6340 = vmatprep.mubr.f32.mxu0 0.0
      %6341 = vmatmul.mubr.f32.gmra.mxu0 %v5724
      %v6342 = vpop.f32.mrf.mxu0
      %v6343 = vadd.f32 0.0, %v6342
      %v6344 = vpop.f32.mrf.mxu0
      %6345 = vmatprep.mubr.f32.mxu0 0.0
      %6346 = vmatmul.mubr.f32.gmra.mxu0 %v5727
      %v6347 = vpop.f32.mrf.mxu0
      %v6348 = vadd.f32 0.0, %v6347
      %v6349 = vpop.f32.mrf.mxu0
      %6350 = vmatprep.mubr.f32.mxu0 0.0
      %6351 = vmatmul.mubr.f32.gmra.mxu0 %v5730
      %v6352 = vpop.f32.mrf.mxu0
      %v6353 = vadd.f32 0.0, %v6352
      %v6354 = vpop.f32.mrf.mxu0
      %6355 = vmatprep.mubr.f32.mxu0 0.0
      %6356 = vmatmul.mubr.f32.gmra.mxu0 %v5733
      %v6357 = vpop.f32.mrf.mxu0
      %v6358 = vadd.f32 0.0, %v6357
      %v6359 = vpop.f32.mrf.mxu0
      %6360 = vmatprep.mubr.f32.mxu0 0.0
      %6361 = vmatmul.mubr.f32.gmra.mxu0 %v5736
      %v6362 = vpop.f32.mrf.mxu0
      %v6363 = vadd.f32 0.0, %v6362
      %v6364 = vpop.f32.mrf.mxu0
      %6365 = vmatprep.mubr.f32.mxu0 0.0
      %6366 = vmatmul.mubr.f32.gmra.mxu0 %v5739
      %v6367 = vpop.f32.mrf.mxu0
      %v6368 = vadd.f32 0.0, %v6367
      %v6369 = vpop.f32.mrf.mxu0
      %6370 = vmatprep.mubr.f32.mxu0 0.0
      %6371 = vmatmul.mubr.f32.gmra.mxu0 %v5742
      %v6372 = vpop.f32.mrf.mxu0
      %v6373 = vadd.f32 0.0, %v6372
      %v6374 = vpop.f32.mrf.mxu0
      %6375 = vmatprep.mubr.f32.mxu0 0.0
      %6376 = vmatmul.mubr.f32.gmra.mxu0 %v5745
      %v6377 = vpop.f32.mrf.mxu0
      %v6378 = vadd.f32 0.0, %v6377
      %v6379 = vpop.f32.mrf.mxu0
      %6380 = vmatprep.mubr.f32.mxu0 0.0
      %6381 = vmatmul.mubr.f32.gmra.mxu0 %v5748
      %v6382 = vpop.f32.mrf.mxu0
      %v6383 = vadd.f32 0.0, %v6382
      %v6384 = vpop.f32.mrf.mxu0
      %6385 = vmatprep.mubr.f32.mxu0 0.0
      %6386 = vmatmul.mubr.f32.gmra.mxu0 %v5751
      %v6387 = vpop.f32.mrf.mxu0
      %v6388 = vadd.f32 0.0, %v6387
      %v6389 = vpop.f32.mrf.mxu0
      %6390 = vmatprep.mubr.f32.mxu0 0.0
      %6391 = vmatmul.mubr.f32.gmra.mxu0 %v5754
      %v6392 = vpop.f32.mrf.mxu0
      %v6393 = vadd.f32 0.0, %v6392
      %v6394 = vpop.f32.mrf.mxu0
      %6395 = vmatprep.mubr.f32.mxu0 0.0
      %6396 = vmatmul.mubr.f32.gmra.mxu0 %v5757
      %v6397 = vpop.f32.mrf.mxu0
      %v6398 = vadd.f32 0.0, %v6397
      %v6399 = vpop.f32.mrf.mxu0
      %6400 = vmatprep.mubr.f32.mxu0 0.0
      %6401 = vmatmul.mubr.f32.gmra.mxu0 %v5760
      %v6402 = vpop.f32.mrf.mxu0
      %v6403 = vadd.f32 0.0, %v6402
      %v6404 = vpop.f32.mrf.mxu0
      %6405 = vmatprep.mubr.f32.mxu0 0.0
      %6406 = vmatmul.mubr.f32.gmra.mxu0 %v5763
      %v6407 = vpop.f32.mrf.mxu0
      %v6408 = vadd.f32 0.0, %v6407
      %v6409 = vpop.f32.mrf.mxu0
      %6410 = vmatprep.mubr.f32.mxu0 0.0
      %6411 = vmatmul.mubr.f32.gmra.mxu0 %v5766
      %v6412 = vpop.f32.mrf.mxu0
      %v6413 = vadd.f32 0.0, %v6412
      %v6414 = vpop.f32.mrf.mxu0
      %6415 = vmatprep.mubr.f32.mxu0 0.0
      %6416 = vmatmul.mubr.f32.gmra.mxu0 %v5769
      %v6417 = vpop.f32.mrf.mxu0
      %v6418 = vadd.f32 0.0, %v6417
      %v6419 = vpop.f32.mrf.mxu0
      %6420 = vmatprep.mubr.f32.mxu0 0.0
      %6421 = vmatmul.mubr.f32.gmra.mxu0 %v5772
      %v6422 = vpop.f32.mrf.mxu0
      %v6423 = vadd.f32 0.0, %v6422
      %v6424 = vpop.f32.mrf.mxu0
      %6425 = vmatprep.mubr.f32.mxu0 0.0
      %6426 = vmatmul.mubr.f32.gmra.mxu0 %v5775
      %v6427 = vpop.f32.mrf.mxu0
      %v6428 = vadd.f32 0.0, %v6427
      %v6429 = vpop.f32.mrf.mxu0
      %6430 = vmatprep.mubr.f32.mxu0 0.0
      %6431 = vmatmul.mubr.f32.gmra.mxu0 %v5778
      %v6432 = vpop.f32.mrf.mxu0
      %v6433 = vadd.f32 0.0, %v6432
      %v6434 = vpop.f32.mrf.mxu0
      %6435 = vmatprep.mubr.f32.mxu0 0.0
      %6436 = vmatmul.mubr.f32.gmra.mxu0 %v5781
      %v6437 = vpop.f32.mrf.mxu0
      %v6438 = vadd.f32 0.0, %v6437
      %v6439 = vpop.f32.mrf.mxu0
      %6440 = vmatprep.mubr.f32.mxu0 0.0
      %6441 = vmatmul.mubr.f32.gmra.mxu0 %v5784
      %v6442 = vpop.f32.mrf.mxu0
      %v6443 = vadd.f32 0.0, %v6442
      %v6444 = vpop.f32.mrf.mxu0
      %6445 = vmatprep.mubr.f32.mxu0 0.0
      %6446 = vmatmul.mubr.f32.gmra.mxu0 %v5787
      %v6447 = vpop.f32.mrf.mxu0
      %v6448 = vadd.f32 0.0, %v6447
      %v6449 = vpop.f32.mrf.mxu0
      %6450 = vmatprep.mubr.f32.mxu0 0.0
      %6451 = vmatmul.mubr.f32.gmra.mxu0 %v5790
      %v6452 = vpop.f32.mrf.mxu0
      %v6453 = vadd.f32 0.0, %v6452
      %v6454 = vpop.f32.mrf.mxu0
      %6455 = vmatprep.mubr.f32.mxu0 0.0
      %6456 = vmatmul.mubr.f32.gmra.mxu0 %v5793
      %v6457 = vpop.f32.mrf.mxu0
      %v6458 = vadd.f32 0.0, %v6457
      %v6459 = vpop.f32.mrf.mxu0
      %6460 = vmatprep.mubr.f32.mxu0 0.0
      %6461 = vmatmul.mubr.f32.gmra.mxu0 %v5796
      %v6462 = vpop.f32.mrf.mxu0
      %v6463 = vadd.f32 0.0, %v6462
      %v6464 = vpop.f32.mrf.mxu0
      %6465 = vmatprep.mubr.f32.mxu0 0.0
      %6466 = vmatmul.mubr.f32.gmra.mxu0 %v5799
      %v6467 = vpop.f32.mrf.mxu0
      %v6468 = vadd.f32 0.0, %v6467
      %v6469 = vpop.f32.mrf.mxu0
      %6470 = vmatprep.mubr.f32.mxu0 0.0
      %6471 = vmatmul.mubr.f32.gmra.mxu0 %v5802
      %v6472 = vpop.f32.mrf.mxu0
      %v6473 = vadd.f32 0.0, %v6472
      %v6474 = vpop.f32.mrf.mxu0
      %6475 = vmatprep.mubr.f32.mxu0 0.0
      %6476 = vmatmul.mubr.f32.gmra.mxu0 %v5805
      %v6477 = vpop.f32.mrf.mxu0
      %v6478 = vadd.f32 0.0, %v6477
      %v6479 = vpop.f32.mrf.mxu0
      %6480 = vmatprep.mubr.f32.mxu0 0.0
      %6481 = vmatmul.mubr.f32.gmra.mxu0 %v5808
      %v6482 = vpop.f32.mrf.mxu0
      %v6483 = vadd.f32 0.0, %v6482
      %v6484 = vpop.f32.mrf.mxu0
      %6485 = vmatprep.mubr.f32.mxu0 0.0
      %6486 = vmatmul.mubr.f32.gmra.mxu0 %v5811
      %v6487 = vpop.f32.mrf.mxu0
      %v6488 = vadd.f32 0.0, %v6487
      %v6489 = vpop.f32.mrf.mxu0
      %6490 = vmatprep.mubr.f32.mxu0 0.0
      %6491 = vmatmul.mubr.f32.gmra.mxu0 %v5814
      %v6492 = vpop.f32.mrf.mxu0
      %v6493 = vadd.f32 0.0, %v6492
      %v6494 = vpop.f32.mrf.mxu0
      %6495 = vmatprep.mubr.f32.mxu0 0.0
      %6496 = vmatmul.mubr.f32.gmra.mxu0 %v5817
      %v6497 = vpop.f32.mrf.mxu0
      %v6498 = vadd.f32 0.0, %v6497
      %v6499 = vpop.f32.mrf.mxu0
      %6500 = vmatprep.mubr.f32.mxu0 0.0
      %6501 = vmatmul.mubr.f32.gmra.mxu0 %v5820
      %v6502 = vpop.f32.mrf.mxu0
      %v6503 = vadd.f32 0.0, %v6502
      %v6504 = vpop.f32.mrf.mxu0
      %6505 = vmatprep.mubr.f32.mxu0 0.0
      %6506 = vmatmul.mubr.f32.gmra.mxu0 %v5823
      %v6507 = vpop.f32.mrf.mxu0
      %v6508 = vadd.f32 0.0, %v6507
      %v6509 = vpop.f32.mrf.mxu0
      %6510 = vmatprep.mubr.f32.mxu0 0.0
      %6511 = vmatmul.mubr.f32.gmra.mxu0 %v5826
      %v6512 = vpop.f32.mrf.mxu0
      %v6513 = vadd.f32 0.0, %v6512
      %v6514 = vpop.f32.mrf.mxu0
      %6515 = vmatprep.mubr.f32.mxu0 0.0
      %6516 = vmatmul.mubr.f32.gmra.mxu0 %v5829
      %v6517 = vpop.f32.mrf.mxu0
      %v6518 = vadd.f32 0.0, %v6517
      %v6519 = vpop.f32.mrf.mxu0
      %6520 = vmatprep.mubr.f32.mxu0 0.0
      %6521 = vmatmul.mubr.f32.gmra.mxu0 %v5832
      %v6522 = vpop.f32.mrf.mxu0
      %v6523 = vadd.f32 0.0, %v6522
      %v6524 = vpop.f32.mrf.mxu0
      %6525 = vmatprep.mubr.f32.mxu0 0.0
      %6526 = vmatmul.mubr.f32.gmra.mxu0 %v5835
      %v6527 = vpop.f32.mrf.mxu0
      %v6528 = vadd.f32 0.0, %v6527
      %v6529 = vpop.f32.mrf.mxu0
      %6530 = vmatprep.mubr.f32.mxu0 0.0
      %6531 = vmatmul.mubr.f32.gmra.mxu0 %v5838
      %v6532 = vpop.f32.mrf.mxu0
      %v6533 = vadd.f32 0.0, %v6532
      %v6534 = vpop.f32.mrf.mxu0
      %6535 = vmatprep.mubr.f32.mxu0 0.0
      %6536 = vmatmul.mubr.f32.gmra.mxu0 %v5841
      %v6537 = vpop.f32.mrf.mxu0
      %v6538 = vadd.f32 0.0, %v6537
      %v6539 = vpop.f32.mrf.mxu0
      %6540 = vmatprep.mubr.f32.mxu0 0.0
      %6541 = vmatmul.mubr.f32.gmra.mxu0 %v5844
      %v6542 = vpop.f32.mrf.mxu0
      %v6543 = vadd.f32 0.0, %v6542
      %v6544 = vpop.f32.mrf.mxu0
      %6545 = vmatprep.mubr.f32.mxu0 0.0
      %6546 = vmatmul.mubr.f32.gmra.mxu0 %v5847
      %v6547 = vpop.f32.mrf.mxu0
      %v6548 = vadd.f32 0.0, %v6547
      %v6549 = vpop.f32.mrf.mxu0
      %6550 = vmatprep.mubr.f32.mxu0 0.0
      %6551 = vmatmul.mubr.f32.gmra.mxu0 %v5850
      %v6552 = vpop.f32.mrf.mxu0
      %v6553 = vadd.f32 0.0, %v6552
      %v6554 = vpop.f32.mrf.mxu0
      %6555 = vmatprep.mubr.f32.mxu0 0.0
      %6556 = vmatmul.mubr.f32.gmra.mxu0 %v5853
      %v6557 = vpop.f32.mrf.mxu0
      %v6558 = vadd.f32 0.0, %v6557
      %v6559 = vpop.f32.mrf.mxu0
      %6560 = vmatprep.mubr.f32.mxu0 0.0
      %6561 = vmatmul.mubr.f32.gmra.mxu0 %v5856
      %v6562 = vpop.f32.mrf.mxu0
      %v6563 = vadd.f32 0.0, %v6562
      %v6564 = vpop.f32.mrf.mxu0
      %6565 = vdwg.mxu0
      %v6566 = vadd.f32 %v5216, %v5928
      %v6567 = vadd.f32 %v5217, %v5933
      %v6568 = vadd.f32 %v5218, %v5938
      %v6569 = vadd.f32 %v5219, %v5943
      %v6570 = vadd.f32 %v5220, %v5948
      %v6571 = vadd.f32 %v5221, %v5953
      %v6572 = vadd.f32 %v5222, %v5958
      %v6573 = vadd.f32 %v5223, %v5963
      %v6574 = vadd.f32 %v5224, %v5968
      %v6575 = vadd.f32 %v5225, %v5973
      %v6576 = vadd.f32 %v5226, %v5978
      %v6577 = vadd.f32 %v5227, %v5983
      %v6578 = vadd.f32 %v5228, %v5988
      %v6579 = vadd.f32 %v5229, %v5993
      %v6580 = vadd.f32 %v5230, %v5998
      %v6581 = vadd.f32 %v5231, %v6003
      %v6582 = vadd.f32 %v5232, %v6008
      %v6583 = vadd.f32 %v5233, %v6013
      %v6584 = vadd.f32 %v5234, %v6018
      %v6585 = vadd.f32 %v5235, %v6023
      %v6586 = vadd.f32 %v5236, %v6028
      %v6587 = vadd.f32 %v5237, %v6033
      %v6588 = vadd.f32 %v5238, %v6038
      %v6589 = vadd.f32 %v5239, %v6043
      %v6590 = vadd.f32 %v5240, %v6048
      %v6591 = vadd.f32 %v5241, %v6053
      %v6592 = vadd.f32 %v5242, %v6058
      %v6593 = vadd.f32 %v5243, %v6063
      %v6594 = vadd.f32 %v5244, %v6068
      %v6595 = vadd.f32 %v5245, %v6073
      %v6596 = vadd.f32 %v5246, %v6078
      %v6597 = vadd.f32 %v5247, %v6083
      %v6598 = vadd.f32 %v5248, %v6088
      %v6599 = vadd.f32 %v5249, %v6093
      %v6600 = vadd.f32 %v5250, %v6098
      %v6601 = vadd.f32 %v5251, %v6103
      %v6602 = vadd.f32 %v5252, %v6108
      %v6603 = vadd.f32 %v5253, %v6113
      %v6604 = vadd.f32 %v5254, %v6118
      %v6605 = vadd.f32 %v5255, %v6123
      %v6606 = vadd.f32 %v5256, %v6128
      %v6607 = vadd.f32 %v5257, %v6133
      %v6608 = vadd.f32 %v5258, %v6138
      %v6609 = vadd.f32 %v5259, %v6143
      %v6610 = vadd.f32 %v5260, %v6148
      %v6611 = vadd.f32 %v5261, %v6153
      %v6612 = vadd.f32 %v5262, %v6158
      %v6613 = vadd.f32 %v5263, %v6163
      %v6614 = vadd.f32 %v5264, %v6168
      %v6615 = vadd.f32 %v5265, %v6173
      %v6616 = vadd.f32 %v5266, %v6178
      %v6617 = vadd.f32 %v5267, %v6183
      %v6618 = vadd.f32 %v5268, %v6188
      %v6619 = vadd.f32 %v5269, %v6193
      %v6620 = vadd.f32 %v5270, %v6198
      %v6621 = vadd.f32 %v5271, %v6203
      %v6622 = vadd.f32 %v5272, %v6208
      %v6623 = vadd.f32 %v5273, %v6213
      %v6624 = vadd.f32 %v5274, %v6218
      %v6625 = vadd.f32 %v5275, %v6223
      %v6626 = vadd.f32 %v5276, %v6228
      %v6627 = vadd.f32 %v5277, %v6233
      %v6628 = vadd.f32 %v5278, %v6238
      %v6629 = vadd.f32 %v5279, %v6243
      %v6630 = vadd.f32 %v5280, %v6248
      %v6631 = vadd.f32 %v5281, %v6253
      %v6632 = vadd.f32 %v5282, %v6258
      %v6633 = vadd.f32 %v5283, %v6263
      %v6634 = vadd.f32 %v5284, %v6268
      %v6635 = vadd.f32 %v5285, %v6273
      %v6636 = vadd.f32 %v5286, %v6278
      %v6637 = vadd.f32 %v5287, %v6283
      %v6638 = vadd.f32 %v5288, %v6288
      %v6639 = vadd.f32 %v5289, %v6293
      %v6640 = vadd.f32 %v5290, %v6298
      %v6641 = vadd.f32 %v5291, %v6303
      %v6642 = vadd.f32 %v5292, %v6308
      %v6643 = vadd.f32 %v5293, %v6313
      %v6644 = vadd.f32 %v5294, %v6318
      %v6645 = vadd.f32 %v5295, %v6323
      %v6646 = vadd.f32 %v5296, %v6328
      %v6647 = vadd.f32 %v5297, %v6333
      %v6648 = vadd.f32 %v5298, %v6338
      %v6649 = vadd.f32 %v5299, %v6343
      %v6650 = vadd.f32 %v5300, %v6348
      %v6651 = vadd.f32 %v5301, %v6353
      %v6652 = vadd.f32 %v5302, %v6358
      %v6653 = vadd.f32 %v5303, %v6363
      %v6654 = vadd.f32 %v5304, %v6368
      %v6655 = vadd.f32 %v5305, %v6373
      %v6656 = vadd.f32 %v5306, %v6378
      %v6657 = vadd.f32 %v5307, %v6383
      %v6658 = vadd.f32 %v5308, %v6388
      %v6659 = vadd.f32 %v5309, %v6393
      %v6660 = vadd.f32 %v5310, %v6398
      %v6661 = vadd.f32 %v5311, %v6403
      %v6662 = vadd.f32 %v5312, %v6408
      %v6663 = vadd.f32 %v5313, %v6413
      %v6664 = vadd.f32 %v5314, %v6418
      %v6665 = vadd.f32 %v5315, %v6423
      %v6666 = vadd.f32 %v5316, %v6428
      %v6667 = vadd.f32 %v5317, %v6433
      %v6668 = vadd.f32 %v5318, %v6438
      %v6669 = vadd.f32 %v5319, %v6443
      %v6670 = vadd.f32 %v5320, %v6448
      %v6671 = vadd.f32 %v5321, %v6453
      %v6672 = vadd.f32 %v5322, %v6458
      %v6673 = vadd.f32 %v5323, %v6463
      %v6674 = vadd.f32 %v5324, %v6468
      %v6675 = vadd.f32 %v5325, %v6473
      %v6676 = vadd.f32 %v5326, %v6478
      %v6677 = vadd.f32 %v5327, %v6483
      %v6678 = vadd.f32 %v5328, %v6488
      %v6679 = vadd.f32 %v5329, %v6493
      %v6680 = vadd.f32 %v5330, %v6498
      %v6681 = vadd.f32 %v5331, %v6503
      %v6682 = vadd.f32 %v5332, %v6508
      %v6683 = vadd.f32 %v5333, %v6513
      %v6684 = vadd.f32 %v5334, %v6518
      %v6685 = vadd.f32 %v5335, %v6523
      %v6686 = vadd.f32 %v5336, %v6528
      %v6687 = vadd.f32 %v5337, %v6533
      %v6688 = vadd.f32 %v5338, %v6538
      %v6689 = vadd.f32 %v5339, %v6543
      %v6690 = vadd.f32 %v5340, %v6548
      %v6691 = vadd.f32 %v5341, %v6553
      %v6692 = vadd.f32 %v5342, %v6558
      %v6693 = vadd.f32 %v5343, %v6563
      %v6694 = vld [vmem:[%s3993 + $0x2] sm:$0xff]
      %v6695 = vld [vmem:[%s3993 + $0xa] sm:$0xff]
      %v6696 = vld [vmem:[%s3993 + $0x12] sm:$0xff]
      %v6697 = vld [vmem:[%s3993 + $0x1a] sm:$0xff]
      %v6698 = vld [vmem:[%s3993 + $0x2a] sm:$0xff]
      %v6699 = vld [vmem:[%s3993 + $0x32] sm:$0xff]
      %v6700 = vld [vmem:[%s3993 + $0x3a] sm:$0xff]
      %v6701 = vld [vmem:[%s3993 + $0x42] sm:$0xff]
      %v6702 = vld [vmem:[%s3993 + $0x52] sm:$0xff]
      %v6703 = vld [vmem:[%s3993 + $0x5a] sm:$0xff]
      %v6704 = vld [vmem:[%s3993 + $0x62] sm:$0xff]
      %v6705 = vld [vmem:[%s3993 + $0x6a] sm:$0xff]
      %v6706 = vld [vmem:[%s3993 + $0x7a] sm:$0xff]
      %v6707 = vld [vmem:[%s3993 + $0x82] sm:$0xff]
      %v6708 = vld [vmem:[%s3993 + $0x8a] sm:$0xff]
      %v6709 = vld [vmem:[%s3993 + $0x92] sm:$0xff]
      %v6710 = vld [vmem:[%s3993 + $0xa2] sm:$0xff]
      %v6711 = vld [vmem:[%s3993 + $0xaa] sm:$0xff]
      %v6712 = vld [vmem:[%s3993 + $0xb2] sm:$0xff]
      %v6713 = vld [vmem:[%s3993 + $0xba] sm:$0xff]
      %v6714 = vld [vmem:[%s3993 + $0xca] sm:$0xff]
      %v6715 = vld [vmem:[%s3993 + $0xd2] sm:$0xff]
      %v6716 = vld [vmem:[%s3993 + $0xda] sm:$0xff]
      %v6717 = vld [vmem:[%s3993 + $0xe2] sm:$0xff]
      %v6718 = vld [vmem:[%s3993 + $0xf2] sm:$0xff]
      %v6719 = vld [vmem:[%s3993 + $0xfa] sm:$0xff]
      %v6720 = vld [vmem:[%s3993 + $0x102] sm:$0xff]
      %v6721 = vld [vmem:[%s3993 + $0x10a] sm:$0xff]
      %v6722 = vld [vmem:[%s3993 + $0x11a] sm:$0xff]
      %v6723 = vld [vmem:[%s3993 + $0x122] sm:$0xff]
      %v6724 = vld [vmem:[%s3993 + $0x12a] sm:$0xff]
      %v6725 = vld [vmem:[%s3993 + $0x132] sm:$0xff]
      %v6726 = vld [vmem:[%s3993 + $0x142] sm:$0xff]
      %v6727 = vld [vmem:[%s3993 + $0x14a] sm:$0xff]
      %v6728 = vld [vmem:[%s3993 + $0x152] sm:$0xff]
      %v6729 = vld [vmem:[%s3993 + $0x15a] sm:$0xff]
      %v6730 = vld [vmem:[%s3993 + $0x16a] sm:$0xff]
      %v6731 = vld [vmem:[%s3993 + $0x172] sm:$0xff]
      %v6732 = vld [vmem:[%s3993 + $0x17a] sm:$0xff]
      %v6733 = vld [vmem:[%s3993 + $0x182] sm:$0xff]
      %v6734 = vld [vmem:[%s3993 + $0x192] sm:$0xff]
      %v6735 = vld [vmem:[%s3993 + $0x19a] sm:$0xff]
      %v6736 = vld [vmem:[%s3993 + $0x1a2] sm:$0xff]
      %v6737 = vld [vmem:[%s3993 + $0x1aa] sm:$0xff]
      %v6738 = vld [vmem:[%s3993 + $0x1ba] sm:$0xff]
      %v6739 = vld [vmem:[%s3993 + $0x1c2] sm:$0xff]
      %v6740 = vld [vmem:[%s3993 + $0x1ca] sm:$0xff]
      %v6741 = vld [vmem:[%s3993 + $0x1d2] sm:$0xff]
      %v6742 = vld [vmem:[%s3993 + $0x1e2] sm:$0xff]
      %v6743 = vld [vmem:[%s3993 + $0x1ea] sm:$0xff]
      %v6744 = vld [vmem:[%s3993 + $0x1f2] sm:$0xff]
      %v6745 = vld [vmem:[%s3993 + $0x1fa] sm:$0xff]
      %v6746 = vld [vmem:[%s3993 + $0x20a] sm:$0xff]
      %v6747 = vld [vmem:[%s3993 + $0x212] sm:$0xff]
      %v6748 = vld [vmem:[%s3993 + $0x21a] sm:$0xff]
      %v6749 = vld [vmem:[%s3993 + $0x222] sm:$0xff]
      %v6750 = vld [vmem:[%s3993 + $0x232] sm:$0xff]
      %v6751 = vld [vmem:[%s3993 + $0x23a] sm:$0xff]
      %v6752 = vld [vmem:[%s3993 + $0x242] sm:$0xff]
      %v6753 = vld [vmem:[%s3993 + $0x24a] sm:$0xff]
      %v6754 = vld [vmem:[%s3993 + $0x25a] sm:$0xff]
      %v6755 = vld [vmem:[%s3993 + $0x262] sm:$0xff]
      %v6756 = vld [vmem:[%s3993 + $0x26a] sm:$0xff]
      %v6757 = vld [vmem:[%s3993 + $0x272] sm:$0xff]
      %v6758 = vld [vmem:[%s3993 + $0x282] sm:$0xff]
      %v6759 = vld [vmem:[%s3993 + $0x28a] sm:$0xff]
      %v6760 = vld [vmem:[%s3993 + $0x292] sm:$0xff]
      %v6761 = vld [vmem:[%s3993 + $0x29a] sm:$0xff]
      %v6762 = vld [vmem:[%s3993 + $0x2aa] sm:$0xff]
      %v6763 = vld [vmem:[%s3993 + $0x2b2] sm:$0xff]
      %v6764 = vld [vmem:[%s3993 + $0x2ba] sm:$0xff]
      %v6765 = vld [vmem:[%s3993 + $0x2c2] sm:$0xff]
      %v6766 = vld [vmem:[%s3993 + $0x2d2] sm:$0xff]
      %v6767 = vld [vmem:[%s3993 + $0x2da] sm:$0xff]
      %v6768 = vld [vmem:[%s3993 + $0x2e2] sm:$0xff]
      %v6769 = vld [vmem:[%s3993 + $0x2ea] sm:$0xff]
      %v6770 = vld [vmem:[%s3993 + $0x2fa] sm:$0xff]
      %v6771 = vld [vmem:[%s3993 + $0x302] sm:$0xff]
      %v6772 = vld [vmem:[%s3993 + $0x30a] sm:$0xff]
      %v6773 = vld [vmem:[%s3993 + $0x312] sm:$0xff]
      %v6774 = vld [vmem:[%s3993 + $0x322] sm:$0xff]
      %v6775 = vld [vmem:[%s3993 + $0x32a] sm:$0xff]
      %v6776 = vld [vmem:[%s3993 + $0x332] sm:$0xff]
      %v6777 = vld [vmem:[%s3993 + $0x33a] sm:$0xff]
      %v6778 = vld [vmem:[%s3993 + $0x34a] sm:$0xff]
      %v6779 = vld [vmem:[%s3993 + $0x352] sm:$0xff]
      %v6780 = vld [vmem:[%s3993 + $0x35a] sm:$0xff]
      %v6781 = vld [vmem:[%s3993 + $0x362] sm:$0xff]
      %v6782 = vld [vmem:[%s3993 + $0x372] sm:$0xff]
      %v6783 = vld [vmem:[%s3993 + $0x37a] sm:$0xff]
      %v6784 = vld [vmem:[%s3993 + $0x382] sm:$0xff]
      %v6785 = vld [vmem:[%s3993 + $0x38a] sm:$0xff]
      %v6786 = vld [vmem:[%s3993 + $0x39a] sm:$0xff]
      %v6787 = vld [vmem:[%s3993 + $0x3a2] sm:$0xff]
      %v6788 = vld [vmem:[%s3993 + $0x3aa] sm:$0xff]
      %v6789 = vld [vmem:[%s3993 + $0x3b2] sm:$0xff]
      %v6790 = vld [vmem:[%s3993 + $0x3c2] sm:$0xff]
      %v6791 = vld [vmem:[%s3993 + $0x3ca] sm:$0xff]
      %v6792 = vld [vmem:[%s3993 + $0x3d2] sm:$0xff]
      %v6793 = vld [vmem:[%s3993 + $0x3da] sm:$0xff]
      %v6794 = vld [vmem:[%s3993 + $0x3ea] sm:$0xff]
      %v6795 = vld [vmem:[%s3993 + $0x3f2] sm:$0xff]
      %v6796 = vld [vmem:[%s3993 + $0x3fa] sm:$0xff]
      %v6797 = vld [vmem:[%s3993 + $0x402] sm:$0xff]
      %v6798 = vld [vmem:[%s3993 + $0x412] sm:$0xff]
      %v6799 = vld [vmem:[%s3993 + $0x41a] sm:$0xff]
      %v6800 = vld [vmem:[%s3993 + $0x422] sm:$0xff]
      %v6801 = vld [vmem:[%s3993 + $0x42a] sm:$0xff]
      %v6802 = vld [vmem:[%s3993 + $0x43a] sm:$0xff]
      %v6803 = vld [vmem:[%s3993 + $0x442] sm:$0xff]
      %v6804 = vld [vmem:[%s3993 + $0x44a] sm:$0xff]
      %v6805 = vld [vmem:[%s3993 + $0x452] sm:$0xff]
      %v6806 = vld [vmem:[%s3993 + $0x462] sm:$0xff]
      %v6807 = vld [vmem:[%s3993 + $0x46a] sm:$0xff]
      %v6808 = vld [vmem:[%s3993 + $0x472] sm:$0xff]
      %v6809 = vld [vmem:[%s3993 + $0x47a] sm:$0xff]
      %v6810 = vld [vmem:[%s3993 + $0x48a] sm:$0xff]
      %v6811 = vld [vmem:[%s3993 + $0x492] sm:$0xff]
      %v6812 = vld [vmem:[%s3993 + $0x49a] sm:$0xff]
      %v6813 = vld [vmem:[%s3993 + $0x4a2] sm:$0xff]
      %v6814 = vld [vmem:[%s3993 + $0x4b2] sm:$0xff]
      %v6815 = vld [vmem:[%s3993 + $0x4ba] sm:$0xff]
      %v6816 = vld [vmem:[%s3993 + $0x4c2] sm:$0xff]
      %v6817 = vld [vmem:[%s3993 + $0x4ca] sm:$0xff]
      %v6818 = vld [vmem:[%s3993 + $0x4da] sm:$0xff]
      %v6819 = vld [vmem:[%s3993 + $0x4e2] sm:$0xff]
      %v6820 = vld [vmem:[%s3993 + $0x4ea] sm:$0xff]
      %v6821 = vld [vmem:[%s3993 + $0x4f2] sm:$0xff]
      %s6822 = scalar_lea.vmem %s1, 20
      %v6823 = vld [vmem:[%s6822] sm:$0xf]
      %v6825 = vsel %vm457, %v6694, 0
      %v6828 = vsel %vm457, %v6695, 0
      %v6831 = vsel %vm457, %v6696, 0
      %v6834 = vsel %vm457, %v6697, 0
      %v6837 = vsel %vm457, %v6698, 0
      %v6840 = vsel %vm457, %v6699, 0
      %v6843 = vsel %vm457, %v6700, 0
      %v6846 = vsel %vm457, %v6701, 0
      %v6849 = vsel %vm457, %v6702, 0
      %v6852 = vsel %vm457, %v6703, 0
      %v6855 = vsel %vm457, %v6704, 0
      %v6858 = vsel %vm457, %v6705, 0
      %v6861 = vsel %vm457, %v6706, 0
      %v6864 = vsel %vm457, %v6707, 0
      %v6867 = vsel %vm457, %v6708, 0
      %v6870 = vsel %vm457, %v6709, 0
      %v6873 = vsel %vm457, %v6710, 0
      %v6876 = vsel %vm457, %v6711, 0
      %v6879 = vsel %vm457, %v6712, 0
      %v6882 = vsel %vm457, %v6713, 0
      %v6885 = vsel %vm457, %v6714, 0
      %v6888 = vsel %vm457, %v6715, 0
      %v6891 = vsel %vm457, %v6716, 0
      %v6894 = vsel %vm457, %v6717, 0
      %v6897 = vsel %vm457, %v6718, 0
      %v6900 = vsel %vm457, %v6719, 0
      %v6903 = vsel %vm457, %v6720, 0
      %v6906 = vsel %vm457, %v6721, 0
      %v6909 = vsel %vm457, %v6722, 0
      %v6912 = vsel %vm457, %v6723, 0
      %v6915 = vsel %vm457, %v6724, 0
      %v6918 = vsel %vm457, %v6725, 0
      %v6921 = vsel %vm457, %v6726, 0
      %v6924 = vsel %vm457, %v6727, 0
      %v6927 = vsel %vm457, %v6728, 0
      %v6930 = vsel %vm457, %v6729, 0
      %v6933 = vsel %vm457, %v6730, 0
      %v6936 = vsel %vm457, %v6731, 0
      %v6939 = vsel %vm457, %v6732, 0
      %v6942 = vsel %vm457, %v6733, 0
      %v6945 = vsel %vm457, %v6734, 0
      %v6948 = vsel %vm457, %v6735, 0
      %v6951 = vsel %vm457, %v6736, 0
      %v6954 = vsel %vm457, %v6737, 0
      %v6957 = vsel %vm457, %v6738, 0
      %v6960 = vsel %vm457, %v6739, 0
      %v6963 = vsel %vm457, %v6740, 0
      %v6966 = vsel %vm457, %v6741, 0
      %v6969 = vsel %vm457, %v6742, 0
      %v6972 = vsel %vm457, %v6743, 0
      %v6975 = vsel %vm457, %v6744, 0
      %v6978 = vsel %vm457, %v6745, 0
      %v6981 = vsel %vm457, %v6746, 0
      %v6984 = vsel %vm457, %v6747, 0
      %v6987 = vsel %vm457, %v6748, 0
      %v6990 = vsel %vm457, %v6749, 0
      %v6993 = vsel %vm457, %v6750, 0
      %v6996 = vsel %vm457, %v6751, 0
      %v6999 = vsel %vm457, %v6752, 0
      %v7002 = vsel %vm457, %v6753, 0
      %v7005 = vsel %vm457, %v6754, 0
      %v7008 = vsel %vm457, %v6755, 0
      %v7011 = vsel %vm457, %v6756, 0
      %v7014 = vsel %vm457, %v6757, 0
      %v7017 = vsel %vm457, %v6758, 0
      %v7020 = vsel %vm457, %v6759, 0
      %v7023 = vsel %vm457, %v6760, 0
      %v7026 = vsel %vm457, %v6761, 0
      %v7029 = vsel %vm457, %v6762, 0
      %v7032 = vsel %vm457, %v6763, 0
      %v7035 = vsel %vm457, %v6764, 0
      %v7038 = vsel %vm457, %v6765, 0
      %v7041 = vsel %vm457, %v6766, 0
      %v7044 = vsel %vm457, %v6767, 0
      %v7047 = vsel %vm457, %v6768, 0
      %v7050 = vsel %vm457, %v6769, 0
      %v7053 = vsel %vm457, %v6770, 0
      %v7056 = vsel %vm457, %v6771, 0
      %v7059 = vsel %vm457, %v6772, 0
      %v7062 = vsel %vm457, %v6773, 0
      %v7065 = vsel %vm457, %v6774, 0
      %v7068 = vsel %vm457, %v6775, 0
      %v7071 = vsel %vm457, %v6776, 0
      %v7074 = vsel %vm457, %v6777, 0
      %v7077 = vsel %vm457, %v6778, 0
      %v7080 = vsel %vm457, %v6779, 0
      %v7083 = vsel %vm457, %v6780, 0
      %v7086 = vsel %vm457, %v6781, 0
      %v7089 = vsel %vm457, %v6782, 0
      %v7092 = vsel %vm457, %v6783, 0
      %v7095 = vsel %vm457, %v6784, 0
      %v7098 = vsel %vm457, %v6785, 0
      %v7101 = vsel %vm457, %v6786, 0
      %v7104 = vsel %vm457, %v6787, 0
      %v7107 = vsel %vm457, %v6788, 0
      %v7110 = vsel %vm457, %v6789, 0
      %v7113 = vsel %vm457, %v6790, 0
      %v7116 = vsel %vm457, %v6791, 0
      %v7119 = vsel %vm457, %v6792, 0
      %v7122 = vsel %vm457, %v6793, 0
      %v7125 = vsel %vm457, %v6794, 0
      %v7128 = vsel %vm457, %v6795, 0
      %v7131 = vsel %vm457, %v6796, 0
      %v7134 = vsel %vm457, %v6797, 0
      %v7137 = vsel %vm457, %v6798, 0
      %v7140 = vsel %vm457, %v6799, 0
      %v7143 = vsel %vm457, %v6800, 0
      %v7146 = vsel %vm457, %v6801, 0
      %v7149 = vsel %vm457, %v6802, 0
      %v7152 = vsel %vm457, %v6803, 0
      %v7155 = vsel %vm457, %v6804, 0
      %v7158 = vsel %vm457, %v6805, 0
      %v7161 = vsel %vm457, %v6806, 0
      %v7164 = vsel %vm457, %v6807, 0
      %v7167 = vsel %vm457, %v6808, 0
      %v7170 = vsel %vm457, %v6809, 0
      %v7173 = vsel %vm457, %v6810, 0
      %v7176 = vsel %vm457, %v6811, 0
      %v7179 = vsel %vm457, %v6812, 0
      %v7182 = vsel %vm457, %v6813, 0
      %v7185 = vsel %vm457, %v6814, 0
      %v7188 = vsel %vm457, %v6815, 0
      %v7191 = vsel %vm457, %v6816, 0
      %v7194 = vsel %vm457, %v6817, 0
      %v7197 = vsel %vm457, %v6818, 0
      %v7200 = vsel %vm457, %v6819, 0
      %v7203 = vsel %vm457, %v6820, 0
      %v7206 = vsel %vm457, %v6821, 0
      %v7209 = vsel %vm842, %v6823, 0
      %7211 = vmatprep.subr.mxu0 0.0
      %7212 = vmatpush1.msra.mxu0 0.0
      %7213 = vmatprep.subr.mxu0 0.0
      %7214 = vmatpush1.msra.mxu0 0.0
      %7215 = vmatprep.subr.mxu0 0.0
      %7216 = vmatpush1.msra.mxu0 0.0
      %7217 = vmatprep.subr.mxu0 0.0
      %7218 = vmatpush1.msra.mxu0 0.0
      %7219 = vmatprep.subr.mxu0 0.0
      %7220 = vmatpush1.msra.mxu0 0.0
      %7221 = vmatprep.subr.mxu0 0.0
      %7222 = vmatpush1.msra.mxu0 0.0
      %7223 = vmatprep.subr.mxu0 0.0
      %7224 = vmatpush1.msra.mxu0 0.0
      %7225 = vmatprep.subr.mxu0 0.0
      %7226 = vmatpush1.msra.mxu0 0.0
      %7227 = vmatprep.subr.mxu0 0.0
      %7228 = vmatpush1.msra.mxu0 0.0
      %7229 = vmatprep.subr.mxu0 0.0
      %7230 = vmatpush1.msra.mxu0 0.0
      %7231 = vmatprep.subr.mxu0 0.0
      %7232 = vmatpush1.msra.mxu0 0.0
      %7233 = vmatprep.subr.mxu0 0.0
      %7234 = vmatpush1.msra.mxu0 0.0
      %7235 = vmatprep.subr.mxu0 0.0
      %7236 = vmatpush1.msra.mxu0 0.0
      %7237 = vmatprep.subr.mxu0 0.0
      %7238 = vmatpush1.msra.mxu0 0.0
      %7239 = vmatprep.subr.mxu0 0.0
      %7240 = vmatpush1.msra.mxu0 0.0
      %7241 = vmatprep.subr.mxu0 0.0
      %7242 = vmatpush1.msra.mxu0 %v7209
      %7243 = vmatprep.subr.mxu0 0.0
      %7244 = vmatpush2.msra.mxu0 0.0
      %7245 = vmatprep.subr.mxu0 0.0
      %7246 = vmatpush2.msra.mxu0 0.0
      %7247 = vmatprep.subr.mxu0 0.0
      %7248 = vmatpush2.msra.mxu0 0.0
      %7249 = vmatprep.subr.mxu0 0.0
      %7250 = vmatpush2.msra.mxu0 0.0
      %7251 = vmatprep.subr.mxu0 0.0
      %7252 = vmatpush2.msra.mxu0 0.0
      %7253 = vmatprep.subr.mxu0 0.0
      %7254 = vmatpush2.msra.mxu0 0.0
      %7255 = vmatprep.subr.mxu0 0.0
      %7256 = vmatpush2.msra.mxu0 0.0
      %7257 = vmatprep.subr.mxu0 0.0
      %7258 = vmatpush2.msra.mxu0 0.0
      %7259 = vmatprep.subr.mxu0 0.0
      %7260 = vmatpush2.msra.mxu0 0.0
      %7261 = vmatprep.subr.mxu0 0.0
      %7262 = vmatpush2.msra.mxu0 0.0
      %7263 = vmatprep.subr.mxu0 0.0
      %7264 = vmatpush2.msra.mxu0 0.0
      %7265 = vmatprep.subr.mxu0 0.0
      %7266 = vmatpush2.msra.mxu0 0.0
      %7267 = vmatprep.subr.mxu0 0.0
      %7268 = vmatpush2.msra.mxu0 0.0
      %7269 = vmatprep.subr.mxu0 0.0
      %7270 = vmatpush2.msra.mxu0 0.0
      %7271 = vmatprep.subr.mxu0 0.0
      %7272 = vmatpush2.msra.mxu0 0.0
      %7273 = vmatprep.subr.mxu0 0.0
      %7274 = vmatpush2.msra.mxu0 0.0
      %7275 = vmatprep.mubr.f32.mxu0 0.0
      %7276 = vmatmul.mubr.f32.gmra.mxu0 %v6825
      %v7277 = vpop.f32.mrf.mxu0
      %v7278 = vadd.f32 0.0, %v7277
      %v7279 = vpop.f32.mrf.mxu0
      %7280 = vmatprep.mubr.f32.mxu0 0.0
      %7281 = vmatmul.mubr.f32.gmra.mxu0 %v6828
      %v7282 = vpop.f32.mrf.mxu0
      %v7283 = vadd.f32 0.0, %v7282
      %v7284 = vpop.f32.mrf.mxu0
      %7285 = vmatprep.mubr.f32.mxu0 0.0
      %7286 = vmatmul.mubr.f32.gmra.mxu0 %v6831
      %v7287 = vpop.f32.mrf.mxu0
      %v7288 = vadd.f32 0.0, %v7287
      %v7289 = vpop.f32.mrf.mxu0
      %7290 = vmatprep.mubr.f32.mxu0 0.0
      %7291 = vmatmul.mubr.f32.gmra.mxu0 %v6834
      %v7292 = vpop.f32.mrf.mxu0
      %v7293 = vadd.f32 0.0, %v7292
      %v7294 = vpop.f32.mrf.mxu0
      %7295 = vmatprep.mubr.f32.mxu0 0.0
      %7296 = vmatmul.mubr.f32.gmra.mxu0 %v6837
      %v7297 = vpop.f32.mrf.mxu0
      %v7298 = vadd.f32 0.0, %v7297
      %v7299 = vpop.f32.mrf.mxu0
      %7300 = vmatprep.mubr.f32.mxu0 0.0
      %7301 = vmatmul.mubr.f32.gmra.mxu0 %v6840
      %v7302 = vpop.f32.mrf.mxu0
      %v7303 = vadd.f32 0.0, %v7302
      %v7304 = vpop.f32.mrf.mxu0
      %7305 = vmatprep.mubr.f32.mxu0 0.0
      %7306 = vmatmul.mubr.f32.gmra.mxu0 %v6843
      %v7307 = vpop.f32.mrf.mxu0
      %v7308 = vadd.f32 0.0, %v7307
      %v7309 = vpop.f32.mrf.mxu0
      %7310 = vmatprep.mubr.f32.mxu0 0.0
      %7311 = vmatmul.mubr.f32.gmra.mxu0 %v6846
      %v7312 = vpop.f32.mrf.mxu0
      %v7313 = vadd.f32 0.0, %v7312
      %v7314 = vpop.f32.mrf.mxu0
      %7315 = vmatprep.mubr.f32.mxu0 0.0
      %7316 = vmatmul.mubr.f32.gmra.mxu0 %v6849
      %v7317 = vpop.f32.mrf.mxu0
      %v7318 = vadd.f32 0.0, %v7317
      %v7319 = vpop.f32.mrf.mxu0
      %7320 = vmatprep.mubr.f32.mxu0 0.0
      %7321 = vmatmul.mubr.f32.gmra.mxu0 %v6852
      %v7322 = vpop.f32.mrf.mxu0
      %v7323 = vadd.f32 0.0, %v7322
      %v7324 = vpop.f32.mrf.mxu0
      %7325 = vmatprep.mubr.f32.mxu0 0.0
      %7326 = vmatmul.mubr.f32.gmra.mxu0 %v6855
      %v7327 = vpop.f32.mrf.mxu0
      %v7328 = vadd.f32 0.0, %v7327
      %v7329 = vpop.f32.mrf.mxu0
      %7330 = vmatprep.mubr.f32.mxu0 0.0
      %7331 = vmatmul.mubr.f32.gmra.mxu0 %v6858
      %v7332 = vpop.f32.mrf.mxu0
      %v7333 = vadd.f32 0.0, %v7332
      %v7334 = vpop.f32.mrf.mxu0
      %7335 = vmatprep.mubr.f32.mxu0 0.0
      %7336 = vmatmul.mubr.f32.gmra.mxu0 %v6861
      %v7337 = vpop.f32.mrf.mxu0
      %v7338 = vadd.f32 0.0, %v7337
      %v7339 = vpop.f32.mrf.mxu0
      %7340 = vmatprep.mubr.f32.mxu0 0.0
      %7341 = vmatmul.mubr.f32.gmra.mxu0 %v6864
      %v7342 = vpop.f32.mrf.mxu0
      %v7343 = vadd.f32 0.0, %v7342
      %v7344 = vpop.f32.mrf.mxu0
      %7345 = vmatprep.mubr.f32.mxu0 0.0
      %7346 = vmatmul.mubr.f32.gmra.mxu0 %v6867
      %v7347 = vpop.f32.mrf.mxu0
      %v7348 = vadd.f32 0.0, %v7347
      %v7349 = vpop.f32.mrf.mxu0
      %7350 = vmatprep.mubr.f32.mxu0 0.0
      %7351 = vmatmul.mubr.f32.gmra.mxu0 %v6870
      %v7352 = vpop.f32.mrf.mxu0
      %v7353 = vadd.f32 0.0, %v7352
      %v7354 = vpop.f32.mrf.mxu0
      %7355 = vmatprep.mubr.f32.mxu0 0.0
      %7356 = vmatmul.mubr.f32.gmra.mxu0 %v6873
      %v7357 = vpop.f32.mrf.mxu0
      %v7358 = vadd.f32 0.0, %v7357
      %v7359 = vpop.f32.mrf.mxu0
      %7360 = vmatprep.mubr.f32.mxu0 0.0
      %7361 = vmatmul.mubr.f32.gmra.mxu0 %v6876
      %v7362 = vpop.f32.mrf.mxu0
      %v7363 = vadd.f32 0.0, %v7362
      %v7364 = vpop.f32.mrf.mxu0
      %7365 = vmatprep.mubr.f32.mxu0 0.0
      %7366 = vmatmul.mubr.f32.gmra.mxu0 %v6879
      %v7367 = vpop.f32.mrf.mxu0
      %v7368 = vadd.f32 0.0, %v7367
      %v7369 = vpop.f32.mrf.mxu0
      %7370 = vmatprep.mubr.f32.mxu0 0.0
      %7371 = vmatmul.mubr.f32.gmra.mxu0 %v6882
      %v7372 = vpop.f32.mrf.mxu0
      %v7373 = vadd.f32 0.0, %v7372
      %v7374 = vpop.f32.mrf.mxu0
      %7375 = vmatprep.mubr.f32.mxu0 0.0
      %7376 = vmatmul.mubr.f32.gmra.mxu0 %v6885
      %v7377 = vpop.f32.mrf.mxu0
      %v7378 = vadd.f32 0.0, %v7377
      %v7379 = vpop.f32.mrf.mxu0
      %7380 = vmatprep.mubr.f32.mxu0 0.0
      %7381 = vmatmul.mubr.f32.gmra.mxu0 %v6888
      %v7382 = vpop.f32.mrf.mxu0
      %v7383 = vadd.f32 0.0, %v7382
      %v7384 = vpop.f32.mrf.mxu0
      %7385 = vmatprep.mubr.f32.mxu0 0.0
      %7386 = vmatmul.mubr.f32.gmra.mxu0 %v6891
      %v7387 = vpop.f32.mrf.mxu0
      %v7388 = vadd.f32 0.0, %v7387
      %v7389 = vpop.f32.mrf.mxu0
      %7390 = vmatprep.mubr.f32.mxu0 0.0
      %7391 = vmatmul.mubr.f32.gmra.mxu0 %v6894
      %v7392 = vpop.f32.mrf.mxu0
      %v7393 = vadd.f32 0.0, %v7392
      %v7394 = vpop.f32.mrf.mxu0
      %7395 = vmatprep.mubr.f32.mxu0 0.0
      %7396 = vmatmul.mubr.f32.gmra.mxu0 %v6897
      %v7397 = vpop.f32.mrf.mxu0
      %v7398 = vadd.f32 0.0, %v7397
      %v7399 = vpop.f32.mrf.mxu0
      %7400 = vmatprep.mubr.f32.mxu0 0.0
      %7401 = vmatmul.mubr.f32.gmra.mxu0 %v6900
      %v7402 = vpop.f32.mrf.mxu0
      %v7403 = vadd.f32 0.0, %v7402
      %v7404 = vpop.f32.mrf.mxu0
      %7405 = vmatprep.mubr.f32.mxu0 0.0
      %7406 = vmatmul.mubr.f32.gmra.mxu0 %v6903
      %v7407 = vpop.f32.mrf.mxu0
      %v7408 = vadd.f32 0.0, %v7407
      %v7409 = vpop.f32.mrf.mxu0
      %7410 = vmatprep.mubr.f32.mxu0 0.0
      %7411 = vmatmul.mubr.f32.gmra.mxu0 %v6906
      %v7412 = vpop.f32.mrf.mxu0
      %v7413 = vadd.f32 0.0, %v7412
      %v7414 = vpop.f32.mrf.mxu0
      %7415 = vmatprep.mubr.f32.mxu0 0.0
      %7416 = vmatmul.mubr.f32.gmra.mxu0 %v6909
      %v7417 = vpop.f32.mrf.mxu0
      %v7418 = vadd.f32 0.0, %v7417
      %v7419 = vpop.f32.mrf.mxu0
      %7420 = vmatprep.mubr.f32.mxu0 0.0
      %7421 = vmatmul.mubr.f32.gmra.mxu0 %v6912
      %v7422 = vpop.f32.mrf.mxu0
      %v7423 = vadd.f32 0.0, %v7422
      %v7424 = vpop.f32.mrf.mxu0
      %7425 = vmatprep.mubr.f32.mxu0 0.0
      %7426 = vmatmul.mubr.f32.gmra.mxu0 %v6915
      %v7427 = vpop.f32.mrf.mxu0
      %v7428 = vadd.f32 0.0, %v7427
      %v7429 = vpop.f32.mrf.mxu0
      %7430 = vmatprep.mubr.f32.mxu0 0.0
      %7431 = vmatmul.mubr.f32.gmra.mxu0 %v6918
      %v7432 = vpop.f32.mrf.mxu0
      %v7433 = vadd.f32 0.0, %v7432
      %v7434 = vpop.f32.mrf.mxu0
      %7435 = vmatprep.mubr.f32.mxu0 0.0
      %7436 = vmatmul.mubr.f32.gmra.mxu0 %v6921
      %v7437 = vpop.f32.mrf.mxu0
      %v7438 = vadd.f32 0.0, %v7437
      %v7439 = vpop.f32.mrf.mxu0
      %7440 = vmatprep.mubr.f32.mxu0 0.0
      %7441 = vmatmul.mubr.f32.gmra.mxu0 %v6924
      %v7442 = vpop.f32.mrf.mxu0
      %v7443 = vadd.f32 0.0, %v7442
      %v7444 = vpop.f32.mrf.mxu0
      %7445 = vmatprep.mubr.f32.mxu0 0.0
      %7446 = vmatmul.mubr.f32.gmra.mxu0 %v6927
      %v7447 = vpop.f32.mrf.mxu0
      %v7448 = vadd.f32 0.0, %v7447
      %v7449 = vpop.f32.mrf.mxu0
      %7450 = vmatprep.mubr.f32.mxu0 0.0
      %7451 = vmatmul.mubr.f32.gmra.mxu0 %v6930
      %v7452 = vpop.f32.mrf.mxu0
      %v7453 = vadd.f32 0.0, %v7452
      %v7454 = vpop.f32.mrf.mxu0
      %7455 = vmatprep.mubr.f32.mxu0 0.0
      %7456 = vmatmul.mubr.f32.gmra.mxu0 %v6933
      %v7457 = vpop.f32.mrf.mxu0
      %v7458 = vadd.f32 0.0, %v7457
      %v7459 = vpop.f32.mrf.mxu0
      %7460 = vmatprep.mubr.f32.mxu0 0.0
      %7461 = vmatmul.mubr.f32.gmra.mxu0 %v6936
      %v7462 = vpop.f32.mrf.mxu0
      %v7463 = vadd.f32 0.0, %v7462
      %v7464 = vpop.f32.mrf.mxu0
      %7465 = vmatprep.mubr.f32.mxu0 0.0
      %7466 = vmatmul.mubr.f32.gmra.mxu0 %v6939
      %v7467 = vpop.f32.mrf.mxu0
      %v7468 = vadd.f32 0.0, %v7467
      %v7469 = vpop.f32.mrf.mxu0
      %7470 = vmatprep.mubr.f32.mxu0 0.0
      %7471 = vmatmul.mubr.f32.gmra.mxu0 %v6942
      %v7472 = vpop.f32.mrf.mxu0
      %v7473 = vadd.f32 0.0, %v7472
      %v7474 = vpop.f32.mrf.mxu0
      %7475 = vmatprep.mubr.f32.mxu0 0.0
      %7476 = vmatmul.mubr.f32.gmra.mxu0 %v6945
      %v7477 = vpop.f32.mrf.mxu0
      %v7478 = vadd.f32 0.0, %v7477
      %v7479 = vpop.f32.mrf.mxu0
      %7480 = vmatprep.mubr.f32.mxu0 0.0
      %7481 = vmatmul.mubr.f32.gmra.mxu0 %v6948
      %v7482 = vpop.f32.mrf.mxu0
      %v7483 = vadd.f32 0.0, %v7482
      %v7484 = vpop.f32.mrf.mxu0
      %7485 = vmatprep.mubr.f32.mxu0 0.0
      %7486 = vmatmul.mubr.f32.gmra.mxu0 %v6951
      %v7487 = vpop.f32.mrf.mxu0
      %v7488 = vadd.f32 0.0, %v7487
      %v7489 = vpop.f32.mrf.mxu0
      %7490 = vmatprep.mubr.f32.mxu0 0.0
      %7491 = vmatmul.mubr.f32.gmra.mxu0 %v6954
      %v7492 = vpop.f32.mrf.mxu0
      %v7493 = vadd.f32 0.0, %v7492
      %v7494 = vpop.f32.mrf.mxu0
      %7495 = vmatprep.mubr.f32.mxu0 0.0
      %7496 = vmatmul.mubr.f32.gmra.mxu0 %v6957
      %v7497 = vpop.f32.mrf.mxu0
      %v7498 = vadd.f32 0.0, %v7497
      %v7499 = vpop.f32.mrf.mxu0
      %7500 = vmatprep.mubr.f32.mxu0 0.0
      %7501 = vmatmul.mubr.f32.gmra.mxu0 %v6960
      %v7502 = vpop.f32.mrf.mxu0
      %v7503 = vadd.f32 0.0, %v7502
      %v7504 = vpop.f32.mrf.mxu0
      %7505 = vmatprep.mubr.f32.mxu0 0.0
      %7506 = vmatmul.mubr.f32.gmra.mxu0 %v6963
      %v7507 = vpop.f32.mrf.mxu0
      %v7508 = vadd.f32 0.0, %v7507
      %v7509 = vpop.f32.mrf.mxu0
      %7510 = vmatprep.mubr.f32.mxu0 0.0
      %7511 = vmatmul.mubr.f32.gmra.mxu0 %v6966
      %v7512 = vpop.f32.mrf.mxu0
      %v7513 = vadd.f32 0.0, %v7512
      %v7514 = vpop.f32.mrf.mxu0
      %7515 = vmatprep.mubr.f32.mxu0 0.0
      %7516 = vmatmul.mubr.f32.gmra.mxu0 %v6969
      %v7517 = vpop.f32.mrf.mxu0
      %v7518 = vadd.f32 0.0, %v7517
      %v7519 = vpop.f32.mrf.mxu0
      %7520 = vmatprep.mubr.f32.mxu0 0.0
      %7521 = vmatmul.mubr.f32.gmra.mxu0 %v6972
      %v7522 = vpop.f32.mrf.mxu0
      %v7523 = vadd.f32 0.0, %v7522
      %v7524 = vpop.f32.mrf.mxu0
      %7525 = vmatprep.mubr.f32.mxu0 0.0
      %7526 = vmatmul.mubr.f32.gmra.mxu0 %v6975
      %v7527 = vpop.f32.mrf.mxu0
      %v7528 = vadd.f32 0.0, %v7527
      %v7529 = vpop.f32.mrf.mxu0
      %7530 = vmatprep.mubr.f32.mxu0 0.0
      %7531 = vmatmul.mubr.f32.gmra.mxu0 %v6978
      %v7532 = vpop.f32.mrf.mxu0
      %v7533 = vadd.f32 0.0, %v7532
      %v7534 = vpop.f32.mrf.mxu0
      %7535 = vmatprep.mubr.f32.mxu0 0.0
      %7536 = vmatmul.mubr.f32.gmra.mxu0 %v6981
      %v7537 = vpop.f32.mrf.mxu0
      %v7538 = vadd.f32 0.0, %v7537
      %v7539 = vpop.f32.mrf.mxu0
      %7540 = vmatprep.mubr.f32.mxu0 0.0
      %7541 = vmatmul.mubr.f32.gmra.mxu0 %v6984
      %v7542 = vpop.f32.mrf.mxu0
      %v7543 = vadd.f32 0.0, %v7542
      %v7544 = vpop.f32.mrf.mxu0
      %7545 = vmatprep.mubr.f32.mxu0 0.0
      %7546 = vmatmul.mubr.f32.gmra.mxu0 %v6987
      %v7547 = vpop.f32.mrf.mxu0
      %v7548 = vadd.f32 0.0, %v7547
      %v7549 = vpop.f32.mrf.mxu0
      %7550 = vmatprep.mubr.f32.mxu0 0.0
      %7551 = vmatmul.mubr.f32.gmra.mxu0 %v6990
      %v7552 = vpop.f32.mrf.mxu0
      %v7553 = vadd.f32 0.0, %v7552
      %v7554 = vpop.f32.mrf.mxu0
      %7555 = vmatprep.mubr.f32.mxu0 0.0
      %7556 = vmatmul.mubr.f32.gmra.mxu0 %v6993
      %v7557 = vpop.f32.mrf.mxu0
      %v7558 = vadd.f32 0.0, %v7557
      %v7559 = vpop.f32.mrf.mxu0
      %7560 = vmatprep.mubr.f32.mxu0 0.0
      %7561 = vmatmul.mubr.f32.gmra.mxu0 %v6996
      %v7562 = vpop.f32.mrf.mxu0
      %v7563 = vadd.f32 0.0, %v7562
      %v7564 = vpop.f32.mrf.mxu0
      %7565 = vmatprep.mubr.f32.mxu0 0.0
      %7566 = vmatmul.mubr.f32.gmra.mxu0 %v6999
      %v7567 = vpop.f32.mrf.mxu0
      %v7568 = vadd.f32 0.0, %v7567
      %v7569 = vpop.f32.mrf.mxu0
      %7570 = vmatprep.mubr.f32.mxu0 0.0
      %7571 = vmatmul.mubr.f32.gmra.mxu0 %v7002
      %v7572 = vpop.f32.mrf.mxu0
      %v7573 = vadd.f32 0.0, %v7572
      %v7574 = vpop.f32.mrf.mxu0
      %7575 = vmatprep.mubr.f32.mxu0 0.0
      %7576 = vmatmul.mubr.f32.gmra.mxu0 %v7005
      %v7577 = vpop.f32.mrf.mxu0
      %v7578 = vadd.f32 0.0, %v7577
      %v7579 = vpop.f32.mrf.mxu0
      %7580 = vmatprep.mubr.f32.mxu0 0.0
      %7581 = vmatmul.mubr.f32.gmra.mxu0 %v7008
      %v7582 = vpop.f32.mrf.mxu0
      %v7583 = vadd.f32 0.0, %v7582
      %v7584 = vpop.f32.mrf.mxu0
      %7585 = vmatprep.mubr.f32.mxu0 0.0
      %7586 = vmatmul.mubr.f32.gmra.mxu0 %v7011
      %v7587 = vpop.f32.mrf.mxu0
      %v7588 = vadd.f32 0.0, %v7587
      %v7589 = vpop.f32.mrf.mxu0
      %7590 = vmatprep.mubr.f32.mxu0 0.0
      %7591 = vmatmul.mubr.f32.gmra.mxu0 %v7014
      %v7592 = vpop.f32.mrf.mxu0
      %v7593 = vadd.f32 0.0, %v7592
      %v7594 = vpop.f32.mrf.mxu0
      %7595 = vmatprep.mubr.f32.mxu0 0.0
      %7596 = vmatmul.mubr.f32.gmra.mxu0 %v7017
      %v7597 = vpop.f32.mrf.mxu0
      %v7598 = vadd.f32 0.0, %v7597
      %v7599 = vpop.f32.mrf.mxu0
      %7600 = vmatprep.mubr.f32.mxu0 0.0
      %7601 = vmatmul.mubr.f32.gmra.mxu0 %v7020
      %v7602 = vpop.f32.mrf.mxu0
      %v7603 = vadd.f32 0.0, %v7602
      %v7604 = vpop.f32.mrf.mxu0
      %7605 = vmatprep.mubr.f32.mxu0 0.0
      %7606 = vmatmul.mubr.f32.gmra.mxu0 %v7023
      %v7607 = vpop.f32.mrf.mxu0
      %v7608 = vadd.f32 0.0, %v7607
      %v7609 = vpop.f32.mrf.mxu0
      %7610 = vmatprep.mubr.f32.mxu0 0.0
      %7611 = vmatmul.mubr.f32.gmra.mxu0 %v7026
      %v7612 = vpop.f32.mrf.mxu0
      %v7613 = vadd.f32 0.0, %v7612
      %v7614 = vpop.f32.mrf.mxu0
      %7615 = vmatprep.mubr.f32.mxu0 0.0
      %7616 = vmatmul.mubr.f32.gmra.mxu0 %v7029
      %v7617 = vpop.f32.mrf.mxu0
      %v7618 = vadd.f32 0.0, %v7617
      %v7619 = vpop.f32.mrf.mxu0
      %7620 = vmatprep.mubr.f32.mxu0 0.0
      %7621 = vmatmul.mubr.f32.gmra.mxu0 %v7032
      %v7622 = vpop.f32.mrf.mxu0
      %v7623 = vadd.f32 0.0, %v7622
      %v7624 = vpop.f32.mrf.mxu0
      %7625 = vmatprep.mubr.f32.mxu0 0.0
      %7626 = vmatmul.mubr.f32.gmra.mxu0 %v7035
      %v7627 = vpop.f32.mrf.mxu0
      %v7628 = vadd.f32 0.0, %v7627
      %v7629 = vpop.f32.mrf.mxu0
      %7630 = vmatprep.mubr.f32.mxu0 0.0
      %7631 = vmatmul.mubr.f32.gmra.mxu0 %v7038
      %v7632 = vpop.f32.mrf.mxu0
      %v7633 = vadd.f32 0.0, %v7632
      %v7634 = vpop.f32.mrf.mxu0
      %7635 = vmatprep.mubr.f32.mxu0 0.0
      %7636 = vmatmul.mubr.f32.gmra.mxu0 %v7041
      %v7637 = vpop.f32.mrf.mxu0
      %v7638 = vadd.f32 0.0, %v7637
      %v7639 = vpop.f32.mrf.mxu0
      %7640 = vmatprep.mubr.f32.mxu0 0.0
      %7641 = vmatmul.mubr.f32.gmra.mxu0 %v7044
      %v7642 = vpop.f32.mrf.mxu0
      %v7643 = vadd.f32 0.0, %v7642
      %v7644 = vpop.f32.mrf.mxu0
      %7645 = vmatprep.mubr.f32.mxu0 0.0
      %7646 = vmatmul.mubr.f32.gmra.mxu0 %v7047
      %v7647 = vpop.f32.mrf.mxu0
      %v7648 = vadd.f32 0.0, %v7647
      %v7649 = vpop.f32.mrf.mxu0
      %7650 = vmatprep.mubr.f32.mxu0 0.0
      %7651 = vmatmul.mubr.f32.gmra.mxu0 %v7050
      %v7652 = vpop.f32.mrf.mxu0
      %v7653 = vadd.f32 0.0, %v7652
      %v7654 = vpop.f32.mrf.mxu0
      %7655 = vmatprep.mubr.f32.mxu0 0.0
      %7656 = vmatmul.mubr.f32.gmra.mxu0 %v7053
      %v7657 = vpop.f32.mrf.mxu0
      %v7658 = vadd.f32 0.0, %v7657
      %v7659 = vpop.f32.mrf.mxu0
      %7660 = vmatprep.mubr.f32.mxu0 0.0
      %7661 = vmatmul.mubr.f32.gmra.mxu0 %v7056
      %v7662 = vpop.f32.mrf.mxu0
      %v7663 = vadd.f32 0.0, %v7662
      %v7664 = vpop.f32.mrf.mxu0
      %7665 = vmatprep.mubr.f32.mxu0 0.0
      %7666 = vmatmul.mubr.f32.gmra.mxu0 %v7059
      %v7667 = vpop.f32.mrf.mxu0
      %v7668 = vadd.f32 0.0, %v7667
      %v7669 = vpop.f32.mrf.mxu0
      %7670 = vmatprep.mubr.f32.mxu0 0.0
      %7671 = vmatmul.mubr.f32.gmra.mxu0 %v7062
      %v7672 = vpop.f32.mrf.mxu0
      %v7673 = vadd.f32 0.0, %v7672
      %v7674 = vpop.f32.mrf.mxu0
      %7675 = vmatprep.mubr.f32.mxu0 0.0
      %7676 = vmatmul.mubr.f32.gmra.mxu0 %v7065
      %v7677 = vpop.f32.mrf.mxu0
      %v7678 = vadd.f32 0.0, %v7677
      %v7679 = vpop.f32.mrf.mxu0
      %7680 = vmatprep.mubr.f32.mxu0 0.0
      %7681 = vmatmul.mubr.f32.gmra.mxu0 %v7068
      %v7682 = vpop.f32.mrf.mxu0
      %v7683 = vadd.f32 0.0, %v7682
      %v7684 = vpop.f32.mrf.mxu0
      %7685 = vmatprep.mubr.f32.mxu0 0.0
      %7686 = vmatmul.mubr.f32.gmra.mxu0 %v7071
      %v7687 = vpop.f32.mrf.mxu0
      %v7688 = vadd.f32 0.0, %v7687
      %v7689 = vpop.f32.mrf.mxu0
      %7690 = vmatprep.mubr.f32.mxu0 0.0
      %7691 = vmatmul.mubr.f32.gmra.mxu0 %v7074
      %v7692 = vpop.f32.mrf.mxu0
      %v7693 = vadd.f32 0.0, %v7692
      %v7694 = vpop.f32.mrf.mxu0
      %7695 = vmatprep.mubr.f32.mxu0 0.0
      %7696 = vmatmul.mubr.f32.gmra.mxu0 %v7077
      %v7697 = vpop.f32.mrf.mxu0
      %v7698 = vadd.f32 0.0, %v7697
      %v7699 = vpop.f32.mrf.mxu0
      %7700 = vmatprep.mubr.f32.mxu0 0.0
      %7701 = vmatmul.mubr.f32.gmra.mxu0 %v7080
      %v7702 = vpop.f32.mrf.mxu0
      %v7703 = vadd.f32 0.0, %v7702
      %v7704 = vpop.f32.mrf.mxu0
      %7705 = vmatprep.mubr.f32.mxu0 0.0
      %7706 = vmatmul.mubr.f32.gmra.mxu0 %v7083
      %v7707 = vpop.f32.mrf.mxu0
      %v7708 = vadd.f32 0.0, %v7707
      %v7709 = vpop.f32.mrf.mxu0
      %7710 = vmatprep.mubr.f32.mxu0 0.0
      %7711 = vmatmul.mubr.f32.gmra.mxu0 %v7086
      %v7712 = vpop.f32.mrf.mxu0
      %v7713 = vadd.f32 0.0, %v7712
      %v7714 = vpop.f32.mrf.mxu0
      %7715 = vmatprep.mubr.f32.mxu0 0.0
      %7716 = vmatmul.mubr.f32.gmra.mxu0 %v7089
      %v7717 = vpop.f32.mrf.mxu0
      %v7718 = vadd.f32 0.0, %v7717
      %v7719 = vpop.f32.mrf.mxu0
      %7720 = vmatprep.mubr.f32.mxu0 0.0
      %7721 = vmatmul.mubr.f32.gmra.mxu0 %v7092
      %v7722 = vpop.f32.mrf.mxu0
      %v7723 = vadd.f32 0.0, %v7722
      %v7724 = vpop.f32.mrf.mxu0
      %7725 = vmatprep.mubr.f32.mxu0 0.0
      %7726 = vmatmul.mubr.f32.gmra.mxu0 %v7095
      %v7727 = vpop.f32.mrf.mxu0
      %v7728 = vadd.f32 0.0, %v7727
      %v7729 = vpop.f32.mrf.mxu0
      %7730 = vmatprep.mubr.f32.mxu0 0.0
      %7731 = vmatmul.mubr.f32.gmra.mxu0 %v7098
      %v7732 = vpop.f32.mrf.mxu0
      %v7733 = vadd.f32 0.0, %v7732
      %v7734 = vpop.f32.mrf.mxu0
      %7735 = vmatprep.mubr.f32.mxu0 0.0
      %7736 = vmatmul.mubr.f32.gmra.mxu0 %v7101
      %v7737 = vpop.f32.mrf.mxu0
      %v7738 = vadd.f32 0.0, %v7737
      %v7739 = vpop.f32.mrf.mxu0
      %7740 = vmatprep.mubr.f32.mxu0 0.0
      %7741 = vmatmul.mubr.f32.gmra.mxu0 %v7104
      %v7742 = vpop.f32.mrf.mxu0
      %v7743 = vadd.f32 0.0, %v7742
      %v7744 = vpop.f32.mrf.mxu0
      %7745 = vmatprep.mubr.f32.mxu0 0.0
      %7746 = vmatmul.mubr.f32.gmra.mxu0 %v7107
      %v7747 = vpop.f32.mrf.mxu0
      %v7748 = vadd.f32 0.0, %v7747
      %v7749 = vpop.f32.mrf.mxu0
      %7750 = vmatprep.mubr.f32.mxu0 0.0
      %7751 = vmatmul.mubr.f32.gmra.mxu0 %v7110
      %v7752 = vpop.f32.mrf.mxu0
      %v7753 = vadd.f32 0.0, %v7752
      %v7754 = vpop.f32.mrf.mxu0
      %7755 = vmatprep.mubr.f32.mxu0 0.0
      %7756 = vmatmul.mubr.f32.gmra.mxu0 %v7113
      %v7757 = vpop.f32.mrf.mxu0
      %v7758 = vadd.f32 0.0, %v7757
      %v7759 = vpop.f32.mrf.mxu0
      %7760 = vmatprep.mubr.f32.mxu0 0.0
      %7761 = vmatmul.mubr.f32.gmra.mxu0 %v7116
      %v7762 = vpop.f32.mrf.mxu0
      %v7763 = vadd.f32 0.0, %v7762
      %v7764 = vpop.f32.mrf.mxu0
      %7765 = vmatprep.mubr.f32.mxu0 0.0
      %7766 = vmatmul.mubr.f32.gmra.mxu0 %v7119
      %v7767 = vpop.f32.mrf.mxu0
      %v7768 = vadd.f32 0.0, %v7767
      %v7769 = vpop.f32.mrf.mxu0
      %7770 = vmatprep.mubr.f32.mxu0 0.0
      %7771 = vmatmul.mubr.f32.gmra.mxu0 %v7122
      %v7772 = vpop.f32.mrf.mxu0
      %v7773 = vadd.f32 0.0, %v7772
      %v7774 = vpop.f32.mrf.mxu0
      %7775 = vmatprep.mubr.f32.mxu0 0.0
      %7776 = vmatmul.mubr.f32.gmra.mxu0 %v7125
      %v7777 = vpop.f32.mrf.mxu0
      %v7778 = vadd.f32 0.0, %v7777
      %v7779 = vpop.f32.mrf.mxu0
      %7780 = vmatprep.mubr.f32.mxu0 0.0
      %7781 = vmatmul.mubr.f32.gmra.mxu0 %v7128
      %v7782 = vpop.f32.mrf.mxu0
      %v7783 = vadd.f32 0.0, %v7782
      %v7784 = vpop.f32.mrf.mxu0
      %7785 = vmatprep.mubr.f32.mxu0 0.0
      %7786 = vmatmul.mubr.f32.gmra.mxu0 %v7131
      %v7787 = vpop.f32.mrf.mxu0
      %v7788 = vadd.f32 0.0, %v7787
      %v7789 = vpop.f32.mrf.mxu0
      %7790 = vmatprep.mubr.f32.mxu0 0.0
      %7791 = vmatmul.mubr.f32.gmra.mxu0 %v7134
      %v7792 = vpop.f32.mrf.mxu0
      %v7793 = vadd.f32 0.0, %v7792
      %v7794 = vpop.f32.mrf.mxu0
      %7795 = vmatprep.mubr.f32.mxu0 0.0
      %7796 = vmatmul.mubr.f32.gmra.mxu0 %v7137
      %v7797 = vpop.f32.mrf.mxu0
      %v7798 = vadd.f32 0.0, %v7797
      %v7799 = vpop.f32.mrf.mxu0
      %7800 = vmatprep.mubr.f32.mxu0 0.0
      %7801 = vmatmul.mubr.f32.gmra.mxu0 %v7140
      %v7802 = vpop.f32.mrf.mxu0
      %v7803 = vadd.f32 0.0, %v7802
      %v7804 = vpop.f32.mrf.mxu0
      %7805 = vmatprep.mubr.f32.mxu0 0.0
      %7806 = vmatmul.mubr.f32.gmra.mxu0 %v7143
      %v7807 = vpop.f32.mrf.mxu0
      %v7808 = vadd.f32 0.0, %v7807
      %v7809 = vpop.f32.mrf.mxu0
      %7810 = vmatprep.mubr.f32.mxu0 0.0
      %7811 = vmatmul.mubr.f32.gmra.mxu0 %v7146
      %v7812 = vpop.f32.mrf.mxu0
      %v7813 = vadd.f32 0.0, %v7812
      %v7814 = vpop.f32.mrf.mxu0
      %7815 = vmatprep.mubr.f32.mxu0 0.0
      %7816 = vmatmul.mubr.f32.gmra.mxu0 %v7149
      %v7817 = vpop.f32.mrf.mxu0
      %v7818 = vadd.f32 0.0, %v7817
      %v7819 = vpop.f32.mrf.mxu0
      %7820 = vmatprep.mubr.f32.mxu0 0.0
      %7821 = vmatmul.mubr.f32.gmra.mxu0 %v7152
      %v7822 = vpop.f32.mrf.mxu0
      %v7823 = vadd.f32 0.0, %v7822
      %v7824 = vpop.f32.mrf.mxu0
      %7825 = vmatprep.mubr.f32.mxu0 0.0
      %7826 = vmatmul.mubr.f32.gmra.mxu0 %v7155
      %v7827 = vpop.f32.mrf.mxu0
      %v7828 = vadd.f32 0.0, %v7827
      %v7829 = vpop.f32.mrf.mxu0
      %7830 = vmatprep.mubr.f32.mxu0 0.0
      %7831 = vmatmul.mubr.f32.gmra.mxu0 %v7158
      %v7832 = vpop.f32.mrf.mxu0
      %v7833 = vadd.f32 0.0, %v7832
      %v7834 = vpop.f32.mrf.mxu0
      %7835 = vmatprep.mubr.f32.mxu0 0.0
      %7836 = vmatmul.mubr.f32.gmra.mxu0 %v7161
      %v7837 = vpop.f32.mrf.mxu0
      %v7838 = vadd.f32 0.0, %v7837
      %v7839 = vpop.f32.mrf.mxu0
      %7840 = vmatprep.mubr.f32.mxu0 0.0
      %7841 = vmatmul.mubr.f32.gmra.mxu0 %v7164
      %v7842 = vpop.f32.mrf.mxu0
      %v7843 = vadd.f32 0.0, %v7842
      %v7844 = vpop.f32.mrf.mxu0
      %7845 = vmatprep.mubr.f32.mxu0 0.0
      %7846 = vmatmul.mubr.f32.gmra.mxu0 %v7167
      %v7847 = vpop.f32.mrf.mxu0
      %v7848 = vadd.f32 0.0, %v7847
      %v7849 = vpop.f32.mrf.mxu0
      %7850 = vmatprep.mubr.f32.mxu0 0.0
      %7851 = vmatmul.mubr.f32.gmra.mxu0 %v7170
      %v7852 = vpop.f32.mrf.mxu0
      %v7853 = vadd.f32 0.0, %v7852
      %v7854 = vpop.f32.mrf.mxu0
      %7855 = vmatprep.mubr.f32.mxu0 0.0
      %7856 = vmatmul.mubr.f32.gmra.mxu0 %v7173
      %v7857 = vpop.f32.mrf.mxu0
      %v7858 = vadd.f32 0.0, %v7857
      %v7859 = vpop.f32.mrf.mxu0
      %7860 = vmatprep.mubr.f32.mxu0 0.0
      %7861 = vmatmul.mubr.f32.gmra.mxu0 %v7176
      %v7862 = vpop.f32.mrf.mxu0
      %v7863 = vadd.f32 0.0, %v7862
      %v7864 = vpop.f32.mrf.mxu0
      %7865 = vmatprep.mubr.f32.mxu0 0.0
      %7866 = vmatmul.mubr.f32.gmra.mxu0 %v7179
      %v7867 = vpop.f32.mrf.mxu0
      %v7868 = vadd.f32 0.0, %v7867
      %v7869 = vpop.f32.mrf.mxu0
      %7870 = vmatprep.mubr.f32.mxu0 0.0
      %7871 = vmatmul.mubr.f32.gmra.mxu0 %v7182
      %v7872 = vpop.f32.mrf.mxu0
      %v7873 = vadd.f32 0.0, %v7872
      %v7874 = vpop.f32.mrf.mxu0
      %7875 = vmatprep.mubr.f32.mxu0 0.0
      %7876 = vmatmul.mubr.f32.gmra.mxu0 %v7185
      %v7877 = vpop.f32.mrf.mxu0
      %v7878 = vadd.f32 0.0, %v7877
      %v7879 = vpop.f32.mrf.mxu0
      %7880 = vmatprep.mubr.f32.mxu0 0.0
      %7881 = vmatmul.mubr.f32.gmra.mxu0 %v7188
      %v7882 = vpop.f32.mrf.mxu0
      %v7883 = vadd.f32 0.0, %v7882
      %v7884 = vpop.f32.mrf.mxu0
      %7885 = vmatprep.mubr.f32.mxu0 0.0
      %7886 = vmatmul.mubr.f32.gmra.mxu0 %v7191
      %v7887 = vpop.f32.mrf.mxu0
      %v7888 = vadd.f32 0.0, %v7887
      %v7889 = vpop.f32.mrf.mxu0
      %7890 = vmatprep.mubr.f32.mxu0 0.0
      %7891 = vmatmul.mubr.f32.gmra.mxu0 %v7194
      %v7892 = vpop.f32.mrf.mxu0
      %v7893 = vadd.f32 0.0, %v7892
      %v7894 = vpop.f32.mrf.mxu0
      %7895 = vmatprep.mubr.f32.mxu0 0.0
      %7896 = vmatmul.mubr.f32.gmra.mxu0 %v7197
      %v7897 = vpop.f32.mrf.mxu0
      %v7898 = vadd.f32 0.0, %v7897
      %v7899 = vpop.f32.mrf.mxu0
      %7900 = vmatprep.mubr.f32.mxu0 0.0
      %7901 = vmatmul.mubr.f32.gmra.mxu0 %v7200
      %v7902 = vpop.f32.mrf.mxu0
      %v7903 = vadd.f32 0.0, %v7902
      %v7904 = vpop.f32.mrf.mxu0
      %7905 = vmatprep.mubr.f32.mxu0 0.0
      %7906 = vmatmul.mubr.f32.gmra.mxu0 %v7203
      %v7907 = vpop.f32.mrf.mxu0
      %v7908 = vadd.f32 0.0, %v7907
      %v7909 = vpop.f32.mrf.mxu0
      %7910 = vmatprep.mubr.f32.mxu0 0.0
      %7911 = vmatmul.mubr.f32.gmra.mxu0 %v7206
      %v7912 = vpop.f32.mrf.mxu0
      %v7913 = vadd.f32 0.0, %v7912
      %v7914 = vpop.f32.mrf.mxu0
      %7915 = vdwg.mxu0
      %v7916 = vadd.f32 %v6566, %v7278
      %v7917 = vadd.f32 %v6567, %v7283
      %v7918 = vadd.f32 %v6568, %v7288
      %v7919 = vadd.f32 %v6569, %v7293
      %v7920 = vadd.f32 %v6570, %v7298
      %v7921 = vadd.f32 %v6571, %v7303
      %v7922 = vadd.f32 %v6572, %v7308
      %v7923 = vadd.f32 %v6573, %v7313
      %v7924 = vadd.f32 %v6574, %v7318
      %v7925 = vadd.f32 %v6575, %v7323
      %v7926 = vadd.f32 %v6576, %v7328
      %v7927 = vadd.f32 %v6577, %v7333
      %v7928 = vadd.f32 %v6578, %v7338
      %v7929 = vadd.f32 %v6579, %v7343
      %v7930 = vadd.f32 %v6580, %v7348
      %v7931 = vadd.f32 %v6581, %v7353
      %v7932 = vadd.f32 %v6582, %v7358
      %v7933 = vadd.f32 %v6583, %v7363
      %v7934 = vadd.f32 %v6584, %v7368
      %v7935 = vadd.f32 %v6585, %v7373
      %v7936 = vadd.f32 %v6586, %v7378
      %v7937 = vadd.f32 %v6587, %v7383
      %v7938 = vadd.f32 %v6588, %v7388
      %v7939 = vadd.f32 %v6589, %v7393
      %v7940 = vadd.f32 %v6590, %v7398
      %v7941 = vadd.f32 %v6591, %v7403
      %v7942 = vadd.f32 %v6592, %v7408
      %v7943 = vadd.f32 %v6593, %v7413
      %v7944 = vadd.f32 %v6594, %v7418
      %v7945 = vadd.f32 %v6595, %v7423
      %v7946 = vadd.f32 %v6596, %v7428
      %v7947 = vadd.f32 %v6597, %v7433
      %v7948 = vadd.f32 %v6598, %v7438
      %v7949 = vadd.f32 %v6599, %v7443
      %v7950 = vadd.f32 %v6600, %v7448
      %v7951 = vadd.f32 %v6601, %v7453
      %v7952 = vadd.f32 %v6602, %v7458
      %v7953 = vadd.f32 %v6603, %v7463
      %v7954 = vadd.f32 %v6604, %v7468
      %v7955 = vadd.f32 %v6605, %v7473
      %v7956 = vadd.f32 %v6606, %v7478
      %v7957 = vadd.f32 %v6607, %v7483
      %v7958 = vadd.f32 %v6608, %v7488
      %v7959 = vadd.f32 %v6609, %v7493
      %v7960 = vadd.f32 %v6610, %v7498
      %v7961 = vadd.f32 %v6611, %v7503
      %v7962 = vadd.f32 %v6612, %v7508
      %v7963 = vadd.f32 %v6613, %v7513
      %v7964 = vadd.f32 %v6614, %v7518
      %v7965 = vadd.f32 %v6615, %v7523
      %v7966 = vadd.f32 %v6616, %v7528
      %v7967 = vadd.f32 %v6617, %v7533
      %v7968 = vadd.f32 %v6618, %v7538
      %v7969 = vadd.f32 %v6619, %v7543
      %v7970 = vadd.f32 %v6620, %v7548
      %v7971 = vadd.f32 %v6621, %v7553
      %v7972 = vadd.f32 %v6622, %v7558
      %v7973 = vadd.f32 %v6623, %v7563
      %v7974 = vadd.f32 %v6624, %v7568
      %v7975 = vadd.f32 %v6625, %v7573
      %v7976 = vadd.f32 %v6626, %v7578
      %v7977 = vadd.f32 %v6627, %v7583
      %v7978 = vadd.f32 %v6628, %v7588
      %v7979 = vadd.f32 %v6629, %v7593
      %v7980 = vadd.f32 %v6630, %v7598
      %v7981 = vadd.f32 %v6631, %v7603
      %v7982 = vadd.f32 %v6632, %v7608
      %v7983 = vadd.f32 %v6633, %v7613
      %v7984 = vadd.f32 %v6634, %v7618
      %v7985 = vadd.f32 %v6635, %v7623
      %v7986 = vadd.f32 %v6636, %v7628
      %v7987 = vadd.f32 %v6637, %v7633
      %v7988 = vadd.f32 %v6638, %v7638
      %v7989 = vadd.f32 %v6639, %v7643
      %v7990 = vadd.f32 %v6640, %v7648
      %v7991 = vadd.f32 %v6641, %v7653
      %v7992 = vadd.f32 %v6642, %v7658
      %v7993 = vadd.f32 %v6643, %v7663
      %v7994 = vadd.f32 %v6644, %v7668
      %v7995 = vadd.f32 %v6645, %v7673
      %v7996 = vadd.f32 %v6646, %v7678
      %v7997 = vadd.f32 %v6647, %v7683
      %v7998 = vadd.f32 %v6648, %v7688
      %v7999 = vadd.f32 %v6649, %v7693
      %v8000 = vadd.f32 %v6650, %v7698
      %v8001 = vadd.f32 %v6651, %v7703
      %v8002 = vadd.f32 %v6652, %v7708
      %v8003 = vadd.f32 %v6653, %v7713
      %v8004 = vadd.f32 %v6654, %v7718
      %v8005 = vadd.f32 %v6655, %v7723
      %v8006 = vadd.f32 %v6656, %v7728
      %v8007 = vadd.f32 %v6657, %v7733
      %v8008 = vadd.f32 %v6658, %v7738
      %v8009 = vadd.f32 %v6659, %v7743
      %v8010 = vadd.f32 %v6660, %v7748
      %v8011 = vadd.f32 %v6661, %v7753
      %v8012 = vadd.f32 %v6662, %v7758
      %v8013 = vadd.f32 %v6663, %v7763
      %v8014 = vadd.f32 %v6664, %v7768
      %v8015 = vadd.f32 %v6665, %v7773
      %v8016 = vadd.f32 %v6666, %v7778
      %v8017 = vadd.f32 %v6667, %v7783
      %v8018 = vadd.f32 %v6668, %v7788
      %v8019 = vadd.f32 %v6669, %v7793
      %v8020 = vadd.f32 %v6670, %v7798
      %v8021 = vadd.f32 %v6671, %v7803
      %v8022 = vadd.f32 %v6672, %v7808
      %v8023 = vadd.f32 %v6673, %v7813
      %v8024 = vadd.f32 %v6674, %v7818
      %v8025 = vadd.f32 %v6675, %v7823
      %v8026 = vadd.f32 %v6676, %v7828
      %v8027 = vadd.f32 %v6677, %v7833
      %v8028 = vadd.f32 %v6678, %v7838
      %v8029 = vadd.f32 %v6679, %v7843
      %v8030 = vadd.f32 %v6680, %v7848
      %v8031 = vadd.f32 %v6681, %v7853
      %v8032 = vadd.f32 %v6682, %v7858
      %v8033 = vadd.f32 %v6683, %v7863
      %v8034 = vadd.f32 %v6684, %v7868
      %v8035 = vadd.f32 %v6685, %v7873
      %v8036 = vadd.f32 %v6686, %v7878
      %v8037 = vadd.f32 %v6687, %v7883
      %v8038 = vadd.f32 %v6688, %v7888
      %v8039 = vadd.f32 %v6689, %v7893
      %v8040 = vadd.f32 %v6690, %v7898
      %v8041 = vadd.f32 %v6691, %v7903
      %v8042 = vadd.f32 %v6692, %v7908
      %v8043 = vadd.f32 %v6693, %v7913
      %s8044 = scalar_lea.vmem %s192, 80
      %v8045 = vld [vmem:[%s8044] sm:$0xff]
      %v8046 = vld [vmem:[%s8044 + $0x8] sm:$0xff]
      %v8047 = vld [vmem:[%s8044 + $0x10] sm:$0xff]
      %v8048 = vld [vmem:[%s8044 + $0x18] sm:$0xff]
      %v8049 = vld [vmem:[%s8044 + $0x28] sm:$0xff]
      %v8050 = vld [vmem:[%s8044 + $0x30] sm:$0xff]
      %v8051 = vld [vmem:[%s8044 + $0x38] sm:$0xff]
      %v8052 = vld [vmem:[%s8044 + $0x40] sm:$0xff]
      %v8053 = vld [vmem:[%s8044 + $0x50] sm:$0xff]
      %v8054 = vld [vmem:[%s8044 + $0x58] sm:$0xff]
      %v8055 = vld [vmem:[%s8044 + $0x60] sm:$0xff]
      %v8056 = vld [vmem:[%s8044 + $0x68] sm:$0xff]
      %v8057 = vld [vmem:[%s8044 + $0x78] sm:$0xff]
      %v8058 = vld [vmem:[%s8044 + $0x80] sm:$0xff]
      %v8059 = vld [vmem:[%s8044 + $0x88] sm:$0xff]
      %v8060 = vld [vmem:[%s8044 + $0x90] sm:$0xff]
      %v8061 = vld [vmem:[%s8044 + $0xa0] sm:$0xff]
      %v8062 = vld [vmem:[%s8044 + $0xa8] sm:$0xff]
      %v8063 = vld [vmem:[%s8044 + $0xb0] sm:$0xff]
      %v8064 = vld [vmem:[%s8044 + $0xb8] sm:$0xff]
      %v8065 = vld [vmem:[%s8044 + $0xc8] sm:$0xff]
      %v8066 = vld [vmem:[%s8044 + $0xd0] sm:$0xff]
      %v8067 = vld [vmem:[%s8044 + $0xd8] sm:$0xff]
      %v8068 = vld [vmem:[%s8044 + $0xe0] sm:$0xff]
      %v8069 = vld [vmem:[%s8044 + $0xf0] sm:$0xff]
      %v8070 = vld [vmem:[%s8044 + $0xf8] sm:$0xff]
      %v8071 = vld [vmem:[%s8044 + $0x100] sm:$0xff]
      %v8072 = vld [vmem:[%s8044 + $0x108] sm:$0xff]
      %v8073 = vld [vmem:[%s8044 + $0x118] sm:$0xff]
      %v8074 = vld [vmem:[%s8044 + $0x120] sm:$0xff]
      %v8075 = vld [vmem:[%s8044 + $0x128] sm:$0xff]
      %v8076 = vld [vmem:[%s8044 + $0x130] sm:$0xff]
      %v8077 = vld [vmem:[%s8044 + $0x140] sm:$0xff]
      %v8078 = vld [vmem:[%s8044 + $0x148] sm:$0xff]
      %v8079 = vld [vmem:[%s8044 + $0x150] sm:$0xff]
      %v8080 = vld [vmem:[%s8044 + $0x158] sm:$0xff]
      %v8081 = vld [vmem:[%s8044 + $0x168] sm:$0xff]
      %v8082 = vld [vmem:[%s8044 + $0x170] sm:$0xff]
      %v8083 = vld [vmem:[%s8044 + $0x178] sm:$0xff]
      %v8084 = vld [vmem:[%s8044 + $0x180] sm:$0xff]
      %v8085 = vld [vmem:[%s8044 + $0x190] sm:$0xff]
      %v8086 = vld [vmem:[%s8044 + $0x198] sm:$0xff]
      %v8087 = vld [vmem:[%s8044 + $0x1a0] sm:$0xff]
      %v8088 = vld [vmem:[%s8044 + $0x1a8] sm:$0xff]
      %v8089 = vld [vmem:[%s8044 + $0x1b8] sm:$0xff]
      %v8090 = vld [vmem:[%s8044 + $0x1c0] sm:$0xff]
      %v8091 = vld [vmem:[%s8044 + $0x1c8] sm:$0xff]
      %v8092 = vld [vmem:[%s8044 + $0x1d0] sm:$0xff]
      %v8093 = vld [vmem:[%s8044 + $0x1e0] sm:$0xff]
      %v8094 = vld [vmem:[%s8044 + $0x1e8] sm:$0xff]
      %v8095 = vld [vmem:[%s8044 + $0x1f0] sm:$0xff]
      %v8096 = vld [vmem:[%s8044 + $0x1f8] sm:$0xff]
      %v8097 = vld [vmem:[%s8044 + $0x208] sm:$0xff]
      %v8098 = vld [vmem:[%s8044 + $0x210] sm:$0xff]
      %v8099 = vld [vmem:[%s8044 + $0x218] sm:$0xff]
      %v8100 = vld [vmem:[%s8044 + $0x220] sm:$0xff]
      %v8101 = vld [vmem:[%s8044 + $0x230] sm:$0xff]
      %v8102 = vld [vmem:[%s8044 + $0x238] sm:$0xff]
      %v8103 = vld [vmem:[%s8044 + $0x240] sm:$0xff]
      %v8104 = vld [vmem:[%s8044 + $0x248] sm:$0xff]
      %v8105 = vld [vmem:[%s8044 + $0x258] sm:$0xff]
      %v8106 = vld [vmem:[%s8044 + $0x260] sm:$0xff]
      %v8107 = vld [vmem:[%s8044 + $0x268] sm:$0xff]
      %v8108 = vld [vmem:[%s8044 + $0x270] sm:$0xff]
      %v8109 = vld [vmem:[%s8044 + $0x280] sm:$0xff]
      %v8110 = vld [vmem:[%s8044 + $0x288] sm:$0xff]
      %v8111 = vld [vmem:[%s8044 + $0x290] sm:$0xff]
      %v8112 = vld [vmem:[%s8044 + $0x298] sm:$0xff]
      %v8113 = vld [vmem:[%s8044 + $0x2a8] sm:$0xff]
      %v8114 = vld [vmem:[%s8044 + $0x2b0] sm:$0xff]
      %v8115 = vld [vmem:[%s8044 + $0x2b8] sm:$0xff]
      %v8116 = vld [vmem:[%s8044 + $0x2c0] sm:$0xff]
      %v8117 = vld [vmem:[%s8044 + $0x2d0] sm:$0xff]
      %v8118 = vld [vmem:[%s8044 + $0x2d8] sm:$0xff]
      %v8119 = vld [vmem:[%s8044 + $0x2e0] sm:$0xff]
      %v8120 = vld [vmem:[%s8044 + $0x2e8] sm:$0xff]
      %v8121 = vld [vmem:[%s8044 + $0x2f8] sm:$0xff]
      %v8122 = vld [vmem:[%s8044 + $0x300] sm:$0xff]
      %v8123 = vld [vmem:[%s8044 + $0x308] sm:$0xff]
      %v8124 = vld [vmem:[%s8044 + $0x310] sm:$0xff]
      %v8125 = vld [vmem:[%s8044 + $0x320] sm:$0xff]
      %v8126 = vld [vmem:[%s8044 + $0x328] sm:$0xff]
      %v8127 = vld [vmem:[%s8044 + $0x330] sm:$0xff]
      %v8128 = vld [vmem:[%s8044 + $0x338] sm:$0xff]
      %v8129 = vld [vmem:[%s8044 + $0x348] sm:$0xff]
      %v8130 = vld [vmem:[%s8044 + $0x350] sm:$0xff]
      %v8131 = vld [vmem:[%s8044 + $0x358] sm:$0xff]
      %v8132 = vld [vmem:[%s8044 + $0x360] sm:$0xff]
      %v8133 = vld [vmem:[%s8044 + $0x370] sm:$0xff]
      %v8134 = vld [vmem:[%s8044 + $0x378] sm:$0xff]
      %v8135 = vld [vmem:[%s8044 + $0x380] sm:$0xff]
      %v8136 = vld [vmem:[%s8044 + $0x388] sm:$0xff]
      %v8137 = vld [vmem:[%s8044 + $0x398] sm:$0xff]
      %v8138 = vld [vmem:[%s8044 + $0x3a0] sm:$0xff]
      %v8139 = vld [vmem:[%s8044 + $0x3a8] sm:$0xff]
      %v8140 = vld [vmem:[%s8044 + $0x3b0] sm:$0xff]
      %v8141 = vld [vmem:[%s8044 + $0x3c0] sm:$0xff]
      %v8142 = vld [vmem:[%s8044 + $0x3c8] sm:$0xff]
      %v8143 = vld [vmem:[%s8044 + $0x3d0] sm:$0xff]
      %v8144 = vld [vmem:[%s8044 + $0x3d8] sm:$0xff]
      %v8145 = vld [vmem:[%s8044 + $0x3e8] sm:$0xff]
      %v8146 = vld [vmem:[%s8044 + $0x3f0] sm:$0xff]
      %v8147 = vld [vmem:[%s8044 + $0x3f8] sm:$0xff]
      %v8148 = vld [vmem:[%s8044 + $0x400] sm:$0xff]
      %v8149 = vld [vmem:[%s8044 + $0x410] sm:$0xff]
      %v8150 = vld [vmem:[%s8044 + $0x418] sm:$0xff]
      %v8151 = vld [vmem:[%s8044 + $0x420] sm:$0xff]
      %v8152 = vld [vmem:[%s8044 + $0x428] sm:$0xff]
      %v8153 = vld [vmem:[%s8044 + $0x438] sm:$0xff]
      %v8154 = vld [vmem:[%s8044 + $0x440] sm:$0xff]
      %v8155 = vld [vmem:[%s8044 + $0x448] sm:$0xff]
      %v8156 = vld [vmem:[%s8044 + $0x450] sm:$0xff]
      %v8157 = vld [vmem:[%s8044 + $0x460] sm:$0xff]
      %v8158 = vld [vmem:[%s8044 + $0x468] sm:$0xff]
      %v8159 = vld [vmem:[%s8044 + $0x470] sm:$0xff]
      %v8160 = vld [vmem:[%s8044 + $0x478] sm:$0xff]
      %v8161 = vld [vmem:[%s8044 + $0x488] sm:$0xff]
      %v8162 = vld [vmem:[%s8044 + $0x490] sm:$0xff]
      %v8163 = vld [vmem:[%s8044 + $0x498] sm:$0xff]
      %v8164 = vld [vmem:[%s8044 + $0x4a0] sm:$0xff]
      %v8165 = vld [vmem:[%s8044 + $0x4b0] sm:$0xff]
      %v8166 = vld [vmem:[%s8044 + $0x4b8] sm:$0xff]
      %v8167 = vld [vmem:[%s8044 + $0x4c0] sm:$0xff]
      %v8168 = vld [vmem:[%s8044 + $0x4c8] sm:$0xff]
      %v8169 = vld [vmem:[%s8044 + $0x4d8] sm:$0xff]
      %v8170 = vld [vmem:[%s8044 + $0x4e0] sm:$0xff]
      %v8171 = vld [vmem:[%s8044 + $0x4e8] sm:$0xff]
      %v8172 = vld [vmem:[%s8044 + $0x4f0] sm:$0xff]
      %s8173 = scalar_lea.vmem %s1, 24
      %v8174 = vld [vmem:[%s8173] sm:$0xf]
      %v8176 = vsel %vm457, %v8045, 0
      %v8179 = vsel %vm457, %v8046, 0
      %v8182 = vsel %vm457, %v8047, 0
      %v8185 = vsel %vm457, %v8048, 0
      %v8188 = vsel %vm457, %v8049, 0
      %v8191 = vsel %vm457, %v8050, 0
      %v8194 = vsel %vm457, %v8051, 0
      %v8197 = vsel %vm457, %v8052, 0
      %v8200 = vsel %vm457, %v8053, 0
      %v8203 = vsel %vm457, %v8054, 0
      %v8206 = vsel %vm457, %v8055, 0
      %v8209 = vsel %vm457, %v8056, 0
      %v8212 = vsel %vm457, %v8057, 0
      %v8215 = vsel %vm457, %v8058, 0
      %v8218 = vsel %vm457, %v8059, 0
      %v8221 = vsel %vm457, %v8060, 0
      %v8224 = vsel %vm457, %v8061, 0
      %v8227 = vsel %vm457, %v8062, 0
      %v8230 = vsel %vm457, %v8063, 0
      %v8233 = vsel %vm457, %v8064, 0
      %v8236 = vsel %vm457, %v8065, 0
      %v8239 = vsel %vm457, %v8066, 0
      %v8242 = vsel %vm457, %v8067, 0
      %v8245 = vsel %vm457, %v8068, 0
      %v8248 = vsel %vm457, %v8069, 0
      %v8251 = vsel %vm457, %v8070, 0
      %v8254 = vsel %vm457, %v8071, 0
      %v8257 = vsel %vm457, %v8072, 0
      %v8260 = vsel %vm457, %v8073, 0
      %v8263 = vsel %vm457, %v8074, 0
      %v8266 = vsel %vm457, %v8075, 0
      %v8269 = vsel %vm457, %v8076, 0
      %v8272 = vsel %vm457, %v8077, 0
      %v8275 = vsel %vm457, %v8078, 0
      %v8278 = vsel %vm457, %v8079, 0
      %v8281 = vsel %vm457, %v8080, 0
      %v8284 = vsel %vm457, %v8081, 0
      %v8287 = vsel %vm457, %v8082, 0
      %v8290 = vsel %vm457, %v8083, 0
      %v8293 = vsel %vm457, %v8084, 0
      %v8296 = vsel %vm457, %v8085, 0
      %v8299 = vsel %vm457, %v8086, 0
      %v8302 = vsel %vm457, %v8087, 0
      %v8305 = vsel %vm457, %v8088, 0
      %v8308 = vsel %vm457, %v8089, 0
      %v8311 = vsel %vm457, %v8090, 0
      %v8314 = vsel %vm457, %v8091, 0
      %v8317 = vsel %vm457, %v8092, 0
      %v8320 = vsel %vm457, %v8093, 0
      %v8323 = vsel %vm457, %v8094, 0
      %v8326 = vsel %vm457, %v8095, 0
      %v8329 = vsel %vm457, %v8096, 0
      %v8332 = vsel %vm457, %v8097, 0
      %v8335 = vsel %vm457, %v8098, 0
      %v8338 = vsel %vm457, %v8099, 0
      %v8341 = vsel %vm457, %v8100, 0
      %v8344 = vsel %vm457, %v8101, 0
      %v8347 = vsel %vm457, %v8102, 0
      %v8350 = vsel %vm457, %v8103, 0
      %v8353 = vsel %vm457, %v8104, 0
      %v8356 = vsel %vm457, %v8105, 0
      %v8359 = vsel %vm457, %v8106, 0
      %v8362 = vsel %vm457, %v8107, 0
      %v8365 = vsel %vm457, %v8108, 0
      %v8368 = vsel %vm457, %v8109, 0
      %v8371 = vsel %vm457, %v8110, 0
      %v8374 = vsel %vm457, %v8111, 0
      %v8377 = vsel %vm457, %v8112, 0
      %v8380 = vsel %vm457, %v8113, 0
      %v8383 = vsel %vm457, %v8114, 0
      %v8386 = vsel %vm457, %v8115, 0
      %v8389 = vsel %vm457, %v8116, 0
      %v8392 = vsel %vm457, %v8117, 0
      %v8395 = vsel %vm457, %v8118, 0
      %v8398 = vsel %vm457, %v8119, 0
      %v8401 = vsel %vm457, %v8120, 0
      %v8404 = vsel %vm457, %v8121, 0
      %v8407 = vsel %vm457, %v8122, 0
      %v8410 = vsel %vm457, %v8123, 0
      %v8413 = vsel %vm457, %v8124, 0
      %v8416 = vsel %vm457, %v8125, 0
      %v8419 = vsel %vm457, %v8126, 0
      %v8422 = vsel %vm457, %v8127, 0
      %v8425 = vsel %vm457, %v8128, 0
      %v8428 = vsel %vm457, %v8129, 0
      %v8431 = vsel %vm457, %v8130, 0
      %v8434 = vsel %vm457, %v8131, 0
      %v8437 = vsel %vm457, %v8132, 0
      %v8440 = vsel %vm457, %v8133, 0
      %v8443 = vsel %vm457, %v8134, 0
      %v8446 = vsel %vm457, %v8135, 0
      %v8449 = vsel %vm457, %v8136, 0
      %v8452 = vsel %vm457, %v8137, 0
      %v8455 = vsel %vm457, %v8138, 0
      %v8458 = vsel %vm457, %v8139, 0
      %v8461 = vsel %vm457, %v8140, 0
      %v8464 = vsel %vm457, %v8141, 0
      %v8467 = vsel %vm457, %v8142, 0
      %v8470 = vsel %vm457, %v8143, 0
      %v8473 = vsel %vm457, %v8144, 0
      %v8476 = vsel %vm457, %v8145, 0
      %v8479 = vsel %vm457, %v8146, 0
      %v8482 = vsel %vm457, %v8147, 0
      %v8485 = vsel %vm457, %v8148, 0
      %v8488 = vsel %vm457, %v8149, 0
      %v8491 = vsel %vm457, %v8150, 0
      %v8494 = vsel %vm457, %v8151, 0
      %v8497 = vsel %vm457, %v8152, 0
      %v8500 = vsel %vm457, %v8153, 0
      %v8503 = vsel %vm457, %v8154, 0
      %v8506 = vsel %vm457, %v8155, 0
      %v8509 = vsel %vm457, %v8156, 0
      %v8512 = vsel %vm457, %v8157, 0
      %v8515 = vsel %vm457, %v8158, 0
      %v8518 = vsel %vm457, %v8159, 0
      %v8521 = vsel %vm457, %v8160, 0
      %v8524 = vsel %vm457, %v8161, 0
      %v8527 = vsel %vm457, %v8162, 0
      %v8530 = vsel %vm457, %v8163, 0
      %v8533 = vsel %vm457, %v8164, 0
      %v8536 = vsel %vm457, %v8165, 0
      %v8539 = vsel %vm457, %v8166, 0
      %v8542 = vsel %vm457, %v8167, 0
      %v8545 = vsel %vm457, %v8168, 0
      %v8548 = vsel %vm457, %v8169, 0
      %v8551 = vsel %vm457, %v8170, 0
      %v8554 = vsel %vm457, %v8171, 0
      %v8557 = vsel %vm457, %v8172, 0
      %v8560 = vsel %vm842, %v8174, 0
      %8562 = vmatprep.subr.mxu0 0.0
      %8563 = vmatpush1.msra.mxu0 0.0
      %8564 = vmatprep.subr.mxu0 0.0
      %8565 = vmatpush1.msra.mxu0 0.0
      %8566 = vmatprep.subr.mxu0 0.0
      %8567 = vmatpush1.msra.mxu0 0.0
      %8568 = vmatprep.subr.mxu0 0.0
      %8569 = vmatpush1.msra.mxu0 0.0
      %8570 = vmatprep.subr.mxu0 0.0
      %8571 = vmatpush1.msra.mxu0 0.0
      %8572 = vmatprep.subr.mxu0 0.0
      %8573 = vmatpush1.msra.mxu0 0.0
      %8574 = vmatprep.subr.mxu0 0.0
      %8575 = vmatpush1.msra.mxu0 0.0
      %8576 = vmatprep.subr.mxu0 0.0
      %8577 = vmatpush1.msra.mxu0 0.0
      %8578 = vmatprep.subr.mxu0 0.0
      %8579 = vmatpush1.msra.mxu0 0.0
      %8580 = vmatprep.subr.mxu0 0.0
      %8581 = vmatpush1.msra.mxu0 0.0
      %8582 = vmatprep.subr.mxu0 0.0
      %8583 = vmatpush1.msra.mxu0 0.0
      %8584 = vmatprep.subr.mxu0 0.0
      %8585 = vmatpush1.msra.mxu0 0.0
      %8586 = vmatprep.subr.mxu0 0.0
      %8587 = vmatpush1.msra.mxu0 0.0
      %8588 = vmatprep.subr.mxu0 0.0
      %8589 = vmatpush1.msra.mxu0 0.0
      %8590 = vmatprep.subr.mxu0 0.0
      %8591 = vmatpush1.msra.mxu0 0.0
      %8592 = vmatprep.subr.mxu0 0.0
      %8593 = vmatpush1.msra.mxu0 %v8560
      %8594 = vmatprep.subr.mxu0 0.0
      %8595 = vmatpush2.msra.mxu0 0.0
      %8596 = vmatprep.subr.mxu0 0.0
      %8597 = vmatpush2.msra.mxu0 0.0
      %8598 = vmatprep.subr.mxu0 0.0
      %8599 = vmatpush2.msra.mxu0 0.0
      %8600 = vmatprep.subr.mxu0 0.0
      %8601 = vmatpush2.msra.mxu0 0.0
      %8602 = vmatprep.subr.mxu0 0.0
      %8603 = vmatpush2.msra.mxu0 0.0
      %8604 = vmatprep.subr.mxu0 0.0
      %8605 = vmatpush2.msra.mxu0 0.0
      %8606 = vmatprep.subr.mxu0 0.0
      %8607 = vmatpush2.msra.mxu0 0.0
      %8608 = vmatprep.subr.mxu0 0.0
      %8609 = vmatpush2.msra.mxu0 0.0
      %8610 = vmatprep.subr.mxu0 0.0
      %8611 = vmatpush2.msra.mxu0 0.0
      %8612 = vmatprep.subr.mxu0 0.0
      %8613 = vmatpush2.msra.mxu0 0.0
      %8614 = vmatprep.subr.mxu0 0.0
      %8615 = vmatpush2.msra.mxu0 0.0
      %8616 = vmatprep.subr.mxu0 0.0
      %8617 = vmatpush2.msra.mxu0 0.0
      %8618 = vmatprep.subr.mxu0 0.0
      %8619 = vmatpush2.msra.mxu0 0.0
      %8620 = vmatprep.subr.mxu0 0.0
      %8621 = vmatpush2.msra.mxu0 0.0
      %8622 = vmatprep.subr.mxu0 0.0
      %8623 = vmatpush2.msra.mxu0 0.0
      %8624 = vmatprep.subr.mxu0 0.0
      %8625 = vmatpush2.msra.mxu0 0.0
      %8626 = vmatprep.mubr.f32.mxu0 0.0
      %8627 = vmatmul.mubr.f32.gmra.mxu0 %v8176
      %v8628 = vpop.f32.mrf.mxu0
      %v8629 = vadd.f32 0.0, %v8628
      %v8630 = vpop.f32.mrf.mxu0
      %8631 = vmatprep.mubr.f32.mxu0 0.0
      %8632 = vmatmul.mubr.f32.gmra.mxu0 %v8179
      %v8633 = vpop.f32.mrf.mxu0
      %v8634 = vadd.f32 0.0, %v8633
      %v8635 = vpop.f32.mrf.mxu0
      %8636 = vmatprep.mubr.f32.mxu0 0.0
      %8637 = vmatmul.mubr.f32.gmra.mxu0 %v8182
      %v8638 = vpop.f32.mrf.mxu0
      %v8639 = vadd.f32 0.0, %v8638
      %v8640 = vpop.f32.mrf.mxu0
      %8641 = vmatprep.mubr.f32.mxu0 0.0
      %8642 = vmatmul.mubr.f32.gmra.mxu0 %v8185
      %v8643 = vpop.f32.mrf.mxu0
      %v8644 = vadd.f32 0.0, %v8643
      %v8645 = vpop.f32.mrf.mxu0
      %8646 = vmatprep.mubr.f32.mxu0 0.0
      %8647 = vmatmul.mubr.f32.gmra.mxu0 %v8188
      %v8648 = vpop.f32.mrf.mxu0
      %v8649 = vadd.f32 0.0, %v8648
      %v8650 = vpop.f32.mrf.mxu0
      %8651 = vmatprep.mubr.f32.mxu0 0.0
      %8652 = vmatmul.mubr.f32.gmra.mxu0 %v8191
      %v8653 = vpop.f32.mrf.mxu0
      %v8654 = vadd.f32 0.0, %v8653
      %v8655 = vpop.f32.mrf.mxu0
      %8656 = vmatprep.mubr.f32.mxu0 0.0
      %8657 = vmatmul.mubr.f32.gmra.mxu0 %v8194
      %v8658 = vpop.f32.mrf.mxu0
      %v8659 = vadd.f32 0.0, %v8658
      %v8660 = vpop.f32.mrf.mxu0
      %8661 = vmatprep.mubr.f32.mxu0 0.0
      %8662 = vmatmul.mubr.f32.gmra.mxu0 %v8197
      %v8663 = vpop.f32.mrf.mxu0
      %v8664 = vadd.f32 0.0, %v8663
      %v8665 = vpop.f32.mrf.mxu0
      %8666 = vmatprep.mubr.f32.mxu0 0.0
      %8667 = vmatmul.mubr.f32.gmra.mxu0 %v8200
      %v8668 = vpop.f32.mrf.mxu0
      %v8669 = vadd.f32 0.0, %v8668
      %v8670 = vpop.f32.mrf.mxu0
      %8671 = vmatprep.mubr.f32.mxu0 0.0
      %8672 = vmatmul.mubr.f32.gmra.mxu0 %v8203
      %v8673 = vpop.f32.mrf.mxu0
      %v8674 = vadd.f32 0.0, %v8673
      %v8675 = vpop.f32.mrf.mxu0
      %8676 = vmatprep.mubr.f32.mxu0 0.0
      %8677 = vmatmul.mubr.f32.gmra.mxu0 %v8206
      %v8678 = vpop.f32.mrf.mxu0
      %v8679 = vadd.f32 0.0, %v8678
      %v8680 = vpop.f32.mrf.mxu0
      %8681 = vmatprep.mubr.f32.mxu0 0.0
      %8682 = vmatmul.mubr.f32.gmra.mxu0 %v8209
      %v8683 = vpop.f32.mrf.mxu0
      %v8684 = vadd.f32 0.0, %v8683
      %v8685 = vpop.f32.mrf.mxu0
      %8686 = vmatprep.mubr.f32.mxu0 0.0
      %8687 = vmatmul.mubr.f32.gmra.mxu0 %v8212
      %v8688 = vpop.f32.mrf.mxu0
      %v8689 = vadd.f32 0.0, %v8688
      %v8690 = vpop.f32.mrf.mxu0
      %8691 = vmatprep.mubr.f32.mxu0 0.0
      %8692 = vmatmul.mubr.f32.gmra.mxu0 %v8215
      %v8693 = vpop.f32.mrf.mxu0
      %v8694 = vadd.f32 0.0, %v8693
      %v8695 = vpop.f32.mrf.mxu0
      %8696 = vmatprep.mubr.f32.mxu0 0.0
      %8697 = vmatmul.mubr.f32.gmra.mxu0 %v8218
      %v8698 = vpop.f32.mrf.mxu0
      %v8699 = vadd.f32 0.0, %v8698
      %v8700 = vpop.f32.mrf.mxu0
      %8701 = vmatprep.mubr.f32.mxu0 0.0
      %8702 = vmatmul.mubr.f32.gmra.mxu0 %v8221
      %v8703 = vpop.f32.mrf.mxu0
      %v8704 = vadd.f32 0.0, %v8703
      %v8705 = vpop.f32.mrf.mxu0
      %8706 = vmatprep.mubr.f32.mxu0 0.0
      %8707 = vmatmul.mubr.f32.gmra.mxu0 %v8224
      %v8708 = vpop.f32.mrf.mxu0
      %v8709 = vadd.f32 0.0, %v8708
      %v8710 = vpop.f32.mrf.mxu0
      %8711 = vmatprep.mubr.f32.mxu0 0.0
      %8712 = vmatmul.mubr.f32.gmra.mxu0 %v8227
      %v8713 = vpop.f32.mrf.mxu0
      %v8714 = vadd.f32 0.0, %v8713
      %v8715 = vpop.f32.mrf.mxu0
      %8716 = vmatprep.mubr.f32.mxu0 0.0
      %8717 = vmatmul.mubr.f32.gmra.mxu0 %v8230
      %v8718 = vpop.f32.mrf.mxu0
      %v8719 = vadd.f32 0.0, %v8718
      %v8720 = vpop.f32.mrf.mxu0
      %8721 = vmatprep.mubr.f32.mxu0 0.0
      %8722 = vmatmul.mubr.f32.gmra.mxu0 %v8233
      %v8723 = vpop.f32.mrf.mxu0
      %v8724 = vadd.f32 0.0, %v8723
      %v8725 = vpop.f32.mrf.mxu0
      %8726 = vmatprep.mubr.f32.mxu0 0.0
      %8727 = vmatmul.mubr.f32.gmra.mxu0 %v8236
      %v8728 = vpop.f32.mrf.mxu0
      %v8729 = vadd.f32 0.0, %v8728
      %v8730 = vpop.f32.mrf.mxu0
      %8731 = vmatprep.mubr.f32.mxu0 0.0
      %8732 = vmatmul.mubr.f32.gmra.mxu0 %v8239
      %v8733 = vpop.f32.mrf.mxu0
      %v8734 = vadd.f32 0.0, %v8733
      %v8735 = vpop.f32.mrf.mxu0
      %8736 = vmatprep.mubr.f32.mxu0 0.0
      %8737 = vmatmul.mubr.f32.gmra.mxu0 %v8242
      %v8738 = vpop.f32.mrf.mxu0
      %v8739 = vadd.f32 0.0, %v8738
      %v8740 = vpop.f32.mrf.mxu0
      %8741 = vmatprep.mubr.f32.mxu0 0.0
      %8742 = vmatmul.mubr.f32.gmra.mxu0 %v8245
      %v8743 = vpop.f32.mrf.mxu0
      %v8744 = vadd.f32 0.0, %v8743
      %v8745 = vpop.f32.mrf.mxu0
      %8746 = vmatprep.mubr.f32.mxu0 0.0
      %8747 = vmatmul.mubr.f32.gmra.mxu0 %v8248
      %v8748 = vpop.f32.mrf.mxu0
      %v8749 = vadd.f32 0.0, %v8748
      %v8750 = vpop.f32.mrf.mxu0
      %8751 = vmatprep.mubr.f32.mxu0 0.0
      %8752 = vmatmul.mubr.f32.gmra.mxu0 %v8251
      %v8753 = vpop.f32.mrf.mxu0
      %v8754 = vadd.f32 0.0, %v8753
      %v8755 = vpop.f32.mrf.mxu0
      %8756 = vmatprep.mubr.f32.mxu0 0.0
      %8757 = vmatmul.mubr.f32.gmra.mxu0 %v8254
      %v8758 = vpop.f32.mrf.mxu0
      %v8759 = vadd.f32 0.0, %v8758
      %v8760 = vpop.f32.mrf.mxu0
      %8761 = vmatprep.mubr.f32.mxu0 0.0
      %8762 = vmatmul.mubr.f32.gmra.mxu0 %v8257
      %v8763 = vpop.f32.mrf.mxu0
      %v8764 = vadd.f32 0.0, %v8763
      %v8765 = vpop.f32.mrf.mxu0
      %8766 = vmatprep.mubr.f32.mxu0 0.0
      %8767 = vmatmul.mubr.f32.gmra.mxu0 %v8260
      %v8768 = vpop.f32.mrf.mxu0
      %v8769 = vadd.f32 0.0, %v8768
      %v8770 = vpop.f32.mrf.mxu0
      %8771 = vmatprep.mubr.f32.mxu0 0.0
      %8772 = vmatmul.mubr.f32.gmra.mxu0 %v8263
      %v8773 = vpop.f32.mrf.mxu0
      %v8774 = vadd.f32 0.0, %v8773
      %v8775 = vpop.f32.mrf.mxu0
      %8776 = vmatprep.mubr.f32.mxu0 0.0
      %8777 = vmatmul.mubr.f32.gmra.mxu0 %v8266
      %v8778 = vpop.f32.mrf.mxu0
      %v8779 = vadd.f32 0.0, %v8778
      %v8780 = vpop.f32.mrf.mxu0
      %8781 = vmatprep.mubr.f32.mxu0 0.0
      %8782 = vmatmul.mubr.f32.gmra.mxu0 %v8269
      %v8783 = vpop.f32.mrf.mxu0
      %v8784 = vadd.f32 0.0, %v8783
      %v8785 = vpop.f32.mrf.mxu0
      %8786 = vmatprep.mubr.f32.mxu0 0.0
      %8787 = vmatmul.mubr.f32.gmra.mxu0 %v8272
      %v8788 = vpop.f32.mrf.mxu0
      %v8789 = vadd.f32 0.0, %v8788
      %v8790 = vpop.f32.mrf.mxu0
      %8791 = vmatprep.mubr.f32.mxu0 0.0
      %8792 = vmatmul.mubr.f32.gmra.mxu0 %v8275
      %v8793 = vpop.f32.mrf.mxu0
      %v8794 = vadd.f32 0.0, %v8793
      %v8795 = vpop.f32.mrf.mxu0
      %8796 = vmatprep.mubr.f32.mxu0 0.0
      %8797 = vmatmul.mubr.f32.gmra.mxu0 %v8278
      %v8798 = vpop.f32.mrf.mxu0
      %v8799 = vadd.f32 0.0, %v8798
      %v8800 = vpop.f32.mrf.mxu0
      %8801 = vmatprep.mubr.f32.mxu0 0.0
      %8802 = vmatmul.mubr.f32.gmra.mxu0 %v8281
      %v8803 = vpop.f32.mrf.mxu0
      %v8804 = vadd.f32 0.0, %v8803
      %v8805 = vpop.f32.mrf.mxu0
      %8806 = vmatprep.mubr.f32.mxu0 0.0
      %8807 = vmatmul.mubr.f32.gmra.mxu0 %v8284
      %v8808 = vpop.f32.mrf.mxu0
      %v8809 = vadd.f32 0.0, %v8808
      %v8810 = vpop.f32.mrf.mxu0
      %8811 = vmatprep.mubr.f32.mxu0 0.0
      %8812 = vmatmul.mubr.f32.gmra.mxu0 %v8287
      %v8813 = vpop.f32.mrf.mxu0
      %v8814 = vadd.f32 0.0, %v8813
      %v8815 = vpop.f32.mrf.mxu0
      %8816 = vmatprep.mubr.f32.mxu0 0.0
      %8817 = vmatmul.mubr.f32.gmra.mxu0 %v8290
      %v8818 = vpop.f32.mrf.mxu0
      %v8819 = vadd.f32 0.0, %v8818
      %v8820 = vpop.f32.mrf.mxu0
      %8821 = vmatprep.mubr.f32.mxu0 0.0
      %8822 = vmatmul.mubr.f32.gmra.mxu0 %v8293
      %v8823 = vpop.f32.mrf.mxu0
      %v8824 = vadd.f32 0.0, %v8823
      %v8825 = vpop.f32.mrf.mxu0
      %8826 = vmatprep.mubr.f32.mxu0 0.0
      %8827 = vmatmul.mubr.f32.gmra.mxu0 %v8296
      %v8828 = vpop.f32.mrf.mxu0
      %v8829 = vadd.f32 0.0, %v8828
      %v8830 = vpop.f32.mrf.mxu0
      %8831 = vmatprep.mubr.f32.mxu0 0.0
      %8832 = vmatmul.mubr.f32.gmra.mxu0 %v8299
      %v8833 = vpop.f32.mrf.mxu0
      %v8834 = vadd.f32 0.0, %v8833
      %v8835 = vpop.f32.mrf.mxu0
      %8836 = vmatprep.mubr.f32.mxu0 0.0
      %8837 = vmatmul.mubr.f32.gmra.mxu0 %v8302
      %v8838 = vpop.f32.mrf.mxu0
      %v8839 = vadd.f32 0.0, %v8838
      %v8840 = vpop.f32.mrf.mxu0
      %8841 = vmatprep.mubr.f32.mxu0 0.0
      %8842 = vmatmul.mubr.f32.gmra.mxu0 %v8305
      %v8843 = vpop.f32.mrf.mxu0
      %v8844 = vadd.f32 0.0, %v8843
      %v8845 = vpop.f32.mrf.mxu0
      %8846 = vmatprep.mubr.f32.mxu0 0.0
      %8847 = vmatmul.mubr.f32.gmra.mxu0 %v8308
      %v8848 = vpop.f32.mrf.mxu0
      %v8849 = vadd.f32 0.0, %v8848
      %v8850 = vpop.f32.mrf.mxu0
      %8851 = vmatprep.mubr.f32.mxu0 0.0
      %8852 = vmatmul.mubr.f32.gmra.mxu0 %v8311
      %v8853 = vpop.f32.mrf.mxu0
      %v8854 = vadd.f32 0.0, %v8853
      %v8855 = vpop.f32.mrf.mxu0
      %8856 = vmatprep.mubr.f32.mxu0 0.0
      %8857 = vmatmul.mubr.f32.gmra.mxu0 %v8314
      %v8858 = vpop.f32.mrf.mxu0
      %v8859 = vadd.f32 0.0, %v8858
      %v8860 = vpop.f32.mrf.mxu0
      %8861 = vmatprep.mubr.f32.mxu0 0.0
      %8862 = vmatmul.mubr.f32.gmra.mxu0 %v8317
      %v8863 = vpop.f32.mrf.mxu0
      %v8864 = vadd.f32 0.0, %v8863
      %v8865 = vpop.f32.mrf.mxu0
      %8866 = vmatprep.mubr.f32.mxu0 0.0
      %8867 = vmatmul.mubr.f32.gmra.mxu0 %v8320
      %v8868 = vpop.f32.mrf.mxu0
      %v8869 = vadd.f32 0.0, %v8868
      %v8870 = vpop.f32.mrf.mxu0
      %8871 = vmatprep.mubr.f32.mxu0 0.0
      %8872 = vmatmul.mubr.f32.gmra.mxu0 %v8323
      %v8873 = vpop.f32.mrf.mxu0
      %v8874 = vadd.f32 0.0, %v8873
      %v8875 = vpop.f32.mrf.mxu0
      %8876 = vmatprep.mubr.f32.mxu0 0.0
      %8877 = vmatmul.mubr.f32.gmra.mxu0 %v8326
      %v8878 = vpop.f32.mrf.mxu0
      %v8879 = vadd.f32 0.0, %v8878
      %v8880 = vpop.f32.mrf.mxu0
      %8881 = vmatprep.mubr.f32.mxu0 0.0
      %8882 = vmatmul.mubr.f32.gmra.mxu0 %v8329
      %v8883 = vpop.f32.mrf.mxu0
      %v8884 = vadd.f32 0.0, %v8883
      %v8885 = vpop.f32.mrf.mxu0
      %8886 = vmatprep.mubr.f32.mxu0 0.0
      %8887 = vmatmul.mubr.f32.gmra.mxu0 %v8332
      %v8888 = vpop.f32.mrf.mxu0
      %v8889 = vadd.f32 0.0, %v8888
      %v8890 = vpop.f32.mrf.mxu0
      %8891 = vmatprep.mubr.f32.mxu0 0.0
      %8892 = vmatmul.mubr.f32.gmra.mxu0 %v8335
      %v8893 = vpop.f32.mrf.mxu0
      %v8894 = vadd.f32 0.0, %v8893
      %v8895 = vpop.f32.mrf.mxu0
      %8896 = vmatprep.mubr.f32.mxu0 0.0
      %8897 = vmatmul.mubr.f32.gmra.mxu0 %v8338
      %v8898 = vpop.f32.mrf.mxu0
      %v8899 = vadd.f32 0.0, %v8898
      %v8900 = vpop.f32.mrf.mxu0
      %8901 = vmatprep.mubr.f32.mxu0 0.0
      %8902 = vmatmul.mubr.f32.gmra.mxu0 %v8341
      %v8903 = vpop.f32.mrf.mxu0
      %v8904 = vadd.f32 0.0, %v8903
      %v8905 = vpop.f32.mrf.mxu0
      %8906 = vmatprep.mubr.f32.mxu0 0.0
      %8907 = vmatmul.mubr.f32.gmra.mxu0 %v8344
      %v8908 = vpop.f32.mrf.mxu0
      %v8909 = vadd.f32 0.0, %v8908
      %v8910 = vpop.f32.mrf.mxu0
      %8911 = vmatprep.mubr.f32.mxu0 0.0
      %8912 = vmatmul.mubr.f32.gmra.mxu0 %v8347
      %v8913 = vpop.f32.mrf.mxu0
      %v8914 = vadd.f32 0.0, %v8913
      %v8915 = vpop.f32.mrf.mxu0
      %8916 = vmatprep.mubr.f32.mxu0 0.0
      %8917 = vmatmul.mubr.f32.gmra.mxu0 %v8350
      %v8918 = vpop.f32.mrf.mxu0
      %v8919 = vadd.f32 0.0, %v8918
      %v8920 = vpop.f32.mrf.mxu0
      %8921 = vmatprep.mubr.f32.mxu0 0.0
      %8922 = vmatmul.mubr.f32.gmra.mxu0 %v8353
      %v8923 = vpop.f32.mrf.mxu0
      %v8924 = vadd.f32 0.0, %v8923
      %v8925 = vpop.f32.mrf.mxu0
      %8926 = vmatprep.mubr.f32.mxu0 0.0
      %8927 = vmatmul.mubr.f32.gmra.mxu0 %v8356
      %v8928 = vpop.f32.mrf.mxu0
      %v8929 = vadd.f32 0.0, %v8928
      %v8930 = vpop.f32.mrf.mxu0
      %8931 = vmatprep.mubr.f32.mxu0 0.0
      %8932 = vmatmul.mubr.f32.gmra.mxu0 %v8359
      %v8933 = vpop.f32.mrf.mxu0
      %v8934 = vadd.f32 0.0, %v8933
      %v8935 = vpop.f32.mrf.mxu0
      %8936 = vmatprep.mubr.f32.mxu0 0.0
      %8937 = vmatmul.mubr.f32.gmra.mxu0 %v8362
      %v8938 = vpop.f32.mrf.mxu0
      %v8939 = vadd.f32 0.0, %v8938
      %v8940 = vpop.f32.mrf.mxu0
      %8941 = vmatprep.mubr.f32.mxu0 0.0
      %8942 = vmatmul.mubr.f32.gmra.mxu0 %v8365
      %v8943 = vpop.f32.mrf.mxu0
      %v8944 = vadd.f32 0.0, %v8943
      %v8945 = vpop.f32.mrf.mxu0
      %8946 = vmatprep.mubr.f32.mxu0 0.0
      %8947 = vmatmul.mubr.f32.gmra.mxu0 %v8368
      %v8948 = vpop.f32.mrf.mxu0
      %v8949 = vadd.f32 0.0, %v8948
      %v8950 = vpop.f32.mrf.mxu0
      %8951 = vmatprep.mubr.f32.mxu0 0.0
      %8952 = vmatmul.mubr.f32.gmra.mxu0 %v8371
      %v8953 = vpop.f32.mrf.mxu0
      %v8954 = vadd.f32 0.0, %v8953
      %v8955 = vpop.f32.mrf.mxu0
      %8956 = vmatprep.mubr.f32.mxu0 0.0
      %8957 = vmatmul.mubr.f32.gmra.mxu0 %v8374
      %v8958 = vpop.f32.mrf.mxu0
      %v8959 = vadd.f32 0.0, %v8958
      %v8960 = vpop.f32.mrf.mxu0
      %8961 = vmatprep.mubr.f32.mxu0 0.0
      %8962 = vmatmul.mubr.f32.gmra.mxu0 %v8377
      %v8963 = vpop.f32.mrf.mxu0
      %v8964 = vadd.f32 0.0, %v8963
      %v8965 = vpop.f32.mrf.mxu0
      %8966 = vmatprep.mubr.f32.mxu0 0.0
      %8967 = vmatmul.mubr.f32.gmra.mxu0 %v8380
      %v8968 = vpop.f32.mrf.mxu0
      %v8969 = vadd.f32 0.0, %v8968
      %v8970 = vpop.f32.mrf.mxu0
      %8971 = vmatprep.mubr.f32.mxu0 0.0
      %8972 = vmatmul.mubr.f32.gmra.mxu0 %v8383
      %v8973 = vpop.f32.mrf.mxu0
      %v8974 = vadd.f32 0.0, %v8973
      %v8975 = vpop.f32.mrf.mxu0
      %8976 = vmatprep.mubr.f32.mxu0 0.0
      %8977 = vmatmul.mubr.f32.gmra.mxu0 %v8386
      %v8978 = vpop.f32.mrf.mxu0
      %v8979 = vadd.f32 0.0, %v8978
      %v8980 = vpop.f32.mrf.mxu0
      %8981 = vmatprep.mubr.f32.mxu0 0.0
      %8982 = vmatmul.mubr.f32.gmra.mxu0 %v8389
      %v8983 = vpop.f32.mrf.mxu0
      %v8984 = vadd.f32 0.0, %v8983
      %v8985 = vpop.f32.mrf.mxu0
      %8986 = vmatprep.mubr.f32.mxu0 0.0
      %8987 = vmatmul.mubr.f32.gmra.mxu0 %v8392
      %v8988 = vpop.f32.mrf.mxu0
      %v8989 = vadd.f32 0.0, %v8988
      %v8990 = vpop.f32.mrf.mxu0
      %8991 = vmatprep.mubr.f32.mxu0 0.0
      %8992 = vmatmul.mubr.f32.gmra.mxu0 %v8395
      %v8993 = vpop.f32.mrf.mxu0
      %v8994 = vadd.f32 0.0, %v8993
      %v8995 = vpop.f32.mrf.mxu0
      %8996 = vmatprep.mubr.f32.mxu0 0.0
      %8997 = vmatmul.mubr.f32.gmra.mxu0 %v8398
      %v8998 = vpop.f32.mrf.mxu0
      %v8999 = vadd.f32 0.0, %v8998
      %v9000 = vpop.f32.mrf.mxu0
      %9001 = vmatprep.mubr.f32.mxu0 0.0
      %9002 = vmatmul.mubr.f32.gmra.mxu0 %v8401
      %v9003 = vpop.f32.mrf.mxu0
      %v9004 = vadd.f32 0.0, %v9003
      %v9005 = vpop.f32.mrf.mxu0
      %9006 = vmatprep.mubr.f32.mxu0 0.0
      %9007 = vmatmul.mubr.f32.gmra.mxu0 %v8404
      %v9008 = vpop.f32.mrf.mxu0
      %v9009 = vadd.f32 0.0, %v9008
      %v9010 = vpop.f32.mrf.mxu0
      %9011 = vmatprep.mubr.f32.mxu0 0.0
      %9012 = vmatmul.mubr.f32.gmra.mxu0 %v8407
      %v9013 = vpop.f32.mrf.mxu0
      %v9014 = vadd.f32 0.0, %v9013
      %v9015 = vpop.f32.mrf.mxu0
      %9016 = vmatprep.mubr.f32.mxu0 0.0
      %9017 = vmatmul.mubr.f32.gmra.mxu0 %v8410
      %v9018 = vpop.f32.mrf.mxu0
      %v9019 = vadd.f32 0.0, %v9018
      %v9020 = vpop.f32.mrf.mxu0
      %9021 = vmatprep.mubr.f32.mxu0 0.0
      %9022 = vmatmul.mubr.f32.gmra.mxu0 %v8413
      %v9023 = vpop.f32.mrf.mxu0
      %v9024 = vadd.f32 0.0, %v9023
      %v9025 = vpop.f32.mrf.mxu0
      %9026 = vmatprep.mubr.f32.mxu0 0.0
      %9027 = vmatmul.mubr.f32.gmra.mxu0 %v8416
      %v9028 = vpop.f32.mrf.mxu0
      %v9029 = vadd.f32 0.0, %v9028
      %v9030 = vpop.f32.mrf.mxu0
      %9031 = vmatprep.mubr.f32.mxu0 0.0
      %9032 = vmatmul.mubr.f32.gmra.mxu0 %v8419
      %v9033 = vpop.f32.mrf.mxu0
      %v9034 = vadd.f32 0.0, %v9033
      %v9035 = vpop.f32.mrf.mxu0
      %9036 = vmatprep.mubr.f32.mxu0 0.0
      %9037 = vmatmul.mubr.f32.gmra.mxu0 %v8422
      %v9038 = vpop.f32.mrf.mxu0
      %v9039 = vadd.f32 0.0, %v9038
      %v9040 = vpop.f32.mrf.mxu0
      %9041 = vmatprep.mubr.f32.mxu0 0.0
      %9042 = vmatmul.mubr.f32.gmra.mxu0 %v8425
      %v9043 = vpop.f32.mrf.mxu0
      %v9044 = vadd.f32 0.0, %v9043
      %v9045 = vpop.f32.mrf.mxu0
      %9046 = vmatprep.mubr.f32.mxu0 0.0
      %9047 = vmatmul.mubr.f32.gmra.mxu0 %v8428
      %v9048 = vpop.f32.mrf.mxu0
      %v9049 = vadd.f32 0.0, %v9048
      %v9050 = vpop.f32.mrf.mxu0
      %9051 = vmatprep.mubr.f32.mxu0 0.0
      %9052 = vmatmul.mubr.f32.gmra.mxu0 %v8431
      %v9053 = vpop.f32.mrf.mxu0
      %v9054 = vadd.f32 0.0, %v9053
      %v9055 = vpop.f32.mrf.mxu0
      %9056 = vmatprep.mubr.f32.mxu0 0.0
      %9057 = vmatmul.mubr.f32.gmra.mxu0 %v8434
      %v9058 = vpop.f32.mrf.mxu0
      %v9059 = vadd.f32 0.0, %v9058
      %v9060 = vpop.f32.mrf.mxu0
      %9061 = vmatprep.mubr.f32.mxu0 0.0
      %9062 = vmatmul.mubr.f32.gmra.mxu0 %v8437
      %v9063 = vpop.f32.mrf.mxu0
      %v9064 = vadd.f32 0.0, %v9063
      %v9065 = vpop.f32.mrf.mxu0
      %9066 = vmatprep.mubr.f32.mxu0 0.0
      %9067 = vmatmul.mubr.f32.gmra.mxu0 %v8440
      %v9068 = vpop.f32.mrf.mxu0
      %v9069 = vadd.f32 0.0, %v9068
      %v9070 = vpop.f32.mrf.mxu0
      %9071 = vmatprep.mubr.f32.mxu0 0.0
      %9072 = vmatmul.mubr.f32.gmra.mxu0 %v8443
      %v9073 = vpop.f32.mrf.mxu0
      %v9074 = vadd.f32 0.0, %v9073
      %v9075 = vpop.f32.mrf.mxu0
      %9076 = vmatprep.mubr.f32.mxu0 0.0
      %9077 = vmatmul.mubr.f32.gmra.mxu0 %v8446
      %v9078 = vpop.f32.mrf.mxu0
      %v9079 = vadd.f32 0.0, %v9078
      %v9080 = vpop.f32.mrf.mxu0
      %9081 = vmatprep.mubr.f32.mxu0 0.0
      %9082 = vmatmul.mubr.f32.gmra.mxu0 %v8449
      %v9083 = vpop.f32.mrf.mxu0
      %v9084 = vadd.f32 0.0, %v9083
      %v9085 = vpop.f32.mrf.mxu0
      %9086 = vmatprep.mubr.f32.mxu0 0.0
      %9087 = vmatmul.mubr.f32.gmra.mxu0 %v8452
      %v9088 = vpop.f32.mrf.mxu0
      %v9089 = vadd.f32 0.0, %v9088
      %v9090 = vpop.f32.mrf.mxu0
      %9091 = vmatprep.mubr.f32.mxu0 0.0
      %9092 = vmatmul.mubr.f32.gmra.mxu0 %v8455
      %v9093 = vpop.f32.mrf.mxu0
      %v9094 = vadd.f32 0.0, %v9093
      %v9095 = vpop.f32.mrf.mxu0
      %9096 = vmatprep.mubr.f32.mxu0 0.0
      %9097 = vmatmul.mubr.f32.gmra.mxu0 %v8458
      %v9098 = vpop.f32.mrf.mxu0
      %v9099 = vadd.f32 0.0, %v9098
      %v9100 = vpop.f32.mrf.mxu0
      %9101 = vmatprep.mubr.f32.mxu0 0.0
      %9102 = vmatmul.mubr.f32.gmra.mxu0 %v8461
      %v9103 = vpop.f32.mrf.mxu0
      %v9104 = vadd.f32 0.0, %v9103
      %v9105 = vpop.f32.mrf.mxu0
      %9106 = vmatprep.mubr.f32.mxu0 0.0
      %9107 = vmatmul.mubr.f32.gmra.mxu0 %v8464
      %v9108 = vpop.f32.mrf.mxu0
      %v9109 = vadd.f32 0.0, %v9108
      %v9110 = vpop.f32.mrf.mxu0
      %9111 = vmatprep.mubr.f32.mxu0 0.0
      %9112 = vmatmul.mubr.f32.gmra.mxu0 %v8467
      %v9113 = vpop.f32.mrf.mxu0
      %v9114 = vadd.f32 0.0, %v9113
      %v9115 = vpop.f32.mrf.mxu0
      %9116 = vmatprep.mubr.f32.mxu0 0.0
      %9117 = vmatmul.mubr.f32.gmra.mxu0 %v8470
      %v9118 = vpop.f32.mrf.mxu0
      %v9119 = vadd.f32 0.0, %v9118
      %v9120 = vpop.f32.mrf.mxu0
      %9121 = vmatprep.mubr.f32.mxu0 0.0
      %9122 = vmatmul.mubr.f32.gmra.mxu0 %v8473
      %v9123 = vpop.f32.mrf.mxu0
      %v9124 = vadd.f32 0.0, %v9123
      %v9125 = vpop.f32.mrf.mxu0
      %9126 = vmatprep.mubr.f32.mxu0 0.0
      %9127 = vmatmul.mubr.f32.gmra.mxu0 %v8476
      %v9128 = vpop.f32.mrf.mxu0
      %v9129 = vadd.f32 0.0, %v9128
      %v9130 = vpop.f32.mrf.mxu0
      %9131 = vmatprep.mubr.f32.mxu0 0.0
      %9132 = vmatmul.mubr.f32.gmra.mxu0 %v8479
      %v9133 = vpop.f32.mrf.mxu0
      %v9134 = vadd.f32 0.0, %v9133
      %v9135 = vpop.f32.mrf.mxu0
      %9136 = vmatprep.mubr.f32.mxu0 0.0
      %9137 = vmatmul.mubr.f32.gmra.mxu0 %v8482
      %v9138 = vpop.f32.mrf.mxu0
      %v9139 = vadd.f32 0.0, %v9138
      %v9140 = vpop.f32.mrf.mxu0
      %9141 = vmatprep.mubr.f32.mxu0 0.0
      %9142 = vmatmul.mubr.f32.gmra.mxu0 %v8485
      %v9143 = vpop.f32.mrf.mxu0
      %v9144 = vadd.f32 0.0, %v9143
      %v9145 = vpop.f32.mrf.mxu0
      %9146 = vmatprep.mubr.f32.mxu0 0.0
      %9147 = vmatmul.mubr.f32.gmra.mxu0 %v8488
      %v9148 = vpop.f32.mrf.mxu0
      %v9149 = vadd.f32 0.0, %v9148
      %v9150 = vpop.f32.mrf.mxu0
      %9151 = vmatprep.mubr.f32.mxu0 0.0
      %9152 = vmatmul.mubr.f32.gmra.mxu0 %v8491
      %v9153 = vpop.f32.mrf.mxu0
      %v9154 = vadd.f32 0.0, %v9153
      %v9155 = vpop.f32.mrf.mxu0
      %9156 = vmatprep.mubr.f32.mxu0 0.0
      %9157 = vmatmul.mubr.f32.gmra.mxu0 %v8494
      %v9158 = vpop.f32.mrf.mxu0
      %v9159 = vadd.f32 0.0, %v9158
      %v9160 = vpop.f32.mrf.mxu0
      %9161 = vmatprep.mubr.f32.mxu0 0.0
      %9162 = vmatmul.mubr.f32.gmra.mxu0 %v8497
      %v9163 = vpop.f32.mrf.mxu0
      %v9164 = vadd.f32 0.0, %v9163
      %v9165 = vpop.f32.mrf.mxu0
      %9166 = vmatprep.mubr.f32.mxu0 0.0
      %9167 = vmatmul.mubr.f32.gmra.mxu0 %v8500
      %v9168 = vpop.f32.mrf.mxu0
      %v9169 = vadd.f32 0.0, %v9168
      %v9170 = vpop.f32.mrf.mxu0
      %9171 = vmatprep.mubr.f32.mxu0 0.0
      %9172 = vmatmul.mubr.f32.gmra.mxu0 %v8503
      %v9173 = vpop.f32.mrf.mxu0
      %v9174 = vadd.f32 0.0, %v9173
      %v9175 = vpop.f32.mrf.mxu0
      %9176 = vmatprep.mubr.f32.mxu0 0.0
      %9177 = vmatmul.mubr.f32.gmra.mxu0 %v8506
      %v9178 = vpop.f32.mrf.mxu0
      %v9179 = vadd.f32 0.0, %v9178
      %v9180 = vpop.f32.mrf.mxu0
      %9181 = vmatprep.mubr.f32.mxu0 0.0
      %9182 = vmatmul.mubr.f32.gmra.mxu0 %v8509
      %v9183 = vpop.f32.mrf.mxu0
      %v9184 = vadd.f32 0.0, %v9183
      %v9185 = vpop.f32.mrf.mxu0
      %9186 = vmatprep.mubr.f32.mxu0 0.0
      %9187 = vmatmul.mubr.f32.gmra.mxu0 %v8512
      %v9188 = vpop.f32.mrf.mxu0
      %v9189 = vadd.f32 0.0, %v9188
      %v9190 = vpop.f32.mrf.mxu0
      %9191 = vmatprep.mubr.f32.mxu0 0.0
      %9192 = vmatmul.mubr.f32.gmra.mxu0 %v8515
      %v9193 = vpop.f32.mrf.mxu0
      %v9194 = vadd.f32 0.0, %v9193
      %v9195 = vpop.f32.mrf.mxu0
      %9196 = vmatprep.mubr.f32.mxu0 0.0
      %9197 = vmatmul.mubr.f32.gmra.mxu0 %v8518
      %v9198 = vpop.f32.mrf.mxu0
      %v9199 = vadd.f32 0.0, %v9198
      %v9200 = vpop.f32.mrf.mxu0
      %9201 = vmatprep.mubr.f32.mxu0 0.0
      %9202 = vmatmul.mubr.f32.gmra.mxu0 %v8521
      %v9203 = vpop.f32.mrf.mxu0
      %v9204 = vadd.f32 0.0, %v9203
      %v9205 = vpop.f32.mrf.mxu0
      %9206 = vmatprep.mubr.f32.mxu0 0.0
      %9207 = vmatmul.mubr.f32.gmra.mxu0 %v8524
      %v9208 = vpop.f32.mrf.mxu0
      %v9209 = vadd.f32 0.0, %v9208
      %v9210 = vpop.f32.mrf.mxu0
      %9211 = vmatprep.mubr.f32.mxu0 0.0
      %9212 = vmatmul.mubr.f32.gmra.mxu0 %v8527
      %v9213 = vpop.f32.mrf.mxu0
      %v9214 = vadd.f32 0.0, %v9213
      %v9215 = vpop.f32.mrf.mxu0
      %9216 = vmatprep.mubr.f32.mxu0 0.0
      %9217 = vmatmul.mubr.f32.gmra.mxu0 %v8530
      %v9218 = vpop.f32.mrf.mxu0
      %v9219 = vadd.f32 0.0, %v9218
      %v9220 = vpop.f32.mrf.mxu0
      %9221 = vmatprep.mubr.f32.mxu0 0.0
      %9222 = vmatmul.mubr.f32.gmra.mxu0 %v8533
      %v9223 = vpop.f32.mrf.mxu0
      %v9224 = vadd.f32 0.0, %v9223
      %v9225 = vpop.f32.mrf.mxu0
      %9226 = vmatprep.mubr.f32.mxu0 0.0
      %9227 = vmatmul.mubr.f32.gmra.mxu0 %v8536
      %v9228 = vpop.f32.mrf.mxu0
      %v9229 = vadd.f32 0.0, %v9228
      %v9230 = vpop.f32.mrf.mxu0
      %9231 = vmatprep.mubr.f32.mxu0 0.0
      %9232 = vmatmul.mubr.f32.gmra.mxu0 %v8539
      %v9233 = vpop.f32.mrf.mxu0
      %v9234 = vadd.f32 0.0, %v9233
      %v9235 = vpop.f32.mrf.mxu0
      %9236 = vmatprep.mubr.f32.mxu0 0.0
      %9237 = vmatmul.mubr.f32.gmra.mxu0 %v8542
      %v9238 = vpop.f32.mrf.mxu0
      %v9239 = vadd.f32 0.0, %v9238
      %v9240 = vpop.f32.mrf.mxu0
      %9241 = vmatprep.mubr.f32.mxu0 0.0
      %9242 = vmatmul.mubr.f32.gmra.mxu0 %v8545
      %v9243 = vpop.f32.mrf.mxu0
      %v9244 = vadd.f32 0.0, %v9243
      %v9245 = vpop.f32.mrf.mxu0
      %9246 = vmatprep.mubr.f32.mxu0 0.0
      %9247 = vmatmul.mubr.f32.gmra.mxu0 %v8548
      %v9248 = vpop.f32.mrf.mxu0
      %v9249 = vadd.f32 0.0, %v9248
      %v9250 = vpop.f32.mrf.mxu0
      %9251 = vmatprep.mubr.f32.mxu0 0.0
      %9252 = vmatmul.mubr.f32.gmra.mxu0 %v8551
      %v9253 = vpop.f32.mrf.mxu0
      %v9254 = vadd.f32 0.0, %v9253
      %v9255 = vpop.f32.mrf.mxu0
      %9256 = vmatprep.mubr.f32.mxu0 0.0
      %9257 = vmatmul.mubr.f32.gmra.mxu0 %v8554
      %v9258 = vpop.f32.mrf.mxu0
      %v9259 = vadd.f32 0.0, %v9258
      %v9260 = vpop.f32.mrf.mxu0
      %9261 = vmatprep.mubr.f32.mxu0 0.0
      %9262 = vmatmul.mubr.f32.gmra.mxu0 %v8557
      %v9263 = vpop.f32.mrf.mxu0
      %v9264 = vadd.f32 0.0, %v9263
      %v9265 = vpop.f32.mrf.mxu0
      %9266 = vdwg.mxu0
      %v9267 = vadd.f32 %v7916, %v8629
      %v9268 = vadd.f32 %v7917, %v8634
      %v9269 = vadd.f32 %v7918, %v8639
      %v9270 = vadd.f32 %v7919, %v8644
      %v9271 = vadd.f32 %v7920, %v8649
      %v9272 = vadd.f32 %v7921, %v8654
      %v9273 = vadd.f32 %v7922, %v8659
      %v9274 = vadd.f32 %v7923, %v8664
      %v9275 = vadd.f32 %v7924, %v8669
      %v9276 = vadd.f32 %v7925, %v8674
      %v9277 = vadd.f32 %v7926, %v8679
      %v9278 = vadd.f32 %v7927, %v8684
      %v9279 = vadd.f32 %v7928, %v8689
      %v9280 = vadd.f32 %v7929, %v8694
      %v9281 = vadd.f32 %v7930, %v8699
      %v9282 = vadd.f32 %v7931, %v8704
      %v9283 = vadd.f32 %v7932, %v8709
      %v9284 = vadd.f32 %v7933, %v8714
      %v9285 = vadd.f32 %v7934, %v8719
      %v9286 = vadd.f32 %v7935, %v8724
      %v9287 = vadd.f32 %v7936, %v8729
      %v9288 = vadd.f32 %v7937, %v8734
      %v9289 = vadd.f32 %v7938, %v8739
      %v9290 = vadd.f32 %v7939, %v8744
      %v9291 = vadd.f32 %v7940, %v8749
      %v9292 = vadd.f32 %v7941, %v8754
      %v9293 = vadd.f32 %v7942, %v8759
      %v9294 = vadd.f32 %v7943, %v8764
      %v9295 = vadd.f32 %v7944, %v8769
      %v9296 = vadd.f32 %v7945, %v8774
      %v9297 = vadd.f32 %v7946, %v8779
      %v9298 = vadd.f32 %v7947, %v8784
      %v9299 = vadd.f32 %v7948, %v8789
      %v9300 = vadd.f32 %v7949, %v8794
      %v9301 = vadd.f32 %v7950, %v8799
      %v9302 = vadd.f32 %v7951, %v8804
      %v9303 = vadd.f32 %v7952, %v8809
      %v9304 = vadd.f32 %v7953, %v8814
      %v9305 = vadd.f32 %v7954, %v8819
      %v9306 = vadd.f32 %v7955, %v8824
      %v9307 = vadd.f32 %v7956, %v8829
      %v9308 = vadd.f32 %v7957, %v8834
      %v9309 = vadd.f32 %v7958, %v8839
      %v9310 = vadd.f32 %v7959, %v8844
      %v9311 = vadd.f32 %v7960, %v8849
      %v9312 = vadd.f32 %v7961, %v8854
      %v9313 = vadd.f32 %v7962, %v8859
      %v9314 = vadd.f32 %v7963, %v8864
      %v9315 = vadd.f32 %v7964, %v8869
      %v9316 = vadd.f32 %v7965, %v8874
      %v9317 = vadd.f32 %v7966, %v8879
      %v9318 = vadd.f32 %v7967, %v8884
      %v9319 = vadd.f32 %v7968, %v8889
      %v9320 = vadd.f32 %v7969, %v8894
      %v9321 = vadd.f32 %v7970, %v8899
      %v9322 = vadd.f32 %v7971, %v8904
      %v9323 = vadd.f32 %v7972, %v8909
      %v9324 = vadd.f32 %v7973, %v8914
      %v9325 = vadd.f32 %v7974, %v8919
      %v9326 = vadd.f32 %v7975, %v8924
      %v9327 = vadd.f32 %v7976, %v8929
      %v9328 = vadd.f32 %v7977, %v8934
      %v9329 = vadd.f32 %v7978, %v8939
      %v9330 = vadd.f32 %v7979, %v8944
      %v9331 = vadd.f32 %v7980, %v8949
      %v9332 = vadd.f32 %v7981, %v8954
      %v9333 = vadd.f32 %v7982, %v8959
      %v9334 = vadd.f32 %v7983, %v8964
      %v9335 = vadd.f32 %v7984, %v8969
      %v9336 = vadd.f32 %v7985, %v8974
      %v9337 = vadd.f32 %v7986, %v8979
      %v9338 = vadd.f32 %v7987, %v8984
      %v9339 = vadd.f32 %v7988, %v8989
      %v9340 = vadd.f32 %v7989, %v8994
      %v9341 = vadd.f32 %v7990, %v8999
      %v9342 = vadd.f32 %v7991, %v9004
      %v9343 = vadd.f32 %v7992, %v9009
      %v9344 = vadd.f32 %v7993, %v9014
      %v9345 = vadd.f32 %v7994, %v9019
      %v9346 = vadd.f32 %v7995, %v9024
      %v9347 = vadd.f32 %v7996, %v9029
      %v9348 = vadd.f32 %v7997, %v9034
      %v9349 = vadd.f32 %v7998, %v9039
      %v9350 = vadd.f32 %v7999, %v9044
      %v9351 = vadd.f32 %v8000, %v9049
      %v9352 = vadd.f32 %v8001, %v9054
      %v9353 = vadd.f32 %v8002, %v9059
      %v9354 = vadd.f32 %v8003, %v9064
      %v9355 = vadd.f32 %v8004, %v9069
      %v9356 = vadd.f32 %v8005, %v9074
      %v9357 = vadd.f32 %v8006, %v9079
      %v9358 = vadd.f32 %v8007, %v9084
      %v9359 = vadd.f32 %v8008, %v9089
      %v9360 = vadd.f32 %v8009, %v9094
      %v9361 = vadd.f32 %v8010, %v9099
      %v9362 = vadd.f32 %v8011, %v9104
      %v9363 = vadd.f32 %v8012, %v9109
      %v9364 = vadd.f32 %v8013, %v9114
      %v9365 = vadd.f32 %v8014, %v9119
      %v9366 = vadd.f32 %v8015, %v9124
      %v9367 = vadd.f32 %v8016, %v9129
      %v9368 = vadd.f32 %v8017, %v9134
      %v9369 = vadd.f32 %v8018, %v9139
      %v9370 = vadd.f32 %v8019, %v9144
      %v9371 = vadd.f32 %v8020, %v9149
      %v9372 = vadd.f32 %v8021, %v9154
      %v9373 = vadd.f32 %v8022, %v9159
      %v9374 = vadd.f32 %v8023, %v9164
      %v9375 = vadd.f32 %v8024, %v9169
      %v9376 = vadd.f32 %v8025, %v9174
      %v9377 = vadd.f32 %v8026, %v9179
      %v9378 = vadd.f32 %v8027, %v9184
      %v9379 = vadd.f32 %v8028, %v9189
      %v9380 = vadd.f32 %v8029, %v9194
      %v9381 = vadd.f32 %v8030, %v9199
      %v9382 = vadd.f32 %v8031, %v9204
      %v9383 = vadd.f32 %v8032, %v9209
      %v9384 = vadd.f32 %v8033, %v9214
      %v9385 = vadd.f32 %v8034, %v9219
      %v9386 = vadd.f32 %v8035, %v9224
      %v9387 = vadd.f32 %v8036, %v9229
      %v9388 = vadd.f32 %v8037, %v9234
      %v9389 = vadd.f32 %v8038, %v9239
      %v9390 = vadd.f32 %v8039, %v9244
      %v9391 = vadd.f32 %v8040, %v9249
      %v9392 = vadd.f32 %v8041, %v9254
      %v9393 = vadd.f32 %v8042, %v9259
      %v9394 = vadd.f32 %v8043, %v9264
      %v9395 = vld [vmem:[%s8044 + $0x1] sm:$0xff]
      %v9396 = vld [vmem:[%s8044 + $0x9] sm:$0xff]
      %v9397 = vld [vmem:[%s8044 + $0x11] sm:$0xff]
      %v9398 = vld [vmem:[%s8044 + $0x19] sm:$0xff]
      %v9399 = vld [vmem:[%s8044 + $0x29] sm:$0xff]
      %v9400 = vld [vmem:[%s8044 + $0x31] sm:$0xff]
      %v9401 = vld [vmem:[%s8044 + $0x39] sm:$0xff]
      %v9402 = vld [vmem:[%s8044 + $0x41] sm:$0xff]
      %v9403 = vld [vmem:[%s8044 + $0x51] sm:$0xff]
      %v9404 = vld [vmem:[%s8044 + $0x59] sm:$0xff]
      %v9405 = vld [vmem:[%s8044 + $0x61] sm:$0xff]
      %v9406 = vld [vmem:[%s8044 + $0x69] sm:$0xff]
      %v9407 = vld [vmem:[%s8044 + $0x79] sm:$0xff]
      %v9408 = vld [vmem:[%s8044 + $0x81] sm:$0xff]
      %v9409 = vld [vmem:[%s8044 + $0x89] sm:$0xff]
      %v9410 = vld [vmem:[%s8044 + $0x91] sm:$0xff]
      %v9411 = vld [vmem:[%s8044 + $0xa1] sm:$0xff]
      %v9412 = vld [vmem:[%s8044 + $0xa9] sm:$0xff]
      %v9413 = vld [vmem:[%s8044 + $0xb1] sm:$0xff]
      %v9414 = vld [vmem:[%s8044 + $0xb9] sm:$0xff]
      %v9415 = vld [vmem:[%s8044 + $0xc9] sm:$0xff]
      %v9416 = vld [vmem:[%s8044 + $0xd1] sm:$0xff]
      %v9417 = vld [vmem:[%s8044 + $0xd9] sm:$0xff]
      %v9418 = vld [vmem:[%s8044 + $0xe1] sm:$0xff]
      %v9419 = vld [vmem:[%s8044 + $0xf1] sm:$0xff]
      %v9420 = vld [vmem:[%s8044 + $0xf9] sm:$0xff]
      %v9421 = vld [vmem:[%s8044 + $0x101] sm:$0xff]
      %v9422 = vld [vmem:[%s8044 + $0x109] sm:$0xff]
      %v9423 = vld [vmem:[%s8044 + $0x119] sm:$0xff]
      %v9424 = vld [vmem:[%s8044 + $0x121] sm:$0xff]
      %v9425 = vld [vmem:[%s8044 + $0x129] sm:$0xff]
      %v9426 = vld [vmem:[%s8044 + $0x131] sm:$0xff]
      %v9427 = vld [vmem:[%s8044 + $0x141] sm:$0xff]
      %v9428 = vld [vmem:[%s8044 + $0x149] sm:$0xff]
      %v9429 = vld [vmem:[%s8044 + $0x151] sm:$0xff]
      %v9430 = vld [vmem:[%s8044 + $0x159] sm:$0xff]
      %v9431 = vld [vmem:[%s8044 + $0x169] sm:$0xff]
      %v9432 = vld [vmem:[%s8044 + $0x171] sm:$0xff]
      %v9433 = vld [vmem:[%s8044 + $0x179] sm:$0xff]
      %v9434 = vld [vmem:[%s8044 + $0x181] sm:$0xff]
      %v9435 = vld [vmem:[%s8044 + $0x191] sm:$0xff]
      %v9436 = vld [vmem:[%s8044 + $0x199] sm:$0xff]
      %v9437 = vld [vmem:[%s8044 + $0x1a1] sm:$0xff]
      %v9438 = vld [vmem:[%s8044 + $0x1a9] sm:$0xff]
      %v9439 = vld [vmem:[%s8044 + $0x1b9] sm:$0xff]
      %v9440 = vld [vmem:[%s8044 + $0x1c1] sm:$0xff]
      %v9441 = vld [vmem:[%s8044 + $0x1c9] sm:$0xff]
      %v9442 = vld [vmem:[%s8044 + $0x1d1] sm:$0xff]
      %v9443 = vld [vmem:[%s8044 + $0x1e1] sm:$0xff]
      %v9444 = vld [vmem:[%s8044 + $0x1e9] sm:$0xff]
      %v9445 = vld [vmem:[%s8044 + $0x1f1] sm:$0xff]
      %v9446 = vld [vmem:[%s8044 + $0x1f9] sm:$0xff]
      %v9447 = vld [vmem:[%s8044 + $0x209] sm:$0xff]
      %v9448 = vld [vmem:[%s8044 + $0x211] sm:$0xff]
      %v9449 = vld [vmem:[%s8044 + $0x219] sm:$0xff]
      %v9450 = vld [vmem:[%s8044 + $0x221] sm:$0xff]
      %v9451 = vld [vmem:[%s8044 + $0x231] sm:$0xff]
      %v9452 = vld [vmem:[%s8044 + $0x239] sm:$0xff]
      %v9453 = vld [vmem:[%s8044 + $0x241] sm:$0xff]
      %v9454 = vld [vmem:[%s8044 + $0x249] sm:$0xff]
      %v9455 = vld [vmem:[%s8044 + $0x259] sm:$0xff]
      %v9456 = vld [vmem:[%s8044 + $0x261] sm:$0xff]
      %v9457 = vld [vmem:[%s8044 + $0x269] sm:$0xff]
      %v9458 = vld [vmem:[%s8044 + $0x271] sm:$0xff]
      %v9459 = vld [vmem:[%s8044 + $0x281] sm:$0xff]
      %v9460 = vld [vmem:[%s8044 + $0x289] sm:$0xff]
      %v9461 = vld [vmem:[%s8044 + $0x291] sm:$0xff]
      %v9462 = vld [vmem:[%s8044 + $0x299] sm:$0xff]
      %v9463 = vld [vmem:[%s8044 + $0x2a9] sm:$0xff]
      %v9464 = vld [vmem:[%s8044 + $0x2b1] sm:$0xff]
      %v9465 = vld [vmem:[%s8044 + $0x2b9] sm:$0xff]
      %v9466 = vld [vmem:[%s8044 + $0x2c1] sm:$0xff]
      %v9467 = vld [vmem:[%s8044 + $0x2d1] sm:$0xff]
      %v9468 = vld [vmem:[%s8044 + $0x2d9] sm:$0xff]
      %v9469 = vld [vmem:[%s8044 + $0x2e1] sm:$0xff]
      %v9470 = vld [vmem:[%s8044 + $0x2e9] sm:$0xff]
      %v9471 = vld [vmem:[%s8044 + $0x2f9] sm:$0xff]
      %v9472 = vld [vmem:[%s8044 + $0x301] sm:$0xff]
      %v9473 = vld [vmem:[%s8044 + $0x309] sm:$0xff]
      %v9474 = vld [vmem:[%s8044 + $0x311] sm:$0xff]
      %v9475 = vld [vmem:[%s8044 + $0x321] sm:$0xff]
      %v9476 = vld [vmem:[%s8044 + $0x329] sm:$0xff]
      %v9477 = vld [vmem:[%s8044 + $0x331] sm:$0xff]
      %v9478 = vld [vmem:[%s8044 + $0x339] sm:$0xff]
      %v9479 = vld [vmem:[%s8044 + $0x349] sm:$0xff]
      %v9480 = vld [vmem:[%s8044 + $0x351] sm:$0xff]
      %v9481 = vld [vmem:[%s8044 + $0x359] sm:$0xff]
      %v9482 = vld [vmem:[%s8044 + $0x361] sm:$0xff]
      %v9483 = vld [vmem:[%s8044 + $0x371] sm:$0xff]
      %v9484 = vld [vmem:[%s8044 + $0x379] sm:$0xff]
      %v9485 = vld [vmem:[%s8044 + $0x381] sm:$0xff]
      %v9486 = vld [vmem:[%s8044 + $0x389] sm:$0xff]
      %v9487 = vld [vmem:[%s8044 + $0x399] sm:$0xff]
      %v9488 = vld [vmem:[%s8044 + $0x3a1] sm:$0xff]
      %v9489 = vld [vmem:[%s8044 + $0x3a9] sm:$0xff]
      %v9490 = vld [vmem:[%s8044 + $0x3b1] sm:$0xff]
      %v9491 = vld [vmem:[%s8044 + $0x3c1] sm:$0xff]
      %v9492 = vld [vmem:[%s8044 + $0x3c9] sm:$0xff]
      %v9493 = vld [vmem:[%s8044 + $0x3d1] sm:$0xff]
      %v9494 = vld [vmem:[%s8044 + $0x3d9] sm:$0xff]
      %v9495 = vld [vmem:[%s8044 + $0x3e9] sm:$0xff]
      %v9496 = vld [vmem:[%s8044 + $0x3f1] sm:$0xff]
      %v9497 = vld [vmem:[%s8044 + $0x3f9] sm:$0xff]
      %v9498 = vld [vmem:[%s8044 + $0x401] sm:$0xff]
      %v9499 = vld [vmem:[%s8044 + $0x411] sm:$0xff]
      %v9500 = vld [vmem:[%s8044 + $0x419] sm:$0xff]
      %v9501 = vld [vmem:[%s8044 + $0x421] sm:$0xff]
      %v9502 = vld [vmem:[%s8044 + $0x429] sm:$0xff]
      %v9503 = vld [vmem:[%s8044 + $0x439] sm:$0xff]
      %v9504 = vld [vmem:[%s8044 + $0x441] sm:$0xff]
      %v9505 = vld [vmem:[%s8044 + $0x449] sm:$0xff]
      %v9506 = vld [vmem:[%s8044 + $0x451] sm:$0xff]
      %v9507 = vld [vmem:[%s8044 + $0x461] sm:$0xff]
      %v9508 = vld [vmem:[%s8044 + $0x469] sm:$0xff]
      %v9509 = vld [vmem:[%s8044 + $0x471] sm:$0xff]
      %v9510 = vld [vmem:[%s8044 + $0x479] sm:$0xff]
      %v9511 = vld [vmem:[%s8044 + $0x489] sm:$0xff]
      %v9512 = vld [vmem:[%s8044 + $0x491] sm:$0xff]
      %v9513 = vld [vmem:[%s8044 + $0x499] sm:$0xff]
      %v9514 = vld [vmem:[%s8044 + $0x4a1] sm:$0xff]
      %v9515 = vld [vmem:[%s8044 + $0x4b1] sm:$0xff]
      %v9516 = vld [vmem:[%s8044 + $0x4b9] sm:$0xff]
      %v9517 = vld [vmem:[%s8044 + $0x4c1] sm:$0xff]
      %v9518 = vld [vmem:[%s8044 + $0x4c9] sm:$0xff]
      %v9519 = vld [vmem:[%s8044 + $0x4d9] sm:$0xff]
      %v9520 = vld [vmem:[%s8044 + $0x4e1] sm:$0xff]
      %v9521 = vld [vmem:[%s8044 + $0x4e9] sm:$0xff]
      %v9522 = vld [vmem:[%s8044 + $0x4f1] sm:$0xff]
      %s9523 = scalar_lea.vmem %s1, 28
      %v9524 = vld [vmem:[%s9523] sm:$0xf]
      %v9526 = vsel %vm457, %v9395, 0
      %v9529 = vsel %vm457, %v9396, 0
      %v9532 = vsel %vm457, %v9397, 0
      %v9535 = vsel %vm457, %v9398, 0
      %v9538 = vsel %vm457, %v9399, 0
      %v9541 = vsel %vm457, %v9400, 0
      %v9544 = vsel %vm457, %v9401, 0
      %v9547 = vsel %vm457, %v9402, 0
      %v9550 = vsel %vm457, %v9403, 0
      %v9553 = vsel %vm457, %v9404, 0
      %v9556 = vsel %vm457, %v9405, 0
      %v9559 = vsel %vm457, %v9406, 0
      %v9562 = vsel %vm457, %v9407, 0
      %v9565 = vsel %vm457, %v9408, 0
      %v9568 = vsel %vm457, %v9409, 0
      %v9571 = vsel %vm457, %v9410, 0
      %v9574 = vsel %vm457, %v9411, 0
      %v9577 = vsel %vm457, %v9412, 0
      %v9580 = vsel %vm457, %v9413, 0
      %v9583 = vsel %vm457, %v9414, 0
      %v9586 = vsel %vm457, %v9415, 0
      %v9589 = vsel %vm457, %v9416, 0
      %v9592 = vsel %vm457, %v9417, 0
      %v9595 = vsel %vm457, %v9418, 0
      %v9598 = vsel %vm457, %v9419, 0
      %v9601 = vsel %vm457, %v9420, 0
      %v9604 = vsel %vm457, %v9421, 0
      %v9607 = vsel %vm457, %v9422, 0
      %v9610 = vsel %vm457, %v9423, 0
      %v9613 = vsel %vm457, %v9424, 0
      %v9616 = vsel %vm457, %v9425, 0
      %v9619 = vsel %vm457, %v9426, 0
      %v9622 = vsel %vm457, %v9427, 0
      %v9625 = vsel %vm457, %v9428, 0
      %v9628 = vsel %vm457, %v9429, 0
      %v9631 = vsel %vm457, %v9430, 0
      %v9634 = vsel %vm457, %v9431, 0
      %v9637 = vsel %vm457, %v9432, 0
      %v9640 = vsel %vm457, %v9433, 0
      %v9643 = vsel %vm457, %v9434, 0
      %v9646 = vsel %vm457, %v9435, 0
      %v9649 = vsel %vm457, %v9436, 0
      %v9652 = vsel %vm457, %v9437, 0
      %v9655 = vsel %vm457, %v9438, 0
      %v9658 = vsel %vm457, %v9439, 0
      %v9661 = vsel %vm457, %v9440, 0
      %v9664 = vsel %vm457, %v9441, 0
      %v9667 = vsel %vm457, %v9442, 0
      %v9670 = vsel %vm457, %v9443, 0
      %v9673 = vsel %vm457, %v9444, 0
      %v9676 = vsel %vm457, %v9445, 0
      %v9679 = vsel %vm457, %v9446, 0
      %v9682 = vsel %vm457, %v9447, 0
      %v9685 = vsel %vm457, %v9448, 0
      %v9688 = vsel %vm457, %v9449, 0
      %v9691 = vsel %vm457, %v9450, 0
      %v9694 = vsel %vm457, %v9451, 0
      %v9697 = vsel %vm457, %v9452, 0
      %v9700 = vsel %vm457, %v9453, 0
      %v9703 = vsel %vm457, %v9454, 0
      %v9706 = vsel %vm457, %v9455, 0
      %v9709 = vsel %vm457, %v9456, 0
      %v9712 = vsel %vm457, %v9457, 0
      %v9715 = vsel %vm457, %v9458, 0
      %v9718 = vsel %vm457, %v9459, 0
      %v9721 = vsel %vm457, %v9460, 0
      %v9724 = vsel %vm457, %v9461, 0
      %v9727 = vsel %vm457, %v9462, 0
      %v9730 = vsel %vm457, %v9463, 0
      %v9733 = vsel %vm457, %v9464, 0
      %v9736 = vsel %vm457, %v9465, 0
      %v9739 = vsel %vm457, %v9466, 0
      %v9742 = vsel %vm457, %v9467, 0
      %v9745 = vsel %vm457, %v9468, 0
      %v9748 = vsel %vm457, %v9469, 0
      %v9751 = vsel %vm457, %v9470, 0
      %v9754 = vsel %vm457, %v9471, 0
      %v9757 = vsel %vm457, %v9472, 0
      %v9760 = vsel %vm457, %v9473, 0
      %v9763 = vsel %vm457, %v9474, 0
      %v9766 = vsel %vm457, %v9475, 0
      %v9769 = vsel %vm457, %v9476, 0
      %v9772 = vsel %vm457, %v9477, 0
      %v9775 = vsel %vm457, %v9478, 0
      %v9778 = vsel %vm457, %v9479, 0
      %v9781 = vsel %vm457, %v9480, 0
      %v9784 = vsel %vm457, %v9481, 0
      %v9787 = vsel %vm457, %v9482, 0
      %v9790 = vsel %vm457, %v9483, 0
      %v9793 = vsel %vm457, %v9484, 0
      %v9796 = vsel %vm457, %v9485, 0
      %v9799 = vsel %vm457, %v9486, 0
      %v9802 = vsel %vm457, %v9487, 0
      %v9805 = vsel %vm457, %v9488, 0
      %v9808 = vsel %vm457, %v9489, 0
      %v9811 = vsel %vm457, %v9490, 0
      %v9814 = vsel %vm457, %v9491, 0
      %v9817 = vsel %vm457, %v9492, 0
      %v9820 = vsel %vm457, %v9493, 0
      %v9823 = vsel %vm457, %v9494, 0
      %v9826 = vsel %vm457, %v9495, 0
      %v9829 = vsel %vm457, %v9496, 0
      %v9832 = vsel %vm457, %v9497, 0
      %v9835 = vsel %vm457, %v9498, 0
      %v9838 = vsel %vm457, %v9499, 0
      %v9841 = vsel %vm457, %v9500, 0
      %v9844 = vsel %vm457, %v9501, 0
      %v9847 = vsel %vm457, %v9502, 0
      %v9850 = vsel %vm457, %v9503, 0
      %v9853 = vsel %vm457, %v9504, 0
      %v9856 = vsel %vm457, %v9505, 0
      %v9859 = vsel %vm457, %v9506, 0
      %v9862 = vsel %vm457, %v9507, 0
      %v9865 = vsel %vm457, %v9508, 0
      %v9868 = vsel %vm457, %v9509, 0
      %v9871 = vsel %vm457, %v9510, 0
      %v9874 = vsel %vm457, %v9511, 0
      %v9877 = vsel %vm457, %v9512, 0
      %v9880 = vsel %vm457, %v9513, 0
      %v9883 = vsel %vm457, %v9514, 0
      %v9886 = vsel %vm457, %v9515, 0
      %v9889 = vsel %vm457, %v9516, 0
      %v9892 = vsel %vm457, %v9517, 0
      %v9895 = vsel %vm457, %v9518, 0
      %v9898 = vsel %vm457, %v9519, 0
      %v9901 = vsel %vm457, %v9520, 0
      %v9904 = vsel %vm457, %v9521, 0
      %v9907 = vsel %vm457, %v9522, 0
      %v9910 = vsel %vm842, %v9524, 0
      %9912 = vmatprep.subr.mxu0 0.0
      %9913 = vmatpush1.msra.mxu0 0.0
      %9914 = vmatprep.subr.mxu0 0.0
      %9915 = vmatpush1.msra.mxu0 0.0
      %9916 = vmatprep.subr.mxu0 0.0
      %9917 = vmatpush1.msra.mxu0 0.0
      %9918 = vmatprep.subr.mxu0 0.0
      %9919 = vmatpush1.msra.mxu0 0.0
      %9920 = vmatprep.subr.mxu0 0.0
      %9921 = vmatpush1.msra.mxu0 0.0
      %9922 = vmatprep.subr.mxu0 0.0
      %9923 = vmatpush1.msra.mxu0 0.0
      %9924 = vmatprep.subr.mxu0 0.0
      %9925 = vmatpush1.msra.mxu0 0.0
      %9926 = vmatprep.subr.mxu0 0.0
      %9927 = vmatpush1.msra.mxu0 0.0
      %9928 = vmatprep.subr.mxu0 0.0
      %9929 = vmatpush1.msra.mxu0 0.0
      %9930 = vmatprep.subr.mxu0 0.0
      %9931 = vmatpush1.msra.mxu0 0.0
      %9932 = vmatprep.subr.mxu0 0.0
      %9933 = vmatpush1.msra.mxu0 0.0
      %9934 = vmatprep.subr.mxu0 0.0
      %9935 = vmatpush1.msra.mxu0 0.0
      %9936 = vmatprep.subr.mxu0 0.0
      %9937 = vmatpush1.msra.mxu0 0.0
      %9938 = vmatprep.subr.mxu0 0.0
      %9939 = vmatpush1.msra.mxu0 0.0
      %9940 = vmatprep.subr.mxu0 0.0
      %9941 = vmatpush1.msra.mxu0 0.0
      %9942 = vmatprep.subr.mxu0 0.0
      %9943 = vmatpush1.msra.mxu0 %v9910
      %9944 = vmatprep.subr.mxu0 0.0
      %9945 = vmatpush2.msra.mxu0 0.0
      %9946 = vmatprep.subr.mxu0 0.0
      %9947 = vmatpush2.msra.mxu0 0.0
      %9948 = vmatprep.subr.mxu0 0.0
      %9949 = vmatpush2.msra.mxu0 0.0
      %9950 = vmatprep.subr.mxu0 0.0
      %9951 = vmatpush2.msra.mxu0 0.0
      %9952 = vmatprep.subr.mxu0 0.0
      %9953 = vmatpush2.msra.mxu0 0.0
      %9954 = vmatprep.subr.mxu0 0.0
      %9955 = vmatpush2.msra.mxu0 0.0
      %9956 = vmatprep.subr.mxu0 0.0
      %9957 = vmatpush2.msra.mxu0 0.0
      %9958 = vmatprep.subr.mxu0 0.0
      %9959 = vmatpush2.msra.mxu0 0.0
      %9960 = vmatprep.subr.mxu0 0.0
      %9961 = vmatpush2.msra.mxu0 0.0
      %9962 = vmatprep.subr.mxu0 0.0
      %9963 = vmatpush2.msra.mxu0 0.0
      %9964 = vmatprep.subr.mxu0 0.0
      %9965 = vmatpush2.msra.mxu0 0.0
      %9966 = vmatprep.subr.mxu0 0.0
      %9967 = vmatpush2.msra.mxu0 0.0
      %9968 = vmatprep.subr.mxu0 0.0
      %9969 = vmatpush2.msra.mxu0 0.0
      %9970 = vmatprep.subr.mxu0 0.0
      %9971 = vmatpush2.msra.mxu0 0.0
      %9972 = vmatprep.subr.mxu0 0.0
      %9973 = vmatpush2.msra.mxu0 0.0
      %9974 = vmatprep.subr.mxu0 0.0
      %9975 = vmatpush2.msra.mxu0 0.0
      %9976 = vmatprep.mubr.f32.mxu0 0.0
      %9977 = vmatmul.mubr.f32.gmra.mxu0 %v9526
      %v9978 = vpop.f32.mrf.mxu0
      %v9979 = vadd.f32 0.0, %v9978
      %v9980 = vpop.f32.mrf.mxu0
      %9981 = vmatprep.mubr.f32.mxu0 0.0
      %9982 = vmatmul.mubr.f32.gmra.mxu0 %v9529
      %v9983 = vpop.f32.mrf.mxu0
      %v9984 = vadd.f32 0.0, %v9983
      %v9985 = vpop.f32.mrf.mxu0
      %9986 = vmatprep.mubr.f32.mxu0 0.0
      %9987 = vmatmul.mubr.f32.gmra.mxu0 %v9532
      %v9988 = vpop.f32.mrf.mxu0
      %v9989 = vadd.f32 0.0, %v9988
      %v9990 = vpop.f32.mrf.mxu0
      %9991 = vmatprep.mubr.f32.mxu0 0.0
      %9992 = vmatmul.mubr.f32.gmra.mxu0 %v9535
      %v9993 = vpop.f32.mrf.mxu0
      %v9994 = vadd.f32 0.0, %v9993
      %v9995 = vpop.f32.mrf.mxu0
      %9996 = vmatprep.mubr.f32.mxu0 0.0
      %9997 = vmatmul.mubr.f32.gmra.mxu0 %v9538
      %v9998 = vpop.f32.mrf.mxu0
      %v9999 = vadd.f32 0.0, %v9998
      %v10000 = vpop.f32.mrf.mxu0
      %10001 = vmatprep.mubr.f32.mxu0 0.0
      %10002 = vmatmul.mubr.f32.gmra.mxu0 %v9541
      %v10003 = vpop.f32.mrf.mxu0
      %v10004 = vadd.f32 0.0, %v10003
      %v10005 = vpop.f32.mrf.mxu0
      %10006 = vmatprep.mubr.f32.mxu0 0.0
      %10007 = vmatmul.mubr.f32.gmra.mxu0 %v9544
      %v10008 = vpop.f32.mrf.mxu0
      %v10009 = vadd.f32 0.0, %v10008
      %v10010 = vpop.f32.mrf.mxu0
      %10011 = vmatprep.mubr.f32.mxu0 0.0
      %10012 = vmatmul.mubr.f32.gmra.mxu0 %v9547
      %v10013 = vpop.f32.mrf.mxu0
      %v10014 = vadd.f32 0.0, %v10013
      %v10015 = vpop.f32.mrf.mxu0
      %10016 = vmatprep.mubr.f32.mxu0 0.0
      %10017 = vmatmul.mubr.f32.gmra.mxu0 %v9550
      %v10018 = vpop.f32.mrf.mxu0
      %v10019 = vadd.f32 0.0, %v10018
      %v10020 = vpop.f32.mrf.mxu0
      %10021 = vmatprep.mubr.f32.mxu0 0.0
      %10022 = vmatmul.mubr.f32.gmra.mxu0 %v9553
      %v10023 = vpop.f32.mrf.mxu0
      %v10024 = vadd.f32 0.0, %v10023
      %v10025 = vpop.f32.mrf.mxu0
      %10026 = vmatprep.mubr.f32.mxu0 0.0
      %10027 = vmatmul.mubr.f32.gmra.mxu0 %v9556
      %v10028 = vpop.f32.mrf.mxu0
      %v10029 = vadd.f32 0.0, %v10028
      %v10030 = vpop.f32.mrf.mxu0
      %10031 = vmatprep.mubr.f32.mxu0 0.0
      %10032 = vmatmul.mubr.f32.gmra.mxu0 %v9559
      %v10033 = vpop.f32.mrf.mxu0
      %v10034 = vadd.f32 0.0, %v10033
      %v10035 = vpop.f32.mrf.mxu0
      %10036 = vmatprep.mubr.f32.mxu0 0.0
      %10037 = vmatmul.mubr.f32.gmra.mxu0 %v9562
      %v10038 = vpop.f32.mrf.mxu0
      %v10039 = vadd.f32 0.0, %v10038
      %v10040 = vpop.f32.mrf.mxu0
      %10041 = vmatprep.mubr.f32.mxu0 0.0
      %10042 = vmatmul.mubr.f32.gmra.mxu0 %v9565
      %v10043 = vpop.f32.mrf.mxu0
      %v10044 = vadd.f32 0.0, %v10043
      %v10045 = vpop.f32.mrf.mxu0
      %10046 = vmatprep.mubr.f32.mxu0 0.0
      %10047 = vmatmul.mubr.f32.gmra.mxu0 %v9568
      %v10048 = vpop.f32.mrf.mxu0
      %v10049 = vadd.f32 0.0, %v10048
      %v10050 = vpop.f32.mrf.mxu0
      %10051 = vmatprep.mubr.f32.mxu0 0.0
      %10052 = vmatmul.mubr.f32.gmra.mxu0 %v9571
      %v10053 = vpop.f32.mrf.mxu0
      %v10054 = vadd.f32 0.0, %v10053
      %v10055 = vpop.f32.mrf.mxu0
      %10056 = vmatprep.mubr.f32.mxu0 0.0
      %10057 = vmatmul.mubr.f32.gmra.mxu0 %v9574
      %v10058 = vpop.f32.mrf.mxu0
      %v10059 = vadd.f32 0.0, %v10058
      %v10060 = vpop.f32.mrf.mxu0
      %10061 = vmatprep.mubr.f32.mxu0 0.0
      %10062 = vmatmul.mubr.f32.gmra.mxu0 %v9577
      %v10063 = vpop.f32.mrf.mxu0
      %v10064 = vadd.f32 0.0, %v10063
      %v10065 = vpop.f32.mrf.mxu0
      %10066 = vmatprep.mubr.f32.mxu0 0.0
      %10067 = vmatmul.mubr.f32.gmra.mxu0 %v9580
      %v10068 = vpop.f32.mrf.mxu0
      %v10069 = vadd.f32 0.0, %v10068
      %v10070 = vpop.f32.mrf.mxu0
      %10071 = vmatprep.mubr.f32.mxu0 0.0
      %10072 = vmatmul.mubr.f32.gmra.mxu0 %v9583
      %v10073 = vpop.f32.mrf.mxu0
      %v10074 = vadd.f32 0.0, %v10073
      %v10075 = vpop.f32.mrf.mxu0
      %10076 = vmatprep.mubr.f32.mxu0 0.0
      %10077 = vmatmul.mubr.f32.gmra.mxu0 %v9586
      %v10078 = vpop.f32.mrf.mxu0
      %v10079 = vadd.f32 0.0, %v10078
      %v10080 = vpop.f32.mrf.mxu0
      %10081 = vmatprep.mubr.f32.mxu0 0.0
      %10082 = vmatmul.mubr.f32.gmra.mxu0 %v9589
      %v10083 = vpop.f32.mrf.mxu0
      %v10084 = vadd.f32 0.0, %v10083
      %v10085 = vpop.f32.mrf.mxu0
      %10086 = vmatprep.mubr.f32.mxu0 0.0
      %10087 = vmatmul.mubr.f32.gmra.mxu0 %v9592
      %v10088 = vpop.f32.mrf.mxu0
      %v10089 = vadd.f32 0.0, %v10088
      %v10090 = vpop.f32.mrf.mxu0
      %10091 = vmatprep.mubr.f32.mxu0 0.0
      %10092 = vmatmul.mubr.f32.gmra.mxu0 %v9595
      %v10093 = vpop.f32.mrf.mxu0
      %v10094 = vadd.f32 0.0, %v10093
      %v10095 = vpop.f32.mrf.mxu0
      %10096 = vmatprep.mubr.f32.mxu0 0.0
      %10097 = vmatmul.mubr.f32.gmra.mxu0 %v9598
      %v10098 = vpop.f32.mrf.mxu0
      %v10099 = vadd.f32 0.0, %v10098
      %v10100 = vpop.f32.mrf.mxu0
      %10101 = vmatprep.mubr.f32.mxu0 0.0
      %10102 = vmatmul.mubr.f32.gmra.mxu0 %v9601
      %v10103 = vpop.f32.mrf.mxu0
      %v10104 = vadd.f32 0.0, %v10103
      %v10105 = vpop.f32.mrf.mxu0
      %10106 = vmatprep.mubr.f32.mxu0 0.0
      %10107 = vmatmul.mubr.f32.gmra.mxu0 %v9604
      %v10108 = vpop.f32.mrf.mxu0
      %v10109 = vadd.f32 0.0, %v10108
      %v10110 = vpop.f32.mrf.mxu0
      %10111 = vmatprep.mubr.f32.mxu0 0.0
      %10112 = vmatmul.mubr.f32.gmra.mxu0 %v9607
      %v10113 = vpop.f32.mrf.mxu0
      %v10114 = vadd.f32 0.0, %v10113
      %v10115 = vpop.f32.mrf.mxu0
      %10116 = vmatprep.mubr.f32.mxu0 0.0
      %10117 = vmatmul.mubr.f32.gmra.mxu0 %v9610
      %v10118 = vpop.f32.mrf.mxu0
      %v10119 = vadd.f32 0.0, %v10118
      %v10120 = vpop.f32.mrf.mxu0
      %10121 = vmatprep.mubr.f32.mxu0 0.0
      %10122 = vmatmul.mubr.f32.gmra.mxu0 %v9613
      %v10123 = vpop.f32.mrf.mxu0
      %v10124 = vadd.f32 0.0, %v10123
      %v10125 = vpop.f32.mrf.mxu0
      %10126 = vmatprep.mubr.f32.mxu0 0.0
      %10127 = vmatmul.mubr.f32.gmra.mxu0 %v9616
      %v10128 = vpop.f32.mrf.mxu0
      %v10129 = vadd.f32 0.0, %v10128
      %v10130 = vpop.f32.mrf.mxu0
      %10131 = vmatprep.mubr.f32.mxu0 0.0
      %10132 = vmatmul.mubr.f32.gmra.mxu0 %v9619
      %v10133 = vpop.f32.mrf.mxu0
      %v10134 = vadd.f32 0.0, %v10133
      %v10135 = vpop.f32.mrf.mxu0
      %10136 = vmatprep.mubr.f32.mxu0 0.0
      %10137 = vmatmul.mubr.f32.gmra.mxu0 %v9622
      %v10138 = vpop.f32.mrf.mxu0
      %v10139 = vadd.f32 0.0, %v10138
      %v10140 = vpop.f32.mrf.mxu0
      %10141 = vmatprep.mubr.f32.mxu0 0.0
      %10142 = vmatmul.mubr.f32.gmra.mxu0 %v9625
      %v10143 = vpop.f32.mrf.mxu0
      %v10144 = vadd.f32 0.0, %v10143
      %v10145 = vpop.f32.mrf.mxu0
      %10146 = vmatprep.mubr.f32.mxu0 0.0
      %10147 = vmatmul.mubr.f32.gmra.mxu0 %v9628
      %v10148 = vpop.f32.mrf.mxu0
      %v10149 = vadd.f32 0.0, %v10148
      %v10150 = vpop.f32.mrf.mxu0
      %10151 = vmatprep.mubr.f32.mxu0 0.0
      %10152 = vmatmul.mubr.f32.gmra.mxu0 %v9631
      %v10153 = vpop.f32.mrf.mxu0
      %v10154 = vadd.f32 0.0, %v10153
      %v10155 = vpop.f32.mrf.mxu0
      %10156 = vmatprep.mubr.f32.mxu0 0.0
      %10157 = vmatmul.mubr.f32.gmra.mxu0 %v9634
      %v10158 = vpop.f32.mrf.mxu0
      %v10159 = vadd.f32 0.0, %v10158
      %v10160 = vpop.f32.mrf.mxu0
      %10161 = vmatprep.mubr.f32.mxu0 0.0
      %10162 = vmatmul.mubr.f32.gmra.mxu0 %v9637
      %v10163 = vpop.f32.mrf.mxu0
      %v10164 = vadd.f32 0.0, %v10163
      %v10165 = vpop.f32.mrf.mxu0
      %10166 = vmatprep.mubr.f32.mxu0 0.0
      %10167 = vmatmul.mubr.f32.gmra.mxu0 %v9640
      %v10168 = vpop.f32.mrf.mxu0
      %v10169 = vadd.f32 0.0, %v10168
      %v10170 = vpop.f32.mrf.mxu0
      %10171 = vmatprep.mubr.f32.mxu0 0.0
      %10172 = vmatmul.mubr.f32.gmra.mxu0 %v9643
      %v10173 = vpop.f32.mrf.mxu0
      %v10174 = vadd.f32 0.0, %v10173
      %v10175 = vpop.f32.mrf.mxu0
      %10176 = vmatprep.mubr.f32.mxu0 0.0
      %10177 = vmatmul.mubr.f32.gmra.mxu0 %v9646
      %v10178 = vpop.f32.mrf.mxu0
      %v10179 = vadd.f32 0.0, %v10178
      %v10180 = vpop.f32.mrf.mxu0
      %10181 = vmatprep.mubr.f32.mxu0 0.0
      %10182 = vmatmul.mubr.f32.gmra.mxu0 %v9649
      %v10183 = vpop.f32.mrf.mxu0
      %v10184 = vadd.f32 0.0, %v10183
      %v10185 = vpop.f32.mrf.mxu0
      %10186 = vmatprep.mubr.f32.mxu0 0.0
      %10187 = vmatmul.mubr.f32.gmra.mxu0 %v9652
      %v10188 = vpop.f32.mrf.mxu0
      %v10189 = vadd.f32 0.0, %v10188
      %v10190 = vpop.f32.mrf.mxu0
      %10191 = vmatprep.mubr.f32.mxu0 0.0
      %10192 = vmatmul.mubr.f32.gmra.mxu0 %v9655
      %v10193 = vpop.f32.mrf.mxu0
      %v10194 = vadd.f32 0.0, %v10193
      %v10195 = vpop.f32.mrf.mxu0
      %10196 = vmatprep.mubr.f32.mxu0 0.0
      %10197 = vmatmul.mubr.f32.gmra.mxu0 %v9658
      %v10198 = vpop.f32.mrf.mxu0
      %v10199 = vadd.f32 0.0, %v10198
      %v10200 = vpop.f32.mrf.mxu0
      %10201 = vmatprep.mubr.f32.mxu0 0.0
      %10202 = vmatmul.mubr.f32.gmra.mxu0 %v9661
      %v10203 = vpop.f32.mrf.mxu0
      %v10204 = vadd.f32 0.0, %v10203
      %v10205 = vpop.f32.mrf.mxu0
      %10206 = vmatprep.mubr.f32.mxu0 0.0
      %10207 = vmatmul.mubr.f32.gmra.mxu0 %v9664
      %v10208 = vpop.f32.mrf.mxu0
      %v10209 = vadd.f32 0.0, %v10208
      %v10210 = vpop.f32.mrf.mxu0
      %10211 = vmatprep.mubr.f32.mxu0 0.0
      %10212 = vmatmul.mubr.f32.gmra.mxu0 %v9667
      %v10213 = vpop.f32.mrf.mxu0
      %v10214 = vadd.f32 0.0, %v10213
      %v10215 = vpop.f32.mrf.mxu0
      %10216 = vmatprep.mubr.f32.mxu0 0.0
      %10217 = vmatmul.mubr.f32.gmra.mxu0 %v9670
      %v10218 = vpop.f32.mrf.mxu0
      %v10219 = vadd.f32 0.0, %v10218
      %v10220 = vpop.f32.mrf.mxu0
      %10221 = vmatprep.mubr.f32.mxu0 0.0
      %10222 = vmatmul.mubr.f32.gmra.mxu0 %v9673
      %v10223 = vpop.f32.mrf.mxu0
      %v10224 = vadd.f32 0.0, %v10223
      %v10225 = vpop.f32.mrf.mxu0
      %10226 = vmatprep.mubr.f32.mxu0 0.0
      %10227 = vmatmul.mubr.f32.gmra.mxu0 %v9676
      %v10228 = vpop.f32.mrf.mxu0
      %v10229 = vadd.f32 0.0, %v10228
      %v10230 = vpop.f32.mrf.mxu0
      %10231 = vmatprep.mubr.f32.mxu0 0.0
      %10232 = vmatmul.mubr.f32.gmra.mxu0 %v9679
      %v10233 = vpop.f32.mrf.mxu0
      %v10234 = vadd.f32 0.0, %v10233
      %v10235 = vpop.f32.mrf.mxu0
      %10236 = vmatprep.mubr.f32.mxu0 0.0
      %10237 = vmatmul.mubr.f32.gmra.mxu0 %v9682
      %v10238 = vpop.f32.mrf.mxu0
      %v10239 = vadd.f32 0.0, %v10238
      %v10240 = vpop.f32.mrf.mxu0
      %10241 = vmatprep.mubr.f32.mxu0 0.0
      %10242 = vmatmul.mubr.f32.gmra.mxu0 %v9685
      %v10243 = vpop.f32.mrf.mxu0
      %v10244 = vadd.f32 0.0, %v10243
      %v10245 = vpop.f32.mrf.mxu0
      %10246 = vmatprep.mubr.f32.mxu0 0.0
      %10247 = vmatmul.mubr.f32.gmra.mxu0 %v9688
      %v10248 = vpop.f32.mrf.mxu0
      %v10249 = vadd.f32 0.0, %v10248
      %v10250 = vpop.f32.mrf.mxu0
      %10251 = vmatprep.mubr.f32.mxu0 0.0
      %10252 = vmatmul.mubr.f32.gmra.mxu0 %v9691
      %v10253 = vpop.f32.mrf.mxu0
      %v10254 = vadd.f32 0.0, %v10253
      %v10255 = vpop.f32.mrf.mxu0
      %10256 = vmatprep.mubr.f32.mxu0 0.0
      %10257 = vmatmul.mubr.f32.gmra.mxu0 %v9694
      %v10258 = vpop.f32.mrf.mxu0
      %v10259 = vadd.f32 0.0, %v10258
      %v10260 = vpop.f32.mrf.mxu0
      %10261 = vmatprep.mubr.f32.mxu0 0.0
      %10262 = vmatmul.mubr.f32.gmra.mxu0 %v9697
      %v10263 = vpop.f32.mrf.mxu0
      %v10264 = vadd.f32 0.0, %v10263
      %v10265 = vpop.f32.mrf.mxu0
      %10266 = vmatprep.mubr.f32.mxu0 0.0
      %10267 = vmatmul.mubr.f32.gmra.mxu0 %v9700
      %v10268 = vpop.f32.mrf.mxu0
      %v10269 = vadd.f32 0.0, %v10268
      %v10270 = vpop.f32.mrf.mxu0
      %10271 = vmatprep.mubr.f32.mxu0 0.0
      %10272 = vmatmul.mubr.f32.gmra.mxu0 %v9703
      %v10273 = vpop.f32.mrf.mxu0
      %v10274 = vadd.f32 0.0, %v10273
      %v10275 = vpop.f32.mrf.mxu0
      %10276 = vmatprep.mubr.f32.mxu0 0.0
      %10277 = vmatmul.mubr.f32.gmra.mxu0 %v9706
      %v10278 = vpop.f32.mrf.mxu0
      %v10279 = vadd.f32 0.0, %v10278
      %v10280 = vpop.f32.mrf.mxu0
      %10281 = vmatprep.mubr.f32.mxu0 0.0
      %10282 = vmatmul.mubr.f32.gmra.mxu0 %v9709
      %v10283 = vpop.f32.mrf.mxu0
      %v10284 = vadd.f32 0.0, %v10283
      %v10285 = vpop.f32.mrf.mxu0
      %10286 = vmatprep.mubr.f32.mxu0 0.0
      %10287 = vmatmul.mubr.f32.gmra.mxu0 %v9712
      %v10288 = vpop.f32.mrf.mxu0
      %v10289 = vadd.f32 0.0, %v10288
      %v10290 = vpop.f32.mrf.mxu0
      %10291 = vmatprep.mubr.f32.mxu0 0.0
      %10292 = vmatmul.mubr.f32.gmra.mxu0 %v9715
      %v10293 = vpop.f32.mrf.mxu0
      %v10294 = vadd.f32 0.0, %v10293
      %v10295 = vpop.f32.mrf.mxu0
      %10296 = vmatprep.mubr.f32.mxu0 0.0
      %10297 = vmatmul.mubr.f32.gmra.mxu0 %v9718
      %v10298 = vpop.f32.mrf.mxu0
      %v10299 = vadd.f32 0.0, %v10298
      %v10300 = vpop.f32.mrf.mxu0
      %10301 = vmatprep.mubr.f32.mxu0 0.0
      %10302 = vmatmul.mubr.f32.gmra.mxu0 %v9721
      %v10303 = vpop.f32.mrf.mxu0
      %v10304 = vadd.f32 0.0, %v10303
      %v10305 = vpop.f32.mrf.mxu0
      %10306 = vmatprep.mubr.f32.mxu0 0.0
      %10307 = vmatmul.mubr.f32.gmra.mxu0 %v9724
      %v10308 = vpop.f32.mrf.mxu0
      %v10309 = vadd.f32 0.0, %v10308
      %v10310 = vpop.f32.mrf.mxu0
      %10311 = vmatprep.mubr.f32.mxu0 0.0
      %10312 = vmatmul.mubr.f32.gmra.mxu0 %v9727
      %v10313 = vpop.f32.mrf.mxu0
      %v10314 = vadd.f32 0.0, %v10313
      %v10315 = vpop.f32.mrf.mxu0
      %10316 = vmatprep.mubr.f32.mxu0 0.0
      %10317 = vmatmul.mubr.f32.gmra.mxu0 %v9730
      %v10318 = vpop.f32.mrf.mxu0
      %v10319 = vadd.f32 0.0, %v10318
      %v10320 = vpop.f32.mrf.mxu0
      %10321 = vmatprep.mubr.f32.mxu0 0.0
      %10322 = vmatmul.mubr.f32.gmra.mxu0 %v9733
      %v10323 = vpop.f32.mrf.mxu0
      %v10324 = vadd.f32 0.0, %v10323
      %v10325 = vpop.f32.mrf.mxu0
      %10326 = vmatprep.mubr.f32.mxu0 0.0
      %10327 = vmatmul.mubr.f32.gmra.mxu0 %v9736
      %v10328 = vpop.f32.mrf.mxu0
      %v10329 = vadd.f32 0.0, %v10328
      %v10330 = vpop.f32.mrf.mxu0
      %10331 = vmatprep.mubr.f32.mxu0 0.0
      %10332 = vmatmul.mubr.f32.gmra.mxu0 %v9739
      %v10333 = vpop.f32.mrf.mxu0
      %v10334 = vadd.f32 0.0, %v10333
      %v10335 = vpop.f32.mrf.mxu0
      %10336 = vmatprep.mubr.f32.mxu0 0.0
      %10337 = vmatmul.mubr.f32.gmra.mxu0 %v9742
      %v10338 = vpop.f32.mrf.mxu0
      %v10339 = vadd.f32 0.0, %v10338
      %v10340 = vpop.f32.mrf.mxu0
      %10341 = vmatprep.mubr.f32.mxu0 0.0
      %10342 = vmatmul.mubr.f32.gmra.mxu0 %v9745
      %v10343 = vpop.f32.mrf.mxu0
      %v10344 = vadd.f32 0.0, %v10343
      %v10345 = vpop.f32.mrf.mxu0
      %10346 = vmatprep.mubr.f32.mxu0 0.0
      %10347 = vmatmul.mubr.f32.gmra.mxu0 %v9748
      %v10348 = vpop.f32.mrf.mxu0
      %v10349 = vadd.f32 0.0, %v10348
      %v10350 = vpop.f32.mrf.mxu0
      %10351 = vmatprep.mubr.f32.mxu0 0.0
      %10352 = vmatmul.mubr.f32.gmra.mxu0 %v9751
      %v10353 = vpop.f32.mrf.mxu0
      %v10354 = vadd.f32 0.0, %v10353
      %v10355 = vpop.f32.mrf.mxu0
      %10356 = vmatprep.mubr.f32.mxu0 0.0
      %10357 = vmatmul.mubr.f32.gmra.mxu0 %v9754
      %v10358 = vpop.f32.mrf.mxu0
      %v10359 = vadd.f32 0.0, %v10358
      %v10360 = vpop.f32.mrf.mxu0
      %10361 = vmatprep.mubr.f32.mxu0 0.0
      %10362 = vmatmul.mubr.f32.gmra.mxu0 %v9757
      %v10363 = vpop.f32.mrf.mxu0
      %v10364 = vadd.f32 0.0, %v10363
      %v10365 = vpop.f32.mrf.mxu0
      %10366 = vmatprep.mubr.f32.mxu0 0.0
      %10367 = vmatmul.mubr.f32.gmra.mxu0 %v9760
      %v10368 = vpop.f32.mrf.mxu0
      %v10369 = vadd.f32 0.0, %v10368
      %v10370 = vpop.f32.mrf.mxu0
      %10371 = vmatprep.mubr.f32.mxu0 0.0
      %10372 = vmatmul.mubr.f32.gmra.mxu0 %v9763
      %v10373 = vpop.f32.mrf.mxu0
      %v10374 = vadd.f32 0.0, %v10373
      %v10375 = vpop.f32.mrf.mxu0
      %10376 = vmatprep.mubr.f32.mxu0 0.0
      %10377 = vmatmul.mubr.f32.gmra.mxu0 %v9766
      %v10378 = vpop.f32.mrf.mxu0
      %v10379 = vadd.f32 0.0, %v10378
      %v10380 = vpop.f32.mrf.mxu0
      %10381 = vmatprep.mubr.f32.mxu0 0.0
      %10382 = vmatmul.mubr.f32.gmra.mxu0 %v9769
      %v10383 = vpop.f32.mrf.mxu0
      %v10384 = vadd.f32 0.0, %v10383
      %v10385 = vpop.f32.mrf.mxu0
      %10386 = vmatprep.mubr.f32.mxu0 0.0
      %10387 = vmatmul.mubr.f32.gmra.mxu0 %v9772
      %v10388 = vpop.f32.mrf.mxu0
      %v10389 = vadd.f32 0.0, %v10388
      %v10390 = vpop.f32.mrf.mxu0
      %10391 = vmatprep.mubr.f32.mxu0 0.0
      %10392 = vmatmul.mubr.f32.gmra.mxu0 %v9775
      %v10393 = vpop.f32.mrf.mxu0
      %v10394 = vadd.f32 0.0, %v10393
      %v10395 = vpop.f32.mrf.mxu0
      %10396 = vmatprep.mubr.f32.mxu0 0.0
      %10397 = vmatmul.mubr.f32.gmra.mxu0 %v9778
      %v10398 = vpop.f32.mrf.mxu0
      %v10399 = vadd.f32 0.0, %v10398
      %v10400 = vpop.f32.mrf.mxu0
      %10401 = vmatprep.mubr.f32.mxu0 0.0
      %10402 = vmatmul.mubr.f32.gmra.mxu0 %v9781
      %v10403 = vpop.f32.mrf.mxu0
      %v10404 = vadd.f32 0.0, %v10403
      %v10405 = vpop.f32.mrf.mxu0
      %10406 = vmatprep.mubr.f32.mxu0 0.0
      %10407 = vmatmul.mubr.f32.gmra.mxu0 %v9784
      %v10408 = vpop.f32.mrf.mxu0
      %v10409 = vadd.f32 0.0, %v10408
      %v10410 = vpop.f32.mrf.mxu0
      %10411 = vmatprep.mubr.f32.mxu0 0.0
      %10412 = vmatmul.mubr.f32.gmra.mxu0 %v9787
      %v10413 = vpop.f32.mrf.mxu0
      %v10414 = vadd.f32 0.0, %v10413
      %v10415 = vpop.f32.mrf.mxu0
      %10416 = vmatprep.mubr.f32.mxu0 0.0
      %10417 = vmatmul.mubr.f32.gmra.mxu0 %v9790
      %v10418 = vpop.f32.mrf.mxu0
      %v10419 = vadd.f32 0.0, %v10418
      %v10420 = vpop.f32.mrf.mxu0
      %10421 = vmatprep.mubr.f32.mxu0 0.0
      %10422 = vmatmul.mubr.f32.gmra.mxu0 %v9793
      %v10423 = vpop.f32.mrf.mxu0
      %v10424 = vadd.f32 0.0, %v10423
      %v10425 = vpop.f32.mrf.mxu0
      %10426 = vmatprep.mubr.f32.mxu0 0.0
      %10427 = vmatmul.mubr.f32.gmra.mxu0 %v9796
      %v10428 = vpop.f32.mrf.mxu0
      %v10429 = vadd.f32 0.0, %v10428
      %v10430 = vpop.f32.mrf.mxu0
      %10431 = vmatprep.mubr.f32.mxu0 0.0
      %10432 = vmatmul.mubr.f32.gmra.mxu0 %v9799
      %v10433 = vpop.f32.mrf.mxu0
      %v10434 = vadd.f32 0.0, %v10433
      %v10435 = vpop.f32.mrf.mxu0
      %10436 = vmatprep.mubr.f32.mxu0 0.0
      %10437 = vmatmul.mubr.f32.gmra.mxu0 %v9802
      %v10438 = vpop.f32.mrf.mxu0
      %v10439 = vadd.f32 0.0, %v10438
      %v10440 = vpop.f32.mrf.mxu0
      %10441 = vmatprep.mubr.f32.mxu0 0.0
      %10442 = vmatmul.mubr.f32.gmra.mxu0 %v9805
      %v10443 = vpop.f32.mrf.mxu0
      %v10444 = vadd.f32 0.0, %v10443
      %v10445 = vpop.f32.mrf.mxu0
      %10446 = vmatprep.mubr.f32.mxu0 0.0
      %10447 = vmatmul.mubr.f32.gmra.mxu0 %v9808
      %v10448 = vpop.f32.mrf.mxu0
      %v10449 = vadd.f32 0.0, %v10448
      %v10450 = vpop.f32.mrf.mxu0
      %10451 = vmatprep.mubr.f32.mxu0 0.0
      %10452 = vmatmul.mubr.f32.gmra.mxu0 %v9811
      %v10453 = vpop.f32.mrf.mxu0
      %v10454 = vadd.f32 0.0, %v10453
      %v10455 = vpop.f32.mrf.mxu0
      %10456 = vmatprep.mubr.f32.mxu0 0.0
      %10457 = vmatmul.mubr.f32.gmra.mxu0 %v9814
      %v10458 = vpop.f32.mrf.mxu0
      %v10459 = vadd.f32 0.0, %v10458
      %v10460 = vpop.f32.mrf.mxu0
      %10461 = vmatprep.mubr.f32.mxu0 0.0
      %10462 = vmatmul.mubr.f32.gmra.mxu0 %v9817
      %v10463 = vpop.f32.mrf.mxu0
      %v10464 = vadd.f32 0.0, %v10463
      %v10465 = vpop.f32.mrf.mxu0
      %10466 = vmatprep.mubr.f32.mxu0 0.0
      %10467 = vmatmul.mubr.f32.gmra.mxu0 %v9820
      %v10468 = vpop.f32.mrf.mxu0
      %v10469 = vadd.f32 0.0, %v10468
      %v10470 = vpop.f32.mrf.mxu0
      %10471 = vmatprep.mubr.f32.mxu0 0.0
      %10472 = vmatmul.mubr.f32.gmra.mxu0 %v9823
      %v10473 = vpop.f32.mrf.mxu0
      %v10474 = vadd.f32 0.0, %v10473
      %v10475 = vpop.f32.mrf.mxu0
      %10476 = vmatprep.mubr.f32.mxu0 0.0
      %10477 = vmatmul.mubr.f32.gmra.mxu0 %v9826
      %v10478 = vpop.f32.mrf.mxu0
      %v10479 = vadd.f32 0.0, %v10478
      %v10480 = vpop.f32.mrf.mxu0
      %10481 = vmatprep.mubr.f32.mxu0 0.0
      %10482 = vmatmul.mubr.f32.gmra.mxu0 %v9829
      %v10483 = vpop.f32.mrf.mxu0
      %v10484 = vadd.f32 0.0, %v10483
      %v10485 = vpop.f32.mrf.mxu0
      %10486 = vmatprep.mubr.f32.mxu0 0.0
      %10487 = vmatmul.mubr.f32.gmra.mxu0 %v9832
      %v10488 = vpop.f32.mrf.mxu0
      %v10489 = vadd.f32 0.0, %v10488
      %v10490 = vpop.f32.mrf.mxu0
      %10491 = vmatprep.mubr.f32.mxu0 0.0
      %10492 = vmatmul.mubr.f32.gmra.mxu0 %v9835
      %v10493 = vpop.f32.mrf.mxu0
      %v10494 = vadd.f32 0.0, %v10493
      %v10495 = vpop.f32.mrf.mxu0
      %10496 = vmatprep.mubr.f32.mxu0 0.0
      %10497 = vmatmul.mubr.f32.gmra.mxu0 %v9838
      %v10498 = vpop.f32.mrf.mxu0
      %v10499 = vadd.f32 0.0, %v10498
      %v10500 = vpop.f32.mrf.mxu0
      %10501 = vmatprep.mubr.f32.mxu0 0.0
      %10502 = vmatmul.mubr.f32.gmra.mxu0 %v9841
      %v10503 = vpop.f32.mrf.mxu0
      %v10504 = vadd.f32 0.0, %v10503
      %v10505 = vpop.f32.mrf.mxu0
      %10506 = vmatprep.mubr.f32.mxu0 0.0
      %10507 = vmatmul.mubr.f32.gmra.mxu0 %v9844
      %v10508 = vpop.f32.mrf.mxu0
      %v10509 = vadd.f32 0.0, %v10508
      %v10510 = vpop.f32.mrf.mxu0
      %10511 = vmatprep.mubr.f32.mxu0 0.0
      %10512 = vmatmul.mubr.f32.gmra.mxu0 %v9847
      %v10513 = vpop.f32.mrf.mxu0
      %v10514 = vadd.f32 0.0, %v10513
      %v10515 = vpop.f32.mrf.mxu0
      %10516 = vmatprep.mubr.f32.mxu0 0.0
      %10517 = vmatmul.mubr.f32.gmra.mxu0 %v9850
      %v10518 = vpop.f32.mrf.mxu0
      %v10519 = vadd.f32 0.0, %v10518
      %v10520 = vpop.f32.mrf.mxu0
      %10521 = vmatprep.mubr.f32.mxu0 0.0
      %10522 = vmatmul.mubr.f32.gmra.mxu0 %v9853
      %v10523 = vpop.f32.mrf.mxu0
      %v10524 = vadd.f32 0.0, %v10523
      %v10525 = vpop.f32.mrf.mxu0
      %10526 = vmatprep.mubr.f32.mxu0 0.0
      %10527 = vmatmul.mubr.f32.gmra.mxu0 %v9856
      %v10528 = vpop.f32.mrf.mxu0
      %v10529 = vadd.f32 0.0, %v10528
      %v10530 = vpop.f32.mrf.mxu0
      %10531 = vmatprep.mubr.f32.mxu0 0.0
      %10532 = vmatmul.mubr.f32.gmra.mxu0 %v9859
      %v10533 = vpop.f32.mrf.mxu0
      %v10534 = vadd.f32 0.0, %v10533
      %v10535 = vpop.f32.mrf.mxu0
      %10536 = vmatprep.mubr.f32.mxu0 0.0
      %10537 = vmatmul.mubr.f32.gmra.mxu0 %v9862
      %v10538 = vpop.f32.mrf.mxu0
      %v10539 = vadd.f32 0.0, %v10538
      %v10540 = vpop.f32.mrf.mxu0
      %10541 = vmatprep.mubr.f32.mxu0 0.0
      %10542 = vmatmul.mubr.f32.gmra.mxu0 %v9865
      %v10543 = vpop.f32.mrf.mxu0
      %v10544 = vadd.f32 0.0, %v10543
      %v10545 = vpop.f32.mrf.mxu0
      %10546 = vmatprep.mubr.f32.mxu0 0.0
      %10547 = vmatmul.mubr.f32.gmra.mxu0 %v9868
      %v10548 = vpop.f32.mrf.mxu0
      %v10549 = vadd.f32 0.0, %v10548
      %v10550 = vpop.f32.mrf.mxu0
      %10551 = vmatprep.mubr.f32.mxu0 0.0
      %10552 = vmatmul.mubr.f32.gmra.mxu0 %v9871
      %v10553 = vpop.f32.mrf.mxu0
      %v10554 = vadd.f32 0.0, %v10553
      %v10555 = vpop.f32.mrf.mxu0
      %10556 = vmatprep.mubr.f32.mxu0 0.0
      %10557 = vmatmul.mubr.f32.gmra.mxu0 %v9874
      %v10558 = vpop.f32.mrf.mxu0
      %v10559 = vadd.f32 0.0, %v10558
      %v10560 = vpop.f32.mrf.mxu0
      %10561 = vmatprep.mubr.f32.mxu0 0.0
      %10562 = vmatmul.mubr.f32.gmra.mxu0 %v9877
      %v10563 = vpop.f32.mrf.mxu0
      %v10564 = vadd.f32 0.0, %v10563
      %v10565 = vpop.f32.mrf.mxu0
      %10566 = vmatprep.mubr.f32.mxu0 0.0
      %10567 = vmatmul.mubr.f32.gmra.mxu0 %v9880
      %v10568 = vpop.f32.mrf.mxu0
      %v10569 = vadd.f32 0.0, %v10568
      %v10570 = vpop.f32.mrf.mxu0
      %10571 = vmatprep.mubr.f32.mxu0 0.0
      %10572 = vmatmul.mubr.f32.gmra.mxu0 %v9883
      %v10573 = vpop.f32.mrf.mxu0
      %v10574 = vadd.f32 0.0, %v10573
      %v10575 = vpop.f32.mrf.mxu0
      %10576 = vmatprep.mubr.f32.mxu0 0.0
      %10577 = vmatmul.mubr.f32.gmra.mxu0 %v9886
      %v10578 = vpop.f32.mrf.mxu0
      %v10579 = vadd.f32 0.0, %v10578
      %v10580 = vpop.f32.mrf.mxu0
      %10581 = vmatprep.mubr.f32.mxu0 0.0
      %10582 = vmatmul.mubr.f32.gmra.mxu0 %v9889
      %v10583 = vpop.f32.mrf.mxu0
      %v10584 = vadd.f32 0.0, %v10583
      %v10585 = vpop.f32.mrf.mxu0
      %10586 = vmatprep.mubr.f32.mxu0 0.0
      %10587 = vmatmul.mubr.f32.gmra.mxu0 %v9892
      %v10588 = vpop.f32.mrf.mxu0
      %v10589 = vadd.f32 0.0, %v10588
      %v10590 = vpop.f32.mrf.mxu0
      %10591 = vmatprep.mubr.f32.mxu0 0.0
      %10592 = vmatmul.mubr.f32.gmra.mxu0 %v9895
      %v10593 = vpop.f32.mrf.mxu0
      %v10594 = vadd.f32 0.0, %v10593
      %v10595 = vpop.f32.mrf.mxu0
      %10596 = vmatprep.mubr.f32.mxu0 0.0
      %10597 = vmatmul.mubr.f32.gmra.mxu0 %v9898
      %v10598 = vpop.f32.mrf.mxu0
      %v10599 = vadd.f32 0.0, %v10598
      %v10600 = vpop.f32.mrf.mxu0
      %10601 = vmatprep.mubr.f32.mxu0 0.0
      %10602 = vmatmul.mubr.f32.gmra.mxu0 %v9901
      %v10603 = vpop.f32.mrf.mxu0
      %v10604 = vadd.f32 0.0, %v10603
      %v10605 = vpop.f32.mrf.mxu0
      %10606 = vmatprep.mubr.f32.mxu0 0.0
      %10607 = vmatmul.mubr.f32.gmra.mxu0 %v9904
      %v10608 = vpop.f32.mrf.mxu0
      %v10609 = vadd.f32 0.0, %v10608
      %v10610 = vpop.f32.mrf.mxu0
      %10611 = vmatprep.mubr.f32.mxu0 0.0
      %10612 = vmatmul.mubr.f32.gmra.mxu0 %v9907
      %v10613 = vpop.f32.mrf.mxu0
      %v10614 = vadd.f32 0.0, %v10613
      %v10615 = vpop.f32.mrf.mxu0
      %10616 = vdwg.mxu0
      %v10617 = vadd.f32 %v9267, %v9979
      %v10618 = vadd.f32 %v9268, %v9984
      %v10619 = vadd.f32 %v9269, %v9989
      %v10620 = vadd.f32 %v9270, %v9994
      %v10621 = vadd.f32 %v9271, %v9999
      %v10622 = vadd.f32 %v9272, %v10004
      %v10623 = vadd.f32 %v9273, %v10009
      %v10624 = vadd.f32 %v9274, %v10014
      %v10625 = vadd.f32 %v9275, %v10019
      %v10626 = vadd.f32 %v9276, %v10024
      %v10627 = vadd.f32 %v9277, %v10029
      %v10628 = vadd.f32 %v9278, %v10034
      %v10629 = vadd.f32 %v9279, %v10039
      %v10630 = vadd.f32 %v9280, %v10044
      %v10631 = vadd.f32 %v9281, %v10049
      %v10632 = vadd.f32 %v9282, %v10054
      %v10633 = vadd.f32 %v9283, %v10059
      %v10634 = vadd.f32 %v9284, %v10064
      %v10635 = vadd.f32 %v9285, %v10069
      %v10636 = vadd.f32 %v9286, %v10074
      %v10637 = vadd.f32 %v9287, %v10079
      %v10638 = vadd.f32 %v9288, %v10084
      %v10639 = vadd.f32 %v9289, %v10089
      %v10640 = vadd.f32 %v9290, %v10094
      %v10641 = vadd.f32 %v9291, %v10099
      %v10642 = vadd.f32 %v9292, %v10104
      %v10643 = vadd.f32 %v9293, %v10109
      %v10644 = vadd.f32 %v9294, %v10114
      %v10645 = vadd.f32 %v9295, %v10119
      %v10646 = vadd.f32 %v9296, %v10124
      %v10647 = vadd.f32 %v9297, %v10129
      %v10648 = vadd.f32 %v9298, %v10134
      %v10649 = vadd.f32 %v9299, %v10139
      %v10650 = vadd.f32 %v9300, %v10144
      %v10651 = vadd.f32 %v9301, %v10149
      %v10652 = vadd.f32 %v9302, %v10154
      %v10653 = vadd.f32 %v9303, %v10159
      %v10654 = vadd.f32 %v9304, %v10164
      %v10655 = vadd.f32 %v9305, %v10169
      %v10656 = vadd.f32 %v9306, %v10174
      %v10657 = vadd.f32 %v9307, %v10179
      %v10658 = vadd.f32 %v9308, %v10184
      %v10659 = vadd.f32 %v9309, %v10189
      %v10660 = vadd.f32 %v9310, %v10194
      %v10661 = vadd.f32 %v9311, %v10199
      %v10662 = vadd.f32 %v9312, %v10204
      %v10663 = vadd.f32 %v9313, %v10209
      %v10664 = vadd.f32 %v9314, %v10214
      %v10665 = vadd.f32 %v9315, %v10219
      %v10666 = vadd.f32 %v9316, %v10224
      %v10667 = vadd.f32 %v9317, %v10229
      %v10668 = vadd.f32 %v9318, %v10234
      %v10669 = vadd.f32 %v9319, %v10239
      %v10670 = vadd.f32 %v9320, %v10244
      %v10671 = vadd.f32 %v9321, %v10249
      %v10672 = vadd.f32 %v9322, %v10254
      %v10673 = vadd.f32 %v9323, %v10259
      %v10674 = vadd.f32 %v9324, %v10264
      %v10675 = vadd.f32 %v9325, %v10269
      %v10676 = vadd.f32 %v9326, %v10274
      %v10677 = vadd.f32 %v9327, %v10279
      %v10678 = vadd.f32 %v9328, %v10284
      %v10679 = vadd.f32 %v9329, %v10289
      %v10680 = vadd.f32 %v9330, %v10294
      %v10681 = vadd.f32 %v9331, %v10299
      %v10682 = vadd.f32 %v9332, %v10304
      %v10683 = vadd.f32 %v9333, %v10309
      %v10684 = vadd.f32 %v9334, %v10314
      %v10685 = vadd.f32 %v9335, %v10319
      %v10686 = vadd.f32 %v9336, %v10324
      %v10687 = vadd.f32 %v9337, %v10329
      %v10688 = vadd.f32 %v9338, %v10334
      %v10689 = vadd.f32 %v9339, %v10339
      %v10690 = vadd.f32 %v9340, %v10344
      %v10691 = vadd.f32 %v9341, %v10349
      %v10692 = vadd.f32 %v9342, %v10354
      %v10693 = vadd.f32 %v9343, %v10359
      %v10694 = vadd.f32 %v9344, %v10364
      %v10695 = vadd.f32 %v9345, %v10369
      %v10696 = vadd.f32 %v9346, %v10374
      %v10697 = vadd.f32 %v9347, %v10379
      %v10698 = vadd.f32 %v9348, %v10384
      %v10699 = vadd.f32 %v9349, %v10389
      %v10700 = vadd.f32 %v9350, %v10394
      %v10701 = vadd.f32 %v9351, %v10399
      %v10702 = vadd.f32 %v9352, %v10404
      %v10703 = vadd.f32 %v9353, %v10409
      %v10704 = vadd.f32 %v9354, %v10414
      %v10705 = vadd.f32 %v9355, %v10419
      %v10706 = vadd.f32 %v9356, %v10424
      %v10707 = vadd.f32 %v9357, %v10429
      %v10708 = vadd.f32 %v9358, %v10434
      %v10709 = vadd.f32 %v9359, %v10439
      %v10710 = vadd.f32 %v9360, %v10444
      %v10711 = vadd.f32 %v9361, %v10449
      %v10712 = vadd.f32 %v9362, %v10454
      %v10713 = vadd.f32 %v9363, %v10459
      %v10714 = vadd.f32 %v9364, %v10464
      %v10715 = vadd.f32 %v9365, %v10469
      %v10716 = vadd.f32 %v9366, %v10474
      %v10717 = vadd.f32 %v9367, %v10479
      %v10718 = vadd.f32 %v9368, %v10484
      %v10719 = vadd.f32 %v9369, %v10489
      %v10720 = vadd.f32 %v9370, %v10494
      %v10721 = vadd.f32 %v9371, %v10499
      %v10722 = vadd.f32 %v9372, %v10504
      %v10723 = vadd.f32 %v9373, %v10509
      %v10724 = vadd.f32 %v9374, %v10514
      %v10725 = vadd.f32 %v9375, %v10519
      %v10726 = vadd.f32 %v9376, %v10524
      %v10727 = vadd.f32 %v9377, %v10529
      %v10728 = vadd.f32 %v9378, %v10534
      %v10729 = vadd.f32 %v9379, %v10539
      %v10730 = vadd.f32 %v9380, %v10544
      %v10731 = vadd.f32 %v9381, %v10549
      %v10732 = vadd.f32 %v9382, %v10554
      %v10733 = vadd.f32 %v9383, %v10559
      %v10734 = vadd.f32 %v9384, %v10564
      %v10735 = vadd.f32 %v9385, %v10569
      %v10736 = vadd.f32 %v9386, %v10574
      %v10737 = vadd.f32 %v9387, %v10579
      %v10738 = vadd.f32 %v9388, %v10584
      %v10739 = vadd.f32 %v9389, %v10589
      %v10740 = vadd.f32 %v9390, %v10594
      %v10741 = vadd.f32 %v9391, %v10599
      %v10742 = vadd.f32 %v9392, %v10604
      %v10743 = vadd.f32 %v9393, %v10609
      %v10744 = vadd.f32 %v9394, %v10614
      %v10745 = vld [vmem:[%s8044 + $0x2] sm:$0xff]
      %v10746 = vld [vmem:[%s8044 + $0xa] sm:$0xff]
      %v10747 = vld [vmem:[%s8044 + $0x12] sm:$0xff]
      %v10748 = vld [vmem:[%s8044 + $0x1a] sm:$0xff]
      %v10749 = vld [vmem:[%s8044 + $0x2a] sm:$0xff]
      %v10750 = vld [vmem:[%s8044 + $0x32] sm:$0xff]
      %v10751 = vld [vmem:[%s8044 + $0x3a] sm:$0xff]
      %v10752 = vld [vmem:[%s8044 + $0x42] sm:$0xff]
      %v10753 = vld [vmem:[%s8044 + $0x52] sm:$0xff]
      %v10754 = vld [vmem:[%s8044 + $0x5a] sm:$0xff]
      %v10755 = vld [vmem:[%s8044 + $0x62] sm:$0xff]
      %v10756 = vld [vmem:[%s8044 + $0x6a] sm:$0xff]
      %v10757 = vld [vmem:[%s8044 + $0x7a] sm:$0xff]
      %v10758 = vld [vmem:[%s8044 + $0x82] sm:$0xff]
      %v10759 = vld [vmem:[%s8044 + $0x8a] sm:$0xff]
      %v10760 = vld [vmem:[%s8044 + $0x92] sm:$0xff]
      %v10761 = vld [vmem:[%s8044 + $0xa2] sm:$0xff]
      %v10762 = vld [vmem:[%s8044 + $0xaa] sm:$0xff]
      %v10763 = vld [vmem:[%s8044 + $0xb2] sm:$0xff]
      %v10764 = vld [vmem:[%s8044 + $0xba] sm:$0xff]
      %v10765 = vld [vmem:[%s8044 + $0xca] sm:$0xff]
      %v10766 = vld [vmem:[%s8044 + $0xd2] sm:$0xff]
      %v10767 = vld [vmem:[%s8044 + $0xda] sm:$0xff]
      %v10768 = vld [vmem:[%s8044 + $0xe2] sm:$0xff]
      %v10769 = vld [vmem:[%s8044 + $0xf2] sm:$0xff]
      %v10770 = vld [vmem:[%s8044 + $0xfa] sm:$0xff]
      %v10771 = vld [vmem:[%s8044 + $0x102] sm:$0xff]
      %v10772 = vld [vmem:[%s8044 + $0x10a] sm:$0xff]
      %v10773 = vld [vmem:[%s8044 + $0x11a] sm:$0xff]
      %v10774 = vld [vmem:[%s8044 + $0x122] sm:$0xff]
      %v10775 = vld [vmem:[%s8044 + $0x12a] sm:$0xff]
      %v10776 = vld [vmem:[%s8044 + $0x132] sm:$0xff]
      %v10777 = vld [vmem:[%s8044 + $0x142] sm:$0xff]
      %v10778 = vld [vmem:[%s8044 + $0x14a] sm:$0xff]
      %v10779 = vld [vmem:[%s8044 + $0x152] sm:$0xff]
      %v10780 = vld [vmem:[%s8044 + $0x15a] sm:$0xff]
      %v10781 = vld [vmem:[%s8044 + $0x16a] sm:$0xff]
      %v10782 = vld [vmem:[%s8044 + $0x172] sm:$0xff]
      %v10783 = vld [vmem:[%s8044 + $0x17a] sm:$0xff]
      %v10784 = vld [vmem:[%s8044 + $0x182] sm:$0xff]
      %v10785 = vld [vmem:[%s8044 + $0x192] sm:$0xff]
      %v10786 = vld [vmem:[%s8044 + $0x19a] sm:$0xff]
      %v10787 = vld [vmem:[%s8044 + $0x1a2] sm:$0xff]
      %v10788 = vld [vmem:[%s8044 + $0x1aa] sm:$0xff]
      %v10789 = vld [vmem:[%s8044 + $0x1ba] sm:$0xff]
      %v10790 = vld [vmem:[%s8044 + $0x1c2] sm:$0xff]
      %v10791 = vld [vmem:[%s8044 + $0x1ca] sm:$0xff]
      %v10792 = vld [vmem:[%s8044 + $0x1d2] sm:$0xff]
      %v10793 = vld [vmem:[%s8044 + $0x1e2] sm:$0xff]
      %v10794 = vld [vmem:[%s8044 + $0x1ea] sm:$0xff]
      %v10795 = vld [vmem:[%s8044 + $0x1f2] sm:$0xff]
      %v10796 = vld [vmem:[%s8044 + $0x1fa] sm:$0xff]
      %v10797 = vld [vmem:[%s8044 + $0x20a] sm:$0xff]
      %v10798 = vld [vmem:[%s8044 + $0x212] sm:$0xff]
      %v10799 = vld [vmem:[%s8044 + $0x21a] sm:$0xff]
      %v10800 = vld [vmem:[%s8044 + $0x222] sm:$0xff]
      %v10801 = vld [vmem:[%s8044 + $0x232] sm:$0xff]
      %v10802 = vld [vmem:[%s8044 + $0x23a] sm:$0xff]
      %v10803 = vld [vmem:[%s8044 + $0x242] sm:$0xff]
      %v10804 = vld [vmem:[%s8044 + $0x24a] sm:$0xff]
      %v10805 = vld [vmem:[%s8044 + $0x25a] sm:$0xff]
      %v10806 = vld [vmem:[%s8044 + $0x262] sm:$0xff]
      %v10807 = vld [vmem:[%s8044 + $0x26a] sm:$0xff]
      %v10808 = vld [vmem:[%s8044 + $0x272] sm:$0xff]
      %v10809 = vld [vmem:[%s8044 + $0x282] sm:$0xff]
      %v10810 = vld [vmem:[%s8044 + $0x28a] sm:$0xff]
      %v10811 = vld [vmem:[%s8044 + $0x292] sm:$0xff]
      %v10812 = vld [vmem:[%s8044 + $0x29a] sm:$0xff]
      %v10813 = vld [vmem:[%s8044 + $0x2aa] sm:$0xff]
      %v10814 = vld [vmem:[%s8044 + $0x2b2] sm:$0xff]
      %v10815 = vld [vmem:[%s8044 + $0x2ba] sm:$0xff]
      %v10816 = vld [vmem:[%s8044 + $0x2c2] sm:$0xff]
      %v10817 = vld [vmem:[%s8044 + $0x2d2] sm:$0xff]
      %v10818 = vld [vmem:[%s8044 + $0x2da] sm:$0xff]
      %v10819 = vld [vmem:[%s8044 + $0x2e2] sm:$0xff]
      %v10820 = vld [vmem:[%s8044 + $0x2ea] sm:$0xff]
      %v10821 = vld [vmem:[%s8044 + $0x2fa] sm:$0xff]
      %v10822 = vld [vmem:[%s8044 + $0x302] sm:$0xff]
      %v10823 = vld [vmem:[%s8044 + $0x30a] sm:$0xff]
      %v10824 = vld [vmem:[%s8044 + $0x312] sm:$0xff]
      %v10825 = vld [vmem:[%s8044 + $0x322] sm:$0xff]
      %v10826 = vld [vmem:[%s8044 + $0x32a] sm:$0xff]
      %v10827 = vld [vmem:[%s8044 + $0x332] sm:$0xff]
      %v10828 = vld [vmem:[%s8044 + $0x33a] sm:$0xff]
      %v10829 = vld [vmem:[%s8044 + $0x34a] sm:$0xff]
      %v10830 = vld [vmem:[%s8044 + $0x352] sm:$0xff]
      %v10831 = vld [vmem:[%s8044 + $0x35a] sm:$0xff]
      %v10832 = vld [vmem:[%s8044 + $0x362] sm:$0xff]
      %v10833 = vld [vmem:[%s8044 + $0x372] sm:$0xff]
      %v10834 = vld [vmem:[%s8044 + $0x37a] sm:$0xff]
      %v10835 = vld [vmem:[%s8044 + $0x382] sm:$0xff]
      %v10836 = vld [vmem:[%s8044 + $0x38a] sm:$0xff]
      %v10837 = vld [vmem:[%s8044 + $0x39a] sm:$0xff]
      %v10838 = vld [vmem:[%s8044 + $0x3a2] sm:$0xff]
      %v10839 = vld [vmem:[%s8044 + $0x3aa] sm:$0xff]
      %v10840 = vld [vmem:[%s8044 + $0x3b2] sm:$0xff]
      %v10841 = vld [vmem:[%s8044 + $0x3c2] sm:$0xff]
      %v10842 = vld [vmem:[%s8044 + $0x3ca] sm:$0xff]
      %v10843 = vld [vmem:[%s8044 + $0x3d2] sm:$0xff]
      %v10844 = vld [vmem:[%s8044 + $0x3da] sm:$0xff]
      %v10845 = vld [vmem:[%s8044 + $0x3ea] sm:$0xff]
      %v10846 = vld [vmem:[%s8044 + $0x3f2] sm:$0xff]
      %v10847 = vld [vmem:[%s8044 + $0x3fa] sm:$0xff]
      %v10848 = vld [vmem:[%s8044 + $0x402] sm:$0xff]
      %v10849 = vld [vmem:[%s8044 + $0x412] sm:$0xff]
      %v10850 = vld [vmem:[%s8044 + $0x41a] sm:$0xff]
      %v10851 = vld [vmem:[%s8044 + $0x422] sm:$0xff]
      %v10852 = vld [vmem:[%s8044 + $0x42a] sm:$0xff]
      %v10853 = vld [vmem:[%s8044 + $0x43a] sm:$0xff]
      %v10854 = vld [vmem:[%s8044 + $0x442] sm:$0xff]
      %v10855 = vld [vmem:[%s8044 + $0x44a] sm:$0xff]
      %v10856 = vld [vmem:[%s8044 + $0x452] sm:$0xff]
      %v10857 = vld [vmem:[%s8044 + $0x462] sm:$0xff]
      %v10858 = vld [vmem:[%s8044 + $0x46a] sm:$0xff]
      %v10859 = vld [vmem:[%s8044 + $0x472] sm:$0xff]
      %v10860 = vld [vmem:[%s8044 + $0x47a] sm:$0xff]
      %v10861 = vld [vmem:[%s8044 + $0x48a] sm:$0xff]
      %v10862 = vld [vmem:[%s8044 + $0x492] sm:$0xff]
      %v10863 = vld [vmem:[%s8044 + $0x49a] sm:$0xff]
      %v10864 = vld [vmem:[%s8044 + $0x4a2] sm:$0xff]
      %v10865 = vld [vmem:[%s8044 + $0x4b2] sm:$0xff]
      %v10866 = vld [vmem:[%s8044 + $0x4ba] sm:$0xff]
      %v10867 = vld [vmem:[%s8044 + $0x4c2] sm:$0xff]
      %v10868 = vld [vmem:[%s8044 + $0x4ca] sm:$0xff]
      %v10869 = vld [vmem:[%s8044 + $0x4da] sm:$0xff]
      %v10870 = vld [vmem:[%s8044 + $0x4e2] sm:$0xff]
      %v10871 = vld [vmem:[%s8044 + $0x4ea] sm:$0xff]
      %v10872 = vld [vmem:[%s8044 + $0x4f2] sm:$0xff]
      %s10873 = scalar_lea.vmem %s1, 32
      %v10874 = vld [vmem:[%s10873] sm:$0xf]
      %v10876 = vsel %vm457, %v10745, 0
      %v10879 = vsel %vm457, %v10746, 0
      %v10882 = vsel %vm457, %v10747, 0
      %v10885 = vsel %vm457, %v10748, 0
      %v10888 = vsel %vm457, %v10749, 0
      %v10891 = vsel %vm457, %v10750, 0
      %v10894 = vsel %vm457, %v10751, 0
      %v10897 = vsel %vm457, %v10752, 0
      %v10900 = vsel %vm457, %v10753, 0
      %v10903 = vsel %vm457, %v10754, 0
      %v10906 = vsel %vm457, %v10755, 0
      %v10909 = vsel %vm457, %v10756, 0
      %v10912 = vsel %vm457, %v10757, 0
      %v10915 = vsel %vm457, %v10758, 0
      %v10918 = vsel %vm457, %v10759, 0
      %v10921 = vsel %vm457, %v10760, 0
      %v10924 = vsel %vm457, %v10761, 0
      %v10927 = vsel %vm457, %v10762, 0
      %v10930 = vsel %vm457, %v10763, 0
      %v10933 = vsel %vm457, %v10764, 0
      %v10936 = vsel %vm457, %v10765, 0
      %v10939 = vsel %vm457, %v10766, 0
      %v10942 = vsel %vm457, %v10767, 0
      %v10945 = vsel %vm457, %v10768, 0
      %v10948 = vsel %vm457, %v10769, 0
      %v10951 = vsel %vm457, %v10770, 0
      %v10954 = vsel %vm457, %v10771, 0
      %v10957 = vsel %vm457, %v10772, 0
      %v10960 = vsel %vm457, %v10773, 0
      %v10963 = vsel %vm457, %v10774, 0
      %v10966 = vsel %vm457, %v10775, 0
      %v10969 = vsel %vm457, %v10776, 0
      %v10972 = vsel %vm457, %v10777, 0
      %v10975 = vsel %vm457, %v10778, 0
      %v10978 = vsel %vm457, %v10779, 0
      %v10981 = vsel %vm457, %v10780, 0
      %v10984 = vsel %vm457, %v10781, 0
      %v10987 = vsel %vm457, %v10782, 0
      %v10990 = vsel %vm457, %v10783, 0
      %v10993 = vsel %vm457, %v10784, 0
      %v10996 = vsel %vm457, %v10785, 0
      %v10999 = vsel %vm457, %v10786, 0
      %v11002 = vsel %vm457, %v10787, 0
      %v11005 = vsel %vm457, %v10788, 0
      %v11008 = vsel %vm457, %v10789, 0
      %v11011 = vsel %vm457, %v10790, 0
      %v11014 = vsel %vm457, %v10791, 0
      %v11017 = vsel %vm457, %v10792, 0
      %v11020 = vsel %vm457, %v10793, 0
      %v11023 = vsel %vm457, %v10794, 0
      %v11026 = vsel %vm457, %v10795, 0
      %v11029 = vsel %vm457, %v10796, 0
      %v11032 = vsel %vm457, %v10797, 0
      %v11035 = vsel %vm457, %v10798, 0
      %v11038 = vsel %vm457, %v10799, 0
      %v11041 = vsel %vm457, %v10800, 0
      %v11044 = vsel %vm457, %v10801, 0
      %v11047 = vsel %vm457, %v10802, 0
      %v11050 = vsel %vm457, %v10803, 0
      %v11053 = vsel %vm457, %v10804, 0
      %v11056 = vsel %vm457, %v10805, 0
      %v11059 = vsel %vm457, %v10806, 0
      %v11062 = vsel %vm457, %v10807, 0
      %v11065 = vsel %vm457, %v10808, 0
      %v11068 = vsel %vm457, %v10809, 0
      %v11071 = vsel %vm457, %v10810, 0
      %v11074 = vsel %vm457, %v10811, 0
      %v11077 = vsel %vm457, %v10812, 0
      %v11080 = vsel %vm457, %v10813, 0
      %v11083 = vsel %vm457, %v10814, 0
      %v11086 = vsel %vm457, %v10815, 0
      %v11089 = vsel %vm457, %v10816, 0
      %v11092 = vsel %vm457, %v10817, 0
      %v11095 = vsel %vm457, %v10818, 0
      %v11098 = vsel %vm457, %v10819, 0
      %v11101 = vsel %vm457, %v10820, 0
      %v11104 = vsel %vm457, %v10821, 0
      %v11107 = vsel %vm457, %v10822, 0
      %v11110 = vsel %vm457, %v10823, 0
      %v11113 = vsel %vm457, %v10824, 0
      %v11116 = vsel %vm457, %v10825, 0
      %v11119 = vsel %vm457, %v10826, 0
      %v11122 = vsel %vm457, %v10827, 0
      %v11125 = vsel %vm457, %v10828, 0
      %v11128 = vsel %vm457, %v10829, 0
      %v11131 = vsel %vm457, %v10830, 0
      %v11134 = vsel %vm457, %v10831, 0
      %v11137 = vsel %vm457, %v10832, 0
      %v11140 = vsel %vm457, %v10833, 0
      %v11143 = vsel %vm457, %v10834, 0
      %v11146 = vsel %vm457, %v10835, 0
      %v11149 = vsel %vm457, %v10836, 0
      %v11152 = vsel %vm457, %v10837, 0
      %v11155 = vsel %vm457, %v10838, 0
      %v11158 = vsel %vm457, %v10839, 0
      %v11161 = vsel %vm457, %v10840, 0
      %v11164 = vsel %vm457, %v10841, 0
      %v11167 = vsel %vm457, %v10842, 0
      %v11170 = vsel %vm457, %v10843, 0
      %v11173 = vsel %vm457, %v10844, 0
      %v11176 = vsel %vm457, %v10845, 0
      %v11179 = vsel %vm457, %v10846, 0
      %v11182 = vsel %vm457, %v10847, 0
      %v11185 = vsel %vm457, %v10848, 0
      %v11188 = vsel %vm457, %v10849, 0
      %v11191 = vsel %vm457, %v10850, 0
      %v11194 = vsel %vm457, %v10851, 0
      %v11197 = vsel %vm457, %v10852, 0
      %v11200 = vsel %vm457, %v10853, 0
      %v11203 = vsel %vm457, %v10854, 0
      %v11206 = vsel %vm457, %v10855, 0
      %v11209 = vsel %vm457, %v10856, 0
      %v11212 = vsel %vm457, %v10857, 0
      %v11215 = vsel %vm457, %v10858, 0
      %v11218 = vsel %vm457, %v10859, 0
      %v11221 = vsel %vm457, %v10860, 0
      %v11224 = vsel %vm457, %v10861, 0
      %v11227 = vsel %vm457, %v10862, 0
      %v11230 = vsel %vm457, %v10863, 0
      %v11233 = vsel %vm457, %v10864, 0
      %v11236 = vsel %vm457, %v10865, 0
      %v11239 = vsel %vm457, %v10866, 0
      %v11242 = vsel %vm457, %v10867, 0
      %v11245 = vsel %vm457, %v10868, 0
      %v11248 = vsel %vm457, %v10869, 0
      %v11251 = vsel %vm457, %v10870, 0
      %v11254 = vsel %vm457, %v10871, 0
      %v11257 = vsel %vm457, %v10872, 0
      %v11260 = vsel %vm842, %v10874, 0
      %11262 = vmatprep.subr.mxu0 0.0
      %11263 = vmatpush1.msra.mxu0 0.0
      %11264 = vmatprep.subr.mxu0 0.0
      %11265 = vmatpush1.msra.mxu0 0.0
      %11266 = vmatprep.subr.mxu0 0.0
      %11267 = vmatpush1.msra.mxu0 0.0
      %11268 = vmatprep.subr.mxu0 0.0
      %11269 = vmatpush1.msra.mxu0 0.0
      %11270 = vmatprep.subr.mxu0 0.0
      %11271 = vmatpush1.msra.mxu0 0.0
      %11272 = vmatprep.subr.mxu0 0.0
      %11273 = vmatpush1.msra.mxu0 0.0
      %11274 = vmatprep.subr.mxu0 0.0
      %11275 = vmatpush1.msra.mxu0 0.0
      %11276 = vmatprep.subr.mxu0 0.0
      %11277 = vmatpush1.msra.mxu0 0.0
      %11278 = vmatprep.subr.mxu0 0.0
      %11279 = vmatpush1.msra.mxu0 0.0
      %11280 = vmatprep.subr.mxu0 0.0
      %11281 = vmatpush1.msra.mxu0 0.0
      %11282 = vmatprep.subr.mxu0 0.0
      %11283 = vmatpush1.msra.mxu0 0.0
      %11284 = vmatprep.subr.mxu0 0.0
      %11285 = vmatpush1.msra.mxu0 0.0
      %11286 = vmatprep.subr.mxu0 0.0
      %11287 = vmatpush1.msra.mxu0 0.0
      %11288 = vmatprep.subr.mxu0 0.0
      %11289 = vmatpush1.msra.mxu0 0.0
      %11290 = vmatprep.subr.mxu0 0.0
      %11291 = vmatpush1.msra.mxu0 0.0
      %11292 = vmatprep.subr.mxu0 0.0
      %11293 = vmatpush1.msra.mxu0 %v11260
      %11294 = vmatprep.subr.mxu0 0.0
      %11295 = vmatpush2.msra.mxu0 0.0
      %11296 = vmatprep.subr.mxu0 0.0
      %11297 = vmatpush2.msra.mxu0 0.0
      %11298 = vmatprep.subr.mxu0 0.0
      %11299 = vmatpush2.msra.mxu0 0.0
      %11300 = vmatprep.subr.mxu0 0.0
      %11301 = vmatpush2.msra.mxu0 0.0
      %11302 = vmatprep.subr.mxu0 0.0
      %11303 = vmatpush2.msra.mxu0 0.0
      %11304 = vmatprep.subr.mxu0 0.0
      %11305 = vmatpush2.msra.mxu0 0.0
      %11306 = vmatprep.subr.mxu0 0.0
      %11307 = vmatpush2.msra.mxu0 0.0
      %11308 = vmatprep.subr.mxu0 0.0
      %11309 = vmatpush2.msra.mxu0 0.0
      %11310 = vmatprep.subr.mxu0 0.0
      %11311 = vmatpush2.msra.mxu0 0.0
      %11312 = vmatprep.subr.mxu0 0.0
      %11313 = vmatpush2.msra.mxu0 0.0
      %11314 = vmatprep.subr.mxu0 0.0
      %11315 = vmatpush2.msra.mxu0 0.0
      %11316 = vmatprep.subr.mxu0 0.0
      %11317 = vmatpush2.msra.mxu0 0.0
      %11318 = vmatprep.subr.mxu0 0.0
      %11319 = vmatpush2.msra.mxu0 0.0
      %11320 = vmatprep.subr.mxu0 0.0
      %11321 = vmatpush2.msra.mxu0 0.0
      %11322 = vmatprep.subr.mxu0 0.0
      %11323 = vmatpush2.msra.mxu0 0.0
      %11324 = vmatprep.subr.mxu0 0.0
      %11325 = vmatpush2.msra.mxu0 0.0
      %11326 = vmatprep.mubr.f32.mxu0 0.0
      %11327 = vmatmul.mubr.f32.gmra.mxu0 %v10876
      %v11328 = vpop.f32.mrf.mxu0
      %v11329 = vadd.f32 0.0, %v11328
      %v11330 = vpop.f32.mrf.mxu0
      %11331 = vmatprep.mubr.f32.mxu0 0.0
      %11332 = vmatmul.mubr.f32.gmra.mxu0 %v10879
      %v11333 = vpop.f32.mrf.mxu0
      %v11334 = vadd.f32 0.0, %v11333
      %v11335 = vpop.f32.mrf.mxu0
      %11336 = vmatprep.mubr.f32.mxu0 0.0
      %11337 = vmatmul.mubr.f32.gmra.mxu0 %v10882
      %v11338 = vpop.f32.mrf.mxu0
      %v11339 = vadd.f32 0.0, %v11338
      %v11340 = vpop.f32.mrf.mxu0
      %11341 = vmatprep.mubr.f32.mxu0 0.0
      %11342 = vmatmul.mubr.f32.gmra.mxu0 %v10885
      %v11343 = vpop.f32.mrf.mxu0
      %v11344 = vadd.f32 0.0, %v11343
      %v11345 = vpop.f32.mrf.mxu0
      %11346 = vmatprep.mubr.f32.mxu0 0.0
      %11347 = vmatmul.mubr.f32.gmra.mxu0 %v10888
      %v11348 = vpop.f32.mrf.mxu0
      %v11349 = vadd.f32 0.0, %v11348
      %v11350 = vpop.f32.mrf.mxu0
      %11351 = vmatprep.mubr.f32.mxu0 0.0
      %11352 = vmatmul.mubr.f32.gmra.mxu0 %v10891
      %v11353 = vpop.f32.mrf.mxu0
      %v11354 = vadd.f32 0.0, %v11353
      %v11355 = vpop.f32.mrf.mxu0
      %11356 = vmatprep.mubr.f32.mxu0 0.0
      %11357 = vmatmul.mubr.f32.gmra.mxu0 %v10894
      %v11358 = vpop.f32.mrf.mxu0
      %v11359 = vadd.f32 0.0, %v11358
      %v11360 = vpop.f32.mrf.mxu0
      %11361 = vmatprep.mubr.f32.mxu0 0.0
      %11362 = vmatmul.mubr.f32.gmra.mxu0 %v10897
      %v11363 = vpop.f32.mrf.mxu0
      %v11364 = vadd.f32 0.0, %v11363
      %v11365 = vpop.f32.mrf.mxu0
      %11366 = vmatprep.mubr.f32.mxu0 0.0
      %11367 = vmatmul.mubr.f32.gmra.mxu0 %v10900
      %v11368 = vpop.f32.mrf.mxu0
      %v11369 = vadd.f32 0.0, %v11368
      %v11370 = vpop.f32.mrf.mxu0
      %11371 = vmatprep.mubr.f32.mxu0 0.0
      %11372 = vmatmul.mubr.f32.gmra.mxu0 %v10903
      %v11373 = vpop.f32.mrf.mxu0
      %v11374 = vadd.f32 0.0, %v11373
      %v11375 = vpop.f32.mrf.mxu0
      %11376 = vmatprep.mubr.f32.mxu0 0.0
      %11377 = vmatmul.mubr.f32.gmra.mxu0 %v10906
      %v11378 = vpop.f32.mrf.mxu0
      %v11379 = vadd.f32 0.0, %v11378
      %v11380 = vpop.f32.mrf.mxu0
      %11381 = vmatprep.mubr.f32.mxu0 0.0
      %11382 = vmatmul.mubr.f32.gmra.mxu0 %v10909
      %v11383 = vpop.f32.mrf.mxu0
      %v11384 = vadd.f32 0.0, %v11383
      %v11385 = vpop.f32.mrf.mxu0
      %11386 = vmatprep.mubr.f32.mxu0 0.0
      %11387 = vmatmul.mubr.f32.gmra.mxu0 %v10912
      %v11388 = vpop.f32.mrf.mxu0
      %v11389 = vadd.f32 0.0, %v11388
      %v11390 = vpop.f32.mrf.mxu0
      %11391 = vmatprep.mubr.f32.mxu0 0.0
      %11392 = vmatmul.mubr.f32.gmra.mxu0 %v10915
      %v11393 = vpop.f32.mrf.mxu0
      %v11394 = vadd.f32 0.0, %v11393
      %v11395 = vpop.f32.mrf.mxu0
      %11396 = vmatprep.mubr.f32.mxu0 0.0
      %11397 = vmatmul.mubr.f32.gmra.mxu0 %v10918
      %v11398 = vpop.f32.mrf.mxu0
      %v11399 = vadd.f32 0.0, %v11398
      %v11400 = vpop.f32.mrf.mxu0
      %11401 = vmatprep.mubr.f32.mxu0 0.0
      %11402 = vmatmul.mubr.f32.gmra.mxu0 %v10921
      %v11403 = vpop.f32.mrf.mxu0
      %v11404 = vadd.f32 0.0, %v11403
      %v11405 = vpop.f32.mrf.mxu0
      %11406 = vmatprep.mubr.f32.mxu0 0.0
      %11407 = vmatmul.mubr.f32.gmra.mxu0 %v10924
      %v11408 = vpop.f32.mrf.mxu0
      %v11409 = vadd.f32 0.0, %v11408
      %v11410 = vpop.f32.mrf.mxu0
      %11411 = vmatprep.mubr.f32.mxu0 0.0
      %11412 = vmatmul.mubr.f32.gmra.mxu0 %v10927
      %v11413 = vpop.f32.mrf.mxu0
      %v11414 = vadd.f32 0.0, %v11413
      %v11415 = vpop.f32.mrf.mxu0
      %11416 = vmatprep.mubr.f32.mxu0 0.0
      %11417 = vmatmul.mubr.f32.gmra.mxu0 %v10930
      %v11418 = vpop.f32.mrf.mxu0
      %v11419 = vadd.f32 0.0, %v11418
      %v11420 = vpop.f32.mrf.mxu0
      %11421 = vmatprep.mubr.f32.mxu0 0.0
      %11422 = vmatmul.mubr.f32.gmra.mxu0 %v10933
      %v11423 = vpop.f32.mrf.mxu0
      %v11424 = vadd.f32 0.0, %v11423
      %v11425 = vpop.f32.mrf.mxu0
      %11426 = vmatprep.mubr.f32.mxu0 0.0
      %11427 = vmatmul.mubr.f32.gmra.mxu0 %v10936
      %v11428 = vpop.f32.mrf.mxu0
      %v11429 = vadd.f32 0.0, %v11428
      %v11430 = vpop.f32.mrf.mxu0
      %11431 = vmatprep.mubr.f32.mxu0 0.0
      %11432 = vmatmul.mubr.f32.gmra.mxu0 %v10939
      %v11433 = vpop.f32.mrf.mxu0
      %v11434 = vadd.f32 0.0, %v11433
      %v11435 = vpop.f32.mrf.mxu0
      %11436 = vmatprep.mubr.f32.mxu0 0.0
      %11437 = vmatmul.mubr.f32.gmra.mxu0 %v10942
      %v11438 = vpop.f32.mrf.mxu0
      %v11439 = vadd.f32 0.0, %v11438
      %v11440 = vpop.f32.mrf.mxu0
      %11441 = vmatprep.mubr.f32.mxu0 0.0
      %11442 = vmatmul.mubr.f32.gmra.mxu0 %v10945
      %v11443 = vpop.f32.mrf.mxu0
      %v11444 = vadd.f32 0.0, %v11443
      %v11445 = vpop.f32.mrf.mxu0
      %11446 = vmatprep.mubr.f32.mxu0 0.0
      %11447 = vmatmul.mubr.f32.gmra.mxu0 %v10948
      %v11448 = vpop.f32.mrf.mxu0
      %v11449 = vadd.f32 0.0, %v11448
      %v11450 = vpop.f32.mrf.mxu0
      %11451 = vmatprep.mubr.f32.mxu0 0.0
      %11452 = vmatmul.mubr.f32.gmra.mxu0 %v10951
      %v11453 = vpop.f32.mrf.mxu0
      %v11454 = vadd.f32 0.0, %v11453
      %v11455 = vpop.f32.mrf.mxu0
      %11456 = vmatprep.mubr.f32.mxu0 0.0
      %11457 = vmatmul.mubr.f32.gmra.mxu0 %v10954
      %v11458 = vpop.f32.mrf.mxu0
      %v11459 = vadd.f32 0.0, %v11458
      %v11460 = vpop.f32.mrf.mxu0
      %11461 = vmatprep.mubr.f32.mxu0 0.0
      %11462 = vmatmul.mubr.f32.gmra.mxu0 %v10957
      %v11463 = vpop.f32.mrf.mxu0
      %v11464 = vadd.f32 0.0, %v11463
      %v11465 = vpop.f32.mrf.mxu0
      %11466 = vmatprep.mubr.f32.mxu0 0.0
      %11467 = vmatmul.mubr.f32.gmra.mxu0 %v10960
      %v11468 = vpop.f32.mrf.mxu0
      %v11469 = vadd.f32 0.0, %v11468
      %v11470 = vpop.f32.mrf.mxu0
      %11471 = vmatprep.mubr.f32.mxu0 0.0
      %11472 = vmatmul.mubr.f32.gmra.mxu0 %v10963
      %v11473 = vpop.f32.mrf.mxu0
      %v11474 = vadd.f32 0.0, %v11473
      %v11475 = vpop.f32.mrf.mxu0
      %11476 = vmatprep.mubr.f32.mxu0 0.0
      %11477 = vmatmul.mubr.f32.gmra.mxu0 %v10966
      %v11478 = vpop.f32.mrf.mxu0
      %v11479 = vadd.f32 0.0, %v11478
      %v11480 = vpop.f32.mrf.mxu0
      %11481 = vmatprep.mubr.f32.mxu0 0.0
      %11482 = vmatmul.mubr.f32.gmra.mxu0 %v10969
      %v11483 = vpop.f32.mrf.mxu0
      %v11484 = vadd.f32 0.0, %v11483
      %v11485 = vpop.f32.mrf.mxu0
      %11486 = vmatprep.mubr.f32.mxu0 0.0
      %11487 = vmatmul.mubr.f32.gmra.mxu0 %v10972
      %v11488 = vpop.f32.mrf.mxu0
      %v11489 = vadd.f32 0.0, %v11488
      %v11490 = vpop.f32.mrf.mxu0
      %11491 = vmatprep.mubr.f32.mxu0 0.0
      %11492 = vmatmul.mubr.f32.gmra.mxu0 %v10975
      %v11493 = vpop.f32.mrf.mxu0
      %v11494 = vadd.f32 0.0, %v11493
      %v11495 = vpop.f32.mrf.mxu0
      %11496 = vmatprep.mubr.f32.mxu0 0.0
      %11497 = vmatmul.mubr.f32.gmra.mxu0 %v10978
      %v11498 = vpop.f32.mrf.mxu0
      %v11499 = vadd.f32 0.0, %v11498
      %v11500 = vpop.f32.mrf.mxu0
      %11501 = vmatprep.mubr.f32.mxu0 0.0
      %11502 = vmatmul.mubr.f32.gmra.mxu0 %v10981
      %v11503 = vpop.f32.mrf.mxu0
      %v11504 = vadd.f32 0.0, %v11503
      %v11505 = vpop.f32.mrf.mxu0
      %11506 = vmatprep.mubr.f32.mxu0 0.0
      %11507 = vmatmul.mubr.f32.gmra.mxu0 %v10984
      %v11508 = vpop.f32.mrf.mxu0
      %v11509 = vadd.f32 0.0, %v11508
      %v11510 = vpop.f32.mrf.mxu0
      %11511 = vmatprep.mubr.f32.mxu0 0.0
      %11512 = vmatmul.mubr.f32.gmra.mxu0 %v10987
      %v11513 = vpop.f32.mrf.mxu0
      %v11514 = vadd.f32 0.0, %v11513
      %v11515 = vpop.f32.mrf.mxu0
      %11516 = vmatprep.mubr.f32.mxu0 0.0
      %11517 = vmatmul.mubr.f32.gmra.mxu0 %v10990
      %v11518 = vpop.f32.mrf.mxu0
      %v11519 = vadd.f32 0.0, %v11518
      %v11520 = vpop.f32.mrf.mxu0
      %11521 = vmatprep.mubr.f32.mxu0 0.0
      %11522 = vmatmul.mubr.f32.gmra.mxu0 %v10993
      %v11523 = vpop.f32.mrf.mxu0
      %v11524 = vadd.f32 0.0, %v11523
      %v11525 = vpop.f32.mrf.mxu0
      %11526 = vmatprep.mubr.f32.mxu0 0.0
      %11527 = vmatmul.mubr.f32.gmra.mxu0 %v10996
      %v11528 = vpop.f32.mrf.mxu0
      %v11529 = vadd.f32 0.0, %v11528
      %v11530 = vpop.f32.mrf.mxu0
      %11531 = vmatprep.mubr.f32.mxu0 0.0
      %11532 = vmatmul.mubr.f32.gmra.mxu0 %v10999
      %v11533 = vpop.f32.mrf.mxu0
      %v11534 = vadd.f32 0.0, %v11533
      %v11535 = vpop.f32.mrf.mxu0
      %11536 = vmatprep.mubr.f32.mxu0 0.0
      %11537 = vmatmul.mubr.f32.gmra.mxu0 %v11002
      %v11538 = vpop.f32.mrf.mxu0
      %v11539 = vadd.f32 0.0, %v11538
      %v11540 = vpop.f32.mrf.mxu0
      %11541 = vmatprep.mubr.f32.mxu0 0.0
      %11542 = vmatmul.mubr.f32.gmra.mxu0 %v11005
      %v11543 = vpop.f32.mrf.mxu0
      %v11544 = vadd.f32 0.0, %v11543
      %v11545 = vpop.f32.mrf.mxu0
      %11546 = vmatprep.mubr.f32.mxu0 0.0
      %11547 = vmatmul.mubr.f32.gmra.mxu0 %v11008
      %v11548 = vpop.f32.mrf.mxu0
      %v11549 = vadd.f32 0.0, %v11548
      %v11550 = vpop.f32.mrf.mxu0
      %11551 = vmatprep.mubr.f32.mxu0 0.0
      %11552 = vmatmul.mubr.f32.gmra.mxu0 %v11011
      %v11553 = vpop.f32.mrf.mxu0
      %v11554 = vadd.f32 0.0, %v11553
      %v11555 = vpop.f32.mrf.mxu0
      %11556 = vmatprep.mubr.f32.mxu0 0.0
      %11557 = vmatmul.mubr.f32.gmra.mxu0 %v11014
      %v11558 = vpop.f32.mrf.mxu0
      %v11559 = vadd.f32 0.0, %v11558
      %v11560 = vpop.f32.mrf.mxu0
      %11561 = vmatprep.mubr.f32.mxu0 0.0
      %11562 = vmatmul.mubr.f32.gmra.mxu0 %v11017
      %v11563 = vpop.f32.mrf.mxu0
      %v11564 = vadd.f32 0.0, %v11563
      %v11565 = vpop.f32.mrf.mxu0
      %11566 = vmatprep.mubr.f32.mxu0 0.0
      %11567 = vmatmul.mubr.f32.gmra.mxu0 %v11020
      %v11568 = vpop.f32.mrf.mxu0
      %v11569 = vadd.f32 0.0, %v11568
      %v11570 = vpop.f32.mrf.mxu0
      %11571 = vmatprep.mubr.f32.mxu0 0.0
      %11572 = vmatmul.mubr.f32.gmra.mxu0 %v11023
      %v11573 = vpop.f32.mrf.mxu0
      %v11574 = vadd.f32 0.0, %v11573
      %v11575 = vpop.f32.mrf.mxu0
      %11576 = vmatprep.mubr.f32.mxu0 0.0
      %11577 = vmatmul.mubr.f32.gmra.mxu0 %v11026
      %v11578 = vpop.f32.mrf.mxu0
      %v11579 = vadd.f32 0.0, %v11578
      %v11580 = vpop.f32.mrf.mxu0
      %11581 = vmatprep.mubr.f32.mxu0 0.0
      %11582 = vmatmul.mubr.f32.gmra.mxu0 %v11029
      %v11583 = vpop.f32.mrf.mxu0
      %v11584 = vadd.f32 0.0, %v11583
      %v11585 = vpop.f32.mrf.mxu0
      %11586 = vmatprep.mubr.f32.mxu0 0.0
      %11587 = vmatmul.mubr.f32.gmra.mxu0 %v11032
      %v11588 = vpop.f32.mrf.mxu0
      %v11589 = vadd.f32 0.0, %v11588
      %v11590 = vpop.f32.mrf.mxu0
      %11591 = vmatprep.mubr.f32.mxu0 0.0
      %11592 = vmatmul.mubr.f32.gmra.mxu0 %v11035
      %v11593 = vpop.f32.mrf.mxu0
      %v11594 = vadd.f32 0.0, %v11593
      %v11595 = vpop.f32.mrf.mxu0
      %11596 = vmatprep.mubr.f32.mxu0 0.0
      %11597 = vmatmul.mubr.f32.gmra.mxu0 %v11038
      %v11598 = vpop.f32.mrf.mxu0
      %v11599 = vadd.f32 0.0, %v11598
      %v11600 = vpop.f32.mrf.mxu0
      %11601 = vmatprep.mubr.f32.mxu0 0.0
      %11602 = vmatmul.mubr.f32.gmra.mxu0 %v11041
      %v11603 = vpop.f32.mrf.mxu0
      %v11604 = vadd.f32 0.0, %v11603
      %v11605 = vpop.f32.mrf.mxu0
      %11606 = vmatprep.mubr.f32.mxu0 0.0
      %11607 = vmatmul.mubr.f32.gmra.mxu0 %v11044
      %v11608 = vpop.f32.mrf.mxu0
      %v11609 = vadd.f32 0.0, %v11608
      %v11610 = vpop.f32.mrf.mxu0
      %11611 = vmatprep.mubr.f32.mxu0 0.0
      %11612 = vmatmul.mubr.f32.gmra.mxu0 %v11047
      %v11613 = vpop.f32.mrf.mxu0
      %v11614 = vadd.f32 0.0, %v11613
      %v11615 = vpop.f32.mrf.mxu0
      %11616 = vmatprep.mubr.f32.mxu0 0.0
      %11617 = vmatmul.mubr.f32.gmra.mxu0 %v11050
      %v11618 = vpop.f32.mrf.mxu0
      %v11619 = vadd.f32 0.0, %v11618
      %v11620 = vpop.f32.mrf.mxu0
      %11621 = vmatprep.mubr.f32.mxu0 0.0
      %11622 = vmatmul.mubr.f32.gmra.mxu0 %v11053
      %v11623 = vpop.f32.mrf.mxu0
      %v11624 = vadd.f32 0.0, %v11623
      %v11625 = vpop.f32.mrf.mxu0
      %11626 = vmatprep.mubr.f32.mxu0 0.0
      %11627 = vmatmul.mubr.f32.gmra.mxu0 %v11056
      %v11628 = vpop.f32.mrf.mxu0
      %v11629 = vadd.f32 0.0, %v11628
      %v11630 = vpop.f32.mrf.mxu0
      %11631 = vmatprep.mubr.f32.mxu0 0.0
      %11632 = vmatmul.mubr.f32.gmra.mxu0 %v11059
      %v11633 = vpop.f32.mrf.mxu0
      %v11634 = vadd.f32 0.0, %v11633
      %v11635 = vpop.f32.mrf.mxu0
      %11636 = vmatprep.mubr.f32.mxu0 0.0
      %11637 = vmatmul.mubr.f32.gmra.mxu0 %v11062
      %v11638 = vpop.f32.mrf.mxu0
      %v11639 = vadd.f32 0.0, %v11638
      %v11640 = vpop.f32.mrf.mxu0
      %11641 = vmatprep.mubr.f32.mxu0 0.0
      %11642 = vmatmul.mubr.f32.gmra.mxu0 %v11065
      %v11643 = vpop.f32.mrf.mxu0
      %v11644 = vadd.f32 0.0, %v11643
      %v11645 = vpop.f32.mrf.mxu0
      %11646 = vmatprep.mubr.f32.mxu0 0.0
      %11647 = vmatmul.mubr.f32.gmra.mxu0 %v11068
      %v11648 = vpop.f32.mrf.mxu0
      %v11649 = vadd.f32 0.0, %v11648
      %v11650 = vpop.f32.mrf.mxu0
      %11651 = vmatprep.mubr.f32.mxu0 0.0
      %11652 = vmatmul.mubr.f32.gmra.mxu0 %v11071
      %v11653 = vpop.f32.mrf.mxu0
      %v11654 = vadd.f32 0.0, %v11653
      %v11655 = vpop.f32.mrf.mxu0
      %11656 = vmatprep.mubr.f32.mxu0 0.0
      %11657 = vmatmul.mubr.f32.gmra.mxu0 %v11074
      %v11658 = vpop.f32.mrf.mxu0
      %v11659 = vadd.f32 0.0, %v11658
      %v11660 = vpop.f32.mrf.mxu0
      %11661 = vmatprep.mubr.f32.mxu0 0.0
      %11662 = vmatmul.mubr.f32.gmra.mxu0 %v11077
      %v11663 = vpop.f32.mrf.mxu0
      %v11664 = vadd.f32 0.0, %v11663
      %v11665 = vpop.f32.mrf.mxu0
      %11666 = vmatprep.mubr.f32.mxu0 0.0
      %11667 = vmatmul.mubr.f32.gmra.mxu0 %v11080
      %v11668 = vpop.f32.mrf.mxu0
      %v11669 = vadd.f32 0.0, %v11668
      %v11670 = vpop.f32.mrf.mxu0
      %11671 = vmatprep.mubr.f32.mxu0 0.0
      %11672 = vmatmul.mubr.f32.gmra.mxu0 %v11083
      %v11673 = vpop.f32.mrf.mxu0
      %v11674 = vadd.f32 0.0, %v11673
      %v11675 = vpop.f32.mrf.mxu0
      %11676 = vmatprep.mubr.f32.mxu0 0.0
      %11677 = vmatmul.mubr.f32.gmra.mxu0 %v11086
      %v11678 = vpop.f32.mrf.mxu0
      %v11679 = vadd.f32 0.0, %v11678
      %v11680 = vpop.f32.mrf.mxu0
      %11681 = vmatprep.mubr.f32.mxu0 0.0
      %11682 = vmatmul.mubr.f32.gmra.mxu0 %v11089
      %v11683 = vpop.f32.mrf.mxu0
      %v11684 = vadd.f32 0.0, %v11683
      %v11685 = vpop.f32.mrf.mxu0
      %11686 = vmatprep.mubr.f32.mxu0 0.0
      %11687 = vmatmul.mubr.f32.gmra.mxu0 %v11092
      %v11688 = vpop.f32.mrf.mxu0
      %v11689 = vadd.f32 0.0, %v11688
      %v11690 = vpop.f32.mrf.mxu0
      %11691 = vmatprep.mubr.f32.mxu0 0.0
      %11692 = vmatmul.mubr.f32.gmra.mxu0 %v11095
      %v11693 = vpop.f32.mrf.mxu0
      %v11694 = vadd.f32 0.0, %v11693
      %v11695 = vpop.f32.mrf.mxu0
      %11696 = vmatprep.mubr.f32.mxu0 0.0
      %11697 = vmatmul.mubr.f32.gmra.mxu0 %v11098
      %v11698 = vpop.f32.mrf.mxu0
      %v11699 = vadd.f32 0.0, %v11698
      %v11700 = vpop.f32.mrf.mxu0
      %11701 = vmatprep.mubr.f32.mxu0 0.0
      %11702 = vmatmul.mubr.f32.gmra.mxu0 %v11101
      %v11703 = vpop.f32.mrf.mxu0
      %v11704 = vadd.f32 0.0, %v11703
      %v11705 = vpop.f32.mrf.mxu0
      %11706 = vmatprep.mubr.f32.mxu0 0.0
      %11707 = vmatmul.mubr.f32.gmra.mxu0 %v11104
      %v11708 = vpop.f32.mrf.mxu0
      %v11709 = vadd.f32 0.0, %v11708
      %v11710 = vpop.f32.mrf.mxu0
      %11711 = vmatprep.mubr.f32.mxu0 0.0
      %11712 = vmatmul.mubr.f32.gmra.mxu0 %v11107
      %v11713 = vpop.f32.mrf.mxu0
      %v11714 = vadd.f32 0.0, %v11713
      %v11715 = vpop.f32.mrf.mxu0
      %11716 = vmatprep.mubr.f32.mxu0 0.0
      %11717 = vmatmul.mubr.f32.gmra.mxu0 %v11110
      %v11718 = vpop.f32.mrf.mxu0
      %v11719 = vadd.f32 0.0, %v11718
      %v11720 = vpop.f32.mrf.mxu0
      %11721 = vmatprep.mubr.f32.mxu0 0.0
      %11722 = vmatmul.mubr.f32.gmra.mxu0 %v11113
      %v11723 = vpop.f32.mrf.mxu0
      %v11724 = vadd.f32 0.0, %v11723
      %v11725 = vpop.f32.mrf.mxu0
      %11726 = vmatprep.mubr.f32.mxu0 0.0
      %11727 = vmatmul.mubr.f32.gmra.mxu0 %v11116
      %v11728 = vpop.f32.mrf.mxu0
      %v11729 = vadd.f32 0.0, %v11728
      %v11730 = vpop.f32.mrf.mxu0
      %11731 = vmatprep.mubr.f32.mxu0 0.0
      %11732 = vmatmul.mubr.f32.gmra.mxu0 %v11119
      %v11733 = vpop.f32.mrf.mxu0
      %v11734 = vadd.f32 0.0, %v11733
      %v11735 = vpop.f32.mrf.mxu0
      %11736 = vmatprep.mubr.f32.mxu0 0.0
      %11737 = vmatmul.mubr.f32.gmra.mxu0 %v11122
      %v11738 = vpop.f32.mrf.mxu0
      %v11739 = vadd.f32 0.0, %v11738
      %v11740 = vpop.f32.mrf.mxu0
      %11741 = vmatprep.mubr.f32.mxu0 0.0
      %11742 = vmatmul.mubr.f32.gmra.mxu0 %v11125
      %v11743 = vpop.f32.mrf.mxu0
      %v11744 = vadd.f32 0.0, %v11743
      %v11745 = vpop.f32.mrf.mxu0
      %11746 = vmatprep.mubr.f32.mxu0 0.0
      %11747 = vmatmul.mubr.f32.gmra.mxu0 %v11128
      %v11748 = vpop.f32.mrf.mxu0
      %v11749 = vadd.f32 0.0, %v11748
      %v11750 = vpop.f32.mrf.mxu0
      %11751 = vmatprep.mubr.f32.mxu0 0.0
      %11752 = vmatmul.mubr.f32.gmra.mxu0 %v11131
      %v11753 = vpop.f32.mrf.mxu0
      %v11754 = vadd.f32 0.0, %v11753
      %v11755 = vpop.f32.mrf.mxu0
      %11756 = vmatprep.mubr.f32.mxu0 0.0
      %11757 = vmatmul.mubr.f32.gmra.mxu0 %v11134
      %v11758 = vpop.f32.mrf.mxu0
      %v11759 = vadd.f32 0.0, %v11758
      %v11760 = vpop.f32.mrf.mxu0
      %11761 = vmatprep.mubr.f32.mxu0 0.0
      %11762 = vmatmul.mubr.f32.gmra.mxu0 %v11137
      %v11763 = vpop.f32.mrf.mxu0
      %v11764 = vadd.f32 0.0, %v11763
      %v11765 = vpop.f32.mrf.mxu0
      %11766 = vmatprep.mubr.f32.mxu0 0.0
      %11767 = vmatmul.mubr.f32.gmra.mxu0 %v11140
      %v11768 = vpop.f32.mrf.mxu0
      %v11769 = vadd.f32 0.0, %v11768
      %v11770 = vpop.f32.mrf.mxu0
      %11771 = vmatprep.mubr.f32.mxu0 0.0
      %11772 = vmatmul.mubr.f32.gmra.mxu0 %v11143
      %v11773 = vpop.f32.mrf.mxu0
      %v11774 = vadd.f32 0.0, %v11773
      %v11775 = vpop.f32.mrf.mxu0
      %11776 = vmatprep.mubr.f32.mxu0 0.0
      %11777 = vmatmul.mubr.f32.gmra.mxu0 %v11146
      %v11778 = vpop.f32.mrf.mxu0
      %v11779 = vadd.f32 0.0, %v11778
      %v11780 = vpop.f32.mrf.mxu0
      %11781 = vmatprep.mubr.f32.mxu0 0.0
      %11782 = vmatmul.mubr.f32.gmra.mxu0 %v11149
      %v11783 = vpop.f32.mrf.mxu0
      %v11784 = vadd.f32 0.0, %v11783
      %v11785 = vpop.f32.mrf.mxu0
      %11786 = vmatprep.mubr.f32.mxu0 0.0
      %11787 = vmatmul.mubr.f32.gmra.mxu0 %v11152
      %v11788 = vpop.f32.mrf.mxu0
      %v11789 = vadd.f32 0.0, %v11788
      %v11790 = vpop.f32.mrf.mxu0
      %11791 = vmatprep.mubr.f32.mxu0 0.0
      %11792 = vmatmul.mubr.f32.gmra.mxu0 %v11155
      %v11793 = vpop.f32.mrf.mxu0
      %v11794 = vadd.f32 0.0, %v11793
      %v11795 = vpop.f32.mrf.mxu0
      %11796 = vmatprep.mubr.f32.mxu0 0.0
      %11797 = vmatmul.mubr.f32.gmra.mxu0 %v11158
      %v11798 = vpop.f32.mrf.mxu0
      %v11799 = vadd.f32 0.0, %v11798
      %v11800 = vpop.f32.mrf.mxu0
      %11801 = vmatprep.mubr.f32.mxu0 0.0
      %11802 = vmatmul.mubr.f32.gmra.mxu0 %v11161
      %v11803 = vpop.f32.mrf.mxu0
      %v11804 = vadd.f32 0.0, %v11803
      %v11805 = vpop.f32.mrf.mxu0
      %11806 = vmatprep.mubr.f32.mxu0 0.0
      %11807 = vmatmul.mubr.f32.gmra.mxu0 %v11164
      %v11808 = vpop.f32.mrf.mxu0
      %v11809 = vadd.f32 0.0, %v11808
      %v11810 = vpop.f32.mrf.mxu0
      %11811 = vmatprep.mubr.f32.mxu0 0.0
      %11812 = vmatmul.mubr.f32.gmra.mxu0 %v11167
      %v11813 = vpop.f32.mrf.mxu0
      %v11814 = vadd.f32 0.0, %v11813
      %v11815 = vpop.f32.mrf.mxu0
      %11816 = vmatprep.mubr.f32.mxu0 0.0
      %11817 = vmatmul.mubr.f32.gmra.mxu0 %v11170
      %v11818 = vpop.f32.mrf.mxu0
      %v11819 = vadd.f32 0.0, %v11818
      %v11820 = vpop.f32.mrf.mxu0
      %11821 = vmatprep.mubr.f32.mxu0 0.0
      %11822 = vmatmul.mubr.f32.gmra.mxu0 %v11173
      %v11823 = vpop.f32.mrf.mxu0
      %v11824 = vadd.f32 0.0, %v11823
      %v11825 = vpop.f32.mrf.mxu0
      %11826 = vmatprep.mubr.f32.mxu0 0.0
      %11827 = vmatmul.mubr.f32.gmra.mxu0 %v11176
      %v11828 = vpop.f32.mrf.mxu0
      %v11829 = vadd.f32 0.0, %v11828
      %v11830 = vpop.f32.mrf.mxu0
      %11831 = vmatprep.mubr.f32.mxu0 0.0
      %11832 = vmatmul.mubr.f32.gmra.mxu0 %v11179
      %v11833 = vpop.f32.mrf.mxu0
      %v11834 = vadd.f32 0.0, %v11833
      %v11835 = vpop.f32.mrf.mxu0
      %11836 = vmatprep.mubr.f32.mxu0 0.0
      %11837 = vmatmul.mubr.f32.gmra.mxu0 %v11182
      %v11838 = vpop.f32.mrf.mxu0
      %v11839 = vadd.f32 0.0, %v11838
      %v11840 = vpop.f32.mrf.mxu0
      %11841 = vmatprep.mubr.f32.mxu0 0.0
      %11842 = vmatmul.mubr.f32.gmra.mxu0 %v11185
      %v11843 = vpop.f32.mrf.mxu0
      %v11844 = vadd.f32 0.0, %v11843
      %v11845 = vpop.f32.mrf.mxu0
      %11846 = vmatprep.mubr.f32.mxu0 0.0
      %11847 = vmatmul.mubr.f32.gmra.mxu0 %v11188
      %v11848 = vpop.f32.mrf.mxu0
      %v11849 = vadd.f32 0.0, %v11848
      %v11850 = vpop.f32.mrf.mxu0
      %11851 = vmatprep.mubr.f32.mxu0 0.0
      %11852 = vmatmul.mubr.f32.gmra.mxu0 %v11191
      %v11853 = vpop.f32.mrf.mxu0
      %v11854 = vadd.f32 0.0, %v11853
      %v11855 = vpop.f32.mrf.mxu0
      %11856 = vmatprep.mubr.f32.mxu0 0.0
      %11857 = vmatmul.mubr.f32.gmra.mxu0 %v11194
      %v11858 = vpop.f32.mrf.mxu0
      %v11859 = vadd.f32 0.0, %v11858
      %v11860 = vpop.f32.mrf.mxu0
      %11861 = vmatprep.mubr.f32.mxu0 0.0
      %11862 = vmatmul.mubr.f32.gmra.mxu0 %v11197
      %v11863 = vpop.f32.mrf.mxu0
      %v11864 = vadd.f32 0.0, %v11863
      %v11865 = vpop.f32.mrf.mxu0
      %11866 = vmatprep.mubr.f32.mxu0 0.0
      %11867 = vmatmul.mubr.f32.gmra.mxu0 %v11200
      %v11868 = vpop.f32.mrf.mxu0
      %v11869 = vadd.f32 0.0, %v11868
      %v11870 = vpop.f32.mrf.mxu0
      %11871 = vmatprep.mubr.f32.mxu0 0.0
      %11872 = vmatmul.mubr.f32.gmra.mxu0 %v11203
      %v11873 = vpop.f32.mrf.mxu0
      %v11874 = vadd.f32 0.0, %v11873
      %v11875 = vpop.f32.mrf.mxu0
      %11876 = vmatprep.mubr.f32.mxu0 0.0
      %11877 = vmatmul.mubr.f32.gmra.mxu0 %v11206
      %v11878 = vpop.f32.mrf.mxu0
      %v11879 = vadd.f32 0.0, %v11878
      %v11880 = vpop.f32.mrf.mxu0
      %11881 = vmatprep.mubr.f32.mxu0 0.0
      %11882 = vmatmul.mubr.f32.gmra.mxu0 %v11209
      %v11883 = vpop.f32.mrf.mxu0
      %v11884 = vadd.f32 0.0, %v11883
      %v11885 = vpop.f32.mrf.mxu0
      %11886 = vmatprep.mubr.f32.mxu0 0.0
      %11887 = vmatmul.mubr.f32.gmra.mxu0 %v11212
      %v11888 = vpop.f32.mrf.mxu0
      %v11889 = vadd.f32 0.0, %v11888
      %v11890 = vpop.f32.mrf.mxu0
      %11891 = vmatprep.mubr.f32.mxu0 0.0
      %11892 = vmatmul.mubr.f32.gmra.mxu0 %v11215
      %v11893 = vpop.f32.mrf.mxu0
      %v11894 = vadd.f32 0.0, %v11893
      %v11895 = vpop.f32.mrf.mxu0
      %11896 = vmatprep.mubr.f32.mxu0 0.0
      %11897 = vmatmul.mubr.f32.gmra.mxu0 %v11218
      %v11898 = vpop.f32.mrf.mxu0
      %v11899 = vadd.f32 0.0, %v11898
      %v11900 = vpop.f32.mrf.mxu0
      %11901 = vmatprep.mubr.f32.mxu0 0.0
      %11902 = vmatmul.mubr.f32.gmra.mxu0 %v11221
      %v11903 = vpop.f32.mrf.mxu0
      %v11904 = vadd.f32 0.0, %v11903
      %v11905 = vpop.f32.mrf.mxu0
      %11906 = vmatprep.mubr.f32.mxu0 0.0
      %11907 = vmatmul.mubr.f32.gmra.mxu0 %v11224
      %v11908 = vpop.f32.mrf.mxu0
      %v11909 = vadd.f32 0.0, %v11908
      %v11910 = vpop.f32.mrf.mxu0
      %11911 = vmatprep.mubr.f32.mxu0 0.0
      %11912 = vmatmul.mubr.f32.gmra.mxu0 %v11227
      %v11913 = vpop.f32.mrf.mxu0
      %v11914 = vadd.f32 0.0, %v11913
      %v11915 = vpop.f32.mrf.mxu0
      %11916 = vmatprep.mubr.f32.mxu0 0.0
      %11917 = vmatmul.mubr.f32.gmra.mxu0 %v11230
      %v11918 = vpop.f32.mrf.mxu0
      %v11919 = vadd.f32 0.0, %v11918
      %v11920 = vpop.f32.mrf.mxu0
      %11921 = vmatprep.mubr.f32.mxu0 0.0
      %11922 = vmatmul.mubr.f32.gmra.mxu0 %v11233
      %v11923 = vpop.f32.mrf.mxu0
      %v11924 = vadd.f32 0.0, %v11923
      %v11925 = vpop.f32.mrf.mxu0
      %11926 = vmatprep.mubr.f32.mxu0 0.0
      %11927 = vmatmul.mubr.f32.gmra.mxu0 %v11236
      %v11928 = vpop.f32.mrf.mxu0
      %v11929 = vadd.f32 0.0, %v11928
      %v11930 = vpop.f32.mrf.mxu0
      %11931 = vmatprep.mubr.f32.mxu0 0.0
      %11932 = vmatmul.mubr.f32.gmra.mxu0 %v11239
      %v11933 = vpop.f32.mrf.mxu0
      %v11934 = vadd.f32 0.0, %v11933
      %v11935 = vpop.f32.mrf.mxu0
      %11936 = vmatprep.mubr.f32.mxu0 0.0
      %11937 = vmatmul.mubr.f32.gmra.mxu0 %v11242
      %v11938 = vpop.f32.mrf.mxu0
      %v11939 = vadd.f32 0.0, %v11938
      %v11940 = vpop.f32.mrf.mxu0
      %11941 = vmatprep.mubr.f32.mxu0 0.0
      %11942 = vmatmul.mubr.f32.gmra.mxu0 %v11245
      %v11943 = vpop.f32.mrf.mxu0
      %v11944 = vadd.f32 0.0, %v11943
      %v11945 = vpop.f32.mrf.mxu0
      %11946 = vmatprep.mubr.f32.mxu0 0.0
      %11947 = vmatmul.mubr.f32.gmra.mxu0 %v11248
      %v11948 = vpop.f32.mrf.mxu0
      %v11949 = vadd.f32 0.0, %v11948
      %v11950 = vpop.f32.mrf.mxu0
      %11951 = vmatprep.mubr.f32.mxu0 0.0
      %11952 = vmatmul.mubr.f32.gmra.mxu0 %v11251
      %v11953 = vpop.f32.mrf.mxu0
      %v11954 = vadd.f32 0.0, %v11953
      %v11955 = vpop.f32.mrf.mxu0
      %11956 = vmatprep.mubr.f32.mxu0 0.0
      %11957 = vmatmul.mubr.f32.gmra.mxu0 %v11254
      %v11958 = vpop.f32.mrf.mxu0
      %v11959 = vadd.f32 0.0, %v11958
      %v11960 = vpop.f32.mrf.mxu0
      %11961 = vmatprep.mubr.f32.mxu0 0.0
      %11962 = vmatmul.mubr.f32.gmra.mxu0 %v11257
      %v11963 = vpop.f32.mrf.mxu0
      %v11964 = vadd.f32 0.0, %v11963
      %v11965 = vpop.f32.mrf.mxu0
      %11966 = vdwg.mxu0
      %v11967 = vadd.f32 %v10617, %v11329
      %v11968 = vadd.f32 %v10618, %v11334
      %v11969 = vadd.f32 %v10619, %v11339
      %v11970 = vadd.f32 %v10620, %v11344
      %v11971 = vadd.f32 %v10621, %v11349
      %v11972 = vadd.f32 %v10622, %v11354
      %v11973 = vadd.f32 %v10623, %v11359
      %v11974 = vadd.f32 %v10624, %v11364
      %v11975 = vadd.f32 %v10625, %v11369
      %v11976 = vadd.f32 %v10626, %v11374
      %v11977 = vadd.f32 %v10627, %v11379
      %v11978 = vadd.f32 %v10628, %v11384
      %v11979 = vadd.f32 %v10629, %v11389
      %v11980 = vadd.f32 %v10630, %v11394
      %v11981 = vadd.f32 %v10631, %v11399
      %v11982 = vadd.f32 %v10632, %v11404
      %v11983 = vadd.f32 %v10633, %v11409
      %v11984 = vadd.f32 %v10634, %v11414
      %v11985 = vadd.f32 %v10635, %v11419
      %v11986 = vadd.f32 %v10636, %v11424
      %v11987 = vadd.f32 %v10637, %v11429
      %v11988 = vadd.f32 %v10638, %v11434
      %v11989 = vadd.f32 %v10639, %v11439
      %v11990 = vadd.f32 %v10640, %v11444
      %v11991 = vadd.f32 %v10641, %v11449
      %v11992 = vadd.f32 %v10642, %v11454
      %v11993 = vadd.f32 %v10643, %v11459
      %v11994 = vadd.f32 %v10644, %v11464
      %v11995 = vadd.f32 %v10645, %v11469
      %v11996 = vadd.f32 %v10646, %v11474
      %v11997 = vadd.f32 %v10647, %v11479
      %v11998 = vadd.f32 %v10648, %v11484
      %v11999 = vadd.f32 %v10649, %v11489
      %v12000 = vadd.f32 %v10650, %v11494
      %v12001 = vadd.f32 %v10651, %v11499
      %v12002 = vadd.f32 %v10652, %v11504
      %v12003 = vadd.f32 %v10653, %v11509
      %v12004 = vadd.f32 %v10654, %v11514
      %v12005 = vadd.f32 %v10655, %v11519
      %v12006 = vadd.f32 %v10656, %v11524
      %v12007 = vadd.f32 %v10657, %v11529
      %v12008 = vadd.f32 %v10658, %v11534
      %v12009 = vadd.f32 %v10659, %v11539
      %v12010 = vadd.f32 %v10660, %v11544
      %v12011 = vadd.f32 %v10661, %v11549
      %v12012 = vadd.f32 %v10662, %v11554
      %v12013 = vadd.f32 %v10663, %v11559
      %v12014 = vadd.f32 %v10664, %v11564
      %v12015 = vadd.f32 %v10665, %v11569
      %v12016 = vadd.f32 %v10666, %v11574
      %v12017 = vadd.f32 %v10667, %v11579
      %v12018 = vadd.f32 %v10668, %v11584
      %v12019 = vadd.f32 %v10669, %v11589
      %v12020 = vadd.f32 %v10670, %v11594
      %v12021 = vadd.f32 %v10671, %v11599
      %v12022 = vadd.f32 %v10672, %v11604
      %v12023 = vadd.f32 %v10673, %v11609
      %v12024 = vadd.f32 %v10674, %v11614
      %v12025 = vadd.f32 %v10675, %v11619
      %v12026 = vadd.f32 %v10676, %v11624
      %v12027 = vadd.f32 %v10677, %v11629
      %v12028 = vadd.f32 %v10678, %v11634
      %v12029 = vadd.f32 %v10679, %v11639
      %v12030 = vadd.f32 %v10680, %v11644
      %v12031 = vadd.f32 %v10681, %v11649
      %v12032 = vadd.f32 %v10682, %v11654
      %v12033 = vadd.f32 %v10683, %v11659
      %v12034 = vadd.f32 %v10684, %v11664
      %v12035 = vadd.f32 %v10685, %v11669
      %v12036 = vadd.f32 %v10686, %v11674
      %v12037 = vadd.f32 %v10687, %v11679
      %v12038 = vadd.f32 %v10688, %v11684
      %v12039 = vadd.f32 %v10689, %v11689
      %v12040 = vadd.f32 %v10690, %v11694
      %v12041 = vadd.f32 %v10691, %v11699
      %v12042 = vadd.f32 %v10692, %v11704
      %v12043 = vadd.f32 %v10693, %v11709
      %v12044 = vadd.f32 %v10694, %v11714
      %v12045 = vadd.f32 %v10695, %v11719
      %v12046 = vadd.f32 %v10696, %v11724
      %v12047 = vadd.f32 %v10697, %v11729
      %v12048 = vadd.f32 %v10698, %v11734
      %v12049 = vadd.f32 %v10699, %v11739
      %v12050 = vadd.f32 %v10700, %v11744
      %v12051 = vadd.f32 %v10701, %v11749
      %v12052 = vadd.f32 %v10702, %v11754
      %v12053 = vadd.f32 %v10703, %v11759
      %v12054 = vadd.f32 %v10704, %v11764
      %v12055 = vadd.f32 %v10705, %v11769
      %v12056 = vadd.f32 %v10706, %v11774
      %v12057 = vadd.f32 %v10707, %v11779
      %v12058 = vadd.f32 %v10708, %v11784
      %v12059 = vadd.f32 %v10709, %v11789
      %v12060 = vadd.f32 %v10710, %v11794
      %v12061 = vadd.f32 %v10711, %v11799
      %v12062 = vadd.f32 %v10712, %v11804
      %v12063 = vadd.f32 %v10713, %v11809
      %v12064 = vadd.f32 %v10714, %v11814
      %v12065 = vadd.f32 %v10715, %v11819
      %v12066 = vadd.f32 %v10716, %v11824
      %v12067 = vadd.f32 %v10717, %v11829
      %v12068 = vadd.f32 %v10718, %v11834
      %v12069 = vadd.f32 %v10719, %v11839
      %v12070 = vadd.f32 %v10720, %v11844
      %v12071 = vadd.f32 %v10721, %v11849
      %v12072 = vadd.f32 %v10722, %v11854
      %v12073 = vadd.f32 %v10723, %v11859
      %v12074 = vadd.f32 %v10724, %v11864
      %v12075 = vadd.f32 %v10725, %v11869
      %v12076 = vadd.f32 %v10726, %v11874
      %v12077 = vadd.f32 %v10727, %v11879
      %v12078 = vadd.f32 %v10728, %v11884
      %v12079 = vadd.f32 %v10729, %v11889
      %v12080 = vadd.f32 %v10730, %v11894
      %v12081 = vadd.f32 %v10731, %v11899
      %v12082 = vadd.f32 %v10732, %v11904
      %v12083 = vadd.f32 %v10733, %v11909
      %v12084 = vadd.f32 %v10734, %v11914
      %v12085 = vadd.f32 %v10735, %v11919
      %v12086 = vadd.f32 %v10736, %v11924
      %v12087 = vadd.f32 %v10737, %v11929
      %v12088 = vadd.f32 %v10738, %v11934
      %v12089 = vadd.f32 %v10739, %v11939
      %v12090 = vadd.f32 %v10740, %v11944
      %v12091 = vadd.f32 %v10741, %v11949
      %v12092 = vadd.f32 %v10742, %v11954
      %v12093 = vadd.f32 %v10743, %v11959
      %v12094 = vadd.f32 %v10744, %v11964
      %v12095 = vld [vmem:[%s2] sm:$0x1]
      %v12097 = vlaneseq
      %v12098 = vshrl.u32 %v12097, 7
      %v12099 = vsub.s32 0, %v12098
      %v12100 = vrot.slane %v12095, %v12099
      %v12102 = vmul.f32 %v11967, %v12100
      %v12103 = vmul.f32 %v11968, %v12100
      %v12104 = vmul.f32 %v11969, %v12100
      %v12105 = vmul.f32 %v11970, %v12100
      %v12106 = vmul.f32 %v11971, %v12100
      %v12107 = vmul.f32 %v11972, %v12100
      %v12108 = vmul.f32 %v11973, %v12100
      %v12109 = vmul.f32 %v11974, %v12100
      %v12110 = vmul.f32 %v11975, %v12100
      %v12111 = vmul.f32 %v11976, %v12100
      %v12112 = vmul.f32 %v11977, %v12100
      %v12113 = vmul.f32 %v11978, %v12100
      %v12114 = vmul.f32 %v11979, %v12100
      %v12115 = vmul.f32 %v11980, %v12100
      %v12116 = vmul.f32 %v11981, %v12100
      %v12117 = vmul.f32 %v11982, %v12100
      %v12118 = vmul.f32 %v11983, %v12100
      %v12119 = vmul.f32 %v11984, %v12100
      %v12120 = vmul.f32 %v11985, %v12100
      %v12121 = vmul.f32 %v11986, %v12100
      %v12122 = vmul.f32 %v11987, %v12100
      %v12123 = vmul.f32 %v11988, %v12100
      %v12124 = vmul.f32 %v11989, %v12100
      %v12125 = vmul.f32 %v11990, %v12100
      %v12126 = vmul.f32 %v11991, %v12100
      %v12127 = vmul.f32 %v11992, %v12100
      %v12128 = vmul.f32 %v11993, %v12100
      %v12129 = vmul.f32 %v11994, %v12100
      %v12130 = vmul.f32 %v11995, %v12100
      %v12131 = vmul.f32 %v11996, %v12100
      %v12132 = vmul.f32 %v11997, %v12100
      %v12133 = vmul.f32 %v11998, %v12100
      %v12134 = vmul.f32 %v11999, %v12100
      %v12135 = vmul.f32 %v12000, %v12100
      %v12136 = vmul.f32 %v12001, %v12100
      %v12137 = vmul.f32 %v12002, %v12100
      %v12138 = vmul.f32 %v12003, %v12100
      %v12139 = vmul.f32 %v12004, %v12100
      %v12140 = vmul.f32 %v12005, %v12100
      %v12141 = vmul.f32 %v12006, %v12100
      %v12142 = vmul.f32 %v12007, %v12100
      %v12143 = vmul.f32 %v12008, %v12100
      %v12144 = vmul.f32 %v12009, %v12100
      %v12145 = vmul.f32 %v12010, %v12100
      %v12146 = vmul.f32 %v12011, %v12100
      %v12147 = vmul.f32 %v12012, %v12100
      %v12148 = vmul.f32 %v12013, %v12100
      %v12149 = vmul.f32 %v12014, %v12100
      %v12150 = vmul.f32 %v12015, %v12100
      %v12151 = vmul.f32 %v12016, %v12100
      %v12152 = vmul.f32 %v12017, %v12100
      %v12153 = vmul.f32 %v12018, %v12100
      %v12154 = vmul.f32 %v12019, %v12100
      %v12155 = vmul.f32 %v12020, %v12100
      %v12156 = vmul.f32 %v12021, %v12100
      %v12157 = vmul.f32 %v12022, %v12100
      %v12158 = vmul.f32 %v12023, %v12100
      %v12159 = vmul.f32 %v12024, %v12100
      %v12160 = vmul.f32 %v12025, %v12100
      %v12161 = vmul.f32 %v12026, %v12100
      %v12162 = vmul.f32 %v12027, %v12100
      %v12163 = vmul.f32 %v12028, %v12100
      %v12164 = vmul.f32 %v12029, %v12100
      %v12165 = vmul.f32 %v12030, %v12100
      %v12166 = vmul.f32 %v12031, %v12100
      %v12167 = vmul.f32 %v12032, %v12100
      %v12168 = vmul.f32 %v12033, %v12100
      %v12169 = vmul.f32 %v12034, %v12100
      %v12170 = vmul.f32 %v12035, %v12100
      %v12171 = vmul.f32 %v12036, %v12100
      %v12172 = vmul.f32 %v12037, %v12100
      %v12173 = vmul.f32 %v12038, %v12100
      %v12174 = vmul.f32 %v12039, %v12100
      %v12175 = vmul.f32 %v12040, %v12100
      %v12176 = vmul.f32 %v12041, %v12100
      %v12177 = vmul.f32 %v12042, %v12100
      %v12178 = vmul.f32 %v12043, %v12100
      %v12179 = vmul.f32 %v12044, %v12100
      %v12180 = vmul.f32 %v12045, %v12100
      %v12181 = vmul.f32 %v12046, %v12100
      %v12182 = vmul.f32 %v12047, %v12100
      %v12183 = vmul.f32 %v12048, %v12100
      %v12184 = vmul.f32 %v12049, %v12100
      %v12185 = vmul.f32 %v12050, %v12100
      %v12186 = vmul.f32 %v12051, %v12100
      %v12187 = vmul.f32 %v12052, %v12100
      %v12188 = vmul.f32 %v12053, %v12100
      %v12189 = vmul.f32 %v12054, %v12100
      %v12190 = vmul.f32 %v12055, %v12100
      %v12191 = vmul.f32 %v12056, %v12100
      %v12192 = vmul.f32 %v12057, %v12100
      %v12193 = vmul.f32 %v12058, %v12100
      %v12194 = vmul.f32 %v12059, %v12100
      %v12195 = vmul.f32 %v12060, %v12100
      %v12196 = vmul.f32 %v12061, %v12100
      %v12197 = vmul.f32 %v12062, %v12100
      %v12198 = vmul.f32 %v12063, %v12100
      %v12199 = vmul.f32 %v12064, %v12100
      %v12200 = vmul.f32 %v12065, %v12100
      %v12201 = vmul.f32 %v12066, %v12100
      %v12202 = vmul.f32 %v12067, %v12100
      %v12203 = vmul.f32 %v12068, %v12100
      %v12204 = vmul.f32 %v12069, %v12100
      %v12205 = vmul.f32 %v12070, %v12100
      %v12206 = vmul.f32 %v12071, %v12100
      %v12207 = vmul.f32 %v12072, %v12100
      %v12208 = vmul.f32 %v12073, %v12100
      %v12209 = vmul.f32 %v12074, %v12100
      %v12210 = vmul.f32 %v12075, %v12100
      %v12211 = vmul.f32 %v12076, %v12100
      %v12212 = vmul.f32 %v12077, %v12100
      %v12213 = vmul.f32 %v12078, %v12100
      %v12214 = vmul.f32 %v12079, %v12100
      %v12215 = vmul.f32 %v12080, %v12100
      %v12216 = vmul.f32 %v12081, %v12100
      %v12217 = vmul.f32 %v12082, %v12100
      %v12218 = vmul.f32 %v12083, %v12100
      %v12219 = vmul.f32 %v12084, %v12100
      %v12220 = vmul.f32 %v12085, %v12100
      %v12221 = vmul.f32 %v12086, %v12100
      %v12222 = vmul.f32 %v12087, %v12100
      %v12223 = vmul.f32 %v12088, %v12100
      %v12224 = vmul.f32 %v12089, %v12100
      %v12225 = vmul.f32 %v12090, %v12100
      %v12226 = vmul.f32 %v12091, %v12100
      %v12227 = vmul.f32 %v12092, %v12100
      %v12228 = vmul.f32 %v12093, %v12100
      %v12229 = vmul.f32 %v12094, %v12100
      %v12230 = vld [vmem:[%s3] sm:$0x1]
      %v12232 = vlaneseq
      %v12233 = vshrl.u32 %v12232, 7
      %v12234 = vsub.s32 0, %v12233
      %v12235 = vrot.slane %v12230, %v12234
      %v12237 = vadd.f32 %v12102, %v12235
      %v12238 = vadd.f32 %v12103, %v12235
      %v12239 = vadd.f32 %v12104, %v12235
      %v12240 = vadd.f32 %v12105, %v12235
      %v12241 = vadd.f32 %v12106, %v12235
      %v12242 = vadd.f32 %v12107, %v12235
      %v12243 = vadd.f32 %v12108, %v12235
      %v12244 = vadd.f32 %v12109, %v12235
      %v12245 = vadd.f32 %v12110, %v12235
      %v12246 = vadd.f32 %v12111, %v12235
      %v12247 = vadd.f32 %v12112, %v12235
      %v12248 = vadd.f32 %v12113, %v12235
      %v12249 = vadd.f32 %v12114, %v12235
      %v12250 = vadd.f32 %v12115, %v12235
      %v12251 = vadd.f32 %v12116, %v12235
      %v12252 = vadd.f32 %v12117, %v12235
      %v12253 = vadd.f32 %v12118, %v12235
      %v12254 = vadd.f32 %v12119, %v12235
      %v12255 = vadd.f32 %v12120, %v12235
      %v12256 = vadd.f32 %v12121, %v12235
      %v12257 = vadd.f32 %v12122, %v12235
      %v12258 = vadd.f32 %v12123, %v12235
      %v12259 = vadd.f32 %v12124, %v12235
      %v12260 = vadd.f32 %v12125, %v12235
      %v12261 = vadd.f32 %v12126, %v12235
      %v12262 = vadd.f32 %v12127, %v12235
      %v12263 = vadd.f32 %v12128, %v12235
      %v12264 = vadd.f32 %v12129, %v12235
      %v12265 = vadd.f32 %v12130, %v12235
      %v12266 = vadd.f32 %v12131, %v12235
      %v12267 = vadd.f32 %v12132, %v12235
      %v12268 = vadd.f32 %v12133, %v12235
      %v12269 = vadd.f32 %v12134, %v12235
      %v12270 = vadd.f32 %v12135, %v12235
      %v12271 = vadd.f32 %v12136, %v12235
      %v12272 = vadd.f32 %v12137, %v12235
      %v12273 = vadd.f32 %v12138, %v12235
      %v12274 = vadd.f32 %v12139, %v12235
      %v12275 = vadd.f32 %v12140, %v12235
      %v12276 = vadd.f32 %v12141, %v12235
      %v12277 = vadd.f32 %v12142, %v12235
      %v12278 = vadd.f32 %v12143, %v12235
      %v12279 = vadd.f32 %v12144, %v12235
      %v12280 = vadd.f32 %v12145, %v12235
      %v12281 = vadd.f32 %v12146, %v12235
      %v12282 = vadd.f32 %v12147, %v12235
      %v12283 = vadd.f32 %v12148, %v12235
      %v12284 = vadd.f32 %v12149, %v12235
      %v12285 = vadd.f32 %v12150, %v12235
      %v12286 = vadd.f32 %v12151, %v12235
      %v12287 = vadd.f32 %v12152, %v12235
      %v12288 = vadd.f32 %v12153, %v12235
      %v12289 = vadd.f32 %v12154, %v12235
      %v12290 = vadd.f32 %v12155, %v12235
      %v12291 = vadd.f32 %v12156, %v12235
      %v12292 = vadd.f32 %v12157, %v12235
      %v12293 = vadd.f32 %v12158, %v12235
      %v12294 = vadd.f32 %v12159, %v12235
      %v12295 = vadd.f32 %v12160, %v12235
      %v12296 = vadd.f32 %v12161, %v12235
      %v12297 = vadd.f32 %v12162, %v12235
      %v12298 = vadd.f32 %v12163, %v12235
      %v12299 = vadd.f32 %v12164, %v12235
      %v12300 = vadd.f32 %v12165, %v12235
      %v12301 = vadd.f32 %v12166, %v12235
      %v12302 = vadd.f32 %v12167, %v12235
      %v12303 = vadd.f32 %v12168, %v12235
      %v12304 = vadd.f32 %v12169, %v12235
      %v12305 = vadd.f32 %v12170, %v12235
      %v12306 = vadd.f32 %v12171, %v12235
      %v12307 = vadd.f32 %v12172, %v12235
      %v12308 = vadd.f32 %v12173, %v12235
      %v12309 = vadd.f32 %v12174, %v12235
      %v12310 = vadd.f32 %v12175, %v12235
      %v12311 = vadd.f32 %v12176, %v12235
      %v12312 = vadd.f32 %v12177, %v12235
      %v12313 = vadd.f32 %v12178, %v12235
      %v12314 = vadd.f32 %v12179, %v12235
      %v12315 = vadd.f32 %v12180, %v12235
      %v12316 = vadd.f32 %v12181, %v12235
      %v12317 = vadd.f32 %v12182, %v12235
      %v12318 = vadd.f32 %v12183, %v12235
      %v12319 = vadd.f32 %v12184, %v12235
      %v12320 = vadd.f32 %v12185, %v12235
      %v12321 = vadd.f32 %v12186, %v12235
      %v12322 = vadd.f32 %v12187, %v12235
      %v12323 = vadd.f32 %v12188, %v12235
      %v12324 = vadd.f32 %v12189, %v12235
      %v12325 = vadd.f32 %v12190, %v12235
      %v12326 = vadd.f32 %v12191, %v12235
      %v12327 = vadd.f32 %v12192, %v12235
      %v12328 = vadd.f32 %v12193, %v12235
      %v12329 = vadd.f32 %v12194, %v12235
      %v12330 = vadd.f32 %v12195, %v12235
      %v12331 = vadd.f32 %v12196, %v12235
      %v12332 = vadd.f32 %v12197, %v12235
      %v12333 = vadd.f32 %v12198, %v12235
      %v12334 = vadd.f32 %v12199, %v12235
      %v12335 = vadd.f32 %v12200, %v12235
      %v12336 = vadd.f32 %v12201, %v12235
      %v12337 = vadd.f32 %v12202, %v12235
      %v12338 = vadd.f32 %v12203, %v12235
      %v12339 = vadd.f32 %v12204, %v12235
      %v12340 = vadd.f32 %v12205, %v12235
      %v12341 = vadd.f32 %v12206, %v12235
      %v12342 = vadd.f32 %v12207, %v12235
      %v12343 = vadd.f32 %v12208, %v12235
      %v12344 = vadd.f32 %v12209, %v12235
      %v12345 = vadd.f32 %v12210, %v12235
      %v12346 = vadd.f32 %v12211, %v12235
      %v12347 = vadd.f32 %v12212, %v12235
      %v12348 = vadd.f32 %v12213, %v12235
      %v12349 = vadd.f32 %v12214, %v12235
      %v12350 = vadd.f32 %v12215, %v12235
      %v12351 = vadd.f32 %v12216, %v12235
      %v12352 = vadd.f32 %v12217, %v12235
      %v12353 = vadd.f32 %v12218, %v12235
      %v12354 = vadd.f32 %v12219, %v12235
      %v12355 = vadd.f32 %v12220, %v12235
      %v12356 = vadd.f32 %v12221, %v12235
      %v12357 = vadd.f32 %v12222, %v12235
      %v12358 = vadd.f32 %v12223, %v12235
      %v12359 = vadd.f32 %v12224, %v12235
      %v12360 = vadd.f32 %v12225, %v12235
      %v12361 = vadd.f32 %v12226, %v12235
      %v12362 = vadd.f32 %v12227, %v12235
      %v12363 = vadd.f32 %v12228, %v12235
      %v12364 = vadd.f32 %v12229, %v12235
      %v12365 = vmax.f32 %v12237, 0.0
      %v12366 = vmax.f32 %v12238, 0.0
      %v12367 = vmax.f32 %v12239, 0.0
      %v12368 = vmax.f32 %v12240, 0.0
      %v12369 = vmax.f32 %v12241, 0.0
      %v12370 = vmax.f32 %v12242, 0.0
      %v12371 = vmax.f32 %v12243, 0.0
      %v12372 = vmax.f32 %v12244, 0.0
      %v12373 = vmax.f32 %v12245, 0.0
      %v12374 = vmax.f32 %v12246, 0.0
      %v12375 = vmax.f32 %v12247, 0.0
      %v12376 = vmax.f32 %v12248, 0.0
      %v12377 = vmax.f32 %v12249, 0.0
      %v12378 = vmax.f32 %v12250, 0.0
      %v12379 = vmax.f32 %v12251, 0.0
      %v12380 = vmax.f32 %v12252, 0.0
      %v12381 = vmax.f32 %v12253, 0.0
      %v12382 = vmax.f32 %v12254, 0.0
      %v12383 = vmax.f32 %v12255, 0.0
      %v12384 = vmax.f32 %v12256, 0.0
      %v12385 = vmax.f32 %v12257, 0.0
      %v12386 = vmax.f32 %v12258, 0.0
      %v12387 = vmax.f32 %v12259, 0.0
      %v12388 = vmax.f32 %v12260, 0.0
      %v12389 = vmax.f32 %v12261, 0.0
      %v12390 = vmax.f32 %v12262, 0.0
      %v12391 = vmax.f32 %v12263, 0.0
      %v12392 = vmax.f32 %v12264, 0.0
      %v12393 = vmax.f32 %v12265, 0.0
      %v12394 = vmax.f32 %v12266, 0.0
      %v12395 = vmax.f32 %v12267, 0.0
      %v12396 = vmax.f32 %v12268, 0.0
      %v12397 = vmax.f32 %v12269, 0.0
      %v12398 = vmax.f32 %v12270, 0.0
      %v12399 = vmax.f32 %v12271, 0.0
      %v12400 = vmax.f32 %v12272, 0.0
      %v12401 = vmax.f32 %v12273, 0.0
      %v12402 = vmax.f32 %v12274, 0.0
      %v12403 = vmax.f32 %v12275, 0.0
      %v12404 = vmax.f32 %v12276, 0.0
      %v12405 = vmax.f32 %v12277, 0.0
      %v12406 = vmax.f32 %v12278, 0.0
      %v12407 = vmax.f32 %v12279, 0.0
      %v12408 = vmax.f32 %v12280, 0.0
      %v12409 = vmax.f32 %v12281, 0.0
      %v12410 = vmax.f32 %v12282, 0.0
      %v12411 = vmax.f32 %v12283, 0.0
      %v12412 = vmax.f32 %v12284, 0.0
      %v12413 = vmax.f32 %v12285, 0.0
      %v12414 = vmax.f32 %v12286, 0.0
      %v12415 = vmax.f32 %v12287, 0.0
      %v12416 = vmax.f32 %v12288, 0.0
      %v12417 = vmax.f32 %v12289, 0.0
      %v12418 = vmax.f32 %v12290, 0.0
      %v12419 = vmax.f32 %v12291, 0.0
      %v12420 = vmax.f32 %v12292, 0.0
      %v12421 = vmax.f32 %v12293, 0.0
      %v12422 = vmax.f32 %v12294, 0.0
      %v12423 = vmax.f32 %v12295, 0.0
      %v12424 = vmax.f32 %v12296, 0.0
      %v12425 = vmax.f32 %v12297, 0.0
      %v12426 = vmax.f32 %v12298, 0.0
      %v12427 = vmax.f32 %v12299, 0.0
      %v12428 = vmax.f32 %v12300, 0.0
      %v12429 = vmax.f32 %v12301, 0.0
      %v12430 = vmax.f32 %v12302, 0.0
      %v12431 = vmax.f32 %v12303, 0.0
      %v12432 = vmax.f32 %v12304, 0.0
      %v12433 = vmax.f32 %v12305, 0.0
      %v12434 = vmax.f32 %v12306, 0.0
      %v12435 = vmax.f32 %v12307, 0.0
      %v12436 = vmax.f32 %v12308, 0.0
      %v12437 = vmax.f32 %v12309, 0.0
      %v12438 = vmax.f32 %v12310, 0.0
      %v12439 = vmax.f32 %v12311, 0.0
      %v12440 = vmax.f32 %v12312, 0.0
      %v12441 = vmax.f32 %v12313, 0.0
      %v12442 = vmax.f32 %v12314, 0.0
      %v12443 = vmax.f32 %v12315, 0.0
      %v12444 = vmax.f32 %v12316, 0.0
      %v12445 = vmax.f32 %v12317, 0.0
      %v12446 = vmax.f32 %v12318, 0.0
      %v12447 = vmax.f32 %v12319, 0.0
      %v12448 = vmax.f32 %v12320, 0.0
      %v12449 = vmax.f32 %v12321, 0.0
      %v12450 = vmax.f32 %v12322, 0.0
      %v12451 = vmax.f32 %v12323, 0.0
      %v12452 = vmax.f32 %v12324, 0.0
      %v12453 = vmax.f32 %v12325, 0.0
      %v12454 = vmax.f32 %v12326, 0.0
      %v12455 = vmax.f32 %v12327, 0.0
      %v12456 = vmax.f32 %v12328, 0.0
      %v12457 = vmax.f32 %v12329, 0.0
      %v12458 = vmax.f32 %v12330, 0.0
      %v12459 = vmax.f32 %v12331, 0.0
      %v12460 = vmax.f32 %v12332, 0.0
      %v12461 = vmax.f32 %v12333, 0.0
      %v12462 = vmax.f32 %v12334, 0.0
      %v12463 = vmax.f32 %v12335, 0.0
      %v12464 = vmax.f32 %v12336, 0.0
      %v12465 = vmax.f32 %v12337, 0.0
      %v12466 = vmax.f32 %v12338, 0.0
      %v12467 = vmax.f32 %v12339, 0.0
      %v12468 = vmax.f32 %v12340, 0.0
      %v12469 = vmax.f32 %v12341, 0.0
      %v12470 = vmax.f32 %v12342, 0.0
      %v12471 = vmax.f32 %v12343, 0.0
      %v12472 = vmax.f32 %v12344, 0.0
      %v12473 = vmax.f32 %v12345, 0.0
      %v12474 = vmax.f32 %v12346, 0.0
      %v12475 = vmax.f32 %v12347, 0.0
      %v12476 = vmax.f32 %v12348, 0.0
      %v12477 = vmax.f32 %v12349, 0.0
      %v12478 = vmax.f32 %v12350, 0.0
      %v12479 = vmax.f32 %v12351, 0.0
      %v12480 = vmax.f32 %v12352, 0.0
      %v12481 = vmax.f32 %v12353, 0.0
      %v12482 = vmax.f32 %v12354, 0.0
      %v12483 = vmax.f32 %v12355, 0.0
      %v12484 = vmax.f32 %v12356, 0.0
      %v12485 = vmax.f32 %v12357, 0.0
      %v12486 = vmax.f32 %v12358, 0.0
      %v12487 = vmax.f32 %v12359, 0.0
      %v12488 = vmax.f32 %v12360, 0.0
      %v12489 = vmax.f32 %v12361, 0.0
      %v12490 = vmax.f32 %v12362, 0.0
      %v12491 = vmax.f32 %v12363, 0.0
      %v12492 = vmax.f32 %v12364, 0.0
      %vm12493 = vcmask 64512
      %12494 = vst.msk [vmem:[%s197] sm:$0xff] %vm12493, %v12365
      %12495 = vst.msk [vmem:[%s197 + $0x8] sm:$0xff] %vm12493, %v12366
      %12496 = vst.msk [vmem:[%s197 + $0x10] sm:$0xff] %vm12493, %v12367
      %12497 = vst.msk [vmem:[%s197 + $0x18] sm:$0xff] %vm12493, %v12368
      %12498 = vst.msk [vmem:[%s197 + $0x20] sm:$0xff] %vm12493, %v12369
      %12499 = vst.msk [vmem:[%s197 + $0x28] sm:$0xff] %vm12493, %v12370
      %12500 = vst.msk [vmem:[%s197 + $0x30] sm:$0xff] %vm12493, %v12371
      %12501 = vst.msk [vmem:[%s197 + $0x38] sm:$0xff] %vm12493, %v12372
      %12502 = vst.msk [vmem:[%s197 + $0x40] sm:$0xff] %vm12493, %v12373
      %12503 = vst.msk [vmem:[%s197 + $0x48] sm:$0xff] %vm12493, %v12374
      %12504 = vst.msk [vmem:[%s197 + $0x50] sm:$0xff] %vm12493, %v12375
      %12505 = vst.msk [vmem:[%s197 + $0x58] sm:$0xff] %vm12493, %v12376
      %12506 = vst.msk [vmem:[%s197 + $0x60] sm:$0xff] %vm12493, %v12377
      %12507 = vst.msk [vmem:[%s197 + $0x68] sm:$0xff] %vm12493, %v12378
      %12508 = vst.msk [vmem:[%s197 + $0x70] sm:$0xff] %vm12493, %v12379
      %12509 = vst.msk [vmem:[%s197 + $0x78] sm:$0xff] %vm12493, %v12380
      %12510 = vst.msk [vmem:[%s197 + $0x80] sm:$0xff] %vm12493, %v12381
      %12511 = vst.msk [vmem:[%s197 + $0x88] sm:$0xff] %vm12493, %v12382
      %12512 = vst.msk [vmem:[%s197 + $0x90] sm:$0xff] %vm12493, %v12383
      %12513 = vst.msk [vmem:[%s197 + $0x98] sm:$0xff] %vm12493, %v12384
      %12514 = vst.msk [vmem:[%s197 + $0xa0] sm:$0xff] %vm12493, %v12385
      %12515 = vst.msk [vmem:[%s197 + $0xa8] sm:$0xff] %vm12493, %v12386
      %12516 = vst.msk [vmem:[%s197 + $0xb0] sm:$0xff] %vm12493, %v12387
      %12517 = vst.msk [vmem:[%s197 + $0xb8] sm:$0xff] %vm12493, %v12388
      %12518 = vst.msk [vmem:[%s197 + $0xc0] sm:$0xff] %vm12493, %v12389
      %12519 = vst.msk [vmem:[%s197 + $0xc8] sm:$0xff] %vm12493, %v12390
      %12520 = vst.msk [vmem:[%s197 + $0xd0] sm:$0xff] %vm12493, %v12391
      %12521 = vst.msk [vmem:[%s197 + $0xd8] sm:$0xff] %vm12493, %v12392
      %12522 = vst.msk [vmem:[%s197 + $0xe0] sm:$0xff] %vm12493, %v12393
      %12523 = vst.msk [vmem:[%s197 + $0xe8] sm:$0xff] %vm12493, %v12394
      %12524 = vst.msk [vmem:[%s197 + $0xf0] sm:$0xff] %vm12493, %v12395
      %12525 = vst.msk [vmem:[%s197 + $0xf8] sm:$0xff] %vm12493, %v12396
      %12526 = vst.msk [vmem:[%s197 + $0x100] sm:$0xff] %vm12493, %v12397
      %12527 = vst.msk [vmem:[%s197 + $0x108] sm:$0xff] %vm12493, %v12398
      %12528 = vst.msk [vmem:[%s197 + $0x110] sm:$0xff] %vm12493, %v12399
      %12529 = vst.msk [vmem:[%s197 + $0x118] sm:$0xff] %vm12493, %v12400
      %12530 = vst.msk [vmem:[%s197 + $0x120] sm:$0xff] %vm12493, %v12401
      %12531 = vst.msk [vmem:[%s197 + $0x128] sm:$0xff] %vm12493, %v12402
      %12532 = vst.msk [vmem:[%s197 + $0x130] sm:$0xff] %vm12493, %v12403
      %12533 = vst.msk [vmem:[%s197 + $0x138] sm:$0xff] %vm12493, %v12404
      %12534 = vst.msk [vmem:[%s197 + $0x140] sm:$0xff] %vm12493, %v12405
      %12535 = vst.msk [vmem:[%s197 + $0x148] sm:$0xff] %vm12493, %v12406
      %12536 = vst.msk [vmem:[%s197 + $0x150] sm:$0xff] %vm12493, %v12407
      %12537 = vst.msk [vmem:[%s197 + $0x158] sm:$0xff] %vm12493, %v12408
      %12538 = vst.msk [vmem:[%s197 + $0x160] sm:$0xff] %vm12493, %v12409
      %12539 = vst.msk [vmem:[%s197 + $0x168] sm:$0xff] %vm12493, %v12410
      %12540 = vst.msk [vmem:[%s197 + $0x170] sm:$0xff] %vm12493, %v12411
      %12541 = vst.msk [vmem:[%s197 + $0x178] sm:$0xff] %vm12493, %v12412
      %12542 = vst.msk [vmem:[%s197 + $0x180] sm:$0xff] %vm12493, %v12413
      %12543 = vst.msk [vmem:[%s197 + $0x188] sm:$0xff] %vm12493, %v12414
      %12544 = vst.msk [vmem:[%s197 + $0x190] sm:$0xff] %vm12493, %v12415
      %12545 = vst.msk [vmem:[%s197 + $0x198] sm:$0xff] %vm12493, %v12416
      %12546 = vst.msk [vmem:[%s197 + $0x1a0] sm:$0xff] %vm12493, %v12417
      %12547 = vst.msk [vmem:[%s197 + $0x1a8] sm:$0xff] %vm12493, %v12418
      %12548 = vst.msk [vmem:[%s197 + $0x1b0] sm:$0xff] %vm12493, %v12419
      %12549 = vst.msk [vmem:[%s197 + $0x1b8] sm:$0xff] %vm12493, %v12420
      %12550 = vst.msk [vmem:[%s197 + $0x1c0] sm:$0xff] %vm12493, %v12421
      %12551 = vst.msk [vmem:[%s197 + $0x1c8] sm:$0xff] %vm12493, %v12422
      %12552 = vst.msk [vmem:[%s197 + $0x1d0] sm:$0xff] %vm12493, %v12423
      %12553 = vst.msk [vmem:[%s197 + $0x1d8] sm:$0xff] %vm12493, %v12424
      %12554 = vst.msk [vmem:[%s197 + $0x1e0] sm:$0xff] %vm12493, %v12425
      %12555 = vst.msk [vmem:[%s197 + $0x1e8] sm:$0xff] %vm12493, %v12426
      %12556 = vst.msk [vmem:[%s197 + $0x1f0] sm:$0xff] %vm12493, %v12427
      %12557 = vst.msk [vmem:[%s197 + $0x1f8] sm:$0xff] %vm12493, %v12428
      %12558 = vst.msk [vmem:[%s197 + $0x200] sm:$0xff] %vm12493, %v12429
      %12559 = vst.msk [vmem:[%s197 + $0x208] sm:$0xff] %vm12493, %v12430
      %12560 = vst.msk [vmem:[%s197 + $0x210] sm:$0xff] %vm12493, %v12431
      %12561 = vst.msk [vmem:[%s197 + $0x218] sm:$0xff] %vm12493, %v12432
      %12562 = vst.msk [vmem:[%s197 + $0x220] sm:$0xff] %vm12493, %v12433
      %12563 = vst.msk [vmem:[%s197 + $0x228] sm:$0xff] %vm12493, %v12434
      %12564 = vst.msk [vmem:[%s197 + $0x230] sm:$0xff] %vm12493, %v12435
      %12565 = vst.msk [vmem:[%s197 + $0x238] sm:$0xff] %vm12493, %v12436
      %12566 = vst.msk [vmem:[%s197 + $0x240] sm:$0xff] %vm12493, %v12437
      %12567 = vst.msk [vmem:[%s197 + $0x248] sm:$0xff] %vm12493, %v12438
      %12568 = vst.msk [vmem:[%s197 + $0x250] sm:$0xff] %vm12493, %v12439
      %12569 = vst.msk [vmem:[%s197 + $0x258] sm:$0xff] %vm12493, %v12440
      %12570 = vst.msk [vmem:[%s197 + $0x260] sm:$0xff] %vm12493, %v12441
      %12571 = vst.msk [vmem:[%s197 + $0x268] sm:$0xff] %vm12493, %v12442
      %12572 = vst.msk [vmem:[%s197 + $0x270] sm:$0xff] %vm12493, %v12443
      %12573 = vst.msk [vmem:[%s197 + $0x278] sm:$0xff] %vm12493, %v12444
      %12574 = vst.msk [vmem:[%s197 + $0x280] sm:$0xff] %vm12493, %v12445
      %12575 = vst.msk [vmem:[%s197 + $0x288] sm:$0xff] %vm12493, %v12446
      %12576 = vst.msk [vmem:[%s197 + $0x290] sm:$0xff] %vm12493, %v12447
      %12577 = vst.msk [vmem:[%s197 + $0x298] sm:$0xff] %vm12493, %v12448
      %12578 = vst.msk [vmem:[%s197 + $0x2a0] sm:$0xff] %vm12493, %v12449
      %12579 = vst.msk [vmem:[%s197 + $0x2a8] sm:$0xff] %vm12493, %v12450
      %12580 = vst.msk [vmem:[%s197 + $0x2b0] sm:$0xff] %vm12493, %v12451
      %12581 = vst.msk [vmem:[%s197 + $0x2b8] sm:$0xff] %vm12493, %v12452
      %12582 = vst.msk [vmem:[%s197 + $0x2c0] sm:$0xff] %vm12493, %v12453
      %12583 = vst.msk [vmem:[%s197 + $0x2c8] sm:$0xff] %vm12493, %v12454
      %12584 = vst.msk [vmem:[%s197 + $0x2d0] sm:$0xff] %vm12493, %v12455
      %12585 = vst.msk [vmem:[%s197 + $0x2d8] sm:$0xff] %vm12493, %v12456
      %12586 = vst.msk [vmem:[%s197 + $0x2e0] sm:$0xff] %vm12493, %v12457
      %12587 = vst.msk [vmem:[%s197 + $0x2e8] sm:$0xff] %vm12493, %v12458
      %12588 = vst.msk [vmem:[%s197 + $0x2f0] sm:$0xff] %vm12493, %v12459
      %12589 = vst.msk [vmem:[%s197 + $0x2f8] sm:$0xff] %vm12493, %v12460
      %12590 = vst.msk [vmem:[%s197 + $0x300] sm:$0xff] %vm12493, %v12461
      %12591 = vst.msk [vmem:[%s197 + $0x308] sm:$0xff] %vm12493, %v12462
      %12592 = vst.msk [vmem:[%s197 + $0x310] sm:$0xff] %vm12493, %v12463
      %12593 = vst.msk [vmem:[%s197 + $0x318] sm:$0xff] %vm12493, %v12464
      %12594 = vst.msk [vmem:[%s197 + $0x320] sm:$0xff] %vm12493, %v12465
      %12595 = vst.msk [vmem:[%s197 + $0x328] sm:$0xff] %vm12493, %v12466
      %12596 = vst.msk [vmem:[%s197 + $0x330] sm:$0xff] %vm12493, %v12467
      %12597 = vst.msk [vmem:[%s197 + $0x338] sm:$0xff] %vm12493, %v12468
      %12598 = vst.msk [vmem:[%s197 + $0x340] sm:$0xff] %vm12493, %v12469
      %12599 = vst.msk [vmem:[%s197 + $0x348] sm:$0xff] %vm12493, %v12470
      %12600 = vst.msk [vmem:[%s197 + $0x350] sm:$0xff] %vm12493, %v12471
      %12601 = vst.msk [vmem:[%s197 + $0x358] sm:$0xff] %vm12493, %v12472
      %12602 = vst.msk [vmem:[%s197 + $0x360] sm:$0xff] %vm12493, %v12473
      %12603 = vst.msk [vmem:[%s197 + $0x368] sm:$0xff] %vm12493, %v12474
      %12604 = vst.msk [vmem:[%s197 + $0x370] sm:$0xff] %vm12493, %v12475
      %12605 = vst.msk [vmem:[%s197 + $0x378] sm:$0xff] %vm12493, %v12476
      %12606 = vst.msk [vmem:[%s197 + $0x380] sm:$0xff] %vm12493, %v12477
      %12607 = vst.msk [vmem:[%s197 + $0x388] sm:$0xff] %vm12493, %v12478
      %12608 = vst.msk [vmem:[%s197 + $0x390] sm:$0xff] %vm12493, %v12479
      %12609 = vst.msk [vmem:[%s197 + $0x398] sm:$0xff] %vm12493, %v12480
      %12610 = vst.msk [vmem:[%s197 + $0x3a0] sm:$0xff] %vm12493, %v12481
      %12611 = vst.msk [vmem:[%s197 + $0x3a8] sm:$0xff] %vm12493, %v12482
      %12612 = vst.msk [vmem:[%s197 + $0x3b0] sm:$0xff] %vm12493, %v12483
      %12613 = vst.msk [vmem:[%s197 + $0x3b8] sm:$0xff] %vm12493, %v12484
      %12614 = vst.msk [vmem:[%s197 + $0x3c0] sm:$0xff] %vm12493, %v12485
      %12615 = vst.msk [vmem:[%s197 + $0x3c8] sm:$0xff] %vm12493, %v12486
      %12616 = vst.msk [vmem:[%s197 + $0x3d0] sm:$0xff] %vm12493, %v12487
      %12617 = vst.msk [vmem:[%s197 + $0x3d8] sm:$0xff] %vm12493, %v12488
      %12618 = vst.msk [vmem:[%s197 + $0x3e0] sm:$0xff] %vm12493, %v12489
      %12619 = vst.msk [vmem:[%s197 + $0x3e8] sm:$0xff] %vm12493, %v12490
      %12620 = vst.msk [vmem:[%s197 + $0x3f0] sm:$0xff] %vm12493, %v12491
      %12621 = vst.msk [vmem:[%s197 + $0x3f8] sm:$0xff] %vm12493, %v12492
      %p12622 = scmp.lt.s32.totalorder %s15, 1
      %s12623 = scalar_select %p12622, %s15, 1
      %s12624 = smul.addr %s12623, 128
      %s12625 = smul.addr %s12624, 8
      %s12626 = scalar_lea.vmem %s4, %s12625
      // Predicated region
      $region37: #{upsamp_block.3} parent=35 // pred_check
        %p12627 = pneg %p122
      $region38: #{upsamp_block.3} parent=35 // pred_check_branch
        %12629 = sbr.rel (%p12627) target = $region40
      $region39: #{upsamp_block.3} parent=35 // pred_region
        _
      $region40: #{upsamp_block.3} parent=35 // pred_fallthru
        _
    $region36: #{upsamp_block.3} parent=5 // pred_fallthru
      _
    %p12630 = scmp.le.s32.totalorder 2, %s10
    // Predicated region
    $region41: #{upsamp_block.3} parent=5 // pred_check
      %p12631 = pneg %p12630
    $region42: #{upsamp_block.3} parent=5 // pred_check_branch
      %12633 = sbr.rel (%p12631) target = $region44
    $region43: #{upsamp_block.3} parent=5 // pred_region
      %s12634 = ssub.s32 %s10, 2
      // Predicated region
      $region45: #{upsamp_block.3} parent=43 // pred_check
        %p12635 = pneg %p128
      $region46: #{upsamp_block.3} parent=43 // pred_check_branch
        %12637 = sbr.rel (%p12635) target = $region48
      $region47: #{upsamp_block.3} parent=43 // pred_region
        %p12638 = scmp.lt.s32.totalorder %s16, 1
        %s12639 = scalar_select %p12638, %s16, 1
        %s12640 = smul.addr %s12639, 128
        %s12641 = smul.addr %s12640, 8
        %s12642 = scalar_lea.vmem %s4, %s12641
      $region48: #{upsamp_block.3} parent=43 // pred_fallthru
        _
    $region44: #{upsamp_block.3} parent=5 // pred_fallthru
      _
  $region6: #{upsamp_block.3} parent=0 // loop_footer
    %s14 = sadd.s32 1, %s10
  $region7: #{upsamp_block.3} parent=0 // loop_footer_branch
    %9 = sbr.rel target = $region3
  $region8: #{upsamp_block.3} parent=0 // loop_exit
    _

</llo_original>
